<compile_context>
chip_gen: v7x
topology: tpu7x:2x2x1
jax: 0.10.0
libtpu: 0.0.40
codegen_flags: <defaults>
</compile_context>

<pallas_src>
import functools

import numpy as np
import jax
import jax.numpy as jnp
from jax.experimental import pallas as pl
from jax.experimental.pallas import tpu as pltpu


# ---------------------------------------------------------------------------
# small helpers
# ---------------------------------------------------------------------------
def _round_up(x, m):
    return ((x + m - 1) // m) * m


def _pick_tile(total, candidates, bytes_per_row=0, vmem_budget=8 << 20,
               prefer_even_steps=False):
    """Largest candidate dividing `total` that fits a per-step VMEM budget.
    Optionally prefer a choice giving an even number of grid steps so v7x's
    two TensorCores get balanced work on a 'parallel' axis."""
    divs = [c for c in candidates if c <= total and total % c == 0]
    if not divs:
        return total
    fits = [c for c in divs if c * bytes_per_row <= vmem_budget] or [min(divs)]
    if prefer_even_steps:
        even = [c for c in fits if (total // c) % 2 == 0]
        if even:
            return max(even)
    return max(fits)


# ---------------------------------------------------------------------------
# Kernel 1: 3-NN inverse-distance interpolation, tiled over query points.
#   xyz1_ref : [1, TILE_N, 3]    query positions (streams)
#   xyz2_ref : [1, 3, Sp]        source positions, padded cols = far away
#   pts2_ref : [1, Sp, Dp] bf16  source features, zero-padded rows/cols
#   p1_ref   : [1, TILE_N, D1]   (optional) skip features, fused into output
#   out_ref  : [1, TILE_N, Dp] bf16
# ---------------------------------------------------------------------------
def _interp_compute(xyz1_ref, xyz2_ref, pts2_ref, p1_ref, out_ref, d1, d2):
    x1 = xyz1_ref[0].astype(jnp.float32)          # [TN, 3]
    x2 = xyz2_ref[0].astype(jnp.float32)          # [3, Sp]
    p2 = pts2_ref[0]                              # [Sp, Dp] bf16
    tn = x1.shape[0]
    sp = x2.shape[1]
    dp = p2.shape[1]

    # Squared pairwise distance as 3 unrolled VPU FMAs on dense [TN, Sp] tiles
    # (cancellation-free, never negative). Padded columns have huge coords ->
    # distance ~3e12, never selected while real points exist.
    d = jnp.zeros((tn, sp), jnp.float32)
    for c in range(x2.shape[0]):
        diff = x1[:, c:c + 1] - x2[c:c + 1, :]
        d = d + diff * diff

    col = jax.lax.broadcasted_iota(jnp.int32, (tn, sp), 1)

    # 3 nearest neighbours -> sparse inverse-distance weight matrix [TN, Sp]
    # (equivalent to index_points(points2, idx) * weight, without a gather).
    w_acc = jnp.zeros((tn, sp), jnp.float32)
    r_sum = jnp.zeros((tn, 1), jnp.float32)
    for _ in range(3):
        mn = jnp.min(d, axis=-1, keepdims=True)                       # [TN,1]
        first = jnp.min(jnp.where(d == mn, col, sp), axis=-1, keepdims=True)
        sel = col == first                                            # one-hot
        r = 1.0 / (mn + 1e-8)                                         # [TN,1]
        w_acc = jnp.where(sel, r, w_acc)      # column was untouched before
        r_sum = r_sum + r
        d = jnp.where(sel, jnp.float32(3.0e38), d)                    # mask out

    # normalize with an EUP reciprocal + multiply (no [TN,Sp] divide).
    inv = pl.reciprocal(r_sum, approx=True)
    weight = (w_acc * inv).astype(jnp.bfloat16)                       # [TN,Sp]
    interp = jnp.dot(weight, p2, preferred_element_type=jnp.float32)  # [TN,Dp]

    if d1 > 0:
        # Place points1 into output columns d2..d2+d1 via a tiny constant
        # selection matmul (full-tile dense ops only; cols >= d2 of `interp`
        # are exactly zero because pts2 feature columns there are zero).
        p1 = p1_ref[0].astype(jnp.bfloat16)                           # [TN,D1]
        row = jax.lax.broadcasted_iota(jnp.int32, (d1, dp), 0)
        lane = jax.lax.broadcasted_iota(jnp.int32, (d1, dp), 1)
        emb = (lane == row + d2).astype(jnp.bfloat16)                 # [D1,Dp]
        interp = interp + jnp.dot(p1, emb, preferred_element_type=jnp.float32)

    out_ref[0] = interp.astype(out_ref.dtype)


def _make_interp_kernel(d1, d2):
    if d1 > 0:
        def kernel(xyz1_ref, xyz2_ref, pts2_ref, p1_ref, out_ref):
            _interp_compute(xyz1_ref, xyz2_ref, pts2_ref, p1_ref, out_ref, d1, d2)
        return kernel

    def kernel(xyz1_ref, xyz2_ref, pts2_ref, out_ref):
        _interp_compute(xyz1_ref, xyz2_ref, pts2_ref, None, out_ref, d1, d2)
    return kernel


def _interp_pallas(xyz1_nlc, xyz2_pad, pts2_pad, p1_nlc, d2, d1):
    B, N, C = xyz1_nlc.shape
    Sp = xyz2_pad.shape[2]
    Dp = pts2_pad.shape[2]
    # rough live working-set bytes per query point (f32 temporaries dominate)
    row_bytes = Sp * 4 * 6 + Dp * (4 + 2 * 2) + (C + d1) * 4 * 2
    tile_n = _pick_tile(N, (1024, 512, 256, 128), row_bytes)
    nt = N // tile_n

    in_specs = [
        pl.BlockSpec((1, tile_n, C), lambda b, n: (b, n, 0)),   # streams
        pl.BlockSpec((1, C, Sp), lambda b, n: (b, 0, 0)),       # resident
        pl.BlockSpec((1, Sp, Dp), lambda b, n: (b, 0, 0)),      # resident
    ]
    args = [xyz1_nlc, xyz2_pad, pts2_pad]
    if d1 > 0:
        in_specs.append(pl.BlockSpec((1, tile_n, d1), lambda b, n: (b, n, 0)))
        args.append(p1_nlc)

    return pl.pallas_call(
        _make_interp_kernel(d1, d2),
        out_shape=jax.ShapeDtypeStruct((B, N, Dp), jnp.bfloat16),
        grid=(B, nt),
        in_specs=in_specs,
        out_specs=pl.BlockSpec((1, tile_n, Dp), lambda b, n: (b, n, 0)),
        compiler_params=pltpu.CompilerParams(
            dimension_semantics=("parallel", "parallel")),
    )(*args)


# ---------------------------------------------------------------------------
# Kernel set 2: tiled shared-MLP layers with two-pass BatchNorm.
# Matmuls run on bf16 operands (f32 accumulate); per-tile BN partial stats
# (sum / sum-of-squares) are computed from the f32 matmul result and emitted
# as two lane-dense [1, Cp] outputs; the normalize+ReLU of layer i is fused
# into layer i+1's matmul so intermediates do one (bf16) HBM round trip.
# ---------------------------------------------------------------------------
def _matmul_stats_kernel(x_ref, w_ref, y_ref, s_ref, q_ref):
    y = jnp.dot(x_ref[...], w_ref[...], preferred_element_type=jnp.float32)
    y_ref[...] = y.astype(y_ref.dtype)
    s_ref[...] = jnp.sum(y, axis=0, keepdims=True)
    q_ref[...] = jnp.sum(y * y, axis=0, keepdims=True)


def _bn_relu_matmul_stats_kernel(x_ref, sc_ref, sh_ref, w_ref, y_ref, s_ref, q_ref):
    a = x_ref[...].astype(jnp.float32) * sc_ref[...] + sh_ref[...]   # f32 VPU
    a = jnp.maximum(a, 0.0).astype(jnp.bfloat16)                     # MXU feed
    y = jnp.dot(a, w_ref[...], preferred_element_type=jnp.float32)
    y_ref[...] = y.astype(y_ref.dtype)
    s_ref[...] = jnp.sum(y, axis=0, keepdims=True)
    q_ref[...] = jnp.sum(y * y, axis=0, keepdims=True)


def _bn_relu_ncw_kernel(x_ref, sc_ref, sh_ref, o_ref, *, c_out):
    a = jnp.maximum(
        x_ref[...].astype(jnp.float32) * sc_ref[...] + sh_ref[...], 0.0)
    a_t = jnp.transpose(a)                      # [Cp, TILE] via XLU
    o_ref[0] = a_t[:c_out, :].astype(o_ref.dtype)   # lane-dense NCW store


def _matmul_stats_pallas(x, w, tile_m):
    M, cin = x.shape
    cout = w.shape[1]
    mt = M // tile_m
    return pl.pallas_call(
        _matmul_stats_kernel,
        out_shape=(jax.ShapeDtypeStruct((M, cout), jnp.bfloat16),
                   jax.ShapeDtypeStruct((mt, cout), jnp.float32),
                   jax.ShapeDtypeStruct((mt, cout), jnp.float32)),
        grid=(mt,),
        in_specs=[pl.BlockSpec((tile_m, cin), lambda i: (i, 0)),
                  pl.BlockSpec((cin, cout), lambda i: (0, 0))],
        out_specs=(pl.BlockSpec((tile_m, cout), lambda i: (i, 0)),
                   pl.BlockSpec((1, cout), lambda i: (i, 0)),
                   pl.BlockSpec((1, cout), lambda i: (i, 0))),
        compiler_params=pltpu.CompilerParams(dimension_semantics=("parallel",)),
    )(x, w)


def _bn_relu_matmul_pallas(y_prev, scale, shift, w, tile_m):
    M, cin = y_prev.shape
    cout = w.shape[1]
    mt = M // tile_m
    return pl.pallas_call(
        _bn_relu_matmul_stats_kernel,
        out_shape=(jax.ShapeDtypeStruct((M, cout), jnp.bfloat16),
                   jax.ShapeDtypeStruct((mt, cout), jnp.float32),
                   jax.ShapeDtypeStruct((mt, cout), jnp.float32)),
        grid=(mt,),
        in_specs=[pl.BlockSpec((tile_m, cin), lambda i: (i, 0)),
                  pl.BlockSpec((1, cin), lambda i: (0, 0)),
                  pl.BlockSpec((1, cin), lambda i: (0, 0)),
                  pl.BlockSpec((cin, cout), lambda i: (0, 0))],
        out_specs=(pl.BlockSpec((tile_m, cout), lambda i: (i, 0)),
                   pl.BlockSpec((1, cout), lambda i: (i, 0)),
                   pl.BlockSpec((1, cout), lambda i: (i, 0))),
        compiler_params=pltpu.CompilerParams(dimension_semantics=("parallel",)),
    )(y_prev, scale, shift, w)


def _bn_relu_ncw_pallas(y_prev, scale, shift, B, N, c_out):
    M, cp = y_prev.shape
    row_bytes = cp * (2 * 2 + 4 * 3)
    # tile must divide N so a row tile never straddles a batch boundary
    tile_f = _pick_tile(N, (1024, 512, 256, 128), row_bytes,
                        prefer_even_steps=(B % 2 == 1))
    nb = N // tile_f
    return pl.pallas_call(
        functools.partial(_bn_relu_ncw_kernel, c_out=c_out),
        out_shape=jax.ShapeDtypeStruct((B, c_out, N), jnp.float32),
        grid=(M // tile_f,),
        in_specs=[pl.BlockSpec((tile_f, cp), lambda i: (i, 0)),
                  pl.BlockSpec((1, cp), lambda i: (0, 0)),
                  pl.BlockSpec((1, cp), lambda i: (0, 0))],
        out_specs=pl.BlockSpec((1, c_out, tile_f),
                               lambda i: (i // nb, 0, i % nb)),
        compiler_params=pltpu.CompilerParams(dimension_semantics=("parallel",)),
    )(y_prev, scale, shift)


def _bn_scale_shift(s, q, gamma, beta, m_total, c_real, eps=1e-5):
    """Reduce per-tile partial stats -> BN scale/shift (tiny, plain XLA, f32)."""
    cp = s.shape[1]
    s0 = jnp.sum(s, axis=0)
    s1 = jnp.sum(q, axis=0)
    mean = s0 / m_total
    var = jnp.maximum(s1 / m_total - mean * mean, 0.0)   # biased (train mode)
    g = jnp.zeros((cp,), jnp.float32).at[:c_real].set(
        jnp.reshape(gamma, (-1,)).astype(jnp.float32))
    b = jnp.zeros((cp,), jnp.float32).at[:c_real].set(
        jnp.reshape(beta, (-1,)).astype(jnp.float32))
    scale = g * jax.lax.rsqrt(var + eps)
    shift = b - mean * scale
    return scale[None, :], shift[None, :]


# ---------------------------------------------------------------------------
# Module forward (PyTorch NCW in / NCW out).
# params: list of (w [Cin, Cout], b [Cout], gamma [Cout], beta [Cout]).
# ---------------------------------------------------------------------------
def pointnet_feature_propagation(xyz1, xyz2, points1, points2, params):
    """xyz1:[B,C,N] xyz2:[B,C,S] points1:[B,D1,N]|None points2:[B,D2,S]
    -> [B, mlp[-1], N]"""
    B, C, N = xyz1.shape
    S = xyz2.shape[2]
    D2 = points2.shape[1]
    D1 = points1.shape[1] if points1 is not None else 0
    Dp = _round_up(D1 + D2, 128)                    # lane-dense fused width
    M = B * N

    if S == 1:
        # PyTorch: interpolated = points2.repeat(1, N, 1); build fused block.
        comb = jnp.zeros((B, N, Dp), jnp.float32)
        comb = comb.at[:, :, :D2].set(jnp.broadcast_to(
            jnp.transpose(points2, (0, 2, 1)).astype(jnp.float32), (B, N, D2)))
        if D1:
            comb = comb.at[:, :, D2:D2 + D1].set(
                jnp.transpose(points1, (0, 2, 1)).astype(jnp.float32))
        x0 = comb.reshape(M, Dp).astype(jnp.bfloat16)
    else:
        Sp = _round_up(S, 128)
        # padded source points sit far away (never win the 3-NN) and carry
        # zero features; feature columns padded to a 128 multiple.
        xyz2_pad = jnp.full((B, C, Sp), 1.0e6, jnp.float32)
        xyz2_pad = xyz2_pad.at[:, :, :S].set(xyz2.astype(jnp.float32))
        pts2_pad = jnp.zeros((B, Sp, Dp), jnp.bfloat16)
        pts2_pad = pts2_pad.at[:, :S, :D2].set(
            jnp.transpose(points2, (0, 2, 1)).astype(jnp.bfloat16))
        xyz1_nlc = jnp.transpose(xyz1, (0, 2, 1)).astype(jnp.float32)
        p1_nlc = (jnp.transpose(points1, (0, 2, 1)).astype(jnp.float32)
                  if D1 else None)
        x0 = _interp_pallas(xyz1_nlc, xyz2_pad, pts2_pad, p1_nlc, D2, D1)
        x0 = x0.reshape(M, Dp)

    # ---- layer 0: single dense matmul on the fused [interp | points1] block.
    # Reference concat order is [points1, interpolated]; our fused layout is
    # [interpolated | points1], so the weight rows are permuted to match.
    # Conv1d bias is dropped: BatchNorm's mean subtraction cancels it.
    w0, _b0, g0, beta0 = params[0]
    c0 = w0.shape[1]
    c0p = _round_up(c0, 128)
    w0c = jnp.zeros((Dp, c0p), jnp.float32)
    w0c = w0c.at[:D2, :c0].set(w0[D1:].astype(jnp.float32))
    if D1:
        w0c = w0c.at[D2:D2 + D1, :c0].set(w0[:D1].astype(jnp.float32))
    w0c = w0c.astype(jnp.bfloat16)

    row_bytes = 8 * (Dp + c0p)                      # rough per-row footprint
    tile_m = _pick_tile(M, (2048, 1024, 512, 256, 128), row_bytes,
                        prefer_even_steps=True)

    y, s, q = _matmul_stats_pallas(x0, w0c, tile_m)
    scale, shift = _bn_scale_shift(s, q, g0, beta0, M, c0)
    c_prev, c_prev_p = c0, c0p

    # ---- middle layers: fused (BN_i + ReLU) -> matmul_{i+1} + partial stats.
    for (w, _b, g, beta) in params[1:]:
        cl = w.shape[1]
        clp = _round_up(cl, 128)
        w_pad = jnp.zeros((c_prev_p, clp), jnp.float32)
        w_pad = w_pad.at[:c_prev, :cl].set(w.astype(jnp.float32))
        w_pad = w_pad.astype(jnp.bfloat16)
        y, s, q = _bn_relu_matmul_pallas(y, scale, shift, w_pad, tile_m)
        scale, shift = _bn_scale_shift(s, q, g, beta, M, cl)
        c_prev, c_prev_p = cl, clp

    # ---- last layer's BN + ReLU, written directly in NCW (lane dim = N).
    return _bn_relu_ncw_pallas(y, scale, shift, B, N, c_prev)


# ---------------------------------------------------------------------------
# Pure-JAX f32 reference mirroring the PyTorch forward (expansion-form
# distances, argsort top-3, conv bias included, training-mode BatchNorm).
# ---------------------------------------------------------------------------
def _ref_forward(xyz1, xyz2, points1, points2, params):
    xyz1_t = jnp.transpose(xyz1, (0, 2, 1))
    xyz2_t = jnp.transpose(xyz2, (0, 2, 1))
    pts2_t = jnp.transpose(points2, (0, 2, 1))
    B, N, _ = xyz1_t.shape
    S = xyz2_t.shape[1]
    if S == 1:
        interpolated = jnp.broadcast_to(pts2_t, (B, N, pts2_t.shape[-1]))
    else:
        d = (-2.0 * jnp.einsum("bnc,bmc->bnm", xyz1_t, xyz2_t)
             + jnp.sum(xyz1_t ** 2, -1)[:, :, None]
             + jnp.sum(xyz2_t ** 2, -1)[:, None, :])
        idx = jnp.argsort(d, axis=-1)[:, :, :3]
        dists = jnp.take_along_axis(d, idx, axis=-1)
        recip = 1.0 / (dists + 1e-8)
        norm = jnp.sum(recip, axis=2, keepdims=True)
        weight = recip / norm
        gathered = jax.vmap(lambda p, i: p[i])(pts2_t, idx)        # [B,N,3,D2]
        interpolated = jnp.sum(gathered * weight[..., None], axis=2)
    if points1 is not None:
        x = jnp.concatenate([jnp.transpose(points1, (0, 2, 1)), interpolated],
                            axis=-1)
    else:
        x = interpolated
    for (w, b, g, beta) in params:
        y = jnp.einsum("bnc,co->bno", x, w) + b
        mean = jnp.mean(y, axis=(0, 1), keepdims=True)
        var = jnp.mean((y - mean) ** 2, axis=(0, 1), keepdims=True)
        x = jnp.maximum((y - mean) / jnp.sqrt(var + 1e-5) * g + beta, 0.0)
    return jnp.transpose(x, (0, 2, 1))


if __name__ == "__main__":
    # Shapes: B=2, 3-D coords, N=512 dense points, S=64 sampled points,
    # D1=16 / D2=32 feature channels, mlp=[64, 32]
    # (matches PointNetFeaturePropagation(48, [64, 32])); exercises multi-step
    # grids on both the interp kernel and the MLP chain.
    B, C, N, S, D1, D2 = 2, 3, 512, 64, 16, 32
    mlp = [64, 32]
    in_channel = D1 + D2

    key = jax.random.PRNGKey(0)
    ks = jax.random.split(key, 4 + 4 * len(mlp))
    xyz1 = jax.random.normal(ks[0], (B, C, N), jnp.float32)
    xyz2 = jax.random.normal(ks[1], (B, C, S), jnp.float32)
    points1 = jax.random.normal(ks[2], (B, D1, N), jnp.float32)
    points2 = jax.random.normal(ks[3], (B, D2, S), jnp.float32)

    # Deterministic synthetic parameters (not a checkpoint).
    params = []
    last = in_channel
    ki = 4
    for out_c in mlp:
        w = 0.1 * jax.random.normal(ks[ki], (last, out_c), jnp.float32)
        b = 0.1 * jax.random.normal(ks[ki + 1], (out_c,), jnp.float32)
        g = 1.0 + 0.1 * jax.random.normal(ks[ki + 2], (out_c,), jnp.float32)
        beta = 0.1 * jax.random.normal(ks[ki + 3], (out_c,), jnp.float32)
        params.append((w, b, g, beta))
        last = out_c
        ki += 4

    out = jax.block_until_ready(
        pointnet_feature_propagation(xyz1, xyz2, points1, points2, params))
    ref = jax.block_until_ready(
        _ref_forward(xyz1, xyz2, points1, points2, params))

    assert out.shape == (B, mlp[-1], N), out.shape
    # Tolerance accounts for the deliberate precision tradeoffs adopted from
    # the perf review: bf16 inter-layer activation/weight handoff (MXU-native,
    # half the HBM traffic), bf16 interpolation matmul, EUP approx reciprocal,
    # and the cancellation-free (x1-x2)^2 distance form. All BN statistics and
    # elementwise math remain f32.
    np.testing.assert_allclose(np.asarray(out, np.float32), np.asarray(ref),
                               rtol=5e-2, atol=5e-2)
    print("KERNEL_OK")
</pallas_src>

<mosaic_0001>
module attributes {stable_mosaic.version = 11 : i64} {
  func.func @kernel(%arg0: i32, %arg1: i32, %arg2: memref<1x512x3xf32, #tpu.memory_space<vmem>>, %arg3: memref<1x3x128xf32, #tpu.memory_space<vmem>>, %arg4: memref<1x128x128xbf16, #tpu.memory_space<vmem>>, %arg5: memref<1x512x16xf32, #tpu.memory_space<vmem>>, %arg6: memref<1x512x128xbf16, #tpu.memory_space<vmem>>) attributes {dimension_semantics = [#tpu.dimension_semantics<parallel>, #tpu.dimension_semantics<parallel>], iteration_bounds = array<i64: 2, 1>, scalar_prefetch = 0 : i64, scratch_operands = 0 : i64, tpu.core_type = #tpu.core_type<tc>, window_params = [{transform_indices = @transform_0, window_bounds = array<i64: 1, 512, 3>}, {transform_indices = @transform_1, window_bounds = array<i64: 1, 3, 128>}, {transform_indices = @transform_2, window_bounds = array<i64: 1, 128, 128>}, {transform_indices = @transform_3, window_bounds = array<i64: 1, 512, 16>}, {transform_indices = @transform_4, window_bounds = array<i64: 1, 512, 128>}]} {
    %c0 = arith.constant 0 : index
    %c0_0 = arith.constant 0 : index
    %c0_1 = arith.constant 0 : index
    %0 = vector.load %arg2[%c0, %c0_0, %c0_1] : memref<1x512x3xf32, #tpu.memory_space<vmem>>, vector<1x512x3xf32>
    %1 = vector.shape_cast %0 : vector<1x512x3xf32> to vector<512x3xf32>
    %c0_2 = arith.constant 0 : index
    %c0_3 = arith.constant 0 : index
    %c0_4 = arith.constant 0 : index
    %2 = vector.load %arg3[%c0_2, %c0_3, %c0_4] : memref<1x3x128xf32, #tpu.memory_space<vmem>>, vector<1x3x128xf32>
    %3 = vector.shape_cast %2 : vector<1x3x128xf32> to vector<3x128xf32>
    %c0_5 = arith.constant 0 : index
    %c0_6 = arith.constant 0 : index
    %c0_7 = arith.constant 0 : index
    %4 = vector.load %arg4[%c0_5, %c0_6, %c0_7] : memref<1x128x128xbf16, #tpu.memory_space<vmem>>, vector<1x128x128xbf16>
    %5 = vector.shape_cast %4 : vector<1x128x128xbf16> to vector<128x128xbf16>
    %cst = arith.constant 0.000000e+00 : f32
    %6 = vector.broadcast %cst : f32 to vector<512x128xf32>
    %7 = vector.extract_strided_slice %1 {offsets = [0, 0], sizes = [512, 1], strides = [1, 1]} : vector<512x3xf32> to vector<512x1xf32>
    %8 = vector.extract_strided_slice %3 {offsets = [0, 0], sizes = [1, 128], strides = [1, 1]} : vector<3x128xf32> to vector<1x128xf32>
    %9 = vector.broadcast %7 : vector<512x1xf32> to vector<512x128xf32>
    %10 = vector.broadcast %8 : vector<1x128xf32> to vector<512x128xf32>
    %11 = arith.subf %9, %10 : vector<512x128xf32>
    %12 = arith.mulf %11, %11 : vector<512x128xf32>
    %13 = arith.addf %6, %12 : vector<512x128xf32>
    %14 = vector.extract_strided_slice %1 {offsets = [0, 1], sizes = [512, 1], strides = [1, 1]} : vector<512x3xf32> to vector<512x1xf32>
    %15 = vector.extract_strided_slice %3 {offsets = [1, 0], sizes = [1, 128], strides = [1, 1]} : vector<3x128xf32> to vector<1x128xf32>
    %16 = vector.broadcast %14 : vector<512x1xf32> to vector<512x128xf32>
    %17 = vector.broadcast %15 : vector<1x128xf32> to vector<512x128xf32>
    %18 = arith.subf %16, %17 : vector<512x128xf32>
    %19 = arith.mulf %18, %18 : vector<512x128xf32>
    %20 = arith.addf %13, %19 : vector<512x128xf32>
    %21 = vector.extract_strided_slice %1 {offsets = [0, 2], sizes = [512, 1], strides = [1, 1]} : vector<512x3xf32> to vector<512x1xf32>
    %22 = vector.extract_strided_slice %3 {offsets = [2, 0], sizes = [1, 128], strides = [1, 1]} : vector<3x128xf32> to vector<1x128xf32>
    %23 = vector.broadcast %21 : vector<512x1xf32> to vector<512x128xf32>
    %24 = vector.broadcast %22 : vector<1x128xf32> to vector<512x128xf32>
    %25 = arith.subf %23, %24 : vector<512x128xf32>
    %26 = arith.mulf %25, %25 : vector<512x128xf32>
    %27 = arith.addf %20, %26 : vector<512x128xf32>
    %28 = tpu.iota {dimensions = array<i32: 1>} : vector<512x128xi32>
    %cst_8 = arith.constant 0.000000e+00 : f32
    %29 = vector.broadcast %cst_8 : f32 to vector<512x128xf32>
    %cst_9 = arith.constant 0.000000e+00 : f32
    %30 = vector.broadcast %cst_9 : f32 to vector<512x1xf32>
    %cst_10 = arith.constant dense<0x7F800000> : vector<512xf32>
    %31 = vector.multi_reduction <minimumf>, %27, %cst_10 [1] : vector<512x128xf32> to vector<512xf32>
    %32 = vector.shape_cast %31 : vector<512xf32> to vector<512x1xf32>
    %33 = vector.broadcast %32 : vector<512x1xf32> to vector<512x128xf32>
    %34 = arith.cmpf oeq, %27, %33 : vector<512x128xf32>
    %c128_i32 = arith.constant 128 : i32
    %35 = vector.broadcast %c128_i32 : i32 to vector<512x128xi32>
    %36 = arith.select %34, %28, %35 : vector<512x128xi1>, vector<512x128xi32>
    %cst_11 = arith.constant dense<2147483647> : vector<512xi32>
    %37 = vector.multi_reduction <minsi>, %36, %cst_11 [1] : vector<512x128xi32> to vector<512xi32>
    %38 = vector.shape_cast %37 : vector<512xi32> to vector<512x1xi32>
    %39 = vector.broadcast %38 : vector<512x1xi32> to vector<512x128xi32>
    %40 = arith.cmpi eq, %28, %39 : vector<512x128xi32>
    %cst_12 = arith.constant 9.99999993E-9 : f32
    %41 = vector.broadcast %cst_12 : f32 to vector<512x1xf32>
    %42 = arith.addf %32, %41 : vector<512x1xf32>
    %cst_13 = arith.constant 1.000000e+00 : f32
    %43 = vector.broadcast %cst_13 : f32 to vector<512x1xf32>
    %44 = arith.divf %43, %42 : vector<512x1xf32>
    %45 = vector.shape_cast %44 : vector<512x1xf32> to vector<512x1xf32>
    %46 = vector.broadcast %45 : vector<512x1xf32> to vector<512x128xf32>
    %47 = arith.select %40, %46, %29 : vector<512x128xi1>, vector<512x128xf32>
    %48 = arith.addf %30, %44 : vector<512x1xf32>
    %cst_14 = arith.constant 3.000000e+38 : f32
    %49 = vector.broadcast %cst_14 : f32 to vector<512x128xf32>
    %50 = arith.select %40, %49, %27 : vector<512x128xi1>, vector<512x128xf32>
    %cst_15 = arith.constant dense<0x7F800000> : vector<512xf32>
    %51 = vector.multi_reduction <minimumf>, %50, %cst_15 [1] : vector<512x128xf32> to vector<512xf32>
    %52 = vector.shape_cast %51 : vector<512xf32> to vector<512x1xf32>
    %53 = vector.broadcast %52 : vector<512x1xf32> to vector<512x128xf32>
    %54 = arith.cmpf oeq, %50, %53 : vector<512x128xf32>
    %c128_i32_16 = arith.constant 128 : i32
    %55 = vector.broadcast %c128_i32_16 : i32 to vector<512x128xi32>
    %56 = arith.select %54, %28, %55 : vector<512x128xi1>, vector<512x128xi32>
    %cst_17 = arith.constant dense<2147483647> : vector<512xi32>
    %57 = vector.multi_reduction <minsi>, %56, %cst_17 [1] : vector<512x128xi32> to vector<512xi32>
    %58 = vector.shape_cast %57 : vector<512xi32> to vector<512x1xi32>
    %59 = vector.broadcast %58 : vector<512x1xi32> to vector<512x128xi32>
    %60 = arith.cmpi eq, %28, %59 : vector<512x128xi32>
    %cst_18 = arith.constant 9.99999993E-9 : f32
    %61 = vector.broadcast %cst_18 : f32 to vector<512x1xf32>
    %62 = arith.addf %52, %61 : vector<512x1xf32>
    %cst_19 = arith.constant 1.000000e+00 : f32
    %63 = vector.broadcast %cst_19 : f32 to vector<512x1xf32>
    %64 = arith.divf %63, %62 : vector<512x1xf32>
    %65 = vector.shape_cast %64 : vector<512x1xf32> to vector<512x1xf32>
    %66 = vector.broadcast %65 : vector<512x1xf32> to vector<512x128xf32>
    %67 = arith.select %60, %66, %47 : vector<512x128xi1>, vector<512x128xf32>
    %68 = arith.addf %48, %64 : vector<512x1xf32>
    %cst_20 = arith.constant 3.000000e+38 : f32
    %69 = vector.broadcast %cst_20 : f32 to vector<512x128xf32>
    %70 = arith.select %60, %69, %50 : vector<512x128xi1>, vector<512x128xf32>
    %cst_21 = arith.constant dense<0x7F800000> : vector<512xf32>
    %71 = vector.multi_reduction <minimumf>, %70, %cst_21 [1] : vector<512x128xf32> to vector<512xf32>
    %72 = vector.shape_cast %71 : vector<512xf32> to vector<512x1xf32>
    %73 = vector.broadcast %72 : vector<512x1xf32> to vector<512x128xf32>
    %74 = arith.cmpf oeq, %70, %73 : vector<512x128xf32>
    %c128_i32_22 = arith.constant 128 : i32
    %75 = vector.broadcast %c128_i32_22 : i32 to vector<512x128xi32>
    %76 = arith.select %74, %28, %75 : vector<512x128xi1>, vector<512x128xi32>
    %cst_23 = arith.constant dense<2147483647> : vector<512xi32>
    %77 = vector.multi_reduction <minsi>, %76, %cst_23 [1] : vector<512x128xi32> to vector<512xi32>
    %78 = vector.shape_cast %77 : vector<512xi32> to vector<512x1xi32>
    %79 = vector.broadcast %78 : vector<512x1xi32> to vector<512x128xi32>
    %80 = arith.cmpi eq, %28, %79 : vector<512x128xi32>
    %cst_24 = arith.constant 9.99999993E-9 : f32
    %81 = vector.broadcast %cst_24 : f32 to vector<512x1xf32>
    %82 = arith.addf %72, %81 : vector<512x1xf32>
    %cst_25 = arith.constant 1.000000e+00 : f32
    %83 = vector.broadcast %cst_25 : f32 to vector<512x1xf32>
    %84 = arith.divf %83, %82 : vector<512x1xf32>
    %85 = vector.shape_cast %84 : vector<512x1xf32> to vector<512x1xf32>
    %86 = vector.broadcast %85 : vector<512x1xf32> to vector<512x128xf32>
    %87 = arith.select %80, %86, %67 : vector<512x128xi1>, vector<512x128xf32>
    %88 = arith.addf %68, %84 : vector<512x1xf32>
    %89 = tpu.reciprocal %88 {approx = true} : vector<512x1xf32> -> vector<512x1xf32>
    %90 = vector.broadcast %89 : vector<512x1xf32> to vector<512x128xf32>
    %91 = arith.mulf %87, %90 : vector<512x128xf32>
    %92 = arith.truncf %91 : vector<512x128xf32> to vector<512x128xbf16>
    %cst_26 = arith.constant dense<0.000000e+00> : vector<512x128xf32>
    %93 = tpu.matmul %92, %5, %cst_26 {dimension_numbers = #tpu.dot_dimension_numbers<[1], [0], [0], [1], [0, 0, 1, 1], [], []>} : vector<512x128xbf16>, vector<128x128xbf16>, vector<512x128xf32> -> vector<512x128xf32>
    %c0_27 = arith.constant 0 : index
    %c0_28 = arith.constant 0 : index
    %c0_29 = arith.constant 0 : index
    %94 = vector.load %arg5[%c0_27, %c0_28, %c0_29] : memref<1x512x16xf32, #tpu.memory_space<vmem>>, vector<1x512x16xf32>
    %95 = vector.shape_cast %94 : vector<1x512x16xf32> to vector<512x16xf32>
    %96 = arith.truncf %95 : vector<512x16xf32> to vector<512x16xbf16>
    %97 = tpu.iota {dimensions = array<i32: 0>} : vector<16x128xi32>
    %98 = tpu.iota {dimensions = array<i32: 1>} : vector<16x128xi32>
    %c32_i32 = arith.constant 32 : i32
    %99 = vector.broadcast %c32_i32 : i32 to vector<16x128xi32>
    %100 = arith.addi %97, %99 : vector<16x128xi32>
    %101 = arith.cmpi eq, %98, %100 : vector<16x128xi32>
    %102 = arith.extui %101 : vector<16x128xi1> to vector<16x128xi32>
    %103 = arith.sitofp %102 : vector<16x128xi32> to vector<16x128xf32>
    %104 = arith.truncf %103 : vector<16x128xf32> to vector<16x128xbf16>
    %cst_30 = arith.constant dense<0.000000e+00> : vector<512x128xf32>
    %105 = tpu.matmul %96, %104, %cst_30 {dimension_numbers = #tpu.dot_dimension_numbers<[1], [0], [0], [1], [0, 0, 1, 1], [], []>} : vector<512x16xbf16>, vector<16x128xbf16>, vector<512x128xf32> -> vector<512x128xf32>
    %106 = arith.addf %93, %105 : vector<512x128xf32>
    %107 = arith.truncf %106 : vector<512x128xf32> to vector<512x128xbf16>
    %c0_31 = arith.constant 0 : index
    %c0_32 = arith.constant 0 : index
    %c0_33 = arith.constant 0 : index
    %108 = vector.load %arg6[%c0_31, %c0_32, %c0_33] : memref<1x512x128xbf16, #tpu.memory_space<vmem>>, vector<1x512x128xbf16>
    %109 = vector.shape_cast %108 : vector<1x512x128xbf16> to vector<512x128xbf16>
    %110 = vector.shape_cast %107 : vector<512x128xbf16> to vector<1x512x128xbf16>
    tpu.vector_store %arg6[%c0_31, %c0_32, %c0_33], %110 {strides = array<i32>} : memref<1x512x128xbf16, #tpu.memory_space<vmem>>, vector<1x512x128xbf16>,
    return
  }
  func.func @transform_0(%arg0: i32, %arg1: i32) -> (i32, i32, i32) {
    %c0_i32 = arith.constant 0 : i32
    %c0_i32_0 = arith.constant 0 : i32
    return %arg0, %arg1, %c0_i32 : i32, i32, i32
  }
  func.func @transform_1(%arg0: i32, %arg1: i32) -> (i32, i32, i32) {
    %c0_i32 = arith.constant 0 : i32
    %c0_i32_0 = arith.constant 0 : i32
    %c0_i32_1 = arith.constant 0 : i32
    return %arg0, %c0_i32, %c0_i32_0 : i32, i32, i32
  }
  func.func @transform_2(%arg0: i32, %arg1: i32) -> (i32, i32, i32) {
    %c0_i32 = arith.constant 0 : i32
    %c0_i32_0 = arith.constant 0 : i32
    %c0_i32_1 = arith.constant 0 : i32
    return %arg0, %c0_i32, %c0_i32_0 : i32, i32, i32
  }
  func.func @transform_3(%arg0: i32, %arg1: i32) -> (i32, i32, i32) {
    %c0_i32 = arith.constant 0 : i32
    %c0_i32_0 = arith.constant 0 : i32
    return %arg0, %arg1, %c0_i32 : i32, i32, i32
  }
  func.func @transform_4(%arg0: i32, %arg1: i32) -> (i32, i32, i32) {
    %c0_i32 = arith.constant 0 : i32
    %c0_i32_0 = arith.constant 0 : i32
    return %arg0, %arg1, %c0_i32 : i32, i32, i32
  }
}

</mosaic_0001>

<llo_original>
// kernel: tpu_custom_call.1
$region0: #{tpu_custom_call.1}
  #allocation0 [shape = 'u32[]', space=smem, size = 0x4, offset = 0x4, fixed_abs, tag = 'smem constant byte address 0x4 - core index']
  #allocation1 [shape = 'u32[144,128]{1,0:T(1,128)}', space=vmem, size = 0x12000, scoped, tag = 'internal scratch']
  %s0 = inlined_call_operand.vmem [shape: f32[2,512,3], index: 0, kind: input, shape index: {}]
  %s1 = inlined_call_operand.vmem [shape: f32[2,3,128], index: 1, kind: input, shape index: {}]
  %s2 = inlined_call_operand.vmem [shape: bf16[2,128,128], index: 2, kind: input, shape index: {}]
  %s3 = inlined_call_operand.vmem [shape: f32[2,512,16], index: 3, kind: input, shape index: {}]
  %s4 = inlined_call_operand.hbm [shape: bf16[2,512,128], index: 4, kind: output, shape index: {}]
  %s5 = sld [smem:[#allocation0]]
  $region49: #{tpu_custom_call.1} parent=0
    _
  %s7 = ssub.s32 1, %s5
  %s8 = scalar_select 0, %s7, %s5
  $region1: #{tpu_custom_call.1} parent=0
    #allocation2 [shape = 'u8[262144]{0}', space=vmem, size = 0x40000, scoped, tag = 'output window, operand 0']
    #allocation3 [shape = 's32[2]{0}', space=sflag, size = 0x8, scoped, tag = 'scoped memory for tpu_custom_call.1']
    %9 = vsyncpa [#allocation3], 0
    %s10 = scalar_lea.sflag [#allocation3], 1
    %11 = vsyncpa %s10, 0
    loop: start=0, step=1, limit=4
    $region2: #{tpu_custom_call.1} parent=1 // loop_pre_header
      _
    $region3: #{tpu_custom_call.1} parent=1 // loop_header
      %s13 = sphi 0, %s17
      %p14 = scmp.ge.s32.totalorder %s13, 4
      %s20 = sphi 0, %s32
      %s21 = sphi 0, %s28
      %s22 = sphi 0, %s20
      %s23 = sphi 0, %s21
      %s24 = sphi 0, %s22
      %s25 = sphi 0, %s23
      %s37 = sphi 0, %s39
      %s40 = sphi 0, %s37
      %s41 = sphi 0, %s40
      %s57 = sphi 0, %s41
      %s63 = sphi 0, %s65
      %s66 = sphi 0, %s63
      %s67 = sphi 0, %s66
      %s83 = sphi 0, %s67
      %s89 = sphi 0, %s91
      %s92 = sphi 0, %s89
      %s93 = sphi 0, %s92
      %s109 = sphi 0, %s93
      %s117 = sphi 0, %s119
      %s120 = sphi 0, %s117
      %s121 = sphi 0, %s120
      %s137 = sphi 0, %s121
      %s145 = sphi 0, %s147
      %s148 = sphi 0, %s145
      %s149 = sphi 0, %s148
      %s165 = sphi 0, %s149
    $region4: #{tpu_custom_call.1} parent=1 // loop_header_branch
      %16 = sbr.rel (%p14) target = $region8
    $region5: #{tpu_custom_call.1} parent=1 // loop_body
      %s18 = ssub.s32 %s13, 1
      %s19 = ssub.s32 %s13, 2
      %s26 = sadd.s32 1, %s21
      %p27 = scmp.ge.s32.totalorder %s26, 1
      %s28 = scalar_select %p27, 0, %s26
      %s29 = sadd.s32 1, %s20
      %s30 = scalar_select %p27, %s29, %s20
      %p31 = scmp.ge.s32.totalorder %s30, 2
      %s32 = scalar_select %p31, 0, %s30
      %s33 = ssub.s32 %s20, %s32
      %s34 = ssub.s32 %s21, %s28
      %s35 = sor.u32 %s33, %s34
      %p36 = scmp.eq.s32.totalorder %s35, 0
      %s38 = sadd.s32 %s37, 1
      %s39 = scalar_select %p36, %s37, %s38
      %p42 = pneg %p36
      %p43 = scmp.eq.s32.totalorder %s13, 1
      %p44 = por %p42, %p43
      %p45 = scmp.ne.s32.totalorder %s37, %s40
      %p46 = scmp.eq.s32.totalorder %s13, 0
      %p47 = por %p45, %p46
      %p48 = scmp.ne.s32.totalorder %s37, %s40
      %p49 = scmp.eq.s32.totalorder %s18, 1
      %p50 = por %p48, %p49
      %p51 = scmp.ne.s32.totalorder %s40, %s41
      %p52 = scmp.eq.s32.totalorder %s18, 0
      %p53 = por %p51, %p52
      %p54 = scmp.ne.s32.totalorder %s40, %s41
      %p55 = scmp.eq.s32.totalorder %s19, 1
      %p56 = por %p54, %p55
      %p58 = scmp.ne.s32.totalorder %s41, %s57
      %p59 = scmp.eq.s32.totalorder %s19, 0
      %p60 = por %p58, %p59
      %s61 = ssub.s32 %s20, %s32
      %p62 = scmp.eq.s32.totalorder %s61, 0
      %s64 = sadd.s32 %s63, 1
      %s65 = scalar_select %p62, %s63, %s64
      %p68 = pneg %p62
      %p69 = scmp.eq.s32.totalorder %s13, 1
      %p70 = por %p68, %p69
      %p71 = scmp.ne.s32.totalorder %s63, %s66
      %p72 = scmp.eq.s32.totalorder %s13, 0
      %p73 = por %p71, %p72
      %p74 = scmp.ne.s32.totalorder %s63, %s66
      %p75 = scmp.eq.s32.totalorder %s18, 1
      %p76 = por %p74, %p75
      %p77 = scmp.ne.s32.totalorder %s66, %s67
      %p78 = scmp.eq.s32.totalorder %s18, 0
      %p79 = por %p77, %p78
      %p80 = scmp.ne.s32.totalorder %s66, %s67
      %p81 = scmp.eq.s32.totalorder %s19, 1
      %p82 = por %p80, %p81
      %p84 = scmp.ne.s32.totalorder %s67, %s83
      %p85 = scmp.eq.s32.totalorder %s19, 0
      %p86 = por %p84, %p85
      %s87 = ssub.s32 %s20, %s32
      %p88 = scmp.eq.s32.totalorder %s87, 0
      %s90 = sadd.s32 %s89, 1
      %s91 = scalar_select %p88, %s89, %s90
      %p94 = pneg %p88
      %p95 = scmp.eq.s32.totalorder %s13, 1
      %p96 = por %p94, %p95
      %p97 = scmp.ne.s32.totalorder %s89, %s92
      %p98 = scmp.eq.s32.totalorder %s13, 0
      %p99 = por %p97, %p98
      %p100 = scmp.ne.s32.totalorder %s89, %s92
      %p101 = scmp.eq.s32.totalorder %s18, 1
      %p102 = por %p100, %p101
      %p103 = scmp.ne.s32.totalorder %s92, %s93
      %p104 = scmp.eq.s32.totalorder %s18, 0
      %p105 = por %p103, %p104
      %p106 = scmp.ne.s32.totalorder %s92, %s93
      %p107 = scmp.eq.s32.totalorder %s19, 1
      %p108 = por %p106, %p107
      %p110 = scmp.ne.s32.totalorder %s93, %s109
      %p111 = scmp.eq.s32.totalorder %s19, 0
      %p112 = por %p110, %p111
      %s113 = ssub.s32 %s20, %s32
      %s114 = ssub.s32 %s21, %s28
      %s115 = sor.u32 %s113, %s114
      %p116 = scmp.eq.s32.totalorder %s115, 0
      %s118 = sadd.s32 %s117, 1
      %s119 = scalar_select %p116, %s117, %s118
      %p122 = pneg %p116
      %p123 = scmp.eq.s32.totalorder %s13, 1
      %p124 = por %p122, %p123
      %p125 = scmp.ne.s32.totalorder %s117, %s120
      %p126 = scmp.eq.s32.totalorder %s13, 0
      %p127 = por %p125, %p126
      %p128 = scmp.ne.s32.totalorder %s117, %s120
      %p129 = scmp.eq.s32.totalorder %s18, 1
      %p130 = por %p128, %p129
      %p131 = scmp.ne.s32.totalorder %s120, %s121
      %p132 = scmp.eq.s32.totalorder %s18, 0
      %p133 = por %p131, %p132
      %p134 = scmp.ne.s32.totalorder %s120, %s121
      %p135 = scmp.eq.s32.totalorder %s19, 1
      %p136 = por %p134, %p135
      %p138 = scmp.ne.s32.totalorder %s121, %s137
      %p139 = scmp.eq.s32.totalorder %s19, 0
      %p140 = por %p138, %p139
      %s141 = ssub.s32 %s20, %s32
      %s142 = ssub.s32 %s21, %s28
      %s143 = sor.u32 %s141, %s142
      %p144 = scmp.eq.s32.totalorder %s143, 0
      %s146 = sadd.s32 %s145, 1
      %s147 = scalar_select %p144, %s145, %s146
      %p150 = pneg %p144
      %p151 = scmp.eq.s32.totalorder %s13, 1
      %p152 = por %p150, %p151
      %p153 = scmp.ne.s32.totalorder %s145, %s148
      %p154 = scmp.eq.s32.totalorder %s13, 0
      %p155 = por %p153, %p154
      %p156 = scmp.ne.s32.totalorder %s145, %s148
      %p157 = scmp.eq.s32.totalorder %s18, 1
      %p158 = por %p156, %p157
      %p159 = scmp.ne.s32.totalorder %s148, %s149
      %p160 = scmp.eq.s32.totalorder %s18, 0
      %p161 = por %p159, %p160
      %p162 = scmp.ne.s32.totalorder %s148, %s149
      %p163 = scmp.eq.s32.totalorder %s19, 1
      %p164 = por %p162, %p163
      %p166 = scmp.ne.s32.totalorder %s149, %s165
      %p167 = scmp.eq.s32.totalorder %s19, 0
      %p168 = por %p166, %p167
      %p169 = scmp.le.s32.totalorder 1, %s13
      %p170 = scmp.lt.s32.totalorder %s13, 3
      %p171 = pnand %p169, %p170
      %p172 = pneg %p171
      // Predicated region
      $region9: #{tpu_custom_call.1} parent=5 // pred_check
        _
      $region10: #{tpu_custom_call.1} parent=5 // pred_check_branch
        %174 = sbr.rel (%p171) target = $region12
      $region11: #{tpu_custom_call.1} parent=5 // pred_region
        %s175 = ssub.s32 %s13, 1
      $region12: #{tpu_custom_call.1} parent=5 // pred_fallthru
        _
      %p176 = scmp.lt.s32.totalorder %s13, 2
      // Predicated region
      $region13: #{tpu_custom_call.1} parent=5 // pred_check
        %p177 = pneg %p176
      $region14: #{tpu_custom_call.1} parent=5 // pred_check_branch
        %179 = sbr.rel (%p177) target = $region16
      $region15: #{tpu_custom_call.1} parent=5 // pred_region
        // Predicated region
        $region17: #{tpu_custom_call.1} parent=15 // pred_check
          %p180 = pneg %p47
        $region18: #{tpu_custom_call.1} parent=15 // pred_check_branch
          %182 = sbr.rel (%p180) target = $region20
        $region19: #{tpu_custom_call.1} parent=15 // pred_region
          %s183 = smul.u32 64, %s21
          %p184 = scmp.lt.s32.totalorder %s20, 1
          %s185 = scalar_select %p184, %s20, 1
          %p186 = scmp.lt.s32.totalorder %s183, 63
          %s187 = scalar_select %p186, %s183, 63
          %s188 = smul.addr %s185, 64
          %s189 = sadd.s32 %s187, %s188
          %s190 = smul.addr %s189, 8
          %s191 = scalar_lea.vmem %s0, %s190
          %s192 = smul.u32 64, %s21
        $region20: #{tpu_custom_call.1} parent=15 // pred_fallthru
          _
        // Predicated region
        $region21: #{tpu_custom_call.1} parent=15 // pred_check
          %p193 = pneg %p73
        $region22: #{tpu_custom_call.1} parent=15 // pred_check_branch
          %195 = sbr.rel (%p193) target = $region24
        $region23: #{tpu_custom_call.1} parent=15 // pred_region
          %p196 = scmp.lt.s32.totalorder %s20, 1
          %s197 = scalar_select %p196, %s20, 1
          %s198 = smul.addr %s197, 4
          %s199 = scalar_lea.vmem %s1, %s198
        $region24: #{tpu_custom_call.1} parent=15 // pred_fallthru
          _
        // Predicated region
        $region25: #{tpu_custom_call.1} parent=15 // pred_check
          %p200 = pneg %p99
        $region26: #{tpu_custom_call.1} parent=15 // pred_check_branch
          %202 = sbr.rel (%p200) target = $region28
        $region27: #{tpu_custom_call.1} parent=15 // pred_region
          %p203 = scmp.lt.s32.totalorder %s20, 1
          %s204 = scalar_select %p203, %s20, 1
          %s205 = smul.addr %s204, 16
          %s206 = smul.addr %s205, 4
          %s207 = scalar_lea.vmem %s2, %s206
        $region28: #{tpu_custom_call.1} parent=15 // pred_fallthru
          _
        // Predicated region
        $region29: #{tpu_custom_call.1} parent=15 // pred_check
          %p208 = pneg %p127
        $region30: #{tpu_custom_call.1} parent=15 // pred_check_branch
          %210 = sbr.rel (%p208) target = $region32
        $region31: #{tpu_custom_call.1} parent=15 // pred_region
          %s211 = smul.u32 64, %s21
          %p212 = scmp.lt.s32.totalorder %s20, 1
          %s213 = scalar_select %p212, %s20, 1
          %p214 = scmp.lt.s32.totalorder %s211, 63
          %s215 = scalar_select %p214, %s211, 63
          %s216 = smul.addr %s213, 64
          %s217 = sadd.s32 %s215, %s216
          %s218 = smul.addr %s217, 8
          %s219 = scalar_lea.vmem %s3, %s218
          %s220 = smul.u32 64, %s21
        $region32: #{tpu_custom_call.1} parent=15 // pred_fallthru
          _
      $region16: #{tpu_custom_call.1} parent=5 // pred_fallthru
        _
      %p221 = scmp.le.s32.totalorder 1, %s13
      %p222 = scmp.lt.s32.totalorder %s13, 3
      %p223 = pnand %p221, %p222
      %p224 = pneg %p223
      // Predicated region
      $region33: #{tpu_custom_call.1} parent=5 // pred_check
        _
      $region34: #{tpu_custom_call.1} parent=5 // pred_check_branch
        %226 = sbr.rel (%p223) target = $region36
      $region35: #{tpu_custom_call.1} parent=5 // pred_region
        %s227 = ssub.s32 %s13, 1
        %s228 = smul.u32 64, %s23
        %p229 = scmp.lt.s32.totalorder %s22, 1
        %s230 = scalar_select %p229, %s22, 1
        %p231 = scmp.lt.s32.totalorder %s228, 63
        %s232 = scalar_select %p231, %s228, 63
        %s233 = smul.addr %s230, 64
        %s234 = sadd.s32 %s232, %s233
        %s235 = smul.addr %s234, 8
        %s236 = scalar_lea.vmem %s0, %s235
        %p237 = pneg %p53
        %p238 = pneg %p50
        %p239 = scmp.lt.s32.totalorder %s22, 1
        %s240 = scalar_select %p239, %s22, 1
        %s241 = smul.addr %s240, 4
        %s242 = scalar_lea.vmem %s1, %s241
        %p243 = pneg %p79
        %p244 = pneg %p76
        %p245 = scmp.lt.s32.totalorder %s22, 1
        %s246 = scalar_select %p245, %s22, 1
        %s247 = smul.addr %s246, 16
        %s248 = smul.addr %s247, 4
        %s249 = scalar_lea.vmem %s2, %s248
        %p250 = pneg %p105
        %p251 = pneg %p102
        %s252 = smul.u32 64, %s23
        %p253 = scmp.lt.s32.totalorder %s22, 1
        %s254 = scalar_select %p253, %s22, 1
        %p255 = scmp.lt.s32.totalorder %s252, 63
        %s256 = scalar_select %p255, %s252, 63
        %s257 = smul.addr %s254, 64
        %s258 = sadd.s32 %s256, %s257
        %s259 = smul.addr %s258, 8
        %s260 = scalar_lea.vmem %s3, %s259
        %p261 = pneg %p133
        %p262 = pneg %p130
        %p263 = pneg %p161
        %p264 = pneg %p158
        %s265 = sand.u32 %s148, 1
        %s266 = scalar_lea.sflag [#allocation3], %s265
        %s267 = sand.u32 %s148, 1
        %s268 = smul.addr %s267, 256
        %s269 = scalar_lea.vmem [#allocation2], %s268
        %s270 = smul.u32 64, %s23
        %p271 = scmp.lt.s32.totalorder %s22, 1
        %s272 = scalar_select %p271, %s22, 1
        %p273 = scmp.lt.s32.totalorder %s270, 63
        %s274 = scalar_select %p273, %s270, 63
        %s275 = smul.addr %s272, 64
        %s276 = sadd.s32 %s274, %s275
        %s277 = smul.addr %s276, 8
        %s278 = scalar_lea.vmem %s0, %s277
        %s279 = smul.u32 64, %s23
        %p280 = scmp.lt.s32.totalorder %s22, 1
        %s281 = scalar_select %p280, %s22, 1
        %s282 = smul.addr %s281, 4
        %s283 = scalar_lea.vmem %s1, %s282
        %p284 = scmp.lt.s32.totalorder %s22, 1
        %s285 = scalar_select %p284, %s22, 1
        %s286 = smul.addr %s285, 16
        %s287 = smul.addr %s286, 4
        %s288 = scalar_lea.vmem %s2, %s287
        %s289 = smul.u32 64, %s23
        %p290 = scmp.lt.s32.totalorder %s22, 1
        %s291 = scalar_select %p290, %s22, 1
        %p292 = scmp.lt.s32.totalorder %s289, 63
        %s293 = scalar_select %p292, %s289, 63
        %s294 = smul.addr %s291, 64
        %s295 = sadd.s32 %s293, %s294
        %s296 = smul.addr %s295, 8
        %s297 = scalar_lea.vmem %s3, %s296
        %s298 = smul.u32 64, %s23
        %s299 = smul.u32 64, %s23
        %v301 = vld [vmem:[%s278] sm:$0xff]
        %v302 = vld [vmem:[%s278 + $0x8] sm:$0xff]
        %v303 = vld [vmem:[%s278 + $0x10] sm:$0xff]
        %v304 = vld [vmem:[%s278 + $0x18] sm:$0xff]
        %v305 = vld [vmem:[%s278 + $0x20] sm:$0xff]
        %v306 = vld [vmem:[%s278 + $0x28] sm:$0xff]
        %v307 = vld [vmem:[%s278 + $0x30] sm:$0xff]
        %v308 = vld [vmem:[%s278 + $0x38] sm:$0xff]
        %v309 = vld [vmem:[%s278 + $0x40] sm:$0xff]
        %v310 = vld [vmem:[%s278 + $0x48] sm:$0xff]
        %v311 = vld [vmem:[%s278 + $0x50] sm:$0xff]
        %v312 = vld [vmem:[%s278 + $0x58] sm:$0xff]
        %v313 = vld [vmem:[%s278 + $0x60] sm:$0xff]
        %v314 = vld [vmem:[%s278 + $0x68] sm:$0xff]
        %v315 = vld [vmem:[%s278 + $0x70] sm:$0xff]
        %v316 = vld [vmem:[%s278 + $0x78] sm:$0xff]
        %v317 = vld [vmem:[%s278 + $0x80] sm:$0xff]
        %v318 = vld [vmem:[%s278 + $0x88] sm:$0xff]
        %v319 = vld [vmem:[%s278 + $0x90] sm:$0xff]
        %v320 = vld [vmem:[%s278 + $0x98] sm:$0xff]
        %v321 = vld [vmem:[%s278 + $0xa0] sm:$0xff]
        %v322 = vld [vmem:[%s278 + $0xa8] sm:$0xff]
        %v323 = vld [vmem:[%s278 + $0xb0] sm:$0xff]
        %v324 = vld [vmem:[%s278 + $0xb8] sm:$0xff]
        %v325 = vld [vmem:[%s278 + $0xc0] sm:$0xff]
        %v326 = vld [vmem:[%s278 + $0xc8] sm:$0xff]
        %v327 = vld [vmem:[%s278 + $0xd0] sm:$0xff]
        %v328 = vld [vmem:[%s278 + $0xd8] sm:$0xff]
        %v329 = vld [vmem:[%s278 + $0xe0] sm:$0xff]
        %v330 = vld [vmem:[%s278 + $0xe8] sm:$0xff]
        %v331 = vld [vmem:[%s278 + $0xf0] sm:$0xff]
        %v332 = vld [vmem:[%s278 + $0xf8] sm:$0xff]
        %v333 = vld [vmem:[%s278 + $0x100] sm:$0xff]
        %v334 = vld [vmem:[%s278 + $0x108] sm:$0xff]
        %v335 = vld [vmem:[%s278 + $0x110] sm:$0xff]
        %v336 = vld [vmem:[%s278 + $0x118] sm:$0xff]
        %v337 = vld [vmem:[%s278 + $0x120] sm:$0xff]
        %v338 = vld [vmem:[%s278 + $0x128] sm:$0xff]
        %v339 = vld [vmem:[%s278 + $0x130] sm:$0xff]
        %v340 = vld [vmem:[%s278 + $0x138] sm:$0xff]
        %v341 = vld [vmem:[%s278 + $0x140] sm:$0xff]
        %v342 = vld [vmem:[%s278 + $0x148] sm:$0xff]
        %v343 = vld [vmem:[%s278 + $0x150] sm:$0xff]
        %v344 = vld [vmem:[%s278 + $0x158] sm:$0xff]
        %v345 = vld [vmem:[%s278 + $0x160] sm:$0xff]
        %v346 = vld [vmem:[%s278 + $0x168] sm:$0xff]
        %v347 = vld [vmem:[%s278 + $0x170] sm:$0xff]
        %v348 = vld [vmem:[%s278 + $0x178] sm:$0xff]
        %v349 = vld [vmem:[%s278 + $0x180] sm:$0xff]
        %v350 = vld [vmem:[%s278 + $0x188] sm:$0xff]
        %v351 = vld [vmem:[%s278 + $0x190] sm:$0xff]
        %v352 = vld [vmem:[%s278 + $0x198] sm:$0xff]
        %v353 = vld [vmem:[%s278 + $0x1a0] sm:$0xff]
        %v354 = vld [vmem:[%s278 + $0x1a8] sm:$0xff]
        %v355 = vld [vmem:[%s278 + $0x1b0] sm:$0xff]
        %v356 = vld [vmem:[%s278 + $0x1b8] sm:$0xff]
        %v357 = vld [vmem:[%s278 + $0x1c0] sm:$0xff]
        %v358 = vld [vmem:[%s278 + $0x1c8] sm:$0xff]
        %v359 = vld [vmem:[%s278 + $0x1d0] sm:$0xff]
        %v360 = vld [vmem:[%s278 + $0x1d8] sm:$0xff]
        %v361 = vld [vmem:[%s278 + $0x1e0] sm:$0xff]
        %v362 = vld [vmem:[%s278 + $0x1e8] sm:$0xff]
        %v363 = vld [vmem:[%s278 + $0x1f0] sm:$0xff]
        %v364 = vld [vmem:[%s278 + $0x1f8] sm:$0xff]
        %v365 = vld [vmem:[%s283] sm:$0x7]
        %v366 = vld [vmem:[%s288] sm:$0xf]
        %v367 = vld [vmem:[%s288 + $0x4] sm:$0xf]
        %v368 = vld [vmem:[%s288 + $0x8] sm:$0xf]
        %v369 = vld [vmem:[%s288 + $0xc] sm:$0xf]
        %v370 = vld [vmem:[%s288 + $0x10] sm:$0xf]
        %v371 = vld [vmem:[%s288 + $0x14] sm:$0xf]
        %v372 = vld [vmem:[%s288 + $0x18] sm:$0xf]
        %v373 = vld [vmem:[%s288 + $0x1c] sm:$0xf]
        %v374 = vld [vmem:[%s288 + $0x20] sm:$0xf]
        %v375 = vld [vmem:[%s288 + $0x24] sm:$0xf]
        %v376 = vld [vmem:[%s288 + $0x28] sm:$0xf]
        %v377 = vld [vmem:[%s288 + $0x2c] sm:$0xf]
        %v378 = vld [vmem:[%s288 + $0x30] sm:$0xf]
        %v379 = vld [vmem:[%s288 + $0x34] sm:$0xf]
        %v380 = vld [vmem:[%s288 + $0x38] sm:$0xf]
        %v381 = vld [vmem:[%s288 + $0x3c] sm:$0xf]
        %383 = vset.pattern.permute.xlu0 0
        %384 = vperm.xlu0 %383, %v301
        %v385 = vpop.permute.xlu0 %384
        %388 = vset.pattern.permute.xlu0 0
        %389 = vperm.xlu0 %388, %v302
        %v390 = vpop.permute.xlu0 %389
        %393 = vset.pattern.permute.xlu0 0
        %394 = vperm.xlu0 %393, %v303
        %v395 = vpop.permute.xlu0 %394
        %398 = vset.pattern.permute.xlu0 0
        %399 = vperm.xlu0 %398, %v304
        %v400 = vpop.permute.xlu0 %399
        %403 = vset.pattern.permute.xlu0 0
        %404 = vperm.xlu0 %403, %v305
        %v405 = vpop.permute.xlu0 %404
        %408 = vset.pattern.permute.xlu0 0
        %409 = vperm.xlu0 %408, %v306
        %v410 = vpop.permute.xlu0 %409
        %413 = vset.pattern.permute.xlu0 0
        %414 = vperm.xlu0 %413, %v307
        %v415 = vpop.permute.xlu0 %414
        %418 = vset.pattern.permute.xlu0 0
        %419 = vperm.xlu0 %418, %v308
        %v420 = vpop.permute.xlu0 %419
        %423 = vset.pattern.permute.xlu0 0
        %424 = vperm.xlu0 %423, %v309
        %v425 = vpop.permute.xlu0 %424
        %428 = vset.pattern.permute.xlu0 0
        %429 = vperm.xlu0 %428, %v310
        %v430 = vpop.permute.xlu0 %429
        %433 = vset.pattern.permute.xlu0 0
        %434 = vperm.xlu0 %433, %v311
        %v435 = vpop.permute.xlu0 %434
        %438 = vset.pattern.permute.xlu0 0
        %439 = vperm.xlu0 %438, %v312
        %v440 = vpop.permute.xlu0 %439
        %443 = vset.pattern.permute.xlu0 0
        %444 = vperm.xlu0 %443, %v313
        %v445 = vpop.permute.xlu0 %444
        %448 = vset.pattern.permute.xlu0 0
        %449 = vperm.xlu0 %448, %v314
        %v450 = vpop.permute.xlu0 %449
        %453 = vset.pattern.permute.xlu0 0
        %454 = vperm.xlu0 %453, %v315
        %v455 = vpop.permute.xlu0 %454
        %458 = vset.pattern.permute.xlu0 0
        %459 = vperm.xlu0 %458, %v316
        %v460 = vpop.permute.xlu0 %459
        %463 = vset.pattern.permute.xlu0 0
        %464 = vperm.xlu0 %463, %v317
        %v465 = vpop.permute.xlu0 %464
        %468 = vset.pattern.permute.xlu0 0
        %469 = vperm.xlu0 %468, %v318
        %v470 = vpop.permute.xlu0 %469
        %473 = vset.pattern.permute.xlu0 0
        %474 = vperm.xlu0 %473, %v319
        %v475 = vpop.permute.xlu0 %474
        %478 = vset.pattern.permute.xlu0 0
        %479 = vperm.xlu0 %478, %v320
        %v480 = vpop.permute.xlu0 %479
        %483 = vset.pattern.permute.xlu0 0
        %484 = vperm.xlu0 %483, %v321
        %v485 = vpop.permute.xlu0 %484
        %488 = vset.pattern.permute.xlu0 0
        %489 = vperm.xlu0 %488, %v322
        %v490 = vpop.permute.xlu0 %489
        %493 = vset.pattern.permute.xlu0 0
        %494 = vperm.xlu0 %493, %v323
        %v495 = vpop.permute.xlu0 %494
        %498 = vset.pattern.permute.xlu0 0
        %499 = vperm.xlu0 %498, %v324
        %v500 = vpop.permute.xlu0 %499
        %503 = vset.pattern.permute.xlu0 0
        %504 = vperm.xlu0 %503, %v325
        %v505 = vpop.permute.xlu0 %504
        %508 = vset.pattern.permute.xlu0 0
        %509 = vperm.xlu0 %508, %v326
        %v510 = vpop.permute.xlu0 %509
        %513 = vset.pattern.permute.xlu0 0
        %514 = vperm.xlu0 %513, %v327
        %v515 = vpop.permute.xlu0 %514
        %518 = vset.pattern.permute.xlu0 0
        %519 = vperm.xlu0 %518, %v328
        %v520 = vpop.permute.xlu0 %519
        %523 = vset.pattern.permute.xlu0 0
        %524 = vperm.xlu0 %523, %v329
        %v525 = vpop.permute.xlu0 %524
        %528 = vset.pattern.permute.xlu0 0
        %529 = vperm.xlu0 %528, %v330
        %v530 = vpop.permute.xlu0 %529
        %533 = vset.pattern.permute.xlu0 0
        %534 = vperm.xlu0 %533, %v331
        %v535 = vpop.permute.xlu0 %534
        %538 = vset.pattern.permute.xlu0 0
        %539 = vperm.xlu0 %538, %v332
        %v540 = vpop.permute.xlu0 %539
        %543 = vset.pattern.permute.xlu0 0
        %544 = vperm.xlu0 %543, %v333
        %v545 = vpop.permute.xlu0 %544
        %548 = vset.pattern.permute.xlu0 0
        %549 = vperm.xlu0 %548, %v334
        %v550 = vpop.permute.xlu0 %549
        %553 = vset.pattern.permute.xlu0 0
        %554 = vperm.xlu0 %553, %v335
        %v555 = vpop.permute.xlu0 %554
        %558 = vset.pattern.permute.xlu0 0
        %559 = vperm.xlu0 %558, %v336
        %v560 = vpop.permute.xlu0 %559
        %563 = vset.pattern.permute.xlu0 0
        %564 = vperm.xlu0 %563, %v337
        %v565 = vpop.permute.xlu0 %564
        %568 = vset.pattern.permute.xlu0 0
        %569 = vperm.xlu0 %568, %v338
        %v570 = vpop.permute.xlu0 %569
        %573 = vset.pattern.permute.xlu0 0
        %574 = vperm.xlu0 %573, %v339
        %v575 = vpop.permute.xlu0 %574
        %578 = vset.pattern.permute.xlu0 0
        %579 = vperm.xlu0 %578, %v340
        %v580 = vpop.permute.xlu0 %579
        %583 = vset.pattern.permute.xlu0 0
        %584 = vperm.xlu0 %583, %v341
        %v585 = vpop.permute.xlu0 %584
        %588 = vset.pattern.permute.xlu0 0
        %589 = vperm.xlu0 %588, %v342
        %v590 = vpop.permute.xlu0 %589
        %593 = vset.pattern.permute.xlu0 0
        %594 = vperm.xlu0 %593, %v343
        %v595 = vpop.permute.xlu0 %594
        %598 = vset.pattern.permute.xlu0 0
        %599 = vperm.xlu0 %598, %v344
        %v600 = vpop.permute.xlu0 %599
        %603 = vset.pattern.permute.xlu0 0
        %604 = vperm.xlu0 %603, %v345
        %v605 = vpop.permute.xlu0 %604
        %608 = vset.pattern.permute.xlu0 0
        %609 = vperm.xlu0 %608, %v346
        %v610 = vpop.permute.xlu0 %609
        %613 = vset.pattern.permute.xlu0 0
        %614 = vperm.xlu0 %613, %v347
        %v615 = vpop.permute.xlu0 %614
        %618 = vset.pattern.permute.xlu0 0
        %619 = vperm.xlu0 %618, %v348
        %v620 = vpop.permute.xlu0 %619
        %623 = vset.pattern.permute.xlu0 0
        %624 = vperm.xlu0 %623, %v349
        %v625 = vpop.permute.xlu0 %624
        %628 = vset.pattern.permute.xlu0 0
        %629 = vperm.xlu0 %628, %v350
        %v630 = vpop.permute.xlu0 %629
        %633 = vset.pattern.permute.xlu0 0
        %634 = vperm.xlu0 %633, %v351
        %v635 = vpop.permute.xlu0 %634
        %638 = vset.pattern.permute.xlu0 0
        %639 = vperm.xlu0 %638, %v352
        %v640 = vpop.permute.xlu0 %639
        %643 = vset.pattern.permute.xlu0 0
        %644 = vperm.xlu0 %643, %v353
        %v645 = vpop.permute.xlu0 %644
        %648 = vset.pattern.permute.xlu0 0
        %649 = vperm.xlu0 %648, %v354
        %v650 = vpop.permute.xlu0 %649
        %653 = vset.pattern.permute.xlu0 0
        %654 = vperm.xlu0 %653, %v355
        %v655 = vpop.permute.xlu0 %654
        %658 = vset.pattern.permute.xlu0 0
        %659 = vperm.xlu0 %658, %v356
        %v660 = vpop.permute.xlu0 %659
        %663 = vset.pattern.permute.xlu0 0
        %664 = vperm.xlu0 %663, %v357
        %v665 = vpop.permute.xlu0 %664
        %668 = vset.pattern.permute.xlu0 0
        %669 = vperm.xlu0 %668, %v358
        %v670 = vpop.permute.xlu0 %669
        %673 = vset.pattern.permute.xlu0 0
        %674 = vperm.xlu0 %673, %v359
        %v675 = vpop.permute.xlu0 %674
        %678 = vset.pattern.permute.xlu0 0
        %679 = vperm.xlu0 %678, %v360
        %v680 = vpop.permute.xlu0 %679
        %683 = vset.pattern.permute.xlu0 0
        %684 = vperm.xlu0 %683, %v361
        %v685 = vpop.permute.xlu0 %684
        %688 = vset.pattern.permute.xlu0 0
        %689 = vperm.xlu0 %688, %v362
        %v690 = vpop.permute.xlu0 %689
        %693 = vset.pattern.permute.xlu0 0
        %694 = vperm.xlu0 %693, %v363
        %v695 = vpop.permute.xlu0 %694
        %698 = vset.pattern.permute.xlu0 0
        %699 = vperm.xlu0 %698, %v364
        %v700 = vpop.permute.xlu0 %699
        %v702 = vlaneseq
        %v703 = vshrl.u32 %v702, 7
        %v704 = vsub.s32 0, %v703
        %v705 = vrot.slane %v365, %v704
        %v706 = vsub.f32 %v385, %v705
        %v707 = vsub.f32 %v390, %v705
        %v708 = vsub.f32 %v395, %v705
        %v709 = vsub.f32 %v400, %v705
        %v710 = vsub.f32 %v405, %v705
        %v711 = vsub.f32 %v410, %v705
        %v712 = vsub.f32 %v415, %v705
        %v713 = vsub.f32 %v420, %v705
        %v714 = vsub.f32 %v425, %v705
        %v715 = vsub.f32 %v430, %v705
        %v716 = vsub.f32 %v435, %v705
        %v717 = vsub.f32 %v440, %v705
        %v718 = vsub.f32 %v445, %v705
        %v719 = vsub.f32 %v450, %v705
        %v720 = vsub.f32 %v455, %v705
        %v721 = vsub.f32 %v460, %v705
        %v722 = vsub.f32 %v465, %v705
        %v723 = vsub.f32 %v470, %v705
        %v724 = vsub.f32 %v475, %v705
        %v725 = vsub.f32 %v480, %v705
        %v726 = vsub.f32 %v485, %v705
        %v727 = vsub.f32 %v490, %v705
        %v728 = vsub.f32 %v495, %v705
        %v729 = vsub.f32 %v500, %v705
        %v730 = vsub.f32 %v505, %v705
        %v731 = vsub.f32 %v510, %v705
        %v732 = vsub.f32 %v515, %v705
        %v733 = vsub.f32 %v520, %v705
        %v734 = vsub.f32 %v525, %v705
        %v735 = vsub.f32 %v530, %v705
        %v736 = vsub.f32 %v535, %v705
        %v737 = vsub.f32 %v540, %v705
        %v738 = vsub.f32 %v545, %v705
        %v739 = vsub.f32 %v550, %v705
        %v740 = vsub.f32 %v555, %v705
        %v741 = vsub.f32 %v560, %v705
        %v742 = vsub.f32 %v565, %v705
        %v743 = vsub.f32 %v570, %v705
        %v744 = vsub.f32 %v575, %v705
        %v745 = vsub.f32 %v580, %v705
        %v746 = vsub.f32 %v585, %v705
        %v747 = vsub.f32 %v590, %v705
        %v748 = vsub.f32 %v595, %v705
        %v749 = vsub.f32 %v600, %v705
        %v750 = vsub.f32 %v605, %v705
        %v751 = vsub.f32 %v610, %v705
        %v752 = vsub.f32 %v615, %v705
        %v753 = vsub.f32 %v620, %v705
        %v754 = vsub.f32 %v625, %v705
        %v755 = vsub.f32 %v630, %v705
        %v756 = vsub.f32 %v635, %v705
        %v757 = vsub.f32 %v640, %v705
        %v758 = vsub.f32 %v645, %v705
        %v759 = vsub.f32 %v650, %v705
        %v760 = vsub.f32 %v655, %v705
        %v761 = vsub.f32 %v660, %v705
        %v762 = vsub.f32 %v665, %v705
        %v763 = vsub.f32 %v670, %v705
        %v764 = vsub.f32 %v675, %v705
        %v765 = vsub.f32 %v680, %v705
        %v766 = vsub.f32 %v685, %v705
        %v767 = vsub.f32 %v690, %v705
        %v768 = vsub.f32 %v695, %v705
        %v769 = vsub.f32 %v700, %v705
        %v770 = vmul.f32 %v706, %v706
        %v771 = vmul.f32 %v707, %v707
        %v772 = vmul.f32 %v708, %v708
        %v773 = vmul.f32 %v709, %v709
        %v774 = vmul.f32 %v710, %v710
        %v775 = vmul.f32 %v711, %v711
        %v776 = vmul.f32 %v712, %v712
        %v777 = vmul.f32 %v713, %v713
        %v778 = vmul.f32 %v714, %v714
        %v779 = vmul.f32 %v715, %v715
        %v780 = vmul.f32 %v716, %v716
        %v781 = vmul.f32 %v717, %v717
        %v782 = vmul.f32 %v718, %v718
        %v783 = vmul.f32 %v719, %v719
        %v784 = vmul.f32 %v720, %v720
        %v785 = vmul.f32 %v721, %v721
        %v786 = vmul.f32 %v722, %v722
        %v787 = vmul.f32 %v723, %v723
        %v788 = vmul.f32 %v724, %v724
        %v789 = vmul.f32 %v725, %v725
        %v790 = vmul.f32 %v726, %v726
        %v791 = vmul.f32 %v727, %v727
        %v792 = vmul.f32 %v728, %v728
        %v793 = vmul.f32 %v729, %v729
        %v794 = vmul.f32 %v730, %v730
        %v795 = vmul.f32 %v731, %v731
        %v796 = vmul.f32 %v732, %v732
        %v797 = vmul.f32 %v733, %v733
        %v798 = vmul.f32 %v734, %v734
        %v799 = vmul.f32 %v735, %v735
        %v800 = vmul.f32 %v736, %v736
        %v801 = vmul.f32 %v737, %v737
        %v802 = vmul.f32 %v738, %v738
        %v803 = vmul.f32 %v739, %v739
        %v804 = vmul.f32 %v740, %v740
        %v805 = vmul.f32 %v741, %v741
        %v806 = vmul.f32 %v742, %v742
        %v807 = vmul.f32 %v743, %v743
        %v808 = vmul.f32 %v744, %v744
        %v809 = vmul.f32 %v745, %v745
        %v810 = vmul.f32 %v746, %v746
        %v811 = vmul.f32 %v747, %v747
        %v812 = vmul.f32 %v748, %v748
        %v813 = vmul.f32 %v749, %v749
        %v814 = vmul.f32 %v750, %v750
        %v815 = vmul.f32 %v751, %v751
        %v816 = vmul.f32 %v752, %v752
        %v817 = vmul.f32 %v753, %v753
        %v818 = vmul.f32 %v754, %v754
        %v819 = vmul.f32 %v755, %v755
        %v820 = vmul.f32 %v756, %v756
        %v821 = vmul.f32 %v757, %v757
        %v822 = vmul.f32 %v758, %v758
        %v823 = vmul.f32 %v759, %v759
        %v824 = vmul.f32 %v760, %v760
        %v825 = vmul.f32 %v761, %v761
        %v826 = vmul.f32 %v762, %v762
        %v827 = vmul.f32 %v763, %v763
        %v828 = vmul.f32 %v764, %v764
        %v829 = vmul.f32 %v765, %v765
        %v830 = vmul.f32 %v766, %v766
        %v831 = vmul.f32 %v767, %v767
        %v832 = vmul.f32 %v768, %v768
        %v833 = vmul.f32 %v769, %v769
        %v834 = vadd.f32 %v770, 0.0
        %v835 = vadd.f32 %v771, 0.0
        %v836 = vadd.f32 %v772, 0.0
        %v837 = vadd.f32 %v773, 0.0
        %v838 = vadd.f32 %v774, 0.0
        %v839 = vadd.f32 %v775, 0.0
        %v840 = vadd.f32 %v776, 0.0
        %v841 = vadd.f32 %v777, 0.0
        %v842 = vadd.f32 %v778, 0.0
        %v843 = vadd.f32 %v779, 0.0
        %v844 = vadd.f32 %v780, 0.0
        %v845 = vadd.f32 %v781, 0.0
        %v846 = vadd.f32 %v782, 0.0
        %v847 = vadd.f32 %v783, 0.0
        %v848 = vadd.f32 %v784, 0.0
        %v849 = vadd.f32 %v785, 0.0
        %v850 = vadd.f32 %v786, 0.0
        %v851 = vadd.f32 %v787, 0.0
        %v852 = vadd.f32 %v788, 0.0
        %v853 = vadd.f32 %v789, 0.0
        %v854 = vadd.f32 %v790, 0.0
        %v855 = vadd.f32 %v791, 0.0
        %v856 = vadd.f32 %v792, 0.0
        %v857 = vadd.f32 %v793, 0.0
        %v858 = vadd.f32 %v794, 0.0
        %v859 = vadd.f32 %v795, 0.0
        %v860 = vadd.f32 %v796, 0.0
        %v861 = vadd.f32 %v797, 0.0
        %v862 = vadd.f32 %v798, 0.0
        %v863 = vadd.f32 %v799, 0.0
        %v864 = vadd.f32 %v800, 0.0
        %v865 = vadd.f32 %v801, 0.0
        %v866 = vadd.f32 %v802, 0.0
        %v867 = vadd.f32 %v803, 0.0
        %v868 = vadd.f32 %v804, 0.0
        %v869 = vadd.f32 %v805, 0.0
        %v870 = vadd.f32 %v806, 0.0
        %v871 = vadd.f32 %v807, 0.0
        %v872 = vadd.f32 %v808, 0.0
        %v873 = vadd.f32 %v809, 0.0
        %v874 = vadd.f32 %v810, 0.0
        %v875 = vadd.f32 %v811, 0.0
        %v876 = vadd.f32 %v812, 0.0
        %v877 = vadd.f32 %v813, 0.0
        %v878 = vadd.f32 %v814, 0.0
        %v879 = vadd.f32 %v815, 0.0
        %v880 = vadd.f32 %v816, 0.0
        %v881 = vadd.f32 %v817, 0.0
        %v882 = vadd.f32 %v818, 0.0
        %v883 = vadd.f32 %v819, 0.0
        %v884 = vadd.f32 %v820, 0.0
        %v885 = vadd.f32 %v821, 0.0
        %v886 = vadd.f32 %v822, 0.0
        %v887 = vadd.f32 %v823, 0.0
        %v888 = vadd.f32 %v824, 0.0
        %v889 = vadd.f32 %v825, 0.0
        %v890 = vadd.f32 %v826, 0.0
        %v891 = vadd.f32 %v827, 0.0
        %v892 = vadd.f32 %v828, 0.0
        %v893 = vadd.f32 %v829, 0.0
        %v894 = vadd.f32 %v830, 0.0
        %v895 = vadd.f32 %v831, 0.0
        %v896 = vadd.f32 %v832, 0.0
        %v897 = vadd.f32 %v833, 0.0
        %898 = vset.pattern.permute.xlu0 1
        %899 = vperm.xlu0 %898, %v301
        %v900 = vpop.permute.xlu0 %899
        %902 = vset.pattern.permute.xlu0 1
        %903 = vperm.xlu0 %902, %v302
        %v904 = vpop.permute.xlu0 %903
        %906 = vset.pattern.permute.xlu0 1
        %907 = vperm.xlu0 %906, %v303
        %v908 = vpop.permute.xlu0 %907
        %910 = vset.pattern.permute.xlu0 1
        %911 = vperm.xlu0 %910, %v304
        %v912 = vpop.permute.xlu0 %911
        %914 = vset.pattern.permute.xlu0 1
        %915 = vperm.xlu0 %914, %v305
        %v916 = vpop.permute.xlu0 %915
        %918 = vset.pattern.permute.xlu0 1
        %919 = vperm.xlu0 %918, %v306
        %v920 = vpop.permute.xlu0 %919
        %922 = vset.pattern.permute.xlu0 1
        %923 = vperm.xlu0 %922, %v307
        %v924 = vpop.permute.xlu0 %923
        %926 = vset.pattern.permute.xlu0 1
        %927 = vperm.xlu0 %926, %v308
        %v928 = vpop.permute.xlu0 %927
        %930 = vset.pattern.permute.xlu0 1
        %931 = vperm.xlu0 %930, %v309
        %v932 = vpop.permute.xlu0 %931
        %934 = vset.pattern.permute.xlu0 1
        %935 = vperm.xlu0 %934, %v310
        %v936 = vpop.permute.xlu0 %935
        %938 = vset.pattern.permute.xlu0 1
        %939 = vperm.xlu0 %938, %v311
        %v940 = vpop.permute.xlu0 %939
        %942 = vset.pattern.permute.xlu0 1
        %943 = vperm.xlu0 %942, %v312
        %v944 = vpop.permute.xlu0 %943
        %946 = vset.pattern.permute.xlu0 1
        %947 = vperm.xlu0 %946, %v313
        %v948 = vpop.permute.xlu0 %947
        %950 = vset.pattern.permute.xlu0 1
        %951 = vperm.xlu0 %950, %v314
        %v952 = vpop.permute.xlu0 %951
        %954 = vset.pattern.permute.xlu0 1
        %955 = vperm.xlu0 %954, %v315
        %v956 = vpop.permute.xlu0 %955
        %958 = vset.pattern.permute.xlu0 1
        %959 = vperm.xlu0 %958, %v316
        %v960 = vpop.permute.xlu0 %959
        %962 = vset.pattern.permute.xlu0 1
        %963 = vperm.xlu0 %962, %v317
        %v964 = vpop.permute.xlu0 %963
        %966 = vset.pattern.permute.xlu0 1
        %967 = vperm.xlu0 %966, %v318
        %v968 = vpop.permute.xlu0 %967
        %970 = vset.pattern.permute.xlu0 1
        %971 = vperm.xlu0 %970, %v319
        %v972 = vpop.permute.xlu0 %971
        %974 = vset.pattern.permute.xlu0 1
        %975 = vperm.xlu0 %974, %v320
        %v976 = vpop.permute.xlu0 %975
        %978 = vset.pattern.permute.xlu0 1
        %979 = vperm.xlu0 %978, %v321
        %v980 = vpop.permute.xlu0 %979
        %982 = vset.pattern.permute.xlu0 1
        %983 = vperm.xlu0 %982, %v322
        %v984 = vpop.permute.xlu0 %983
        %986 = vset.pattern.permute.xlu0 1
        %987 = vperm.xlu0 %986, %v323
        %v988 = vpop.permute.xlu0 %987
        %990 = vset.pattern.permute.xlu0 1
        %991 = vperm.xlu0 %990, %v324
        %v992 = vpop.permute.xlu0 %991
        %994 = vset.pattern.permute.xlu0 1
        %995 = vperm.xlu0 %994, %v325
        %v996 = vpop.permute.xlu0 %995
        %998 = vset.pattern.permute.xlu0 1
        %999 = vperm.xlu0 %998, %v326
        %v1000 = vpop.permute.xlu0 %999
        %1002 = vset.pattern.permute.xlu0 1
        %1003 = vperm.xlu0 %1002, %v327
        %v1004 = vpop.permute.xlu0 %1003
        %1006 = vset.pattern.permute.xlu0 1
        %1007 = vperm.xlu0 %1006, %v328
        %v1008 = vpop.permute.xlu0 %1007
        %1010 = vset.pattern.permute.xlu0 1
        %1011 = vperm.xlu0 %1010, %v329
        %v1012 = vpop.permute.xlu0 %1011
        %1014 = vset.pattern.permute.xlu0 1
        %1015 = vperm.xlu0 %1014, %v330
        %v1016 = vpop.permute.xlu0 %1015
        %1018 = vset.pattern.permute.xlu0 1
        %1019 = vperm.xlu0 %1018, %v331
        %v1020 = vpop.permute.xlu0 %1019
        %1022 = vset.pattern.permute.xlu0 1
        %1023 = vperm.xlu0 %1022, %v332
        %v1024 = vpop.permute.xlu0 %1023
        %1026 = vset.pattern.permute.xlu0 1
        %1027 = vperm.xlu0 %1026, %v333
        %v1028 = vpop.permute.xlu0 %1027
        %1030 = vset.pattern.permute.xlu0 1
        %1031 = vperm.xlu0 %1030, %v334
        %v1032 = vpop.permute.xlu0 %1031
        %1034 = vset.pattern.permute.xlu0 1
        %1035 = vperm.xlu0 %1034, %v335
        %v1036 = vpop.permute.xlu0 %1035
        %1038 = vset.pattern.permute.xlu0 1
        %1039 = vperm.xlu0 %1038, %v336
        %v1040 = vpop.permute.xlu0 %1039
        %1042 = vset.pattern.permute.xlu0 1
        %1043 = vperm.xlu0 %1042, %v337
        %v1044 = vpop.permute.xlu0 %1043
        %1046 = vset.pattern.permute.xlu0 1
        %1047 = vperm.xlu0 %1046, %v338
        %v1048 = vpop.permute.xlu0 %1047
        %1050 = vset.pattern.permute.xlu0 1
        %1051 = vperm.xlu0 %1050, %v339
        %v1052 = vpop.permute.xlu0 %1051
        %1054 = vset.pattern.permute.xlu0 1
        %1055 = vperm.xlu0 %1054, %v340
        %v1056 = vpop.permute.xlu0 %1055
        %1058 = vset.pattern.permute.xlu0 1
        %1059 = vperm.xlu0 %1058, %v341
        %v1060 = vpop.permute.xlu0 %1059
        %1062 = vset.pattern.permute.xlu0 1
        %1063 = vperm.xlu0 %1062, %v342
        %v1064 = vpop.permute.xlu0 %1063
        %1066 = vset.pattern.permute.xlu0 1
        %1067 = vperm.xlu0 %1066, %v343
        %v1068 = vpop.permute.xlu0 %1067
        %1070 = vset.pattern.permute.xlu0 1
        %1071 = vperm.xlu0 %1070, %v344
        %v1072 = vpop.permute.xlu0 %1071
        %1074 = vset.pattern.permute.xlu0 1
        %1075 = vperm.xlu0 %1074, %v345
        %v1076 = vpop.permute.xlu0 %1075
        %1078 = vset.pattern.permute.xlu0 1
        %1079 = vperm.xlu0 %1078, %v346
        %v1080 = vpop.permute.xlu0 %1079
        %1082 = vset.pattern.permute.xlu0 1
        %1083 = vperm.xlu0 %1082, %v347
        %v1084 = vpop.permute.xlu0 %1083
        %1086 = vset.pattern.permute.xlu0 1
        %1087 = vperm.xlu0 %1086, %v348
        %v1088 = vpop.permute.xlu0 %1087
        %1090 = vset.pattern.permute.xlu0 1
        %1091 = vperm.xlu0 %1090, %v349
        %v1092 = vpop.permute.xlu0 %1091
        %1094 = vset.pattern.permute.xlu0 1
        %1095 = vperm.xlu0 %1094, %v350
        %v1096 = vpop.permute.xlu0 %1095
        %1098 = vset.pattern.permute.xlu0 1
        %1099 = vperm.xlu0 %1098, %v351
        %v1100 = vpop.permute.xlu0 %1099
        %1102 = vset.pattern.permute.xlu0 1
        %1103 = vperm.xlu0 %1102, %v352
        %v1104 = vpop.permute.xlu0 %1103
        %1106 = vset.pattern.permute.xlu0 1
        %1107 = vperm.xlu0 %1106, %v353
        %v1108 = vpop.permute.xlu0 %1107
        %1110 = vset.pattern.permute.xlu0 1
        %1111 = vperm.xlu0 %1110, %v354
        %v1112 = vpop.permute.xlu0 %1111
        %1114 = vset.pattern.permute.xlu0 1
        %1115 = vperm.xlu0 %1114, %v355
        %v1116 = vpop.permute.xlu0 %1115
        %1118 = vset.pattern.permute.xlu0 1
        %1119 = vperm.xlu0 %1118, %v356
        %v1120 = vpop.permute.xlu0 %1119
        %1122 = vset.pattern.permute.xlu0 1
        %1123 = vperm.xlu0 %1122, %v357
        %v1124 = vpop.permute.xlu0 %1123
        %1126 = vset.pattern.permute.xlu0 1
        %1127 = vperm.xlu0 %1126, %v358
        %v1128 = vpop.permute.xlu0 %1127
        %1130 = vset.pattern.permute.xlu0 1
        %1131 = vperm.xlu0 %1130, %v359
        %v1132 = vpop.permute.xlu0 %1131
        %1134 = vset.pattern.permute.xlu0 1
        %1135 = vperm.xlu0 %1134, %v360
        %v1136 = vpop.permute.xlu0 %1135
        %1138 = vset.pattern.permute.xlu0 1
        %1139 = vperm.xlu0 %1138, %v361
        %v1140 = vpop.permute.xlu0 %1139
        %1142 = vset.pattern.permute.xlu0 1
        %1143 = vperm.xlu0 %1142, %v362
        %v1144 = vpop.permute.xlu0 %1143
        %1146 = vset.pattern.permute.xlu0 1
        %1147 = vperm.xlu0 %1146, %v363
        %v1148 = vpop.permute.xlu0 %1147
        %1150 = vset.pattern.permute.xlu0 1
        %1151 = vperm.xlu0 %1150, %v364
        %v1152 = vpop.permute.xlu0 %1151
        %v1154 = vlaneseq
        %v1155 = vshrl.u32 %v1154, 7
        %v1156 = vsub.s32 1, %v1155
        %v1157 = vrot.slane %v365, %v1156
        %v1158 = vsub.f32 %v900, %v1157
        %v1159 = vsub.f32 %v904, %v1157
        %v1160 = vsub.f32 %v908, %v1157
        %v1161 = vsub.f32 %v912, %v1157
        %v1162 = vsub.f32 %v916, %v1157
        %v1163 = vsub.f32 %v920, %v1157
        %v1164 = vsub.f32 %v924, %v1157
        %v1165 = vsub.f32 %v928, %v1157
        %v1166 = vsub.f32 %v932, %v1157
        %v1167 = vsub.f32 %v936, %v1157
        %v1168 = vsub.f32 %v940, %v1157
        %v1169 = vsub.f32 %v944, %v1157
        %v1170 = vsub.f32 %v948, %v1157
        %v1171 = vsub.f32 %v952, %v1157
        %v1172 = vsub.f32 %v956, %v1157
        %v1173 = vsub.f32 %v960, %v1157
        %v1174 = vsub.f32 %v964, %v1157
        %v1175 = vsub.f32 %v968, %v1157
        %v1176 = vsub.f32 %v972, %v1157
        %v1177 = vsub.f32 %v976, %v1157
        %v1178 = vsub.f32 %v980, %v1157
        %v1179 = vsub.f32 %v984, %v1157
        %v1180 = vsub.f32 %v988, %v1157
        %v1181 = vsub.f32 %v992, %v1157
        %v1182 = vsub.f32 %v996, %v1157
        %v1183 = vsub.f32 %v1000, %v1157
        %v1184 = vsub.f32 %v1004, %v1157
        %v1185 = vsub.f32 %v1008, %v1157
        %v1186 = vsub.f32 %v1012, %v1157
        %v1187 = vsub.f32 %v1016, %v1157
        %v1188 = vsub.f32 %v1020, %v1157
        %v1189 = vsub.f32 %v1024, %v1157
        %v1190 = vsub.f32 %v1028, %v1157
        %v1191 = vsub.f32 %v1032, %v1157
        %v1192 = vsub.f32 %v1036, %v1157
        %v1193 = vsub.f32 %v1040, %v1157
        %v1194 = vsub.f32 %v1044, %v1157
        %v1195 = vsub.f32 %v1048, %v1157
        %v1196 = vsub.f32 %v1052, %v1157
        %v1197 = vsub.f32 %v1056, %v1157
        %v1198 = vsub.f32 %v1060, %v1157
        %v1199 = vsub.f32 %v1064, %v1157
        %v1200 = vsub.f32 %v1068, %v1157
        %v1201 = vsub.f32 %v1072, %v1157
        %v1202 = vsub.f32 %v1076, %v1157
        %v1203 = vsub.f32 %v1080, %v1157
        %v1204 = vsub.f32 %v1084, %v1157
        %v1205 = vsub.f32 %v1088, %v1157
        %v1206 = vsub.f32 %v1092, %v1157
        %v1207 = vsub.f32 %v1096, %v1157
        %v1208 = vsub.f32 %v1100, %v1157
        %v1209 = vsub.f32 %v1104, %v1157
        %v1210 = vsub.f32 %v1108, %v1157
        %v1211 = vsub.f32 %v1112, %v1157
        %v1212 = vsub.f32 %v1116, %v1157
        %v1213 = vsub.f32 %v1120, %v1157
        %v1214 = vsub.f32 %v1124, %v1157
        %v1215 = vsub.f32 %v1128, %v1157
        %v1216 = vsub.f32 %v1132, %v1157
        %v1217 = vsub.f32 %v1136, %v1157
        %v1218 = vsub.f32 %v1140, %v1157
        %v1219 = vsub.f32 %v1144, %v1157
        %v1220 = vsub.f32 %v1148, %v1157
        %v1221 = vsub.f32 %v1152, %v1157
        %v1222 = vmul.f32 %v1158, %v1158
        %v1223 = vmul.f32 %v1159, %v1159
        %v1224 = vmul.f32 %v1160, %v1160
        %v1225 = vmul.f32 %v1161, %v1161
        %v1226 = vmul.f32 %v1162, %v1162
        %v1227 = vmul.f32 %v1163, %v1163
        %v1228 = vmul.f32 %v1164, %v1164
        %v1229 = vmul.f32 %v1165, %v1165
        %v1230 = vmul.f32 %v1166, %v1166
        %v1231 = vmul.f32 %v1167, %v1167
        %v1232 = vmul.f32 %v1168, %v1168
        %v1233 = vmul.f32 %v1169, %v1169
        %v1234 = vmul.f32 %v1170, %v1170
        %v1235 = vmul.f32 %v1171, %v1171
        %v1236 = vmul.f32 %v1172, %v1172
        %v1237 = vmul.f32 %v1173, %v1173
        %v1238 = vmul.f32 %v1174, %v1174
        %v1239 = vmul.f32 %v1175, %v1175
        %v1240 = vmul.f32 %v1176, %v1176
        %v1241 = vmul.f32 %v1177, %v1177
        %v1242 = vmul.f32 %v1178, %v1178
        %v1243 = vmul.f32 %v1179, %v1179
        %v1244 = vmul.f32 %v1180, %v1180
        %v1245 = vmul.f32 %v1181, %v1181
        %v1246 = vmul.f32 %v1182, %v1182
        %v1247 = vmul.f32 %v1183, %v1183
        %v1248 = vmul.f32 %v1184, %v1184
        %v1249 = vmul.f32 %v1185, %v1185
        %v1250 = vmul.f32 %v1186, %v1186
        %v1251 = vmul.f32 %v1187, %v1187
        %v1252 = vmul.f32 %v1188, %v1188
        %v1253 = vmul.f32 %v1189, %v1189
        %v1254 = vmul.f32 %v1190, %v1190
        %v1255 = vmul.f32 %v1191, %v1191
        %v1256 = vmul.f32 %v1192, %v1192
        %v1257 = vmul.f32 %v1193, %v1193
        %v1258 = vmul.f32 %v1194, %v1194
        %v1259 = vmul.f32 %v1195, %v1195
        %v1260 = vmul.f32 %v1196, %v1196
        %v1261 = vmul.f32 %v1197, %v1197
        %v1262 = vmul.f32 %v1198, %v1198
        %v1263 = vmul.f32 %v1199, %v1199
        %v1264 = vmul.f32 %v1200, %v1200
        %v1265 = vmul.f32 %v1201, %v1201
        %v1266 = vmul.f32 %v1202, %v1202
        %v1267 = vmul.f32 %v1203, %v1203
        %v1268 = vmul.f32 %v1204, %v1204
        %v1269 = vmul.f32 %v1205, %v1205
        %v1270 = vmul.f32 %v1206, %v1206
        %v1271 = vmul.f32 %v1207, %v1207
        %v1272 = vmul.f32 %v1208, %v1208
        %v1273 = vmul.f32 %v1209, %v1209
        %v1274 = vmul.f32 %v1210, %v1210
        %v1275 = vmul.f32 %v1211, %v1211
        %v1276 = vmul.f32 %v1212, %v1212
        %v1277 = vmul.f32 %v1213, %v1213
        %v1278 = vmul.f32 %v1214, %v1214
        %v1279 = vmul.f32 %v1215, %v1215
        %v1280 = vmul.f32 %v1216, %v1216
        %v1281 = vmul.f32 %v1217, %v1217
        %v1282 = vmul.f32 %v1218, %v1218
        %v1283 = vmul.f32 %v1219, %v1219
        %v1284 = vmul.f32 %v1220, %v1220
        %v1285 = vmul.f32 %v1221, %v1221
        %v1286 = vadd.f32 %v834, %v1222
        %v1287 = vadd.f32 %v835, %v1223
        %v1288 = vadd.f32 %v836, %v1224
        %v1289 = vadd.f32 %v837, %v1225
        %v1290 = vadd.f32 %v838, %v1226
        %v1291 = vadd.f32 %v839, %v1227
        %v1292 = vadd.f32 %v840, %v1228
        %v1293 = vadd.f32 %v841, %v1229
        %v1294 = vadd.f32 %v842, %v1230
        %v1295 = vadd.f32 %v843, %v1231
        %v1296 = vadd.f32 %v844, %v1232
        %v1297 = vadd.f32 %v845, %v1233
        %v1298 = vadd.f32 %v846, %v1234
        %v1299 = vadd.f32 %v847, %v1235
        %v1300 = vadd.f32 %v848, %v1236
        %v1301 = vadd.f32 %v849, %v1237
        %v1302 = vadd.f32 %v850, %v1238
        %v1303 = vadd.f32 %v851, %v1239
        %v1304 = vadd.f32 %v852, %v1240
        %v1305 = vadd.f32 %v853, %v1241
        %v1306 = vadd.f32 %v854, %v1242
        %v1307 = vadd.f32 %v855, %v1243
        %v1308 = vadd.f32 %v856, %v1244
        %v1309 = vadd.f32 %v857, %v1245
        %v1310 = vadd.f32 %v858, %v1246
        %v1311 = vadd.f32 %v859, %v1247
        %v1312 = vadd.f32 %v860, %v1248
        %v1313 = vadd.f32 %v861, %v1249
        %v1314 = vadd.f32 %v862, %v1250
        %v1315 = vadd.f32 %v863, %v1251
        %v1316 = vadd.f32 %v864, %v1252
        %v1317 = vadd.f32 %v865, %v1253
        %v1318 = vadd.f32 %v866, %v1254
        %v1319 = vadd.f32 %v867, %v1255
        %v1320 = vadd.f32 %v868, %v1256
        %v1321 = vadd.f32 %v869, %v1257
        %v1322 = vadd.f32 %v870, %v1258
        %v1323 = vadd.f32 %v871, %v1259
        %v1324 = vadd.f32 %v872, %v1260
        %v1325 = vadd.f32 %v873, %v1261
        %v1326 = vadd.f32 %v874, %v1262
        %v1327 = vadd.f32 %v875, %v1263
        %v1328 = vadd.f32 %v876, %v1264
        %v1329 = vadd.f32 %v877, %v1265
        %v1330 = vadd.f32 %v878, %v1266
        %v1331 = vadd.f32 %v879, %v1267
        %v1332 = vadd.f32 %v880, %v1268
        %v1333 = vadd.f32 %v881, %v1269
        %v1334 = vadd.f32 %v882, %v1270
        %v1335 = vadd.f32 %v883, %v1271
        %v1336 = vadd.f32 %v884, %v1272
        %v1337 = vadd.f32 %v885, %v1273
        %v1338 = vadd.f32 %v886, %v1274
        %v1339 = vadd.f32 %v887, %v1275
        %v1340 = vadd.f32 %v888, %v1276
        %v1341 = vadd.f32 %v889, %v1277
        %v1342 = vadd.f32 %v890, %v1278
        %v1343 = vadd.f32 %v891, %v1279
        %v1344 = vadd.f32 %v892, %v1280
        %v1345 = vadd.f32 %v893, %v1281
        %v1346 = vadd.f32 %v894, %v1282
        %v1347 = vadd.f32 %v895, %v1283
        %v1348 = vadd.f32 %v896, %v1284
        %v1349 = vadd.f32 %v897, %v1285
        %1350 = vset.pattern.permute.xlu0 2
        %1351 = vperm.xlu0 %1350, %v301
        %v1352 = vpop.permute.xlu0 %1351
        %1354 = vset.pattern.permute.xlu0 2
        %1355 = vperm.xlu0 %1354, %v302
        %v1356 = vpop.permute.xlu0 %1355
        %1358 = vset.pattern.permute.xlu0 2
        %1359 = vperm.xlu0 %1358, %v303
        %v1360 = vpop.permute.xlu0 %1359
        %1362 = vset.pattern.permute.xlu0 2
        %1363 = vperm.xlu0 %1362, %v304
        %v1364 = vpop.permute.xlu0 %1363
        %1366 = vset.pattern.permute.xlu0 2
        %1367 = vperm.xlu0 %1366, %v305
        %v1368 = vpop.permute.xlu0 %1367
        %1370 = vset.pattern.permute.xlu0 2
        %1371 = vperm.xlu0 %1370, %v306
        %v1372 = vpop.permute.xlu0 %1371
        %1374 = vset.pattern.permute.xlu0 2
        %1375 = vperm.xlu0 %1374, %v307
        %v1376 = vpop.permute.xlu0 %1375
        %1378 = vset.pattern.permute.xlu0 2
        %1379 = vperm.xlu0 %1378, %v308
        %v1380 = vpop.permute.xlu0 %1379
        %1382 = vset.pattern.permute.xlu0 2
        %1383 = vperm.xlu0 %1382, %v309
        %v1384 = vpop.permute.xlu0 %1383
        %1386 = vset.pattern.permute.xlu0 2
        %1387 = vperm.xlu0 %1386, %v310
        %v1388 = vpop.permute.xlu0 %1387
        %1390 = vset.pattern.permute.xlu0 2
        %1391 = vperm.xlu0 %1390, %v311
        %v1392 = vpop.permute.xlu0 %1391
        %1394 = vset.pattern.permute.xlu0 2
        %1395 = vperm.xlu0 %1394, %v312
        %v1396 = vpop.permute.xlu0 %1395
        %1398 = vset.pattern.permute.xlu0 2
        %1399 = vperm.xlu0 %1398, %v313
        %v1400 = vpop.permute.xlu0 %1399
        %1402 = vset.pattern.permute.xlu0 2
        %1403 = vperm.xlu0 %1402, %v314
        %v1404 = vpop.permute.xlu0 %1403
        %1406 = vset.pattern.permute.xlu0 2
        %1407 = vperm.xlu0 %1406, %v315
        %v1408 = vpop.permute.xlu0 %1407
        %1410 = vset.pattern.permute.xlu0 2
        %1411 = vperm.xlu0 %1410, %v316
        %v1412 = vpop.permute.xlu0 %1411
        %1414 = vset.pattern.permute.xlu0 2
        %1415 = vperm.xlu0 %1414, %v317
        %v1416 = vpop.permute.xlu0 %1415
        %1418 = vset.pattern.permute.xlu0 2
        %1419 = vperm.xlu0 %1418, %v318
        %v1420 = vpop.permute.xlu0 %1419
        %1422 = vset.pattern.permute.xlu0 2
        %1423 = vperm.xlu0 %1422, %v319
        %v1424 = vpop.permute.xlu0 %1423
        %1426 = vset.pattern.permute.xlu0 2
        %1427 = vperm.xlu0 %1426, %v320
        %v1428 = vpop.permute.xlu0 %1427
        %1430 = vset.pattern.permute.xlu0 2
        %1431 = vperm.xlu0 %1430, %v321
        %v1432 = vpop.permute.xlu0 %1431
        %1434 = vset.pattern.permute.xlu0 2
        %1435 = vperm.xlu0 %1434, %v322
        %v1436 = vpop.permute.xlu0 %1435
        %1438 = vset.pattern.permute.xlu0 2
        %1439 = vperm.xlu0 %1438, %v323
        %v1440 = vpop.permute.xlu0 %1439
        %1442 = vset.pattern.permute.xlu0 2
        %1443 = vperm.xlu0 %1442, %v324
        %v1444 = vpop.permute.xlu0 %1443
        %1446 = vset.pattern.permute.xlu0 2
        %1447 = vperm.xlu0 %1446, %v325
        %v1448 = vpop.permute.xlu0 %1447
        %1450 = vset.pattern.permute.xlu0 2
        %1451 = vperm.xlu0 %1450, %v326
        %v1452 = vpop.permute.xlu0 %1451
        %1454 = vset.pattern.permute.xlu0 2
        %1455 = vperm.xlu0 %1454, %v327
        %v1456 = vpop.permute.xlu0 %1455
        %1458 = vset.pattern.permute.xlu0 2
        %1459 = vperm.xlu0 %1458, %v328
        %v1460 = vpop.permute.xlu0 %1459
        %1462 = vset.pattern.permute.xlu0 2
        %1463 = vperm.xlu0 %1462, %v329
        %v1464 = vpop.permute.xlu0 %1463
        %1466 = vset.pattern.permute.xlu0 2
        %1467 = vperm.xlu0 %1466, %v330
        %v1468 = vpop.permute.xlu0 %1467
        %1470 = vset.pattern.permute.xlu0 2
        %1471 = vperm.xlu0 %1470, %v331
        %v1472 = vpop.permute.xlu0 %1471
        %1474 = vset.pattern.permute.xlu0 2
        %1475 = vperm.xlu0 %1474, %v332
        %v1476 = vpop.permute.xlu0 %1475
        %1478 = vset.pattern.permute.xlu0 2
        %1479 = vperm.xlu0 %1478, %v333
        %v1480 = vpop.permute.xlu0 %1479
        %1482 = vset.pattern.permute.xlu0 2
        %1483 = vperm.xlu0 %1482, %v334
        %v1484 = vpop.permute.xlu0 %1483
        %1486 = vset.pattern.permute.xlu0 2
        %1487 = vperm.xlu0 %1486, %v335
        %v1488 = vpop.permute.xlu0 %1487
        %1490 = vset.pattern.permute.xlu0 2
        %1491 = vperm.xlu0 %1490, %v336
        %v1492 = vpop.permute.xlu0 %1491
        %1494 = vset.pattern.permute.xlu0 2
        %1495 = vperm.xlu0 %1494, %v337
        %v1496 = vpop.permute.xlu0 %1495
        %1498 = vset.pattern.permute.xlu0 2
        %1499 = vperm.xlu0 %1498, %v338
        %v1500 = vpop.permute.xlu0 %1499
        %1502 = vset.pattern.permute.xlu0 2
        %1503 = vperm.xlu0 %1502, %v339
        %v1504 = vpop.permute.xlu0 %1503
        %1506 = vset.pattern.permute.xlu0 2
        %1507 = vperm.xlu0 %1506, %v340
        %v1508 = vpop.permute.xlu0 %1507
        %1510 = vset.pattern.permute.xlu0 2
        %1511 = vperm.xlu0 %1510, %v341
        %v1512 = vpop.permute.xlu0 %1511
        %1514 = vset.pattern.permute.xlu0 2
        %1515 = vperm.xlu0 %1514, %v342
        %v1516 = vpop.permute.xlu0 %1515
        %1518 = vset.pattern.permute.xlu0 2
        %1519 = vperm.xlu0 %1518, %v343
        %v1520 = vpop.permute.xlu0 %1519
        %1522 = vset.pattern.permute.xlu0 2
        %1523 = vperm.xlu0 %1522, %v344
        %v1524 = vpop.permute.xlu0 %1523
        %1526 = vset.pattern.permute.xlu0 2
        %1527 = vperm.xlu0 %1526, %v345
        %v1528 = vpop.permute.xlu0 %1527
        %1530 = vset.pattern.permute.xlu0 2
        %1531 = vperm.xlu0 %1530, %v346
        %v1532 = vpop.permute.xlu0 %1531
        %1534 = vset.pattern.permute.xlu0 2
        %1535 = vperm.xlu0 %1534, %v347
        %v1536 = vpop.permute.xlu0 %1535
        %1538 = vset.pattern.permute.xlu0 2
        %1539 = vperm.xlu0 %1538, %v348
        %v1540 = vpop.permute.xlu0 %1539
        %1542 = vset.pattern.permute.xlu0 2
        %1543 = vperm.xlu0 %1542, %v349
        %v1544 = vpop.permute.xlu0 %1543
        %1546 = vset.pattern.permute.xlu0 2
        %1547 = vperm.xlu0 %1546, %v350
        %v1548 = vpop.permute.xlu0 %1547
        %1550 = vset.pattern.permute.xlu0 2
        %1551 = vperm.xlu0 %1550, %v351
        %v1552 = vpop.permute.xlu0 %1551
        %1554 = vset.pattern.permute.xlu0 2
        %1555 = vperm.xlu0 %1554, %v352
        %v1556 = vpop.permute.xlu0 %1555
        %1558 = vset.pattern.permute.xlu0 2
        %1559 = vperm.xlu0 %1558, %v353
        %v1560 = vpop.permute.xlu0 %1559
        %1562 = vset.pattern.permute.xlu0 2
        %1563 = vperm.xlu0 %1562, %v354
        %v1564 = vpop.permute.xlu0 %1563
        %1566 = vset.pattern.permute.xlu0 2
        %1567 = vperm.xlu0 %1566, %v355
        %v1568 = vpop.permute.xlu0 %1567
        %1570 = vset.pattern.permute.xlu0 2
        %1571 = vperm.xlu0 %1570, %v356
        %v1572 = vpop.permute.xlu0 %1571
        %1574 = vset.pattern.permute.xlu0 2
        %1575 = vperm.xlu0 %1574, %v357
        %v1576 = vpop.permute.xlu0 %1575
        %1578 = vset.pattern.permute.xlu0 2
        %1579 = vperm.xlu0 %1578, %v358
        %v1580 = vpop.permute.xlu0 %1579
        %1582 = vset.pattern.permute.xlu0 2
        %1583 = vperm.xlu0 %1582, %v359
        %v1584 = vpop.permute.xlu0 %1583
        %1586 = vset.pattern.permute.xlu0 2
        %1587 = vperm.xlu0 %1586, %v360
        %v1588 = vpop.permute.xlu0 %1587
        %1590 = vset.pattern.permute.xlu0 2
        %1591 = vperm.xlu0 %1590, %v361
        %v1592 = vpop.permute.xlu0 %1591
        %1594 = vset.pattern.permute.xlu0 2
        %1595 = vperm.xlu0 %1594, %v362
        %v1596 = vpop.permute.xlu0 %1595
        %1598 = vset.pattern.permute.xlu0 2
        %1599 = vperm.xlu0 %1598, %v363
        %v1600 = vpop.permute.xlu0 %1599
        %1602 = vset.pattern.permute.xlu0 2
        %1603 = vperm.xlu0 %1602, %v364
        %v1604 = vpop.permute.xlu0 %1603
        %v1606 = vlaneseq
        %v1607 = vshrl.u32 %v1606, 7
        %v1608 = vsub.s32 2, %v1607
        %v1609 = vrot.slane %v365, %v1608
        %v1610 = vsub.f32 %v1352, %v1609
        %v1611 = vsub.f32 %v1356, %v1609
        %v1612 = vsub.f32 %v1360, %v1609
        %v1613 = vsub.f32 %v1364, %v1609
        %v1614 = vsub.f32 %v1368, %v1609
        %v1615 = vsub.f32 %v1372, %v1609
        %v1616 = vsub.f32 %v1376, %v1609
        %v1617 = vsub.f32 %v1380, %v1609
        %v1618 = vsub.f32 %v1384, %v1609
        %v1619 = vsub.f32 %v1388, %v1609
        %v1620 = vsub.f32 %v1392, %v1609
        %v1621 = vsub.f32 %v1396, %v1609
        %v1622 = vsub.f32 %v1400, %v1609
        %v1623 = vsub.f32 %v1404, %v1609
        %v1624 = vsub.f32 %v1408, %v1609
        %v1625 = vsub.f32 %v1412, %v1609
        %v1626 = vsub.f32 %v1416, %v1609
        %v1627 = vsub.f32 %v1420, %v1609
        %v1628 = vsub.f32 %v1424, %v1609
        %v1629 = vsub.f32 %v1428, %v1609
        %v1630 = vsub.f32 %v1432, %v1609
        %v1631 = vsub.f32 %v1436, %v1609
        %v1632 = vsub.f32 %v1440, %v1609
        %v1633 = vsub.f32 %v1444, %v1609
        %v1634 = vsub.f32 %v1448, %v1609
        %v1635 = vsub.f32 %v1452, %v1609
        %v1636 = vsub.f32 %v1456, %v1609
        %v1637 = vsub.f32 %v1460, %v1609
        %v1638 = vsub.f32 %v1464, %v1609
        %v1639 = vsub.f32 %v1468, %v1609
        %v1640 = vsub.f32 %v1472, %v1609
        %v1641 = vsub.f32 %v1476, %v1609
        %v1642 = vsub.f32 %v1480, %v1609
        %v1643 = vsub.f32 %v1484, %v1609
        %v1644 = vsub.f32 %v1488, %v1609
        %v1645 = vsub.f32 %v1492, %v1609
        %v1646 = vsub.f32 %v1496, %v1609
        %v1647 = vsub.f32 %v1500, %v1609
        %v1648 = vsub.f32 %v1504, %v1609
        %v1649 = vsub.f32 %v1508, %v1609
        %v1650 = vsub.f32 %v1512, %v1609
        %v1651 = vsub.f32 %v1516, %v1609
        %v1652 = vsub.f32 %v1520, %v1609
        %v1653 = vsub.f32 %v1524, %v1609
        %v1654 = vsub.f32 %v1528, %v1609
        %v1655 = vsub.f32 %v1532, %v1609
        %v1656 = vsub.f32 %v1536, %v1609
        %v1657 = vsub.f32 %v1540, %v1609
        %v1658 = vsub.f32 %v1544, %v1609
        %v1659 = vsub.f32 %v1548, %v1609
        %v1660 = vsub.f32 %v1552, %v1609
        %v1661 = vsub.f32 %v1556, %v1609
        %v1662 = vsub.f32 %v1560, %v1609
        %v1663 = vsub.f32 %v1564, %v1609
        %v1664 = vsub.f32 %v1568, %v1609
        %v1665 = vsub.f32 %v1572, %v1609
        %v1666 = vsub.f32 %v1576, %v1609
        %v1667 = vsub.f32 %v1580, %v1609
        %v1668 = vsub.f32 %v1584, %v1609
        %v1669 = vsub.f32 %v1588, %v1609
        %v1670 = vsub.f32 %v1592, %v1609
        %v1671 = vsub.f32 %v1596, %v1609
        %v1672 = vsub.f32 %v1600, %v1609
        %v1673 = vsub.f32 %v1604, %v1609
        %v1674 = vmul.f32 %v1610, %v1610
        %v1675 = vmul.f32 %v1611, %v1611
        %v1676 = vmul.f32 %v1612, %v1612
        %v1677 = vmul.f32 %v1613, %v1613
        %v1678 = vmul.f32 %v1614, %v1614
        %v1679 = vmul.f32 %v1615, %v1615
        %v1680 = vmul.f32 %v1616, %v1616
        %v1681 = vmul.f32 %v1617, %v1617
        %v1682 = vmul.f32 %v1618, %v1618
        %v1683 = vmul.f32 %v1619, %v1619
        %v1684 = vmul.f32 %v1620, %v1620
        %v1685 = vmul.f32 %v1621, %v1621
        %v1686 = vmul.f32 %v1622, %v1622
        %v1687 = vmul.f32 %v1623, %v1623
        %v1688 = vmul.f32 %v1624, %v1624
        %v1689 = vmul.f32 %v1625, %v1625
        %v1690 = vmul.f32 %v1626, %v1626
        %v1691 = vmul.f32 %v1627, %v1627
        %v1692 = vmul.f32 %v1628, %v1628
        %v1693 = vmul.f32 %v1629, %v1629
        %v1694 = vmul.f32 %v1630, %v1630
        %v1695 = vmul.f32 %v1631, %v1631
        %v1696 = vmul.f32 %v1632, %v1632
        %v1697 = vmul.f32 %v1633, %v1633
        %v1698 = vmul.f32 %v1634, %v1634
        %v1699 = vmul.f32 %v1635, %v1635
        %v1700 = vmul.f32 %v1636, %v1636
        %v1701 = vmul.f32 %v1637, %v1637
        %v1702 = vmul.f32 %v1638, %v1638
        %v1703 = vmul.f32 %v1639, %v1639
        %v1704 = vmul.f32 %v1640, %v1640
        %v1705 = vmul.f32 %v1641, %v1641
        %v1706 = vmul.f32 %v1642, %v1642
        %v1707 = vmul.f32 %v1643, %v1643
        %v1708 = vmul.f32 %v1644, %v1644
        %v1709 = vmul.f32 %v1645, %v1645
        %v1710 = vmul.f32 %v1646, %v1646
        %v1711 = vmul.f32 %v1647, %v1647
        %v1712 = vmul.f32 %v1648, %v1648
        %v1713 = vmul.f32 %v1649, %v1649
        %v1714 = vmul.f32 %v1650, %v1650
        %v1715 = vmul.f32 %v1651, %v1651
        %v1716 = vmul.f32 %v1652, %v1652
        %v1717 = vmul.f32 %v1653, %v1653
        %v1718 = vmul.f32 %v1654, %v1654
        %v1719 = vmul.f32 %v1655, %v1655
        %v1720 = vmul.f32 %v1656, %v1656
        %v1721 = vmul.f32 %v1657, %v1657
        %v1722 = vmul.f32 %v1658, %v1658
        %v1723 = vmul.f32 %v1659, %v1659
        %v1724 = vmul.f32 %v1660, %v1660
        %v1725 = vmul.f32 %v1661, %v1661
        %v1726 = vmul.f32 %v1662, %v1662
        %v1727 = vmul.f32 %v1663, %v1663
        %v1728 = vmul.f32 %v1664, %v1664
        %v1729 = vmul.f32 %v1665, %v1665
        %v1730 = vmul.f32 %v1666, %v1666
        %v1731 = vmul.f32 %v1667, %v1667
        %v1732 = vmul.f32 %v1668, %v1668
        %v1733 = vmul.f32 %v1669, %v1669
        %v1734 = vmul.f32 %v1670, %v1670
        %v1735 = vmul.f32 %v1671, %v1671
        %v1736 = vmul.f32 %v1672, %v1672
        %v1737 = vmul.f32 %v1673, %v1673
        %v1738 = vadd.f32 %v1286, %v1674
        %v1739 = vadd.f32 %v1287, %v1675
        %v1740 = vadd.f32 %v1288, %v1676
        %v1741 = vadd.f32 %v1289, %v1677
        %v1742 = vadd.f32 %v1290, %v1678
        %v1743 = vadd.f32 %v1291, %v1679
        %v1744 = vadd.f32 %v1292, %v1680
        %v1745 = vadd.f32 %v1293, %v1681
        %v1746 = vadd.f32 %v1294, %v1682
        %v1747 = vadd.f32 %v1295, %v1683
        %v1748 = vadd.f32 %v1296, %v1684
        %v1749 = vadd.f32 %v1297, %v1685
        %v1750 = vadd.f32 %v1298, %v1686
        %v1751 = vadd.f32 %v1299, %v1687
        %v1752 = vadd.f32 %v1300, %v1688
        %v1753 = vadd.f32 %v1301, %v1689
        %v1754 = vadd.f32 %v1302, %v1690
        %v1755 = vadd.f32 %v1303, %v1691
        %v1756 = vadd.f32 %v1304, %v1692
        %v1757 = vadd.f32 %v1305, %v1693
        %v1758 = vadd.f32 %v1306, %v1694
        %v1759 = vadd.f32 %v1307, %v1695
        %v1760 = vadd.f32 %v1308, %v1696
        %v1761 = vadd.f32 %v1309, %v1697
        %v1762 = vadd.f32 %v1310, %v1698
        %v1763 = vadd.f32 %v1311, %v1699
        %v1764 = vadd.f32 %v1312, %v1700
        %v1765 = vadd.f32 %v1313, %v1701
        %v1766 = vadd.f32 %v1314, %v1702
        %v1767 = vadd.f32 %v1315, %v1703
        %v1768 = vadd.f32 %v1316, %v1704
        %v1769 = vadd.f32 %v1317, %v1705
        %v1770 = vadd.f32 %v1318, %v1706
        %v1771 = vadd.f32 %v1319, %v1707
        %v1772 = vadd.f32 %v1320, %v1708
        %v1773 = vadd.f32 %v1321, %v1709
        %v1774 = vadd.f32 %v1322, %v1710
        %v1775 = vadd.f32 %v1323, %v1711
        %v1776 = vadd.f32 %v1324, %v1712
        %v1777 = vadd.f32 %v1325, %v1713
        %v1778 = vadd.f32 %v1326, %v1714
        %v1779 = vadd.f32 %v1327, %v1715
        %v1780 = vadd.f32 %v1328, %v1716
        %v1781 = vadd.f32 %v1329, %v1717
        %v1782 = vadd.f32 %v1330, %v1718
        %v1783 = vadd.f32 %v1331, %v1719
        %v1784 = vadd.f32 %v1332, %v1720
        %v1785 = vadd.f32 %v1333, %v1721
        %v1786 = vadd.f32 %v1334, %v1722
        %v1787 = vadd.f32 %v1335, %v1723
        %v1788 = vadd.f32 %v1336, %v1724
        %v1789 = vadd.f32 %v1337, %v1725
        %v1790 = vadd.f32 %v1338, %v1726
        %v1791 = vadd.f32 %v1339, %v1727
        %v1792 = vadd.f32 %v1340, %v1728
        %v1793 = vadd.f32 %v1341, %v1729
        %v1794 = vadd.f32 %v1342, %v1730
        %v1795 = vadd.f32 %v1343, %v1731
        %v1796 = vadd.f32 %v1344, %v1732
        %v1797 = vadd.f32 %v1345, %v1733
        %v1798 = vadd.f32 %v1346, %v1734
        %v1799 = vadd.f32 %v1347, %v1735
        %v1800 = vadd.f32 %v1348, %v1736
        %v1801 = vadd.f32 %v1349, %v1737
        %v1802 = vlaneseq
        %v1803 = vand.u32 %v1802, 127
        %1804 = vmin.xlane.f32.xlu0 %v1738
        %v1805 = vpop.xlane.xlu0 %1804
        %1806 = vmin.xlane.f32.xlu0 %v1739
        %v1807 = vpop.xlane.xlu0 %1806
        %1808 = vmin.xlane.f32.xlu0 %v1740
        %v1809 = vpop.xlane.xlu0 %1808
        %1810 = vmin.xlane.f32.xlu0 %v1741
        %v1811 = vpop.xlane.xlu0 %1810
        %1812 = vmin.xlane.f32.xlu0 %v1742
        %v1813 = vpop.xlane.xlu0 %1812
        %1814 = vmin.xlane.f32.xlu0 %v1743
        %v1815 = vpop.xlane.xlu0 %1814
        %1816 = vmin.xlane.f32.xlu0 %v1744
        %v1817 = vpop.xlane.xlu0 %1816
        %1818 = vmin.xlane.f32.xlu0 %v1745
        %v1819 = vpop.xlane.xlu0 %1818
        %1820 = vmin.xlane.f32.xlu0 %v1746
        %v1821 = vpop.xlane.xlu0 %1820
        %1822 = vmin.xlane.f32.xlu0 %v1747
        %v1823 = vpop.xlane.xlu0 %1822
        %1824 = vmin.xlane.f32.xlu0 %v1748
        %v1825 = vpop.xlane.xlu0 %1824
        %1826 = vmin.xlane.f32.xlu0 %v1749
        %v1827 = vpop.xlane.xlu0 %1826
        %1828 = vmin.xlane.f32.xlu0 %v1750
        %v1829 = vpop.xlane.xlu0 %1828
        %1830 = vmin.xlane.f32.xlu0 %v1751
        %v1831 = vpop.xlane.xlu0 %1830
        %1832 = vmin.xlane.f32.xlu0 %v1752
        %v1833 = vpop.xlane.xlu0 %1832
        %1834 = vmin.xlane.f32.xlu0 %v1753
        %v1835 = vpop.xlane.xlu0 %1834
        %1836 = vmin.xlane.f32.xlu0 %v1754
        %v1837 = vpop.xlane.xlu0 %1836
        %1838 = vmin.xlane.f32.xlu0 %v1755
        %v1839 = vpop.xlane.xlu0 %1838
        %1840 = vmin.xlane.f32.xlu0 %v1756
        %v1841 = vpop.xlane.xlu0 %1840
        %1842 = vmin.xlane.f32.xlu0 %v1757
        %v1843 = vpop.xlane.xlu0 %1842
        %1844 = vmin.xlane.f32.xlu0 %v1758
        %v1845 = vpop.xlane.xlu0 %1844
        %1846 = vmin.xlane.f32.xlu0 %v1759
        %v1847 = vpop.xlane.xlu0 %1846
        %1848 = vmin.xlane.f32.xlu0 %v1760
        %v1849 = vpop.xlane.xlu0 %1848
        %1850 = vmin.xlane.f32.xlu0 %v1761
        %v1851 = vpop.xlane.xlu0 %1850
        %1852 = vmin.xlane.f32.xlu0 %v1762
        %v1853 = vpop.xlane.xlu0 %1852
        %1854 = vmin.xlane.f32.xlu0 %v1763
        %v1855 = vpop.xlane.xlu0 %1854
        %1856 = vmin.xlane.f32.xlu0 %v1764
        %v1857 = vpop.xlane.xlu0 %1856
        %1858 = vmin.xlane.f32.xlu0 %v1765
        %v1859 = vpop.xlane.xlu0 %1858
        %1860 = vmin.xlane.f32.xlu0 %v1766
        %v1861 = vpop.xlane.xlu0 %1860
        %1862 = vmin.xlane.f32.xlu0 %v1767
        %v1863 = vpop.xlane.xlu0 %1862
        %1864 = vmin.xlane.f32.xlu0 %v1768
        %v1865 = vpop.xlane.xlu0 %1864
        %1866 = vmin.xlane.f32.xlu0 %v1769
        %v1867 = vpop.xlane.xlu0 %1866
        %1868 = vmin.xlane.f32.xlu0 %v1770
        %v1869 = vpop.xlane.xlu0 %1868
        %1870 = vmin.xlane.f32.xlu0 %v1771
        %v1871 = vpop.xlane.xlu0 %1870
        %1872 = vmin.xlane.f32.xlu0 %v1772
        %v1873 = vpop.xlane.xlu0 %1872
        %1874 = vmin.xlane.f32.xlu0 %v1773
        %v1875 = vpop.xlane.xlu0 %1874
        %1876 = vmin.xlane.f32.xlu0 %v1774
        %v1877 = vpop.xlane.xlu0 %1876
        %1878 = vmin.xlane.f32.xlu0 %v1775
        %v1879 = vpop.xlane.xlu0 %1878
        %1880 = vmin.xlane.f32.xlu0 %v1776
        %v1881 = vpop.xlane.xlu0 %1880
        %1882 = vmin.xlane.f32.xlu0 %v1777
        %v1883 = vpop.xlane.xlu0 %1882
        %1884 = vmin.xlane.f32.xlu0 %v1778
        %v1885 = vpop.xlane.xlu0 %1884
        %1886 = vmin.xlane.f32.xlu0 %v1779
        %v1887 = vpop.xlane.xlu0 %1886
        %1888 = vmin.xlane.f32.xlu0 %v1780
        %v1889 = vpop.xlane.xlu0 %1888
        %1890 = vmin.xlane.f32.xlu0 %v1781
        %v1891 = vpop.xlane.xlu0 %1890
        %1892 = vmin.xlane.f32.xlu0 %v1782
        %v1893 = vpop.xlane.xlu0 %1892
        %1894 = vmin.xlane.f32.xlu0 %v1783
        %v1895 = vpop.xlane.xlu0 %1894
        %1896 = vmin.xlane.f32.xlu0 %v1784
        %v1897 = vpop.xlane.xlu0 %1896
        %1898 = vmin.xlane.f32.xlu0 %v1785
        %v1899 = vpop.xlane.xlu0 %1898
        %1900 = vmin.xlane.f32.xlu0 %v1786
        %v1901 = vpop.xlane.xlu0 %1900
        %1902 = vmin.xlane.f32.xlu0 %v1787
        %v1903 = vpop.xlane.xlu0 %1902
        %1904 = vmin.xlane.f32.xlu0 %v1788
        %v1905 = vpop.xlane.xlu0 %1904
        %1906 = vmin.xlane.f32.xlu0 %v1789
        %v1907 = vpop.xlane.xlu0 %1906
        %1908 = vmin.xlane.f32.xlu0 %v1790
        %v1909 = vpop.xlane.xlu0 %1908
        %1910 = vmin.xlane.f32.xlu0 %v1791
        %v1911 = vpop.xlane.xlu0 %1910
        %1912 = vmin.xlane.f32.xlu0 %v1792
        %v1913 = vpop.xlane.xlu0 %1912
        %1914 = vmin.xlane.f32.xlu0 %v1793
        %v1915 = vpop.xlane.xlu0 %1914
        %1916 = vmin.xlane.f32.xlu0 %v1794
        %v1917 = vpop.xlane.xlu0 %1916
        %1918 = vmin.xlane.f32.xlu0 %v1795
        %v1919 = vpop.xlane.xlu0 %1918
        %1920 = vmin.xlane.f32.xlu0 %v1796
        %v1921 = vpop.xlane.xlu0 %1920
        %1922 = vmin.xlane.f32.xlu0 %v1797
        %v1923 = vpop.xlane.xlu0 %1922
        %1924 = vmin.xlane.f32.xlu0 %v1798
        %v1925 = vpop.xlane.xlu0 %1924
        %1926 = vmin.xlane.f32.xlu0 %v1799
        %v1927 = vpop.xlane.xlu0 %1926
        %1928 = vmin.xlane.f32.xlu0 %v1800
        %v1929 = vpop.xlane.xlu0 %1928
        %1930 = vmin.xlane.f32.xlu0 %v1801
        %v1931 = vpop.xlane.xlu0 %1930
        %vm1932 = vcmp.eq.f32.partialorder %v1738, %v1805
        %vm1933 = vcmp.eq.f32.partialorder %v1739, %v1807
        %vm1934 = vcmp.eq.f32.partialorder %v1740, %v1809
        %vm1935 = vcmp.eq.f32.partialorder %v1741, %v1811
        %vm1936 = vcmp.eq.f32.partialorder %v1742, %v1813
        %vm1937 = vcmp.eq.f32.partialorder %v1743, %v1815
        %vm1938 = vcmp.eq.f32.partialorder %v1744, %v1817
        %vm1939 = vcmp.eq.f32.partialorder %v1745, %v1819
        %vm1940 = vcmp.eq.f32.partialorder %v1746, %v1821
        %vm1941 = vcmp.eq.f32.partialorder %v1747, %v1823
        %vm1942 = vcmp.eq.f32.partialorder %v1748, %v1825
        %vm1943 = vcmp.eq.f32.partialorder %v1749, %v1827
        %vm1944 = vcmp.eq.f32.partialorder %v1750, %v1829
        %vm1945 = vcmp.eq.f32.partialorder %v1751, %v1831
        %vm1946 = vcmp.eq.f32.partialorder %v1752, %v1833
        %vm1947 = vcmp.eq.f32.partialorder %v1753, %v1835
        %vm1948 = vcmp.eq.f32.partialorder %v1754, %v1837
        %vm1949 = vcmp.eq.f32.partialorder %v1755, %v1839
        %vm1950 = vcmp.eq.f32.partialorder %v1756, %v1841
        %vm1951 = vcmp.eq.f32.partialorder %v1757, %v1843
        %vm1952 = vcmp.eq.f32.partialorder %v1758, %v1845
        %vm1953 = vcmp.eq.f32.partialorder %v1759, %v1847
        %vm1954 = vcmp.eq.f32.partialorder %v1760, %v1849
        %vm1955 = vcmp.eq.f32.partialorder %v1761, %v1851
        %vm1956 = vcmp.eq.f32.partialorder %v1762, %v1853
        %vm1957 = vcmp.eq.f32.partialorder %v1763, %v1855
        %vm1958 = vcmp.eq.f32.partialorder %v1764, %v1857
        %vm1959 = vcmp.eq.f32.partialorder %v1765, %v1859
        %vm1960 = vcmp.eq.f32.partialorder %v1766, %v1861
        %vm1961 = vcmp.eq.f32.partialorder %v1767, %v1863
        %vm1962 = vcmp.eq.f32.partialorder %v1768, %v1865
        %vm1963 = vcmp.eq.f32.partialorder %v1769, %v1867
        %vm1964 = vcmp.eq.f32.partialorder %v1770, %v1869
        %vm1965 = vcmp.eq.f32.partialorder %v1771, %v1871
        %vm1966 = vcmp.eq.f32.partialorder %v1772, %v1873
        %vm1967 = vcmp.eq.f32.partialorder %v1773, %v1875
        %vm1968 = vcmp.eq.f32.partialorder %v1774, %v1877
        %vm1969 = vcmp.eq.f32.partialorder %v1775, %v1879
        %vm1970 = vcmp.eq.f32.partialorder %v1776, %v1881
        %vm1971 = vcmp.eq.f32.partialorder %v1777, %v1883
        %vm1972 = vcmp.eq.f32.partialorder %v1778, %v1885
        %vm1973 = vcmp.eq.f32.partialorder %v1779, %v1887
        %vm1974 = vcmp.eq.f32.partialorder %v1780, %v1889
        %vm1975 = vcmp.eq.f32.partialorder %v1781, %v1891
        %vm1976 = vcmp.eq.f32.partialorder %v1782, %v1893
        %vm1977 = vcmp.eq.f32.partialorder %v1783, %v1895
        %vm1978 = vcmp.eq.f32.partialorder %v1784, %v1897
        %vm1979 = vcmp.eq.f32.partialorder %v1785, %v1899
        %vm1980 = vcmp.eq.f32.partialorder %v1786, %v1901
        %vm1981 = vcmp.eq.f32.partialorder %v1787, %v1903
        %vm1982 = vcmp.eq.f32.partialorder %v1788, %v1905
        %vm1983 = vcmp.eq.f32.partialorder %v1789, %v1907
        %vm1984 = vcmp.eq.f32.partialorder %v1790, %v1909
        %vm1985 = vcmp.eq.f32.partialorder %v1791, %v1911
        %vm1986 = vcmp.eq.f32.partialorder %v1792, %v1913
        %vm1987 = vcmp.eq.f32.partialorder %v1793, %v1915
        %vm1988 = vcmp.eq.f32.partialorder %v1794, %v1917
        %vm1989 = vcmp.eq.f32.partialorder %v1795, %v1919
        %vm1990 = vcmp.eq.f32.partialorder %v1796, %v1921
        %vm1991 = vcmp.eq.f32.partialorder %v1797, %v1923
        %vm1992 = vcmp.eq.f32.partialorder %v1798, %v1925
        %vm1993 = vcmp.eq.f32.partialorder %v1799, %v1927
        %vm1994 = vcmp.eq.f32.partialorder %v1800, %v1929
        %vm1995 = vcmp.eq.f32.partialorder %v1801, %v1931
        %v1996 = vsel %vm1932, %v1803, 128
        %v1997 = vsel %vm1933, %v1803, 128
        %v1998 = vsel %vm1934, %v1803, 128
        %v1999 = vsel %vm1935, %v1803, 128
        %v2000 = vsel %vm1936, %v1803, 128
        %v2001 = vsel %vm1937, %v1803, 128
        %v2002 = vsel %vm1938, %v1803, 128
        %v2003 = vsel %vm1939, %v1803, 128
        %v2004 = vsel %vm1940, %v1803, 128
        %v2005 = vsel %vm1941, %v1803, 128
        %v2006 = vsel %vm1942, %v1803, 128
        %v2007 = vsel %vm1943, %v1803, 128
        %v2008 = vsel %vm1944, %v1803, 128
        %v2009 = vsel %vm1945, %v1803, 128
        %v2010 = vsel %vm1946, %v1803, 128
        %v2011 = vsel %vm1947, %v1803, 128
        %v2012 = vsel %vm1948, %v1803, 128
        %v2013 = vsel %vm1949, %v1803, 128
        %v2014 = vsel %vm1950, %v1803, 128
        %v2015 = vsel %vm1951, %v1803, 128
        %v2016 = vsel %vm1952, %v1803, 128
        %v2017 = vsel %vm1953, %v1803, 128
        %v2018 = vsel %vm1954, %v1803, 128
        %v2019 = vsel %vm1955, %v1803, 128
        %v2020 = vsel %vm1956, %v1803, 128
        %v2021 = vsel %vm1957, %v1803, 128
        %v2022 = vsel %vm1958, %v1803, 128
        %v2023 = vsel %vm1959, %v1803, 128
        %v2024 = vsel %vm1960, %v1803, 128
        %v2025 = vsel %vm1961, %v1803, 128
        %v2026 = vsel %vm1962, %v1803, 128
        %v2027 = vsel %vm1963, %v1803, 128
        %v2028 = vsel %vm1964, %v1803, 128
        %v2029 = vsel %vm1965, %v1803, 128
        %v2030 = vsel %vm1966, %v1803, 128
        %v2031 = vsel %vm1967, %v1803, 128
        %v2032 = vsel %vm1968, %v1803, 128
        %v2033 = vsel %vm1969, %v1803, 128
        %v2034 = vsel %vm1970, %v1803, 128
        %v2035 = vsel %vm1971, %v1803, 128
        %v2036 = vsel %vm1972, %v1803, 128
        %v2037 = vsel %vm1973, %v1803, 128
        %v2038 = vsel %vm1974, %v1803, 128
        %v2039 = vsel %vm1975, %v1803, 128
        %v2040 = vsel %vm1976, %v1803, 128
        %v2041 = vsel %vm1977, %v1803, 128
        %v2042 = vsel %vm1978, %v1803, 128
        %v2043 = vsel %vm1979, %v1803, 128
        %v2044 = vsel %vm1980, %v1803, 128
        %v2045 = vsel %vm1981, %v1803, 128
        %v2046 = vsel %vm1982, %v1803, 128
        %v2047 = vsel %vm1983, %v1803, 128
        %v2048 = vsel %vm1984, %v1803, 128
        %v2049 = vsel %vm1985, %v1803, 128
        %v2050 = vsel %vm1986, %v1803, 128
        %v2051 = vsel %vm1987, %v1803, 128
        %v2052 = vsel %vm1988, %v1803, 128
        %v2053 = vsel %vm1989, %v1803, 128
        %v2054 = vsel %vm1990, %v1803, 128
        %v2055 = vsel %vm1991, %v1803, 128
        %v2056 = vsel %vm1992, %v1803, 128
        %v2057 = vsel %vm1993, %v1803, 128
        %v2058 = vsel %vm1994, %v1803, 128
        %v2059 = vsel %vm1995, %v1803, 128
        %v2060 = vand.u32 %v1996, 65535
        %v2061 = vshra.s32 %v1996, 16
        %v2062 = vcvt.s32.f32 %v2060
        %v2063 = vcvt.s32.f32 %v2061
        %2064 = vmin.xlane.f32.xlu0 %v2063
        %v2065 = vpop.xlane.xlu0 %2064
        %vm2066 = vcmp.eq.f32.partialorder %v2063, %v2065
        %v2067 = vsel %vm2066, %v2062, inf
        %2068 = vmin.xlane.f32.xlu0 %v2067
        %v2069 = vpop.xlane.xlu0 %2068
        %v2070 = vcvt.f32.s32 %v2069
        %v2071 = vcvt.f32.s32 %v2065
        %v2072 = vshll.u32 %v2071, 16
        %v2073 = vadd.s32 %v2072, %v2070
        %v2074 = vand.u32 %v1997, 65535
        %v2075 = vshra.s32 %v1997, 16
        %v2076 = vcvt.s32.f32 %v2074
        %v2077 = vcvt.s32.f32 %v2075
        %2078 = vmin.xlane.f32.xlu0 %v2077
        %v2079 = vpop.xlane.xlu0 %2078
        %vm2080 = vcmp.eq.f32.partialorder %v2077, %v2079
        %v2081 = vsel %vm2080, %v2076, inf
        %2082 = vmin.xlane.f32.xlu0 %v2081
        %v2083 = vpop.xlane.xlu0 %2082
        %v2084 = vcvt.f32.s32 %v2083
        %v2085 = vcvt.f32.s32 %v2079
        %v2086 = vshll.u32 %v2085, 16
        %v2087 = vadd.s32 %v2086, %v2084
        %v2088 = vand.u32 %v1998, 65535
        %v2089 = vshra.s32 %v1998, 16
        %v2090 = vcvt.s32.f32 %v2088
        %v2091 = vcvt.s32.f32 %v2089
        %2092 = vmin.xlane.f32.xlu0 %v2091
        %v2093 = vpop.xlane.xlu0 %2092
        %vm2094 = vcmp.eq.f32.partialorder %v2091, %v2093
        %v2095 = vsel %vm2094, %v2090, inf
        %2096 = vmin.xlane.f32.xlu0 %v2095
        %v2097 = vpop.xlane.xlu0 %2096
        %v2098 = vcvt.f32.s32 %v2097
        %v2099 = vcvt.f32.s32 %v2093
        %v2100 = vshll.u32 %v2099, 16
        %v2101 = vadd.s32 %v2100, %v2098
        %v2102 = vand.u32 %v1999, 65535
        %v2103 = vshra.s32 %v1999, 16
        %v2104 = vcvt.s32.f32 %v2102
        %v2105 = vcvt.s32.f32 %v2103
        %2106 = vmin.xlane.f32.xlu0 %v2105
        %v2107 = vpop.xlane.xlu0 %2106
        %vm2108 = vcmp.eq.f32.partialorder %v2105, %v2107
        %v2109 = vsel %vm2108, %v2104, inf
        %2110 = vmin.xlane.f32.xlu0 %v2109
        %v2111 = vpop.xlane.xlu0 %2110
        %v2112 = vcvt.f32.s32 %v2111
        %v2113 = vcvt.f32.s32 %v2107
        %v2114 = vshll.u32 %v2113, 16
        %v2115 = vadd.s32 %v2114, %v2112
        %v2116 = vand.u32 %v2000, 65535
        %v2117 = vshra.s32 %v2000, 16
        %v2118 = vcvt.s32.f32 %v2116
        %v2119 = vcvt.s32.f32 %v2117
        %2120 = vmin.xlane.f32.xlu0 %v2119
        %v2121 = vpop.xlane.xlu0 %2120
        %vm2122 = vcmp.eq.f32.partialorder %v2119, %v2121
        %v2123 = vsel %vm2122, %v2118, inf
        %2124 = vmin.xlane.f32.xlu0 %v2123
        %v2125 = vpop.xlane.xlu0 %2124
        %v2126 = vcvt.f32.s32 %v2125
        %v2127 = vcvt.f32.s32 %v2121
        %v2128 = vshll.u32 %v2127, 16
        %v2129 = vadd.s32 %v2128, %v2126
        %v2130 = vand.u32 %v2001, 65535
        %v2131 = vshra.s32 %v2001, 16
        %v2132 = vcvt.s32.f32 %v2130
        %v2133 = vcvt.s32.f32 %v2131
        %2134 = vmin.xlane.f32.xlu0 %v2133
        %v2135 = vpop.xlane.xlu0 %2134
        %vm2136 = vcmp.eq.f32.partialorder %v2133, %v2135
        %v2137 = vsel %vm2136, %v2132, inf
        %2138 = vmin.xlane.f32.xlu0 %v2137
        %v2139 = vpop.xlane.xlu0 %2138
        %v2140 = vcvt.f32.s32 %v2139
        %v2141 = vcvt.f32.s32 %v2135
        %v2142 = vshll.u32 %v2141, 16
        %v2143 = vadd.s32 %v2142, %v2140
        %v2144 = vand.u32 %v2002, 65535
        %v2145 = vshra.s32 %v2002, 16
        %v2146 = vcvt.s32.f32 %v2144
        %v2147 = vcvt.s32.f32 %v2145
        %2148 = vmin.xlane.f32.xlu0 %v2147
        %v2149 = vpop.xlane.xlu0 %2148
        %vm2150 = vcmp.eq.f32.partialorder %v2147, %v2149
        %v2151 = vsel %vm2150, %v2146, inf
        %2152 = vmin.xlane.f32.xlu0 %v2151
        %v2153 = vpop.xlane.xlu0 %2152
        %v2154 = vcvt.f32.s32 %v2153
        %v2155 = vcvt.f32.s32 %v2149
        %v2156 = vshll.u32 %v2155, 16
        %v2157 = vadd.s32 %v2156, %v2154
        %v2158 = vand.u32 %v2003, 65535
        %v2159 = vshra.s32 %v2003, 16
        %v2160 = vcvt.s32.f32 %v2158
        %v2161 = vcvt.s32.f32 %v2159
        %2162 = vmin.xlane.f32.xlu0 %v2161
        %v2163 = vpop.xlane.xlu0 %2162
        %vm2164 = vcmp.eq.f32.partialorder %v2161, %v2163
        %v2165 = vsel %vm2164, %v2160, inf
        %2166 = vmin.xlane.f32.xlu0 %v2165
        %v2167 = vpop.xlane.xlu0 %2166
        %v2168 = vcvt.f32.s32 %v2167
        %v2169 = vcvt.f32.s32 %v2163
        %v2170 = vshll.u32 %v2169, 16
        %v2171 = vadd.s32 %v2170, %v2168
        %v2172 = vand.u32 %v2004, 65535
        %v2173 = vshra.s32 %v2004, 16
        %v2174 = vcvt.s32.f32 %v2172
        %v2175 = vcvt.s32.f32 %v2173
        %2176 = vmin.xlane.f32.xlu0 %v2175
        %v2177 = vpop.xlane.xlu0 %2176
        %vm2178 = vcmp.eq.f32.partialorder %v2175, %v2177
        %v2179 = vsel %vm2178, %v2174, inf
        %2180 = vmin.xlane.f32.xlu0 %v2179
        %v2181 = vpop.xlane.xlu0 %2180
        %v2182 = vcvt.f32.s32 %v2181
        %v2183 = vcvt.f32.s32 %v2177
        %v2184 = vshll.u32 %v2183, 16
        %v2185 = vadd.s32 %v2184, %v2182
        %v2186 = vand.u32 %v2005, 65535
        %v2187 = vshra.s32 %v2005, 16
        %v2188 = vcvt.s32.f32 %v2186
        %v2189 = vcvt.s32.f32 %v2187
        %2190 = vmin.xlane.f32.xlu0 %v2189
        %v2191 = vpop.xlane.xlu0 %2190
        %vm2192 = vcmp.eq.f32.partialorder %v2189, %v2191
        %v2193 = vsel %vm2192, %v2188, inf
        %2194 = vmin.xlane.f32.xlu0 %v2193
        %v2195 = vpop.xlane.xlu0 %2194
        %v2196 = vcvt.f32.s32 %v2195
        %v2197 = vcvt.f32.s32 %v2191
        %v2198 = vshll.u32 %v2197, 16
        %v2199 = vadd.s32 %v2198, %v2196
        %v2200 = vand.u32 %v2006, 65535
        %v2201 = vshra.s32 %v2006, 16
        %v2202 = vcvt.s32.f32 %v2200
        %v2203 = vcvt.s32.f32 %v2201
        %2204 = vmin.xlane.f32.xlu0 %v2203
        %v2205 = vpop.xlane.xlu0 %2204
        %vm2206 = vcmp.eq.f32.partialorder %v2203, %v2205
        %v2207 = vsel %vm2206, %v2202, inf
        %2208 = vmin.xlane.f32.xlu0 %v2207
        %v2209 = vpop.xlane.xlu0 %2208
        %v2210 = vcvt.f32.s32 %v2209
        %v2211 = vcvt.f32.s32 %v2205
        %v2212 = vshll.u32 %v2211, 16
        %v2213 = vadd.s32 %v2212, %v2210
        %v2214 = vand.u32 %v2007, 65535
        %v2215 = vshra.s32 %v2007, 16
        %v2216 = vcvt.s32.f32 %v2214
        %v2217 = vcvt.s32.f32 %v2215
        %2218 = vmin.xlane.f32.xlu0 %v2217
        %v2219 = vpop.xlane.xlu0 %2218
        %vm2220 = vcmp.eq.f32.partialorder %v2217, %v2219
        %v2221 = vsel %vm2220, %v2216, inf
        %2222 = vmin.xlane.f32.xlu0 %v2221
        %v2223 = vpop.xlane.xlu0 %2222
        %v2224 = vcvt.f32.s32 %v2223
        %v2225 = vcvt.f32.s32 %v2219
        %v2226 = vshll.u32 %v2225, 16
        %v2227 = vadd.s32 %v2226, %v2224
        %v2228 = vand.u32 %v2008, 65535
        %v2229 = vshra.s32 %v2008, 16
        %v2230 = vcvt.s32.f32 %v2228
        %v2231 = vcvt.s32.f32 %v2229
        %2232 = vmin.xlane.f32.xlu0 %v2231
        %v2233 = vpop.xlane.xlu0 %2232
        %vm2234 = vcmp.eq.f32.partialorder %v2231, %v2233
        %v2235 = vsel %vm2234, %v2230, inf
        %2236 = vmin.xlane.f32.xlu0 %v2235
        %v2237 = vpop.xlane.xlu0 %2236
        %v2238 = vcvt.f32.s32 %v2237
        %v2239 = vcvt.f32.s32 %v2233
        %v2240 = vshll.u32 %v2239, 16
        %v2241 = vadd.s32 %v2240, %v2238
        %v2242 = vand.u32 %v2009, 65535
        %v2243 = vshra.s32 %v2009, 16
        %v2244 = vcvt.s32.f32 %v2242
        %v2245 = vcvt.s32.f32 %v2243
        %2246 = vmin.xlane.f32.xlu0 %v2245
        %v2247 = vpop.xlane.xlu0 %2246
        %vm2248 = vcmp.eq.f32.partialorder %v2245, %v2247
        %v2249 = vsel %vm2248, %v2244, inf
        %2250 = vmin.xlane.f32.xlu0 %v2249
        %v2251 = vpop.xlane.xlu0 %2250
        %v2252 = vcvt.f32.s32 %v2251
        %v2253 = vcvt.f32.s32 %v2247
        %v2254 = vshll.u32 %v2253, 16
        %v2255 = vadd.s32 %v2254, %v2252
        %v2256 = vand.u32 %v2010, 65535
        %v2257 = vshra.s32 %v2010, 16
        %v2258 = vcvt.s32.f32 %v2256
        %v2259 = vcvt.s32.f32 %v2257
        %2260 = vmin.xlane.f32.xlu0 %v2259
        %v2261 = vpop.xlane.xlu0 %2260
        %vm2262 = vcmp.eq.f32.partialorder %v2259, %v2261
        %v2263 = vsel %vm2262, %v2258, inf
        %2264 = vmin.xlane.f32.xlu0 %v2263
        %v2265 = vpop.xlane.xlu0 %2264
        %v2266 = vcvt.f32.s32 %v2265
        %v2267 = vcvt.f32.s32 %v2261
        %v2268 = vshll.u32 %v2267, 16
        %v2269 = vadd.s32 %v2268, %v2266
        %v2270 = vand.u32 %v2011, 65535
        %v2271 = vshra.s32 %v2011, 16
        %v2272 = vcvt.s32.f32 %v2270
        %v2273 = vcvt.s32.f32 %v2271
        %2274 = vmin.xlane.f32.xlu0 %v2273
        %v2275 = vpop.xlane.xlu0 %2274
        %vm2276 = vcmp.eq.f32.partialorder %v2273, %v2275
        %v2277 = vsel %vm2276, %v2272, inf
        %2278 = vmin.xlane.f32.xlu0 %v2277
        %v2279 = vpop.xlane.xlu0 %2278
        %v2280 = vcvt.f32.s32 %v2279
        %v2281 = vcvt.f32.s32 %v2275
        %v2282 = vshll.u32 %v2281, 16
        %v2283 = vadd.s32 %v2282, %v2280
        %v2284 = vand.u32 %v2012, 65535
        %v2285 = vshra.s32 %v2012, 16
        %v2286 = vcvt.s32.f32 %v2284
        %v2287 = vcvt.s32.f32 %v2285
        %2288 = vmin.xlane.f32.xlu0 %v2287
        %v2289 = vpop.xlane.xlu0 %2288
        %vm2290 = vcmp.eq.f32.partialorder %v2287, %v2289
        %v2291 = vsel %vm2290, %v2286, inf
        %2292 = vmin.xlane.f32.xlu0 %v2291
        %v2293 = vpop.xlane.xlu0 %2292
        %v2294 = vcvt.f32.s32 %v2293
        %v2295 = vcvt.f32.s32 %v2289
        %v2296 = vshll.u32 %v2295, 16
        %v2297 = vadd.s32 %v2296, %v2294
        %v2298 = vand.u32 %v2013, 65535
        %v2299 = vshra.s32 %v2013, 16
        %v2300 = vcvt.s32.f32 %v2298
        %v2301 = vcvt.s32.f32 %v2299
        %2302 = vmin.xlane.f32.xlu0 %v2301
        %v2303 = vpop.xlane.xlu0 %2302
        %vm2304 = vcmp.eq.f32.partialorder %v2301, %v2303
        %v2305 = vsel %vm2304, %v2300, inf
        %2306 = vmin.xlane.f32.xlu0 %v2305
        %v2307 = vpop.xlane.xlu0 %2306
        %v2308 = vcvt.f32.s32 %v2307
        %v2309 = vcvt.f32.s32 %v2303
        %v2310 = vshll.u32 %v2309, 16
        %v2311 = vadd.s32 %v2310, %v2308
        %v2312 = vand.u32 %v2014, 65535
        %v2313 = vshra.s32 %v2014, 16
        %v2314 = vcvt.s32.f32 %v2312
        %v2315 = vcvt.s32.f32 %v2313
        %2316 = vmin.xlane.f32.xlu0 %v2315
        %v2317 = vpop.xlane.xlu0 %2316
        %vm2318 = vcmp.eq.f32.partialorder %v2315, %v2317
        %v2319 = vsel %vm2318, %v2314, inf
        %2320 = vmin.xlane.f32.xlu0 %v2319
        %v2321 = vpop.xlane.xlu0 %2320
        %v2322 = vcvt.f32.s32 %v2321
        %v2323 = vcvt.f32.s32 %v2317
        %v2324 = vshll.u32 %v2323, 16
        %v2325 = vadd.s32 %v2324, %v2322
        %v2326 = vand.u32 %v2015, 65535
        %v2327 = vshra.s32 %v2015, 16
        %v2328 = vcvt.s32.f32 %v2326
        %v2329 = vcvt.s32.f32 %v2327
        %2330 = vmin.xlane.f32.xlu0 %v2329
        %v2331 = vpop.xlane.xlu0 %2330
        %vm2332 = vcmp.eq.f32.partialorder %v2329, %v2331
        %v2333 = vsel %vm2332, %v2328, inf
        %2334 = vmin.xlane.f32.xlu0 %v2333
        %v2335 = vpop.xlane.xlu0 %2334
        %v2336 = vcvt.f32.s32 %v2335
        %v2337 = vcvt.f32.s32 %v2331
        %v2338 = vshll.u32 %v2337, 16
        %v2339 = vadd.s32 %v2338, %v2336
        %v2340 = vand.u32 %v2016, 65535
        %v2341 = vshra.s32 %v2016, 16
        %v2342 = vcvt.s32.f32 %v2340
        %v2343 = vcvt.s32.f32 %v2341
        %2344 = vmin.xlane.f32.xlu0 %v2343
        %v2345 = vpop.xlane.xlu0 %2344
        %vm2346 = vcmp.eq.f32.partialorder %v2343, %v2345
        %v2347 = vsel %vm2346, %v2342, inf
        %2348 = vmin.xlane.f32.xlu0 %v2347
        %v2349 = vpop.xlane.xlu0 %2348
        %v2350 = vcvt.f32.s32 %v2349
        %v2351 = vcvt.f32.s32 %v2345
        %v2352 = vshll.u32 %v2351, 16
        %v2353 = vadd.s32 %v2352, %v2350
        %v2354 = vand.u32 %v2017, 65535
        %v2355 = vshra.s32 %v2017, 16
        %v2356 = vcvt.s32.f32 %v2354
        %v2357 = vcvt.s32.f32 %v2355
        %2358 = vmin.xlane.f32.xlu0 %v2357
        %v2359 = vpop.xlane.xlu0 %2358
        %vm2360 = vcmp.eq.f32.partialorder %v2357, %v2359
        %v2361 = vsel %vm2360, %v2356, inf
        %2362 = vmin.xlane.f32.xlu0 %v2361
        %v2363 = vpop.xlane.xlu0 %2362
        %v2364 = vcvt.f32.s32 %v2363
        %v2365 = vcvt.f32.s32 %v2359
        %v2366 = vshll.u32 %v2365, 16
        %v2367 = vadd.s32 %v2366, %v2364
        %v2368 = vand.u32 %v2018, 65535
        %v2369 = vshra.s32 %v2018, 16
        %v2370 = vcvt.s32.f32 %v2368
        %v2371 = vcvt.s32.f32 %v2369
        %2372 = vmin.xlane.f32.xlu0 %v2371
        %v2373 = vpop.xlane.xlu0 %2372
        %vm2374 = vcmp.eq.f32.partialorder %v2371, %v2373
        %v2375 = vsel %vm2374, %v2370, inf
        %2376 = vmin.xlane.f32.xlu0 %v2375
        %v2377 = vpop.xlane.xlu0 %2376
        %v2378 = vcvt.f32.s32 %v2377
        %v2379 = vcvt.f32.s32 %v2373
        %v2380 = vshll.u32 %v2379, 16
        %v2381 = vadd.s32 %v2380, %v2378
        %v2382 = vand.u32 %v2019, 65535
        %v2383 = vshra.s32 %v2019, 16
        %v2384 = vcvt.s32.f32 %v2382
        %v2385 = vcvt.s32.f32 %v2383
        %2386 = vmin.xlane.f32.xlu0 %v2385
        %v2387 = vpop.xlane.xlu0 %2386
        %vm2388 = vcmp.eq.f32.partialorder %v2385, %v2387
        %v2389 = vsel %vm2388, %v2384, inf
        %2390 = vmin.xlane.f32.xlu0 %v2389
        %v2391 = vpop.xlane.xlu0 %2390
        %v2392 = vcvt.f32.s32 %v2391
        %v2393 = vcvt.f32.s32 %v2387
        %v2394 = vshll.u32 %v2393, 16
        %v2395 = vadd.s32 %v2394, %v2392
        %v2396 = vand.u32 %v2020, 65535
        %v2397 = vshra.s32 %v2020, 16
        %v2398 = vcvt.s32.f32 %v2396
        %v2399 = vcvt.s32.f32 %v2397
        %2400 = vmin.xlane.f32.xlu0 %v2399
        %v2401 = vpop.xlane.xlu0 %2400
        %vm2402 = vcmp.eq.f32.partialorder %v2399, %v2401
        %v2403 = vsel %vm2402, %v2398, inf
        %2404 = vmin.xlane.f32.xlu0 %v2403
        %v2405 = vpop.xlane.xlu0 %2404
        %v2406 = vcvt.f32.s32 %v2405
        %v2407 = vcvt.f32.s32 %v2401
        %v2408 = vshll.u32 %v2407, 16
        %v2409 = vadd.s32 %v2408, %v2406
        %v2410 = vand.u32 %v2021, 65535
        %v2411 = vshra.s32 %v2021, 16
        %v2412 = vcvt.s32.f32 %v2410
        %v2413 = vcvt.s32.f32 %v2411
        %2414 = vmin.xlane.f32.xlu0 %v2413
        %v2415 = vpop.xlane.xlu0 %2414
        %vm2416 = vcmp.eq.f32.partialorder %v2413, %v2415
        %v2417 = vsel %vm2416, %v2412, inf
        %2418 = vmin.xlane.f32.xlu0 %v2417
        %v2419 = vpop.xlane.xlu0 %2418
        %v2420 = vcvt.f32.s32 %v2419
        %v2421 = vcvt.f32.s32 %v2415
        %v2422 = vshll.u32 %v2421, 16
        %v2423 = vadd.s32 %v2422, %v2420
        %v2424 = vand.u32 %v2022, 65535
        %v2425 = vshra.s32 %v2022, 16
        %v2426 = vcvt.s32.f32 %v2424
        %v2427 = vcvt.s32.f32 %v2425
        %2428 = vmin.xlane.f32.xlu0 %v2427
        %v2429 = vpop.xlane.xlu0 %2428
        %vm2430 = vcmp.eq.f32.partialorder %v2427, %v2429
        %v2431 = vsel %vm2430, %v2426, inf
        %2432 = vmin.xlane.f32.xlu0 %v2431
        %v2433 = vpop.xlane.xlu0 %2432
        %v2434 = vcvt.f32.s32 %v2433
        %v2435 = vcvt.f32.s32 %v2429
        %v2436 = vshll.u32 %v2435, 16
        %v2437 = vadd.s32 %v2436, %v2434
        %v2438 = vand.u32 %v2023, 65535
        %v2439 = vshra.s32 %v2023, 16
        %v2440 = vcvt.s32.f32 %v2438
        %v2441 = vcvt.s32.f32 %v2439
        %2442 = vmin.xlane.f32.xlu0 %v2441
        %v2443 = vpop.xlane.xlu0 %2442
        %vm2444 = vcmp.eq.f32.partialorder %v2441, %v2443
        %v2445 = vsel %vm2444, %v2440, inf
        %2446 = vmin.xlane.f32.xlu0 %v2445
        %v2447 = vpop.xlane.xlu0 %2446
        %v2448 = vcvt.f32.s32 %v2447
        %v2449 = vcvt.f32.s32 %v2443
        %v2450 = vshll.u32 %v2449, 16
        %v2451 = vadd.s32 %v2450, %v2448
        %v2452 = vand.u32 %v2024, 65535
        %v2453 = vshra.s32 %v2024, 16
        %v2454 = vcvt.s32.f32 %v2452
        %v2455 = vcvt.s32.f32 %v2453
        %2456 = vmin.xlane.f32.xlu0 %v2455
        %v2457 = vpop.xlane.xlu0 %2456
        %vm2458 = vcmp.eq.f32.partialorder %v2455, %v2457
        %v2459 = vsel %vm2458, %v2454, inf
        %2460 = vmin.xlane.f32.xlu0 %v2459
        %v2461 = vpop.xlane.xlu0 %2460
        %v2462 = vcvt.f32.s32 %v2461
        %v2463 = vcvt.f32.s32 %v2457
        %v2464 = vshll.u32 %v2463, 16
        %v2465 = vadd.s32 %v2464, %v2462
        %v2466 = vand.u32 %v2025, 65535
        %v2467 = vshra.s32 %v2025, 16
        %v2468 = vcvt.s32.f32 %v2466
        %v2469 = vcvt.s32.f32 %v2467
        %2470 = vmin.xlane.f32.xlu0 %v2469
        %v2471 = vpop.xlane.xlu0 %2470
        %vm2472 = vcmp.eq.f32.partialorder %v2469, %v2471
        %v2473 = vsel %vm2472, %v2468, inf
        %2474 = vmin.xlane.f32.xlu0 %v2473
        %v2475 = vpop.xlane.xlu0 %2474
        %v2476 = vcvt.f32.s32 %v2475
        %v2477 = vcvt.f32.s32 %v2471
        %v2478 = vshll.u32 %v2477, 16
        %v2479 = vadd.s32 %v2478, %v2476
        %v2480 = vand.u32 %v2026, 65535
        %v2481 = vshra.s32 %v2026, 16
        %v2482 = vcvt.s32.f32 %v2480
        %v2483 = vcvt.s32.f32 %v2481
        %2484 = vmin.xlane.f32.xlu0 %v2483
        %v2485 = vpop.xlane.xlu0 %2484
        %vm2486 = vcmp.eq.f32.partialorder %v2483, %v2485
        %v2487 = vsel %vm2486, %v2482, inf
        %2488 = vmin.xlane.f32.xlu0 %v2487
        %v2489 = vpop.xlane.xlu0 %2488
        %v2490 = vcvt.f32.s32 %v2489
        %v2491 = vcvt.f32.s32 %v2485
        %v2492 = vshll.u32 %v2491, 16
        %v2493 = vadd.s32 %v2492, %v2490
        %v2494 = vand.u32 %v2027, 65535
        %v2495 = vshra.s32 %v2027, 16
        %v2496 = vcvt.s32.f32 %v2494
        %v2497 = vcvt.s32.f32 %v2495
        %2498 = vmin.xlane.f32.xlu0 %v2497
        %v2499 = vpop.xlane.xlu0 %2498
        %vm2500 = vcmp.eq.f32.partialorder %v2497, %v2499
        %v2501 = vsel %vm2500, %v2496, inf
        %2502 = vmin.xlane.f32.xlu0 %v2501
        %v2503 = vpop.xlane.xlu0 %2502
        %v2504 = vcvt.f32.s32 %v2503
        %v2505 = vcvt.f32.s32 %v2499
        %v2506 = vshll.u32 %v2505, 16
        %v2507 = vadd.s32 %v2506, %v2504
        %v2508 = vand.u32 %v2028, 65535
        %v2509 = vshra.s32 %v2028, 16
        %v2510 = vcvt.s32.f32 %v2508
        %v2511 = vcvt.s32.f32 %v2509
        %2512 = vmin.xlane.f32.xlu0 %v2511
        %v2513 = vpop.xlane.xlu0 %2512
        %vm2514 = vcmp.eq.f32.partialorder %v2511, %v2513
        %v2515 = vsel %vm2514, %v2510, inf
        %2516 = vmin.xlane.f32.xlu0 %v2515
        %v2517 = vpop.xlane.xlu0 %2516
        %v2518 = vcvt.f32.s32 %v2517
        %v2519 = vcvt.f32.s32 %v2513
        %v2520 = vshll.u32 %v2519, 16
        %v2521 = vadd.s32 %v2520, %v2518
        %v2522 = vand.u32 %v2029, 65535
        %v2523 = vshra.s32 %v2029, 16
        %v2524 = vcvt.s32.f32 %v2522
        %v2525 = vcvt.s32.f32 %v2523
        %2526 = vmin.xlane.f32.xlu0 %v2525
        %v2527 = vpop.xlane.xlu0 %2526
        %vm2528 = vcmp.eq.f32.partialorder %v2525, %v2527
        %v2529 = vsel %vm2528, %v2524, inf
        %2530 = vmin.xlane.f32.xlu0 %v2529
        %v2531 = vpop.xlane.xlu0 %2530
        %v2532 = vcvt.f32.s32 %v2531
        %v2533 = vcvt.f32.s32 %v2527
        %v2534 = vshll.u32 %v2533, 16
        %v2535 = vadd.s32 %v2534, %v2532
        %v2536 = vand.u32 %v2030, 65535
        %v2537 = vshra.s32 %v2030, 16
        %v2538 = vcvt.s32.f32 %v2536
        %v2539 = vcvt.s32.f32 %v2537
        %2540 = vmin.xlane.f32.xlu0 %v2539
        %v2541 = vpop.xlane.xlu0 %2540
        %vm2542 = vcmp.eq.f32.partialorder %v2539, %v2541
        %v2543 = vsel %vm2542, %v2538, inf
        %2544 = vmin.xlane.f32.xlu0 %v2543
        %v2545 = vpop.xlane.xlu0 %2544
        %v2546 = vcvt.f32.s32 %v2545
        %v2547 = vcvt.f32.s32 %v2541
        %v2548 = vshll.u32 %v2547, 16
        %v2549 = vadd.s32 %v2548, %v2546
        %v2550 = vand.u32 %v2031, 65535
        %v2551 = vshra.s32 %v2031, 16
        %v2552 = vcvt.s32.f32 %v2550
        %v2553 = vcvt.s32.f32 %v2551
        %2554 = vmin.xlane.f32.xlu0 %v2553
        %v2555 = vpop.xlane.xlu0 %2554
        %vm2556 = vcmp.eq.f32.partialorder %v2553, %v2555
        %v2557 = vsel %vm2556, %v2552, inf
        %2558 = vmin.xlane.f32.xlu0 %v2557
        %v2559 = vpop.xlane.xlu0 %2558
        %v2560 = vcvt.f32.s32 %v2559
        %v2561 = vcvt.f32.s32 %v2555
        %v2562 = vshll.u32 %v2561, 16
        %v2563 = vadd.s32 %v2562, %v2560
        %v2564 = vand.u32 %v2032, 65535
        %v2565 = vshra.s32 %v2032, 16
        %v2566 = vcvt.s32.f32 %v2564
        %v2567 = vcvt.s32.f32 %v2565
        %2568 = vmin.xlane.f32.xlu0 %v2567
        %v2569 = vpop.xlane.xlu0 %2568
        %vm2570 = vcmp.eq.f32.partialorder %v2567, %v2569
        %v2571 = vsel %vm2570, %v2566, inf
        %2572 = vmin.xlane.f32.xlu0 %v2571
        %v2573 = vpop.xlane.xlu0 %2572
        %v2574 = vcvt.f32.s32 %v2573
        %v2575 = vcvt.f32.s32 %v2569
        %v2576 = vshll.u32 %v2575, 16
        %v2577 = vadd.s32 %v2576, %v2574
        %v2578 = vand.u32 %v2033, 65535
        %v2579 = vshra.s32 %v2033, 16
        %v2580 = vcvt.s32.f32 %v2578
        %v2581 = vcvt.s32.f32 %v2579
        %2582 = vmin.xlane.f32.xlu0 %v2581
        %v2583 = vpop.xlane.xlu0 %2582
        %vm2584 = vcmp.eq.f32.partialorder %v2581, %v2583
        %v2585 = vsel %vm2584, %v2580, inf
        %2586 = vmin.xlane.f32.xlu0 %v2585
        %v2587 = vpop.xlane.xlu0 %2586
        %v2588 = vcvt.f32.s32 %v2587
        %v2589 = vcvt.f32.s32 %v2583
        %v2590 = vshll.u32 %v2589, 16
        %v2591 = vadd.s32 %v2590, %v2588
        %v2592 = vand.u32 %v2034, 65535
        %v2593 = vshra.s32 %v2034, 16
        %v2594 = vcvt.s32.f32 %v2592
        %v2595 = vcvt.s32.f32 %v2593
        %2596 = vmin.xlane.f32.xlu0 %v2595
        %v2597 = vpop.xlane.xlu0 %2596
        %vm2598 = vcmp.eq.f32.partialorder %v2595, %v2597
        %v2599 = vsel %vm2598, %v2594, inf
        %2600 = vmin.xlane.f32.xlu0 %v2599
        %v2601 = vpop.xlane.xlu0 %2600
        %v2602 = vcvt.f32.s32 %v2601
        %v2603 = vcvt.f32.s32 %v2597
        %v2604 = vshll.u32 %v2603, 16
        %v2605 = vadd.s32 %v2604, %v2602
        %v2606 = vand.u32 %v2035, 65535
        %v2607 = vshra.s32 %v2035, 16
        %v2608 = vcvt.s32.f32 %v2606
        %v2609 = vcvt.s32.f32 %v2607
        %2610 = vmin.xlane.f32.xlu0 %v2609
        %v2611 = vpop.xlane.xlu0 %2610
        %vm2612 = vcmp.eq.f32.partialorder %v2609, %v2611
        %v2613 = vsel %vm2612, %v2608, inf
        %2614 = vmin.xlane.f32.xlu0 %v2613
        %v2615 = vpop.xlane.xlu0 %2614
        %v2616 = vcvt.f32.s32 %v2615
        %v2617 = vcvt.f32.s32 %v2611
        %v2618 = vshll.u32 %v2617, 16
        %v2619 = vadd.s32 %v2618, %v2616
        %v2620 = vand.u32 %v2036, 65535
        %v2621 = vshra.s32 %v2036, 16
        %v2622 = vcvt.s32.f32 %v2620
        %v2623 = vcvt.s32.f32 %v2621
        %2624 = vmin.xlane.f32.xlu0 %v2623
        %v2625 = vpop.xlane.xlu0 %2624
        %vm2626 = vcmp.eq.f32.partialorder %v2623, %v2625
        %v2627 = vsel %vm2626, %v2622, inf
        %2628 = vmin.xlane.f32.xlu0 %v2627
        %v2629 = vpop.xlane.xlu0 %2628
        %v2630 = vcvt.f32.s32 %v2629
        %v2631 = vcvt.f32.s32 %v2625
        %v2632 = vshll.u32 %v2631, 16
        %v2633 = vadd.s32 %v2632, %v2630
        %v2634 = vand.u32 %v2037, 65535
        %v2635 = vshra.s32 %v2037, 16
        %v2636 = vcvt.s32.f32 %v2634
        %v2637 = vcvt.s32.f32 %v2635
        %2638 = vmin.xlane.f32.xlu0 %v2637
        %v2639 = vpop.xlane.xlu0 %2638
        %vm2640 = vcmp.eq.f32.partialorder %v2637, %v2639
        %v2641 = vsel %vm2640, %v2636, inf
        %2642 = vmin.xlane.f32.xlu0 %v2641
        %v2643 = vpop.xlane.xlu0 %2642
        %v2644 = vcvt.f32.s32 %v2643
        %v2645 = vcvt.f32.s32 %v2639
        %v2646 = vshll.u32 %v2645, 16
        %v2647 = vadd.s32 %v2646, %v2644
        %v2648 = vand.u32 %v2038, 65535
        %v2649 = vshra.s32 %v2038, 16
        %v2650 = vcvt.s32.f32 %v2648
        %v2651 = vcvt.s32.f32 %v2649
        %2652 = vmin.xlane.f32.xlu0 %v2651
        %v2653 = vpop.xlane.xlu0 %2652
        %vm2654 = vcmp.eq.f32.partialorder %v2651, %v2653
        %v2655 = vsel %vm2654, %v2650, inf
        %2656 = vmin.xlane.f32.xlu0 %v2655
        %v2657 = vpop.xlane.xlu0 %2656
        %v2658 = vcvt.f32.s32 %v2657
        %v2659 = vcvt.f32.s32 %v2653
        %v2660 = vshll.u32 %v2659, 16
        %v2661 = vadd.s32 %v2660, %v2658
        %v2662 = vand.u32 %v2039, 65535
        %v2663 = vshra.s32 %v2039, 16
        %v2664 = vcvt.s32.f32 %v2662
        %v2665 = vcvt.s32.f32 %v2663
        %2666 = vmin.xlane.f32.xlu0 %v2665
        %v2667 = vpop.xlane.xlu0 %2666
        %vm2668 = vcmp.eq.f32.partialorder %v2665, %v2667
        %v2669 = vsel %vm2668, %v2664, inf
        %2670 = vmin.xlane.f32.xlu0 %v2669
        %v2671 = vpop.xlane.xlu0 %2670
        %v2672 = vcvt.f32.s32 %v2671
        %v2673 = vcvt.f32.s32 %v2667
        %v2674 = vshll.u32 %v2673, 16
        %v2675 = vadd.s32 %v2674, %v2672
        %v2676 = vand.u32 %v2040, 65535
        %v2677 = vshra.s32 %v2040, 16
        %v2678 = vcvt.s32.f32 %v2676
        %v2679 = vcvt.s32.f32 %v2677
        %2680 = vmin.xlane.f32.xlu0 %v2679
        %v2681 = vpop.xlane.xlu0 %2680
        %vm2682 = vcmp.eq.f32.partialorder %v2679, %v2681
        %v2683 = vsel %vm2682, %v2678, inf
        %2684 = vmin.xlane.f32.xlu0 %v2683
        %v2685 = vpop.xlane.xlu0 %2684
        %v2686 = vcvt.f32.s32 %v2685
        %v2687 = vcvt.f32.s32 %v2681
        %v2688 = vshll.u32 %v2687, 16
        %v2689 = vadd.s32 %v2688, %v2686
        %v2690 = vand.u32 %v2041, 65535
        %v2691 = vshra.s32 %v2041, 16
        %v2692 = vcvt.s32.f32 %v2690
        %v2693 = vcvt.s32.f32 %v2691
        %2694 = vmin.xlane.f32.xlu0 %v2693
        %v2695 = vpop.xlane.xlu0 %2694
        %vm2696 = vcmp.eq.f32.partialorder %v2693, %v2695
        %v2697 = vsel %vm2696, %v2692, inf
        %2698 = vmin.xlane.f32.xlu0 %v2697
        %v2699 = vpop.xlane.xlu0 %2698
        %v2700 = vcvt.f32.s32 %v2699
        %v2701 = vcvt.f32.s32 %v2695
        %v2702 = vshll.u32 %v2701, 16
        %v2703 = vadd.s32 %v2702, %v2700
        %v2704 = vand.u32 %v2042, 65535
        %v2705 = vshra.s32 %v2042, 16
        %v2706 = vcvt.s32.f32 %v2704
        %v2707 = vcvt.s32.f32 %v2705
        %2708 = vmin.xlane.f32.xlu0 %v2707
        %v2709 = vpop.xlane.xlu0 %2708
        %vm2710 = vcmp.eq.f32.partialorder %v2707, %v2709
        %v2711 = vsel %vm2710, %v2706, inf
        %2712 = vmin.xlane.f32.xlu0 %v2711
        %v2713 = vpop.xlane.xlu0 %2712
        %v2714 = vcvt.f32.s32 %v2713
        %v2715 = vcvt.f32.s32 %v2709
        %v2716 = vshll.u32 %v2715, 16
        %v2717 = vadd.s32 %v2716, %v2714
        %v2718 = vand.u32 %v2043, 65535
        %v2719 = vshra.s32 %v2043, 16
        %v2720 = vcvt.s32.f32 %v2718
        %v2721 = vcvt.s32.f32 %v2719
        %2722 = vmin.xlane.f32.xlu0 %v2721
        %v2723 = vpop.xlane.xlu0 %2722
        %vm2724 = vcmp.eq.f32.partialorder %v2721, %v2723
        %v2725 = vsel %vm2724, %v2720, inf
        %2726 = vmin.xlane.f32.xlu0 %v2725
        %v2727 = vpop.xlane.xlu0 %2726
        %v2728 = vcvt.f32.s32 %v2727
        %v2729 = vcvt.f32.s32 %v2723
        %v2730 = vshll.u32 %v2729, 16
        %v2731 = vadd.s32 %v2730, %v2728
        %v2732 = vand.u32 %v2044, 65535
        %v2733 = vshra.s32 %v2044, 16
        %v2734 = vcvt.s32.f32 %v2732
        %v2735 = vcvt.s32.f32 %v2733
        %2736 = vmin.xlane.f32.xlu0 %v2735
        %v2737 = vpop.xlane.xlu0 %2736
        %vm2738 = vcmp.eq.f32.partialorder %v2735, %v2737
        %v2739 = vsel %vm2738, %v2734, inf
        %2740 = vmin.xlane.f32.xlu0 %v2739
        %v2741 = vpop.xlane.xlu0 %2740
        %v2742 = vcvt.f32.s32 %v2741
        %v2743 = vcvt.f32.s32 %v2737
        %v2744 = vshll.u32 %v2743, 16
        %v2745 = vadd.s32 %v2744, %v2742
        %v2746 = vand.u32 %v2045, 65535
        %v2747 = vshra.s32 %v2045, 16
        %v2748 = vcvt.s32.f32 %v2746
        %v2749 = vcvt.s32.f32 %v2747
        %2750 = vmin.xlane.f32.xlu0 %v2749
        %v2751 = vpop.xlane.xlu0 %2750
        %vm2752 = vcmp.eq.f32.partialorder %v2749, %v2751
        %v2753 = vsel %vm2752, %v2748, inf
        %2754 = vmin.xlane.f32.xlu0 %v2753
        %v2755 = vpop.xlane.xlu0 %2754
        %v2756 = vcvt.f32.s32 %v2755
        %v2757 = vcvt.f32.s32 %v2751
        %v2758 = vshll.u32 %v2757, 16
        %v2759 = vadd.s32 %v2758, %v2756
        %v2760 = vand.u32 %v2046, 65535
        %v2761 = vshra.s32 %v2046, 16
        %v2762 = vcvt.s32.f32 %v2760
        %v2763 = vcvt.s32.f32 %v2761
        %2764 = vmin.xlane.f32.xlu0 %v2763
        %v2765 = vpop.xlane.xlu0 %2764
        %vm2766 = vcmp.eq.f32.partialorder %v2763, %v2765
        %v2767 = vsel %vm2766, %v2762, inf
        %2768 = vmin.xlane.f32.xlu0 %v2767
        %v2769 = vpop.xlane.xlu0 %2768
        %v2770 = vcvt.f32.s32 %v2769
        %v2771 = vcvt.f32.s32 %v2765
        %v2772 = vshll.u32 %v2771, 16
        %v2773 = vadd.s32 %v2772, %v2770
        %v2774 = vand.u32 %v2047, 65535
        %v2775 = vshra.s32 %v2047, 16
        %v2776 = vcvt.s32.f32 %v2774
        %v2777 = vcvt.s32.f32 %v2775
        %2778 = vmin.xlane.f32.xlu0 %v2777
        %v2779 = vpop.xlane.xlu0 %2778
        %vm2780 = vcmp.eq.f32.partialorder %v2777, %v2779
        %v2781 = vsel %vm2780, %v2776, inf
        %2782 = vmin.xlane.f32.xlu0 %v2781
        %v2783 = vpop.xlane.xlu0 %2782
        %v2784 = vcvt.f32.s32 %v2783
        %v2785 = vcvt.f32.s32 %v2779
        %v2786 = vshll.u32 %v2785, 16
        %v2787 = vadd.s32 %v2786, %v2784
        %v2788 = vand.u32 %v2048, 65535
        %v2789 = vshra.s32 %v2048, 16
        %v2790 = vcvt.s32.f32 %v2788
        %v2791 = vcvt.s32.f32 %v2789
        %2792 = vmin.xlane.f32.xlu0 %v2791
        %v2793 = vpop.xlane.xlu0 %2792
        %vm2794 = vcmp.eq.f32.partialorder %v2791, %v2793
        %v2795 = vsel %vm2794, %v2790, inf
        %2796 = vmin.xlane.f32.xlu0 %v2795
        %v2797 = vpop.xlane.xlu0 %2796
        %v2798 = vcvt.f32.s32 %v2797
        %v2799 = vcvt.f32.s32 %v2793
        %v2800 = vshll.u32 %v2799, 16
        %v2801 = vadd.s32 %v2800, %v2798
        %v2802 = vand.u32 %v2049, 65535
        %v2803 = vshra.s32 %v2049, 16
        %v2804 = vcvt.s32.f32 %v2802
        %v2805 = vcvt.s32.f32 %v2803
        %2806 = vmin.xlane.f32.xlu0 %v2805
        %v2807 = vpop.xlane.xlu0 %2806
        %vm2808 = vcmp.eq.f32.partialorder %v2805, %v2807
        %v2809 = vsel %vm2808, %v2804, inf
        %2810 = vmin.xlane.f32.xlu0 %v2809
        %v2811 = vpop.xlane.xlu0 %2810
        %v2812 = vcvt.f32.s32 %v2811
        %v2813 = vcvt.f32.s32 %v2807
        %v2814 = vshll.u32 %v2813, 16
        %v2815 = vadd.s32 %v2814, %v2812
        %v2816 = vand.u32 %v2050, 65535
        %v2817 = vshra.s32 %v2050, 16
        %v2818 = vcvt.s32.f32 %v2816
        %v2819 = vcvt.s32.f32 %v2817
        %2820 = vmin.xlane.f32.xlu0 %v2819
        %v2821 = vpop.xlane.xlu0 %2820
        %vm2822 = vcmp.eq.f32.partialorder %v2819, %v2821
        %v2823 = vsel %vm2822, %v2818, inf
        %2824 = vmin.xlane.f32.xlu0 %v2823
        %v2825 = vpop.xlane.xlu0 %2824
        %v2826 = vcvt.f32.s32 %v2825
        %v2827 = vcvt.f32.s32 %v2821
        %v2828 = vshll.u32 %v2827, 16
        %v2829 = vadd.s32 %v2828, %v2826
        %v2830 = vand.u32 %v2051, 65535
        %v2831 = vshra.s32 %v2051, 16
        %v2832 = vcvt.s32.f32 %v2830
        %v2833 = vcvt.s32.f32 %v2831
        %2834 = vmin.xlane.f32.xlu0 %v2833
        %v2835 = vpop.xlane.xlu0 %2834
        %vm2836 = vcmp.eq.f32.partialorder %v2833, %v2835
        %v2837 = vsel %vm2836, %v2832, inf
        %2838 = vmin.xlane.f32.xlu0 %v2837
        %v2839 = vpop.xlane.xlu0 %2838
        %v2840 = vcvt.f32.s32 %v2839
        %v2841 = vcvt.f32.s32 %v2835
        %v2842 = vshll.u32 %v2841, 16
        %v2843 = vadd.s32 %v2842, %v2840
        %v2844 = vand.u32 %v2052, 65535
        %v2845 = vshra.s32 %v2052, 16
        %v2846 = vcvt.s32.f32 %v2844
        %v2847 = vcvt.s32.f32 %v2845
        %2848 = vmin.xlane.f32.xlu0 %v2847
        %v2849 = vpop.xlane.xlu0 %2848
        %vm2850 = vcmp.eq.f32.partialorder %v2847, %v2849
        %v2851 = vsel %vm2850, %v2846, inf
        %2852 = vmin.xlane.f32.xlu0 %v2851
        %v2853 = vpop.xlane.xlu0 %2852
        %v2854 = vcvt.f32.s32 %v2853
        %v2855 = vcvt.f32.s32 %v2849
        %v2856 = vshll.u32 %v2855, 16
        %v2857 = vadd.s32 %v2856, %v2854
        %v2858 = vand.u32 %v2053, 65535
        %v2859 = vshra.s32 %v2053, 16
        %v2860 = vcvt.s32.f32 %v2858
        %v2861 = vcvt.s32.f32 %v2859
        %2862 = vmin.xlane.f32.xlu0 %v2861
        %v2863 = vpop.xlane.xlu0 %2862
        %vm2864 = vcmp.eq.f32.partialorder %v2861, %v2863
        %v2865 = vsel %vm2864, %v2860, inf
        %2866 = vmin.xlane.f32.xlu0 %v2865
        %v2867 = vpop.xlane.xlu0 %2866
        %v2868 = vcvt.f32.s32 %v2867
        %v2869 = vcvt.f32.s32 %v2863
        %v2870 = vshll.u32 %v2869, 16
        %v2871 = vadd.s32 %v2870, %v2868
        %v2872 = vand.u32 %v2054, 65535
        %v2873 = vshra.s32 %v2054, 16
        %v2874 = vcvt.s32.f32 %v2872
        %v2875 = vcvt.s32.f32 %v2873
        %2876 = vmin.xlane.f32.xlu0 %v2875
        %v2877 = vpop.xlane.xlu0 %2876
        %vm2878 = vcmp.eq.f32.partialorder %v2875, %v2877
        %v2879 = vsel %vm2878, %v2874, inf
        %2880 = vmin.xlane.f32.xlu0 %v2879
        %v2881 = vpop.xlane.xlu0 %2880
        %v2882 = vcvt.f32.s32 %v2881
        %v2883 = vcvt.f32.s32 %v2877
        %v2884 = vshll.u32 %v2883, 16
        %v2885 = vadd.s32 %v2884, %v2882
        %v2886 = vand.u32 %v2055, 65535
        %v2887 = vshra.s32 %v2055, 16
        %v2888 = vcvt.s32.f32 %v2886
        %v2889 = vcvt.s32.f32 %v2887
        %2890 = vmin.xlane.f32.xlu0 %v2889
        %v2891 = vpop.xlane.xlu0 %2890
        %vm2892 = vcmp.eq.f32.partialorder %v2889, %v2891
        %v2893 = vsel %vm2892, %v2888, inf
        %2894 = vmin.xlane.f32.xlu0 %v2893
        %v2895 = vpop.xlane.xlu0 %2894
        %v2896 = vcvt.f32.s32 %v2895
        %v2897 = vcvt.f32.s32 %v2891
        %v2898 = vshll.u32 %v2897, 16
        %v2899 = vadd.s32 %v2898, %v2896
        %v2900 = vand.u32 %v2056, 65535
        %v2901 = vshra.s32 %v2056, 16
        %v2902 = vcvt.s32.f32 %v2900
        %v2903 = vcvt.s32.f32 %v2901
        %2904 = vmin.xlane.f32.xlu0 %v2903
        %v2905 = vpop.xlane.xlu0 %2904
        %vm2906 = vcmp.eq.f32.partialorder %v2903, %v2905
        %v2907 = vsel %vm2906, %v2902, inf
        %2908 = vmin.xlane.f32.xlu0 %v2907
        %v2909 = vpop.xlane.xlu0 %2908
        %v2910 = vcvt.f32.s32 %v2909
        %v2911 = vcvt.f32.s32 %v2905
        %v2912 = vshll.u32 %v2911, 16
        %v2913 = vadd.s32 %v2912, %v2910
        %v2914 = vand.u32 %v2057, 65535
        %v2915 = vshra.s32 %v2057, 16
        %v2916 = vcvt.s32.f32 %v2914
        %v2917 = vcvt.s32.f32 %v2915
        %2918 = vmin.xlane.f32.xlu0 %v2917
        %v2919 = vpop.xlane.xlu0 %2918
        %vm2920 = vcmp.eq.f32.partialorder %v2917, %v2919
        %v2921 = vsel %vm2920, %v2916, inf
        %2922 = vmin.xlane.f32.xlu0 %v2921
        %v2923 = vpop.xlane.xlu0 %2922
        %v2924 = vcvt.f32.s32 %v2923
        %v2925 = vcvt.f32.s32 %v2919
        %v2926 = vshll.u32 %v2925, 16
        %v2927 = vadd.s32 %v2926, %v2924
        %v2928 = vand.u32 %v2058, 65535
        %v2929 = vshra.s32 %v2058, 16
        %v2930 = vcvt.s32.f32 %v2928
        %v2931 = vcvt.s32.f32 %v2929
        %2932 = vmin.xlane.f32.xlu0 %v2931
        %v2933 = vpop.xlane.xlu0 %2932
        %vm2934 = vcmp.eq.f32.partialorder %v2931, %v2933
        %v2935 = vsel %vm2934, %v2930, inf
        %2936 = vmin.xlane.f32.xlu0 %v2935
        %v2937 = vpop.xlane.xlu0 %2936
        %v2938 = vcvt.f32.s32 %v2937
        %v2939 = vcvt.f32.s32 %v2933
        %v2940 = vshll.u32 %v2939, 16
        %v2941 = vadd.s32 %v2940, %v2938
        %v2942 = vand.u32 %v2059, 65535
        %v2943 = vshra.s32 %v2059, 16
        %v2944 = vcvt.s32.f32 %v2942
        %v2945 = vcvt.s32.f32 %v2943
        %2946 = vmin.xlane.f32.xlu0 %v2945
        %v2947 = vpop.xlane.xlu0 %2946
        %vm2948 = vcmp.eq.f32.partialorder %v2945, %v2947
        %v2949 = vsel %vm2948, %v2944, inf
        %2950 = vmin.xlane.f32.xlu0 %v2949
        %v2951 = vpop.xlane.xlu0 %2950
        %v2952 = vcvt.f32.s32 %v2951
        %v2953 = vcvt.f32.s32 %v2947
        %v2954 = vshll.u32 %v2953, 16
        %v2955 = vadd.s32 %v2954, %v2952
        %vm2956 = vcmp.eq.s32.totalorder %v1803, %v2073
        %vm2957 = vcmp.eq.s32.totalorder %v1803, %v2087
        %vm2958 = vcmp.eq.s32.totalorder %v1803, %v2101
        %vm2959 = vcmp.eq.s32.totalorder %v1803, %v2115
        %vm2960 = vcmp.eq.s32.totalorder %v1803, %v2129
        %vm2961 = vcmp.eq.s32.totalorder %v1803, %v2143
        %vm2962 = vcmp.eq.s32.totalorder %v1803, %v2157
        %vm2963 = vcmp.eq.s32.totalorder %v1803, %v2171
        %vm2964 = vcmp.eq.s32.totalorder %v1803, %v2185
        %vm2965 = vcmp.eq.s32.totalorder %v1803, %v2199
        %vm2966 = vcmp.eq.s32.totalorder %v1803, %v2213
        %vm2967 = vcmp.eq.s32.totalorder %v1803, %v2227
        %vm2968 = vcmp.eq.s32.totalorder %v1803, %v2241
        %vm2969 = vcmp.eq.s32.totalorder %v1803, %v2255
        %vm2970 = vcmp.eq.s32.totalorder %v1803, %v2269
        %vm2971 = vcmp.eq.s32.totalorder %v1803, %v2283
        %vm2972 = vcmp.eq.s32.totalorder %v1803, %v2297
        %vm2973 = vcmp.eq.s32.totalorder %v1803, %v2311
        %vm2974 = vcmp.eq.s32.totalorder %v1803, %v2325
        %vm2975 = vcmp.eq.s32.totalorder %v1803, %v2339
        %vm2976 = vcmp.eq.s32.totalorder %v1803, %v2353
        %vm2977 = vcmp.eq.s32.totalorder %v1803, %v2367
        %vm2978 = vcmp.eq.s32.totalorder %v1803, %v2381
        %vm2979 = vcmp.eq.s32.totalorder %v1803, %v2395
        %vm2980 = vcmp.eq.s32.totalorder %v1803, %v2409
        %vm2981 = vcmp.eq.s32.totalorder %v1803, %v2423
        %vm2982 = vcmp.eq.s32.totalorder %v1803, %v2437
        %vm2983 = vcmp.eq.s32.totalorder %v1803, %v2451
        %vm2984 = vcmp.eq.s32.totalorder %v1803, %v2465
        %vm2985 = vcmp.eq.s32.totalorder %v1803, %v2479
        %vm2986 = vcmp.eq.s32.totalorder %v1803, %v2493
        %vm2987 = vcmp.eq.s32.totalorder %v1803, %v2507
        %vm2988 = vcmp.eq.s32.totalorder %v1803, %v2521
        %vm2989 = vcmp.eq.s32.totalorder %v1803, %v2535
        %vm2990 = vcmp.eq.s32.totalorder %v1803, %v2549
        %vm2991 = vcmp.eq.s32.totalorder %v1803, %v2563
        %vm2992 = vcmp.eq.s32.totalorder %v1803, %v2577
        %vm2993 = vcmp.eq.s32.totalorder %v1803, %v2591
        %vm2994 = vcmp.eq.s32.totalorder %v1803, %v2605
        %vm2995 = vcmp.eq.s32.totalorder %v1803, %v2619
        %vm2996 = vcmp.eq.s32.totalorder %v1803, %v2633
        %vm2997 = vcmp.eq.s32.totalorder %v1803, %v2647
        %vm2998 = vcmp.eq.s32.totalorder %v1803, %v2661
        %vm2999 = vcmp.eq.s32.totalorder %v1803, %v2675
        %vm3000 = vcmp.eq.s32.totalorder %v1803, %v2689
        %vm3001 = vcmp.eq.s32.totalorder %v1803, %v2703
        %vm3002 = vcmp.eq.s32.totalorder %v1803, %v2717
        %vm3003 = vcmp.eq.s32.totalorder %v1803, %v2731
        %vm3004 = vcmp.eq.s32.totalorder %v1803, %v2745
        %vm3005 = vcmp.eq.s32.totalorder %v1803, %v2759
        %vm3006 = vcmp.eq.s32.totalorder %v1803, %v2773
        %vm3007 = vcmp.eq.s32.totalorder %v1803, %v2787
        %vm3008 = vcmp.eq.s32.totalorder %v1803, %v2801
        %vm3009 = vcmp.eq.s32.totalorder %v1803, %v2815
        %vm3010 = vcmp.eq.s32.totalorder %v1803, %v2829
        %vm3011 = vcmp.eq.s32.totalorder %v1803, %v2843
        %vm3012 = vcmp.eq.s32.totalorder %v1803, %v2857
        %vm3013 = vcmp.eq.s32.totalorder %v1803, %v2871
        %vm3014 = vcmp.eq.s32.totalorder %v1803, %v2885
        %vm3015 = vcmp.eq.s32.totalorder %v1803, %v2899
        %vm3016 = vcmp.eq.s32.totalorder %v1803, %v2913
        %vm3017 = vcmp.eq.s32.totalorder %v1803, %v2927
        %vm3018 = vcmp.eq.s32.totalorder %v1803, %v2941
        %vm3019 = vcmp.eq.s32.totalorder %v1803, %v2955
        %v3020 = vadd.f32 %v1805, 1e-08
        %v3021 = vadd.f32 %v1807, 1e-08
        %v3022 = vadd.f32 %v1809, 1e-08
        %v3023 = vadd.f32 %v1811, 1e-08
        %v3024 = vadd.f32 %v1813, 1e-08
        %v3025 = vadd.f32 %v1815, 1e-08
        %v3026 = vadd.f32 %v1817, 1e-08
        %v3027 = vadd.f32 %v1819, 1e-08
        %v3028 = vadd.f32 %v1821, 1e-08
        %v3029 = vadd.f32 %v1823, 1e-08
        %v3030 = vadd.f32 %v1825, 1e-08
        %v3031 = vadd.f32 %v1827, 1e-08
        %v3032 = vadd.f32 %v1829, 1e-08
        %v3033 = vadd.f32 %v1831, 1e-08
        %v3034 = vadd.f32 %v1833, 1e-08
        %v3035 = vadd.f32 %v1835, 1e-08
        %v3036 = vadd.f32 %v1837, 1e-08
        %v3037 = vadd.f32 %v1839, 1e-08
        %v3038 = vadd.f32 %v1841, 1e-08
        %v3039 = vadd.f32 %v1843, 1e-08
        %v3040 = vadd.f32 %v1845, 1e-08
        %v3041 = vadd.f32 %v1847, 1e-08
        %v3042 = vadd.f32 %v1849, 1e-08
        %v3043 = vadd.f32 %v1851, 1e-08
        %v3044 = vadd.f32 %v1853, 1e-08
        %v3045 = vadd.f32 %v1855, 1e-08
        %v3046 = vadd.f32 %v1857, 1e-08
        %v3047 = vadd.f32 %v1859, 1e-08
        %v3048 = vadd.f32 %v1861, 1e-08
        %v3049 = vadd.f32 %v1863, 1e-08
        %v3050 = vadd.f32 %v1865, 1e-08
        %v3051 = vadd.f32 %v1867, 1e-08
        %v3052 = vadd.f32 %v1869, 1e-08
        %v3053 = vadd.f32 %v1871, 1e-08
        %v3054 = vadd.f32 %v1873, 1e-08
        %v3055 = vadd.f32 %v1875, 1e-08
        %v3056 = vadd.f32 %v1877, 1e-08
        %v3057 = vadd.f32 %v1879, 1e-08
        %v3058 = vadd.f32 %v1881, 1e-08
        %v3059 = vadd.f32 %v1883, 1e-08
        %v3060 = vadd.f32 %v1885, 1e-08
        %v3061 = vadd.f32 %v1887, 1e-08
        %v3062 = vadd.f32 %v1889, 1e-08
        %v3063 = vadd.f32 %v1891, 1e-08
        %v3064 = vadd.f32 %v1893, 1e-08
        %v3065 = vadd.f32 %v1895, 1e-08
        %v3066 = vadd.f32 %v1897, 1e-08
        %v3067 = vadd.f32 %v1899, 1e-08
        %v3068 = vadd.f32 %v1901, 1e-08
        %v3069 = vadd.f32 %v1903, 1e-08
        %v3070 = vadd.f32 %v1905, 1e-08
        %v3071 = vadd.f32 %v1907, 1e-08
        %v3072 = vadd.f32 %v1909, 1e-08
        %v3073 = vadd.f32 %v1911, 1e-08
        %v3074 = vadd.f32 %v1913, 1e-08
        %v3075 = vadd.f32 %v1915, 1e-08
        %v3076 = vadd.f32 %v1917, 1e-08
        %v3077 = vadd.f32 %v1919, 1e-08
        %v3078 = vadd.f32 %v1921, 1e-08
        %v3079 = vadd.f32 %v1923, 1e-08
        %v3080 = vadd.f32 %v1925, 1e-08
        %v3081 = vadd.f32 %v1927, 1e-08
        %v3082 = vadd.f32 %v1929, 1e-08
        %v3083 = vadd.f32 %v1931, 1e-08
        %v3084 = vrcp.pop %v3020
        %v3085 = vmul.f32 1.0, %v3084
        %v3086 = vrcp.pop %v3021
        %v3087 = vmul.f32 1.0, %v3086
        %v3088 = vrcp.pop %v3022
        %v3089 = vmul.f32 1.0, %v3088
        %v3090 = vrcp.pop %v3023
        %v3091 = vmul.f32 1.0, %v3090
        %v3092 = vrcp.pop %v3024
        %v3093 = vmul.f32 1.0, %v3092
        %v3094 = vrcp.pop %v3025
        %v3095 = vmul.f32 1.0, %v3094
        %v3096 = vrcp.pop %v3026
        %v3097 = vmul.f32 1.0, %v3096
        %v3098 = vrcp.pop %v3027
        %v3099 = vmul.f32 1.0, %v3098
        %v3100 = vrcp.pop %v3028
        %v3101 = vmul.f32 1.0, %v3100
        %v3102 = vrcp.pop %v3029
        %v3103 = vmul.f32 1.0, %v3102
        %v3104 = vrcp.pop %v3030
        %v3105 = vmul.f32 1.0, %v3104
        %v3106 = vrcp.pop %v3031
        %v3107 = vmul.f32 1.0, %v3106
        %v3108 = vrcp.pop %v3032
        %v3109 = vmul.f32 1.0, %v3108
        %v3110 = vrcp.pop %v3033
        %v3111 = vmul.f32 1.0, %v3110
        %v3112 = vrcp.pop %v3034
        %v3113 = vmul.f32 1.0, %v3112
        %v3114 = vrcp.pop %v3035
        %v3115 = vmul.f32 1.0, %v3114
        %v3116 = vrcp.pop %v3036
        %v3117 = vmul.f32 1.0, %v3116
        %v3118 = vrcp.pop %v3037
        %v3119 = vmul.f32 1.0, %v3118
        %v3120 = vrcp.pop %v3038
        %v3121 = vmul.f32 1.0, %v3120
        %v3122 = vrcp.pop %v3039
        %v3123 = vmul.f32 1.0, %v3122
        %v3124 = vrcp.pop %v3040
        %v3125 = vmul.f32 1.0, %v3124
        %v3126 = vrcp.pop %v3041
        %v3127 = vmul.f32 1.0, %v3126
        %v3128 = vrcp.pop %v3042
        %v3129 = vmul.f32 1.0, %v3128
        %v3130 = vrcp.pop %v3043
        %v3131 = vmul.f32 1.0, %v3130
        %v3132 = vrcp.pop %v3044
        %v3133 = vmul.f32 1.0, %v3132
        %v3134 = vrcp.pop %v3045
        %v3135 = vmul.f32 1.0, %v3134
        %v3136 = vrcp.pop %v3046
        %v3137 = vmul.f32 1.0, %v3136
        %v3138 = vrcp.pop %v3047
        %v3139 = vmul.f32 1.0, %v3138
        %v3140 = vrcp.pop %v3048
        %v3141 = vmul.f32 1.0, %v3140
        %v3142 = vrcp.pop %v3049
        %v3143 = vmul.f32 1.0, %v3142
        %v3144 = vrcp.pop %v3050
        %v3145 = vmul.f32 1.0, %v3144
        %v3146 = vrcp.pop %v3051
        %v3147 = vmul.f32 1.0, %v3146
        %v3148 = vrcp.pop %v3052
        %v3149 = vmul.f32 1.0, %v3148
        %v3150 = vrcp.pop %v3053
        %v3151 = vmul.f32 1.0, %v3150
        %v3152 = vrcp.pop %v3054
        %v3153 = vmul.f32 1.0, %v3152
        %v3154 = vrcp.pop %v3055
        %v3155 = vmul.f32 1.0, %v3154
        %v3156 = vrcp.pop %v3056
        %v3157 = vmul.f32 1.0, %v3156
        %v3158 = vrcp.pop %v3057
        %v3159 = vmul.f32 1.0, %v3158
        %v3160 = vrcp.pop %v3058
        %v3161 = vmul.f32 1.0, %v3160
        %v3162 = vrcp.pop %v3059
        %v3163 = vmul.f32 1.0, %v3162
        %v3164 = vrcp.pop %v3060
        %v3165 = vmul.f32 1.0, %v3164
        %v3166 = vrcp.pop %v3061
        %v3167 = vmul.f32 1.0, %v3166
        %v3168 = vrcp.pop %v3062
        %v3169 = vmul.f32 1.0, %v3168
        %v3170 = vrcp.pop %v3063
        %v3171 = vmul.f32 1.0, %v3170
        %v3172 = vrcp.pop %v3064
        %v3173 = vmul.f32 1.0, %v3172
        %v3174 = vrcp.pop %v3065
        %v3175 = vmul.f32 1.0, %v3174
        %v3176 = vrcp.pop %v3066
        %v3177 = vmul.f32 1.0, %v3176
        %v3178 = vrcp.pop %v3067
        %v3179 = vmul.f32 1.0, %v3178
        %v3180 = vrcp.pop %v3068
        %v3181 = vmul.f32 1.0, %v3180
        %v3182 = vrcp.pop %v3069
        %v3183 = vmul.f32 1.0, %v3182
        %v3184 = vrcp.pop %v3070
        %v3185 = vmul.f32 1.0, %v3184
        %v3186 = vrcp.pop %v3071
        %v3187 = vmul.f32 1.0, %v3186
        %v3188 = vrcp.pop %v3072
        %v3189 = vmul.f32 1.0, %v3188
        %v3190 = vrcp.pop %v3073
        %v3191 = vmul.f32 1.0, %v3190
        %v3192 = vrcp.pop %v3074
        %v3193 = vmul.f32 1.0, %v3192
        %v3194 = vrcp.pop %v3075
        %v3195 = vmul.f32 1.0, %v3194
        %v3196 = vrcp.pop %v3076
        %v3197 = vmul.f32 1.0, %v3196
        %v3198 = vrcp.pop %v3077
        %v3199 = vmul.f32 1.0, %v3198
        %v3200 = vrcp.pop %v3078
        %v3201 = vmul.f32 1.0, %v3200
        %v3202 = vrcp.pop %v3079
        %v3203 = vmul.f32 1.0, %v3202
        %v3204 = vrcp.pop %v3080
        %v3205 = vmul.f32 1.0, %v3204
        %v3206 = vrcp.pop %v3081
        %v3207 = vmul.f32 1.0, %v3206
        %v3208 = vrcp.pop %v3082
        %v3209 = vmul.f32 1.0, %v3208
        %v3210 = vrcp.pop %v3083
        %v3211 = vmul.f32 1.0, %v3210
        %v3212 = vsel %vm2956, %v3085, 0.0
        %v3213 = vsel %vm2957, %v3087, 0.0
        %v3214 = vsel %vm2958, %v3089, 0.0
        %v3215 = vsel %vm2959, %v3091, 0.0
        %v3216 = vsel %vm2960, %v3093, 0.0
        %v3217 = vsel %vm2961, %v3095, 0.0
        %v3218 = vsel %vm2962, %v3097, 0.0
        %v3219 = vsel %vm2963, %v3099, 0.0
        %v3220 = vsel %vm2964, %v3101, 0.0
        %v3221 = vsel %vm2965, %v3103, 0.0
        %v3222 = vsel %vm2966, %v3105, 0.0
        %v3223 = vsel %vm2967, %v3107, 0.0
        %v3224 = vsel %vm2968, %v3109, 0.0
        %v3225 = vsel %vm2969, %v3111, 0.0
        %v3226 = vsel %vm2970, %v3113, 0.0
        %v3227 = vsel %vm2971, %v3115, 0.0
        %v3228 = vsel %vm2972, %v3117, 0.0
        %v3229 = vsel %vm2973, %v3119, 0.0
        %v3230 = vsel %vm2974, %v3121, 0.0
        %v3231 = vsel %vm2975, %v3123, 0.0
        %v3232 = vsel %vm2976, %v3125, 0.0
        %v3233 = vsel %vm2977, %v3127, 0.0
        %v3234 = vsel %vm2978, %v3129, 0.0
        %v3235 = vsel %vm2979, %v3131, 0.0
        %v3236 = vsel %vm2980, %v3133, 0.0
        %v3237 = vsel %vm2981, %v3135, 0.0
        %v3238 = vsel %vm2982, %v3137, 0.0
        %v3239 = vsel %vm2983, %v3139, 0.0
        %v3240 = vsel %vm2984, %v3141, 0.0
        %v3241 = vsel %vm2985, %v3143, 0.0
        %v3242 = vsel %vm2986, %v3145, 0.0
        %v3243 = vsel %vm2987, %v3147, 0.0
        %v3244 = vsel %vm2988, %v3149, 0.0
        %v3245 = vsel %vm2989, %v3151, 0.0
        %v3246 = vsel %vm2990, %v3153, 0.0
        %v3247 = vsel %vm2991, %v3155, 0.0
        %v3248 = vsel %vm2992, %v3157, 0.0
        %v3249 = vsel %vm2993, %v3159, 0.0
        %v3250 = vsel %vm2994, %v3161, 0.0
        %v3251 = vsel %vm2995, %v3163, 0.0
        %v3252 = vsel %vm2996, %v3165, 0.0
        %v3253 = vsel %vm2997, %v3167, 0.0
        %v3254 = vsel %vm2998, %v3169, 0.0
        %v3255 = vsel %vm2999, %v3171, 0.0
        %v3256 = vsel %vm3000, %v3173, 0.0
        %v3257 = vsel %vm3001, %v3175, 0.0
        %v3258 = vsel %vm3002, %v3177, 0.0
        %v3259 = vsel %vm3003, %v3179, 0.0
        %v3260 = vsel %vm3004, %v3181, 0.0
        %v3261 = vsel %vm3005, %v3183, 0.0
        %v3262 = vsel %vm3006, %v3185, 0.0
        %v3263 = vsel %vm3007, %v3187, 0.0
        %v3264 = vsel %vm3008, %v3189, 0.0
        %v3265 = vsel %vm3009, %v3191, 0.0
        %v3266 = vsel %vm3010, %v3193, 0.0
        %v3267 = vsel %vm3011, %v3195, 0.0
        %v3268 = vsel %vm3012, %v3197, 0.0
        %v3269 = vsel %vm3013, %v3199, 0.0
        %v3270 = vsel %vm3014, %v3201, 0.0
        %v3271 = vsel %vm3015, %v3203, 0.0
        %v3272 = vsel %vm3016, %v3205, 0.0
        %v3273 = vsel %vm3017, %v3207, 0.0
        %v3274 = vsel %vm3018, %v3209, 0.0
        %v3275 = vsel %vm3019, %v3211, 0.0
        %v3276 = vadd.f32 %v3085, 0.0
        %v3277 = vadd.f32 %v3087, 0.0
        %v3278 = vadd.f32 %v3089, 0.0
        %v3279 = vadd.f32 %v3091, 0.0
        %v3280 = vadd.f32 %v3093, 0.0
        %v3281 = vadd.f32 %v3095, 0.0
        %v3282 = vadd.f32 %v3097, 0.0
        %v3283 = vadd.f32 %v3099, 0.0
        %v3284 = vadd.f32 %v3101, 0.0
        %v3285 = vadd.f32 %v3103, 0.0
        %v3286 = vadd.f32 %v3105, 0.0
        %v3287 = vadd.f32 %v3107, 0.0
        %v3288 = vadd.f32 %v3109, 0.0
        %v3289 = vadd.f32 %v3111, 0.0
        %v3290 = vadd.f32 %v3113, 0.0
        %v3291 = vadd.f32 %v3115, 0.0
        %v3292 = vadd.f32 %v3117, 0.0
        %v3293 = vadd.f32 %v3119, 0.0
        %v3294 = vadd.f32 %v3121, 0.0
        %v3295 = vadd.f32 %v3123, 0.0
        %v3296 = vadd.f32 %v3125, 0.0
        %v3297 = vadd.f32 %v3127, 0.0
        %v3298 = vadd.f32 %v3129, 0.0
        %v3299 = vadd.f32 %v3131, 0.0
        %v3300 = vadd.f32 %v3133, 0.0
        %v3301 = vadd.f32 %v3135, 0.0
        %v3302 = vadd.f32 %v3137, 0.0
        %v3303 = vadd.f32 %v3139, 0.0
        %v3304 = vadd.f32 %v3141, 0.0
        %v3305 = vadd.f32 %v3143, 0.0
        %v3306 = vadd.f32 %v3145, 0.0
        %v3307 = vadd.f32 %v3147, 0.0
        %v3308 = vadd.f32 %v3149, 0.0
        %v3309 = vadd.f32 %v3151, 0.0
        %v3310 = vadd.f32 %v3153, 0.0
        %v3311 = vadd.f32 %v3155, 0.0
        %v3312 = vadd.f32 %v3157, 0.0
        %v3313 = vadd.f32 %v3159, 0.0
        %v3314 = vadd.f32 %v3161, 0.0
        %v3315 = vadd.f32 %v3163, 0.0
        %v3316 = vadd.f32 %v3165, 0.0
        %v3317 = vadd.f32 %v3167, 0.0
        %v3318 = vadd.f32 %v3169, 0.0
        %v3319 = vadd.f32 %v3171, 0.0
        %v3320 = vadd.f32 %v3173, 0.0
        %v3321 = vadd.f32 %v3175, 0.0
        %v3322 = vadd.f32 %v3177, 0.0
        %v3323 = vadd.f32 %v3179, 0.0
        %v3324 = vadd.f32 %v3181, 0.0
        %v3325 = vadd.f32 %v3183, 0.0
        %v3326 = vadd.f32 %v3185, 0.0
        %v3327 = vadd.f32 %v3187, 0.0
        %v3328 = vadd.f32 %v3189, 0.0
        %v3329 = vadd.f32 %v3191, 0.0
        %v3330 = vadd.f32 %v3193, 0.0
        %v3331 = vadd.f32 %v3195, 0.0
        %v3332 = vadd.f32 %v3197, 0.0
        %v3333 = vadd.f32 %v3199, 0.0
        %v3334 = vadd.f32 %v3201, 0.0
        %v3335 = vadd.f32 %v3203, 0.0
        %v3336 = vadd.f32 %v3205, 0.0
        %v3337 = vadd.f32 %v3207, 0.0
        %v3338 = vadd.f32 %v3209, 0.0
        %v3339 = vadd.f32 %v3211, 0.0
        %v3340 = vsel %vm2956, 3e+38, %v1738
        %v3341 = vsel %vm2957, 3e+38, %v1739
        %v3342 = vsel %vm2958, 3e+38, %v1740
        %v3343 = vsel %vm2959, 3e+38, %v1741
        %v3344 = vsel %vm2960, 3e+38, %v1742
        %v3345 = vsel %vm2961, 3e+38, %v1743
        %v3346 = vsel %vm2962, 3e+38, %v1744
        %v3347 = vsel %vm2963, 3e+38, %v1745
        %v3348 = vsel %vm2964, 3e+38, %v1746
        %v3349 = vsel %vm2965, 3e+38, %v1747
        %v3350 = vsel %vm2966, 3e+38, %v1748
        %v3351 = vsel %vm2967, 3e+38, %v1749
        %v3352 = vsel %vm2968, 3e+38, %v1750
        %v3353 = vsel %vm2969, 3e+38, %v1751
        %v3354 = vsel %vm2970, 3e+38, %v1752
        %v3355 = vsel %vm2971, 3e+38, %v1753
        %v3356 = vsel %vm2972, 3e+38, %v1754
        %v3357 = vsel %vm2973, 3e+38, %v1755
        %v3358 = vsel %vm2974, 3e+38, %v1756
        %v3359 = vsel %vm2975, 3e+38, %v1757
        %v3360 = vsel %vm2976, 3e+38, %v1758
        %v3361 = vsel %vm2977, 3e+38, %v1759
        %v3362 = vsel %vm2978, 3e+38, %v1760
        %v3363 = vsel %vm2979, 3e+38, %v1761
        %v3364 = vsel %vm2980, 3e+38, %v1762
        %v3365 = vsel %vm2981, 3e+38, %v1763
        %v3366 = vsel %vm2982, 3e+38, %v1764
        %v3367 = vsel %vm2983, 3e+38, %v1765
        %v3368 = vsel %vm2984, 3e+38, %v1766
        %v3369 = vsel %vm2985, 3e+38, %v1767
        %v3370 = vsel %vm2986, 3e+38, %v1768
        %v3371 = vsel %vm2987, 3e+38, %v1769
        %v3372 = vsel %vm2988, 3e+38, %v1770
        %v3373 = vsel %vm2989, 3e+38, %v1771
        %v3374 = vsel %vm2990, 3e+38, %v1772
        %v3375 = vsel %vm2991, 3e+38, %v1773
        %v3376 = vsel %vm2992, 3e+38, %v1774
        %v3377 = vsel %vm2993, 3e+38, %v1775
        %v3378 = vsel %vm2994, 3e+38, %v1776
        %v3379 = vsel %vm2995, 3e+38, %v1777
        %v3380 = vsel %vm2996, 3e+38, %v1778
        %v3381 = vsel %vm2997, 3e+38, %v1779
        %v3382 = vsel %vm2998, 3e+38, %v1780
        %v3383 = vsel %vm2999, 3e+38, %v1781
        %v3384 = vsel %vm3000, 3e+38, %v1782
        %v3385 = vsel %vm3001, 3e+38, %v1783
        %v3386 = vsel %vm3002, 3e+38, %v1784
        %v3387 = vsel %vm3003, 3e+38, %v1785
        %v3388 = vsel %vm3004, 3e+38, %v1786
        %v3389 = vsel %vm3005, 3e+38, %v1787
        %v3390 = vsel %vm3006, 3e+38, %v1788
        %v3391 = vsel %vm3007, 3e+38, %v1789
        %v3392 = vsel %vm3008, 3e+38, %v1790
        %v3393 = vsel %vm3009, 3e+38, %v1791
        %v3394 = vsel %vm3010, 3e+38, %v1792
        %v3395 = vsel %vm3011, 3e+38, %v1793
        %v3396 = vsel %vm3012, 3e+38, %v1794
        %v3397 = vsel %vm3013, 3e+38, %v1795
        %v3398 = vsel %vm3014, 3e+38, %v1796
        %v3399 = vsel %vm3015, 3e+38, %v1797
        %v3400 = vsel %vm3016, 3e+38, %v1798
        %v3401 = vsel %vm3017, 3e+38, %v1799
        %v3402 = vsel %vm3018, 3e+38, %v1800
        %v3403 = vsel %vm3019, 3e+38, %v1801
        %3404 = vmin.xlane.f32.xlu0 %v3340
        %v3405 = vpop.xlane.xlu0 %3404
        %3406 = vmin.xlane.f32.xlu0 %v3341
        %v3407 = vpop.xlane.xlu0 %3406
        %3408 = vmin.xlane.f32.xlu0 %v3342
        %v3409 = vpop.xlane.xlu0 %3408
        %3410 = vmin.xlane.f32.xlu0 %v3343
        %v3411 = vpop.xlane.xlu0 %3410
        %3412 = vmin.xlane.f32.xlu0 %v3344
        %v3413 = vpop.xlane.xlu0 %3412
        %3414 = vmin.xlane.f32.xlu0 %v3345
        %v3415 = vpop.xlane.xlu0 %3414
        %3416 = vmin.xlane.f32.xlu0 %v3346
        %v3417 = vpop.xlane.xlu0 %3416
        %3418 = vmin.xlane.f32.xlu0 %v3347
        %v3419 = vpop.xlane.xlu0 %3418
        %3420 = vmin.xlane.f32.xlu0 %v3348
        %v3421 = vpop.xlane.xlu0 %3420
        %3422 = vmin.xlane.f32.xlu0 %v3349
        %v3423 = vpop.xlane.xlu0 %3422
        %3424 = vmin.xlane.f32.xlu0 %v3350
        %v3425 = vpop.xlane.xlu0 %3424
        %3426 = vmin.xlane.f32.xlu0 %v3351
        %v3427 = vpop.xlane.xlu0 %3426
        %3428 = vmin.xlane.f32.xlu0 %v3352
        %v3429 = vpop.xlane.xlu0 %3428
        %3430 = vmin.xlane.f32.xlu0 %v3353
        %v3431 = vpop.xlane.xlu0 %3430
        %3432 = vmin.xlane.f32.xlu0 %v3354
        %v3433 = vpop.xlane.xlu0 %3432
        %3434 = vmin.xlane.f32.xlu0 %v3355
        %v3435 = vpop.xlane.xlu0 %3434
        %3436 = vmin.xlane.f32.xlu0 %v3356
        %v3437 = vpop.xlane.xlu0 %3436
        %3438 = vmin.xlane.f32.xlu0 %v3357
        %v3439 = vpop.xlane.xlu0 %3438
        %3440 = vmin.xlane.f32.xlu0 %v3358
        %v3441 = vpop.xlane.xlu0 %3440
        %3442 = vmin.xlane.f32.xlu0 %v3359
        %v3443 = vpop.xlane.xlu0 %3442
        %3444 = vmin.xlane.f32.xlu0 %v3360
        %v3445 = vpop.xlane.xlu0 %3444
        %3446 = vmin.xlane.f32.xlu0 %v3361
        %v3447 = vpop.xlane.xlu0 %3446
        %3448 = vmin.xlane.f32.xlu0 %v3362
        %v3449 = vpop.xlane.xlu0 %3448
        %3450 = vmin.xlane.f32.xlu0 %v3363
        %v3451 = vpop.xlane.xlu0 %3450
        %3452 = vmin.xlane.f32.xlu0 %v3364
        %v3453 = vpop.xlane.xlu0 %3452
        %3454 = vmin.xlane.f32.xlu0 %v3365
        %v3455 = vpop.xlane.xlu0 %3454
        %3456 = vmin.xlane.f32.xlu0 %v3366
        %v3457 = vpop.xlane.xlu0 %3456
        %3458 = vmin.xlane.f32.xlu0 %v3367
        %v3459 = vpop.xlane.xlu0 %3458
        %3460 = vmin.xlane.f32.xlu0 %v3368
        %v3461 = vpop.xlane.xlu0 %3460
        %3462 = vmin.xlane.f32.xlu0 %v3369
        %v3463 = vpop.xlane.xlu0 %3462
        %3464 = vmin.xlane.f32.xlu0 %v3370
        %v3465 = vpop.xlane.xlu0 %3464
        %3466 = vmin.xlane.f32.xlu0 %v3371
        %v3467 = vpop.xlane.xlu0 %3466
        %3468 = vmin.xlane.f32.xlu0 %v3372
        %v3469 = vpop.xlane.xlu0 %3468
        %3470 = vmin.xlane.f32.xlu0 %v3373
        %v3471 = vpop.xlane.xlu0 %3470
        %3472 = vmin.xlane.f32.xlu0 %v3374
        %v3473 = vpop.xlane.xlu0 %3472
        %3474 = vmin.xlane.f32.xlu0 %v3375
        %v3475 = vpop.xlane.xlu0 %3474
        %3476 = vmin.xlane.f32.xlu0 %v3376
        %v3477 = vpop.xlane.xlu0 %3476
        %3478 = vmin.xlane.f32.xlu0 %v3377
        %v3479 = vpop.xlane.xlu0 %3478
        %3480 = vmin.xlane.f32.xlu0 %v3378
        %v3481 = vpop.xlane.xlu0 %3480
        %3482 = vmin.xlane.f32.xlu0 %v3379
        %v3483 = vpop.xlane.xlu0 %3482
        %3484 = vmin.xlane.f32.xlu0 %v3380
        %v3485 = vpop.xlane.xlu0 %3484
        %3486 = vmin.xlane.f32.xlu0 %v3381
        %v3487 = vpop.xlane.xlu0 %3486
        %3488 = vmin.xlane.f32.xlu0 %v3382
        %v3489 = vpop.xlane.xlu0 %3488
        %3490 = vmin.xlane.f32.xlu0 %v3383
        %v3491 = vpop.xlane.xlu0 %3490
        %3492 = vmin.xlane.f32.xlu0 %v3384
        %v3493 = vpop.xlane.xlu0 %3492
        %3494 = vmin.xlane.f32.xlu0 %v3385
        %v3495 = vpop.xlane.xlu0 %3494
        %3496 = vmin.xlane.f32.xlu0 %v3386
        %v3497 = vpop.xlane.xlu0 %3496
        %3498 = vmin.xlane.f32.xlu0 %v3387
        %v3499 = vpop.xlane.xlu0 %3498
        %3500 = vmin.xlane.f32.xlu0 %v3388
        %v3501 = vpop.xlane.xlu0 %3500
        %3502 = vmin.xlane.f32.xlu0 %v3389
        %v3503 = vpop.xlane.xlu0 %3502
        %3504 = vmin.xlane.f32.xlu0 %v3390
        %v3505 = vpop.xlane.xlu0 %3504
        %3506 = vmin.xlane.f32.xlu0 %v3391
        %v3507 = vpop.xlane.xlu0 %3506
        %3508 = vmin.xlane.f32.xlu0 %v3392
        %v3509 = vpop.xlane.xlu0 %3508
        %3510 = vmin.xlane.f32.xlu0 %v3393
        %v3511 = vpop.xlane.xlu0 %3510
        %3512 = vmin.xlane.f32.xlu0 %v3394
        %v3513 = vpop.xlane.xlu0 %3512
        %3514 = vmin.xlane.f32.xlu0 %v3395
        %v3515 = vpop.xlane.xlu0 %3514
        %3516 = vmin.xlane.f32.xlu0 %v3396
        %v3517 = vpop.xlane.xlu0 %3516
        %3518 = vmin.xlane.f32.xlu0 %v3397
        %v3519 = vpop.xlane.xlu0 %3518
        %3520 = vmin.xlane.f32.xlu0 %v3398
        %v3521 = vpop.xlane.xlu0 %3520
        %3522 = vmin.xlane.f32.xlu0 %v3399
        %v3523 = vpop.xlane.xlu0 %3522
        %3524 = vmin.xlane.f32.xlu0 %v3400
        %v3525 = vpop.xlane.xlu0 %3524
        %3526 = vmin.xlane.f32.xlu0 %v3401
        %v3527 = vpop.xlane.xlu0 %3526
        %3528 = vmin.xlane.f32.xlu0 %v3402
        %v3529 = vpop.xlane.xlu0 %3528
        %3530 = vmin.xlane.f32.xlu0 %v3403
        %v3531 = vpop.xlane.xlu0 %3530
        %vm3532 = vcmp.eq.f32.partialorder %v3340, %v3405
        %vm3533 = vcmp.eq.f32.partialorder %v3341, %v3407
        %vm3534 = vcmp.eq.f32.partialorder %v3342, %v3409
        %vm3535 = vcmp.eq.f32.partialorder %v3343, %v3411
        %vm3536 = vcmp.eq.f32.partialorder %v3344, %v3413
        %vm3537 = vcmp.eq.f32.partialorder %v3345, %v3415
        %vm3538 = vcmp.eq.f32.partialorder %v3346, %v3417
        %vm3539 = vcmp.eq.f32.partialorder %v3347, %v3419
        %vm3540 = vcmp.eq.f32.partialorder %v3348, %v3421
        %vm3541 = vcmp.eq.f32.partialorder %v3349, %v3423
        %vm3542 = vcmp.eq.f32.partialorder %v3350, %v3425
        %vm3543 = vcmp.eq.f32.partialorder %v3351, %v3427
        %vm3544 = vcmp.eq.f32.partialorder %v3352, %v3429
        %vm3545 = vcmp.eq.f32.partialorder %v3353, %v3431
        %vm3546 = vcmp.eq.f32.partialorder %v3354, %v3433
        %vm3547 = vcmp.eq.f32.partialorder %v3355, %v3435
        %vm3548 = vcmp.eq.f32.partialorder %v3356, %v3437
        %vm3549 = vcmp.eq.f32.partialorder %v3357, %v3439
        %vm3550 = vcmp.eq.f32.partialorder %v3358, %v3441
        %vm3551 = vcmp.eq.f32.partialorder %v3359, %v3443
        %vm3552 = vcmp.eq.f32.partialorder %v3360, %v3445
        %vm3553 = vcmp.eq.f32.partialorder %v3361, %v3447
        %vm3554 = vcmp.eq.f32.partialorder %v3362, %v3449
        %vm3555 = vcmp.eq.f32.partialorder %v3363, %v3451
        %vm3556 = vcmp.eq.f32.partialorder %v3364, %v3453
        %vm3557 = vcmp.eq.f32.partialorder %v3365, %v3455
        %vm3558 = vcmp.eq.f32.partialorder %v3366, %v3457
        %vm3559 = vcmp.eq.f32.partialorder %v3367, %v3459
        %vm3560 = vcmp.eq.f32.partialorder %v3368, %v3461
        %vm3561 = vcmp.eq.f32.partialorder %v3369, %v3463
        %vm3562 = vcmp.eq.f32.partialorder %v3370, %v3465
        %vm3563 = vcmp.eq.f32.partialorder %v3371, %v3467
        %vm3564 = vcmp.eq.f32.partialorder %v3372, %v3469
        %vm3565 = vcmp.eq.f32.partialorder %v3373, %v3471
        %vm3566 = vcmp.eq.f32.partialorder %v3374, %v3473
        %vm3567 = vcmp.eq.f32.partialorder %v3375, %v3475
        %vm3568 = vcmp.eq.f32.partialorder %v3376, %v3477
        %vm3569 = vcmp.eq.f32.partialorder %v3377, %v3479
        %vm3570 = vcmp.eq.f32.partialorder %v3378, %v3481
        %vm3571 = vcmp.eq.f32.partialorder %v3379, %v3483
        %vm3572 = vcmp.eq.f32.partialorder %v3380, %v3485
        %vm3573 = vcmp.eq.f32.partialorder %v3381, %v3487
        %vm3574 = vcmp.eq.f32.partialorder %v3382, %v3489
        %vm3575 = vcmp.eq.f32.partialorder %v3383, %v3491
        %vm3576 = vcmp.eq.f32.partialorder %v3384, %v3493
        %vm3577 = vcmp.eq.f32.partialorder %v3385, %v3495
        %vm3578 = vcmp.eq.f32.partialorder %v3386, %v3497
        %vm3579 = vcmp.eq.f32.partialorder %v3387, %v3499
        %vm3580 = vcmp.eq.f32.partialorder %v3388, %v3501
        %vm3581 = vcmp.eq.f32.partialorder %v3389, %v3503
        %vm3582 = vcmp.eq.f32.partialorder %v3390, %v3505
        %vm3583 = vcmp.eq.f32.partialorder %v3391, %v3507
        %vm3584 = vcmp.eq.f32.partialorder %v3392, %v3509
        %vm3585 = vcmp.eq.f32.partialorder %v3393, %v3511
        %vm3586 = vcmp.eq.f32.partialorder %v3394, %v3513
        %vm3587 = vcmp.eq.f32.partialorder %v3395, %v3515
        %vm3588 = vcmp.eq.f32.partialorder %v3396, %v3517
        %vm3589 = vcmp.eq.f32.partialorder %v3397, %v3519
        %vm3590 = vcmp.eq.f32.partialorder %v3398, %v3521
        %vm3591 = vcmp.eq.f32.partialorder %v3399, %v3523
        %vm3592 = vcmp.eq.f32.partialorder %v3400, %v3525
        %vm3593 = vcmp.eq.f32.partialorder %v3401, %v3527
        %vm3594 = vcmp.eq.f32.partialorder %v3402, %v3529
        %vm3595 = vcmp.eq.f32.partialorder %v3403, %v3531
        %v3596 = vsel %vm3532, %v1803, 128
        %v3597 = vsel %vm3533, %v1803, 128
        %v3598 = vsel %vm3534, %v1803, 128
        %v3599 = vsel %vm3535, %v1803, 128
        %v3600 = vsel %vm3536, %v1803, 128
        %v3601 = vsel %vm3537, %v1803, 128
        %v3602 = vsel %vm3538, %v1803, 128
        %v3603 = vsel %vm3539, %v1803, 128
        %v3604 = vsel %vm3540, %v1803, 128
        %v3605 = vsel %vm3541, %v1803, 128
        %v3606 = vsel %vm3542, %v1803, 128
        %v3607 = vsel %vm3543, %v1803, 128
        %v3608 = vsel %vm3544, %v1803, 128
        %v3609 = vsel %vm3545, %v1803, 128
        %v3610 = vsel %vm3546, %v1803, 128
        %v3611 = vsel %vm3547, %v1803, 128
        %v3612 = vsel %vm3548, %v1803, 128
        %v3613 = vsel %vm3549, %v1803, 128
        %v3614 = vsel %vm3550, %v1803, 128
        %v3615 = vsel %vm3551, %v1803, 128
        %v3616 = vsel %vm3552, %v1803, 128
        %v3617 = vsel %vm3553, %v1803, 128
        %v3618 = vsel %vm3554, %v1803, 128
        %v3619 = vsel %vm3555, %v1803, 128
        %v3620 = vsel %vm3556, %v1803, 128
        %v3621 = vsel %vm3557, %v1803, 128
        %v3622 = vsel %vm3558, %v1803, 128
        %v3623 = vsel %vm3559, %v1803, 128
        %v3624 = vsel %vm3560, %v1803, 128
        %v3625 = vsel %vm3561, %v1803, 128
        %v3626 = vsel %vm3562, %v1803, 128
        %v3627 = vsel %vm3563, %v1803, 128
        %v3628 = vsel %vm3564, %v1803, 128
        %v3629 = vsel %vm3565, %v1803, 128
        %v3630 = vsel %vm3566, %v1803, 128
        %v3631 = vsel %vm3567, %v1803, 128
        %v3632 = vsel %vm3568, %v1803, 128
        %v3633 = vsel %vm3569, %v1803, 128
        %v3634 = vsel %vm3570, %v1803, 128
        %v3635 = vsel %vm3571, %v1803, 128
        %v3636 = vsel %vm3572, %v1803, 128
        %v3637 = vsel %vm3573, %v1803, 128
        %v3638 = vsel %vm3574, %v1803, 128
        %v3639 = vsel %vm3575, %v1803, 128
        %v3640 = vsel %vm3576, %v1803, 128
        %v3641 = vsel %vm3577, %v1803, 128
        %v3642 = vsel %vm3578, %v1803, 128
        %v3643 = vsel %vm3579, %v1803, 128
        %v3644 = vsel %vm3580, %v1803, 128
        %v3645 = vsel %vm3581, %v1803, 128
        %v3646 = vsel %vm3582, %v1803, 128
        %v3647 = vsel %vm3583, %v1803, 128
        %v3648 = vsel %vm3584, %v1803, 128
        %v3649 = vsel %vm3585, %v1803, 128
        %v3650 = vsel %vm3586, %v1803, 128
        %v3651 = vsel %vm3587, %v1803, 128
        %v3652 = vsel %vm3588, %v1803, 128
        %v3653 = vsel %vm3589, %v1803, 128
        %v3654 = vsel %vm3590, %v1803, 128
        %v3655 = vsel %vm3591, %v1803, 128
        %v3656 = vsel %vm3592, %v1803, 128
        %v3657 = vsel %vm3593, %v1803, 128
        %v3658 = vsel %vm3594, %v1803, 128
        %v3659 = vsel %vm3595, %v1803, 128
        %v3660 = vand.u32 %v3596, 65535
        %v3661 = vshra.s32 %v3596, 16
        %v3662 = vcvt.s32.f32 %v3660
        %v3663 = vcvt.s32.f32 %v3661
        %3664 = vmin.xlane.f32.xlu0 %v3663
        %v3665 = vpop.xlane.xlu0 %3664
        %vm3666 = vcmp.eq.f32.partialorder %v3663, %v3665
        %v3667 = vsel %vm3666, %v3662, inf
        %3668 = vmin.xlane.f32.xlu0 %v3667
        %v3669 = vpop.xlane.xlu0 %3668
        %v3670 = vcvt.f32.s32 %v3669
        %v3671 = vcvt.f32.s32 %v3665
        %v3672 = vshll.u32 %v3671, 16
        %v3673 = vadd.s32 %v3672, %v3670
        %v3674 = vand.u32 %v3597, 65535
        %v3675 = vshra.s32 %v3597, 16
        %v3676 = vcvt.s32.f32 %v3674
        %v3677 = vcvt.s32.f32 %v3675
        %3678 = vmin.xlane.f32.xlu0 %v3677
        %v3679 = vpop.xlane.xlu0 %3678
        %vm3680 = vcmp.eq.f32.partialorder %v3677, %v3679
        %v3681 = vsel %vm3680, %v3676, inf
        %3682 = vmin.xlane.f32.xlu0 %v3681
        %v3683 = vpop.xlane.xlu0 %3682
        %v3684 = vcvt.f32.s32 %v3683
        %v3685 = vcvt.f32.s32 %v3679
        %v3686 = vshll.u32 %v3685, 16
        %v3687 = vadd.s32 %v3686, %v3684
        %v3688 = vand.u32 %v3598, 65535
        %v3689 = vshra.s32 %v3598, 16
        %v3690 = vcvt.s32.f32 %v3688
        %v3691 = vcvt.s32.f32 %v3689
        %3692 = vmin.xlane.f32.xlu0 %v3691
        %v3693 = vpop.xlane.xlu0 %3692
        %vm3694 = vcmp.eq.f32.partialorder %v3691, %v3693
        %v3695 = vsel %vm3694, %v3690, inf
        %3696 = vmin.xlane.f32.xlu0 %v3695
        %v3697 = vpop.xlane.xlu0 %3696
        %v3698 = vcvt.f32.s32 %v3697
        %v3699 = vcvt.f32.s32 %v3693
        %v3700 = vshll.u32 %v3699, 16
        %v3701 = vadd.s32 %v3700, %v3698
        %v3702 = vand.u32 %v3599, 65535
        %v3703 = vshra.s32 %v3599, 16
        %v3704 = vcvt.s32.f32 %v3702
        %v3705 = vcvt.s32.f32 %v3703
        %3706 = vmin.xlane.f32.xlu0 %v3705
        %v3707 = vpop.xlane.xlu0 %3706
        %vm3708 = vcmp.eq.f32.partialorder %v3705, %v3707
        %v3709 = vsel %vm3708, %v3704, inf
        %3710 = vmin.xlane.f32.xlu0 %v3709
        %v3711 = vpop.xlane.xlu0 %3710
        %v3712 = vcvt.f32.s32 %v3711
        %v3713 = vcvt.f32.s32 %v3707
        %v3714 = vshll.u32 %v3713, 16
        %v3715 = vadd.s32 %v3714, %v3712
        %v3716 = vand.u32 %v3600, 65535
        %v3717 = vshra.s32 %v3600, 16
        %v3718 = vcvt.s32.f32 %v3716
        %v3719 = vcvt.s32.f32 %v3717
        %3720 = vmin.xlane.f32.xlu0 %v3719
        %v3721 = vpop.xlane.xlu0 %3720
        %vm3722 = vcmp.eq.f32.partialorder %v3719, %v3721
        %v3723 = vsel %vm3722, %v3718, inf
        %3724 = vmin.xlane.f32.xlu0 %v3723
        %v3725 = vpop.xlane.xlu0 %3724
        %v3726 = vcvt.f32.s32 %v3725
        %v3727 = vcvt.f32.s32 %v3721
        %v3728 = vshll.u32 %v3727, 16
        %v3729 = vadd.s32 %v3728, %v3726
        %v3730 = vand.u32 %v3601, 65535
        %v3731 = vshra.s32 %v3601, 16
        %v3732 = vcvt.s32.f32 %v3730
        %v3733 = vcvt.s32.f32 %v3731
        %3734 = vmin.xlane.f32.xlu0 %v3733
        %v3735 = vpop.xlane.xlu0 %3734
        %vm3736 = vcmp.eq.f32.partialorder %v3733, %v3735
        %v3737 = vsel %vm3736, %v3732, inf
        %3738 = vmin.xlane.f32.xlu0 %v3737
        %v3739 = vpop.xlane.xlu0 %3738
        %v3740 = vcvt.f32.s32 %v3739
        %v3741 = vcvt.f32.s32 %v3735
        %v3742 = vshll.u32 %v3741, 16
        %v3743 = vadd.s32 %v3742, %v3740
        %v3744 = vand.u32 %v3602, 65535
        %v3745 = vshra.s32 %v3602, 16
        %v3746 = vcvt.s32.f32 %v3744
        %v3747 = vcvt.s32.f32 %v3745
        %3748 = vmin.xlane.f32.xlu0 %v3747
        %v3749 = vpop.xlane.xlu0 %3748
        %vm3750 = vcmp.eq.f32.partialorder %v3747, %v3749
        %v3751 = vsel %vm3750, %v3746, inf
        %3752 = vmin.xlane.f32.xlu0 %v3751
        %v3753 = vpop.xlane.xlu0 %3752
        %v3754 = vcvt.f32.s32 %v3753
        %v3755 = vcvt.f32.s32 %v3749
        %v3756 = vshll.u32 %v3755, 16
        %v3757 = vadd.s32 %v3756, %v3754
        %v3758 = vand.u32 %v3603, 65535
        %v3759 = vshra.s32 %v3603, 16
        %v3760 = vcvt.s32.f32 %v3758
        %v3761 = vcvt.s32.f32 %v3759
        %3762 = vmin.xlane.f32.xlu0 %v3761
        %v3763 = vpop.xlane.xlu0 %3762
        %vm3764 = vcmp.eq.f32.partialorder %v3761, %v3763
        %v3765 = vsel %vm3764, %v3760, inf
        %3766 = vmin.xlane.f32.xlu0 %v3765
        %v3767 = vpop.xlane.xlu0 %3766
        %v3768 = vcvt.f32.s32 %v3767
        %v3769 = vcvt.f32.s32 %v3763
        %v3770 = vshll.u32 %v3769, 16
        %v3771 = vadd.s32 %v3770, %v3768
        %v3772 = vand.u32 %v3604, 65535
        %v3773 = vshra.s32 %v3604, 16
        %v3774 = vcvt.s32.f32 %v3772
        %v3775 = vcvt.s32.f32 %v3773
        %3776 = vmin.xlane.f32.xlu0 %v3775
        %v3777 = vpop.xlane.xlu0 %3776
        %vm3778 = vcmp.eq.f32.partialorder %v3775, %v3777
        %v3779 = vsel %vm3778, %v3774, inf
        %3780 = vmin.xlane.f32.xlu0 %v3779
        %v3781 = vpop.xlane.xlu0 %3780
        %v3782 = vcvt.f32.s32 %v3781
        %v3783 = vcvt.f32.s32 %v3777
        %v3784 = vshll.u32 %v3783, 16
        %v3785 = vadd.s32 %v3784, %v3782
        %v3786 = vand.u32 %v3605, 65535
        %v3787 = vshra.s32 %v3605, 16
        %v3788 = vcvt.s32.f32 %v3786
        %v3789 = vcvt.s32.f32 %v3787
        %3790 = vmin.xlane.f32.xlu0 %v3789
        %v3791 = vpop.xlane.xlu0 %3790
        %vm3792 = vcmp.eq.f32.partialorder %v3789, %v3791
        %v3793 = vsel %vm3792, %v3788, inf
        %3794 = vmin.xlane.f32.xlu0 %v3793
        %v3795 = vpop.xlane.xlu0 %3794
        %v3796 = vcvt.f32.s32 %v3795
        %v3797 = vcvt.f32.s32 %v3791
        %v3798 = vshll.u32 %v3797, 16
        %v3799 = vadd.s32 %v3798, %v3796
        %v3800 = vand.u32 %v3606, 65535
        %v3801 = vshra.s32 %v3606, 16
        %v3802 = vcvt.s32.f32 %v3800
        %v3803 = vcvt.s32.f32 %v3801
        %3804 = vmin.xlane.f32.xlu0 %v3803
        %v3805 = vpop.xlane.xlu0 %3804
        %vm3806 = vcmp.eq.f32.partialorder %v3803, %v3805
        %v3807 = vsel %vm3806, %v3802, inf
        %3808 = vmin.xlane.f32.xlu0 %v3807
        %v3809 = vpop.xlane.xlu0 %3808
        %v3810 = vcvt.f32.s32 %v3809
        %v3811 = vcvt.f32.s32 %v3805
        %v3812 = vshll.u32 %v3811, 16
        %v3813 = vadd.s32 %v3812, %v3810
        %v3814 = vand.u32 %v3607, 65535
        %v3815 = vshra.s32 %v3607, 16
        %v3816 = vcvt.s32.f32 %v3814
        %v3817 = vcvt.s32.f32 %v3815
        %3818 = vmin.xlane.f32.xlu0 %v3817
        %v3819 = vpop.xlane.xlu0 %3818
        %vm3820 = vcmp.eq.f32.partialorder %v3817, %v3819
        %v3821 = vsel %vm3820, %v3816, inf
        %3822 = vmin.xlane.f32.xlu0 %v3821
        %v3823 = vpop.xlane.xlu0 %3822
        %v3824 = vcvt.f32.s32 %v3823
        %v3825 = vcvt.f32.s32 %v3819
        %v3826 = vshll.u32 %v3825, 16
        %v3827 = vadd.s32 %v3826, %v3824
        %v3828 = vand.u32 %v3608, 65535
        %v3829 = vshra.s32 %v3608, 16
        %v3830 = vcvt.s32.f32 %v3828
        %v3831 = vcvt.s32.f32 %v3829
        %3832 = vmin.xlane.f32.xlu0 %v3831
        %v3833 = vpop.xlane.xlu0 %3832
        %vm3834 = vcmp.eq.f32.partialorder %v3831, %v3833
        %v3835 = vsel %vm3834, %v3830, inf
        %3836 = vmin.xlane.f32.xlu0 %v3835
        %v3837 = vpop.xlane.xlu0 %3836
        %v3838 = vcvt.f32.s32 %v3837
        %v3839 = vcvt.f32.s32 %v3833
        %v3840 = vshll.u32 %v3839, 16
        %v3841 = vadd.s32 %v3840, %v3838
        %v3842 = vand.u32 %v3609, 65535
        %v3843 = vshra.s32 %v3609, 16
        %v3844 = vcvt.s32.f32 %v3842
        %v3845 = vcvt.s32.f32 %v3843
        %3846 = vmin.xlane.f32.xlu0 %v3845
        %v3847 = vpop.xlane.xlu0 %3846
        %vm3848 = vcmp.eq.f32.partialorder %v3845, %v3847
        %v3849 = vsel %vm3848, %v3844, inf
        %3850 = vmin.xlane.f32.xlu0 %v3849
        %v3851 = vpop.xlane.xlu0 %3850
        %v3852 = vcvt.f32.s32 %v3851
        %v3853 = vcvt.f32.s32 %v3847
        %v3854 = vshll.u32 %v3853, 16
        %v3855 = vadd.s32 %v3854, %v3852
        %v3856 = vand.u32 %v3610, 65535
        %v3857 = vshra.s32 %v3610, 16
        %v3858 = vcvt.s32.f32 %v3856
        %v3859 = vcvt.s32.f32 %v3857
        %3860 = vmin.xlane.f32.xlu0 %v3859
        %v3861 = vpop.xlane.xlu0 %3860
        %vm3862 = vcmp.eq.f32.partialorder %v3859, %v3861
        %v3863 = vsel %vm3862, %v3858, inf
        %3864 = vmin.xlane.f32.xlu0 %v3863
        %v3865 = vpop.xlane.xlu0 %3864
        %v3866 = vcvt.f32.s32 %v3865
        %v3867 = vcvt.f32.s32 %v3861
        %v3868 = vshll.u32 %v3867, 16
        %v3869 = vadd.s32 %v3868, %v3866
        %v3870 = vand.u32 %v3611, 65535
        %v3871 = vshra.s32 %v3611, 16
        %v3872 = vcvt.s32.f32 %v3870
        %v3873 = vcvt.s32.f32 %v3871
        %3874 = vmin.xlane.f32.xlu0 %v3873
        %v3875 = vpop.xlane.xlu0 %3874
        %vm3876 = vcmp.eq.f32.partialorder %v3873, %v3875
        %v3877 = vsel %vm3876, %v3872, inf
        %3878 = vmin.xlane.f32.xlu0 %v3877
        %v3879 = vpop.xlane.xlu0 %3878
        %v3880 = vcvt.f32.s32 %v3879
        %v3881 = vcvt.f32.s32 %v3875
        %v3882 = vshll.u32 %v3881, 16
        %v3883 = vadd.s32 %v3882, %v3880
        %v3884 = vand.u32 %v3612, 65535
        %v3885 = vshra.s32 %v3612, 16
        %v3886 = vcvt.s32.f32 %v3884
        %v3887 = vcvt.s32.f32 %v3885
        %3888 = vmin.xlane.f32.xlu0 %v3887
        %v3889 = vpop.xlane.xlu0 %3888
        %vm3890 = vcmp.eq.f32.partialorder %v3887, %v3889
        %v3891 = vsel %vm3890, %v3886, inf
        %3892 = vmin.xlane.f32.xlu0 %v3891
        %v3893 = vpop.xlane.xlu0 %3892
        %v3894 = vcvt.f32.s32 %v3893
        %v3895 = vcvt.f32.s32 %v3889
        %v3896 = vshll.u32 %v3895, 16
        %v3897 = vadd.s32 %v3896, %v3894
        %v3898 = vand.u32 %v3613, 65535
        %v3899 = vshra.s32 %v3613, 16
        %v3900 = vcvt.s32.f32 %v3898
        %v3901 = vcvt.s32.f32 %v3899
        %3902 = vmin.xlane.f32.xlu0 %v3901
        %v3903 = vpop.xlane.xlu0 %3902
        %vm3904 = vcmp.eq.f32.partialorder %v3901, %v3903
        %v3905 = vsel %vm3904, %v3900, inf
        %3906 = vmin.xlane.f32.xlu0 %v3905
        %v3907 = vpop.xlane.xlu0 %3906
        %v3908 = vcvt.f32.s32 %v3907
        %v3909 = vcvt.f32.s32 %v3903
        %v3910 = vshll.u32 %v3909, 16
        %v3911 = vadd.s32 %v3910, %v3908
        %v3912 = vand.u32 %v3614, 65535
        %v3913 = vshra.s32 %v3614, 16
        %v3914 = vcvt.s32.f32 %v3912
        %v3915 = vcvt.s32.f32 %v3913
        %3916 = vmin.xlane.f32.xlu0 %v3915
        %v3917 = vpop.xlane.xlu0 %3916
        %vm3918 = vcmp.eq.f32.partialorder %v3915, %v3917
        %v3919 = vsel %vm3918, %v3914, inf
        %3920 = vmin.xlane.f32.xlu0 %v3919
        %v3921 = vpop.xlane.xlu0 %3920
        %v3922 = vcvt.f32.s32 %v3921
        %v3923 = vcvt.f32.s32 %v3917
        %v3924 = vshll.u32 %v3923, 16
        %v3925 = vadd.s32 %v3924, %v3922
        %v3926 = vand.u32 %v3615, 65535
        %v3927 = vshra.s32 %v3615, 16
        %v3928 = vcvt.s32.f32 %v3926
        %v3929 = vcvt.s32.f32 %v3927
        %3930 = vmin.xlane.f32.xlu0 %v3929
        %v3931 = vpop.xlane.xlu0 %3930
        %vm3932 = vcmp.eq.f32.partialorder %v3929, %v3931
        %v3933 = vsel %vm3932, %v3928, inf
        %3934 = vmin.xlane.f32.xlu0 %v3933
        %v3935 = vpop.xlane.xlu0 %3934
        %v3936 = vcvt.f32.s32 %v3935
        %v3937 = vcvt.f32.s32 %v3931
        %v3938 = vshll.u32 %v3937, 16
        %v3939 = vadd.s32 %v3938, %v3936
        %v3940 = vand.u32 %v3616, 65535
        %v3941 = vshra.s32 %v3616, 16
        %v3942 = vcvt.s32.f32 %v3940
        %v3943 = vcvt.s32.f32 %v3941
        %3944 = vmin.xlane.f32.xlu0 %v3943
        %v3945 = vpop.xlane.xlu0 %3944
        %vm3946 = vcmp.eq.f32.partialorder %v3943, %v3945
        %v3947 = vsel %vm3946, %v3942, inf
        %3948 = vmin.xlane.f32.xlu0 %v3947
        %v3949 = vpop.xlane.xlu0 %3948
        %v3950 = vcvt.f32.s32 %v3949
        %v3951 = vcvt.f32.s32 %v3945
        %v3952 = vshll.u32 %v3951, 16
        %v3953 = vadd.s32 %v3952, %v3950
        %v3954 = vand.u32 %v3617, 65535
        %v3955 = vshra.s32 %v3617, 16
        %v3956 = vcvt.s32.f32 %v3954
        %v3957 = vcvt.s32.f32 %v3955
        %3958 = vmin.xlane.f32.xlu0 %v3957
        %v3959 = vpop.xlane.xlu0 %3958
        %vm3960 = vcmp.eq.f32.partialorder %v3957, %v3959
        %v3961 = vsel %vm3960, %v3956, inf
        %3962 = vmin.xlane.f32.xlu0 %v3961
        %v3963 = vpop.xlane.xlu0 %3962
        %v3964 = vcvt.f32.s32 %v3963
        %v3965 = vcvt.f32.s32 %v3959
        %v3966 = vshll.u32 %v3965, 16
        %v3967 = vadd.s32 %v3966, %v3964
        %v3968 = vand.u32 %v3618, 65535
        %v3969 = vshra.s32 %v3618, 16
        %v3970 = vcvt.s32.f32 %v3968
        %v3971 = vcvt.s32.f32 %v3969
        %3972 = vmin.xlane.f32.xlu0 %v3971
        %v3973 = vpop.xlane.xlu0 %3972
        %vm3974 = vcmp.eq.f32.partialorder %v3971, %v3973
        %v3975 = vsel %vm3974, %v3970, inf
        %3976 = vmin.xlane.f32.xlu0 %v3975
        %v3977 = vpop.xlane.xlu0 %3976
        %v3978 = vcvt.f32.s32 %v3977
        %v3979 = vcvt.f32.s32 %v3973
        %v3980 = vshll.u32 %v3979, 16
        %v3981 = vadd.s32 %v3980, %v3978
        %v3982 = vand.u32 %v3619, 65535
        %v3983 = vshra.s32 %v3619, 16
        %v3984 = vcvt.s32.f32 %v3982
        %v3985 = vcvt.s32.f32 %v3983
        %3986 = vmin.xlane.f32.xlu0 %v3985
        %v3987 = vpop.xlane.xlu0 %3986
        %vm3988 = vcmp.eq.f32.partialorder %v3985, %v3987
        %v3989 = vsel %vm3988, %v3984, inf
        %3990 = vmin.xlane.f32.xlu0 %v3989
        %v3991 = vpop.xlane.xlu0 %3990
        %v3992 = vcvt.f32.s32 %v3991
        %v3993 = vcvt.f32.s32 %v3987
        %v3994 = vshll.u32 %v3993, 16
        %v3995 = vadd.s32 %v3994, %v3992
        %v3996 = vand.u32 %v3620, 65535
        %v3997 = vshra.s32 %v3620, 16
        %v3998 = vcvt.s32.f32 %v3996
        %v3999 = vcvt.s32.f32 %v3997
        %4000 = vmin.xlane.f32.xlu0 %v3999
        %v4001 = vpop.xlane.xlu0 %4000
        %vm4002 = vcmp.eq.f32.partialorder %v3999, %v4001
        %v4003 = vsel %vm4002, %v3998, inf
        %4004 = vmin.xlane.f32.xlu0 %v4003
        %v4005 = vpop.xlane.xlu0 %4004
        %v4006 = vcvt.f32.s32 %v4005
        %v4007 = vcvt.f32.s32 %v4001
        %v4008 = vshll.u32 %v4007, 16
        %v4009 = vadd.s32 %v4008, %v4006
        %v4010 = vand.u32 %v3621, 65535
        %v4011 = vshra.s32 %v3621, 16
        %v4012 = vcvt.s32.f32 %v4010
        %v4013 = vcvt.s32.f32 %v4011
        %4014 = vmin.xlane.f32.xlu0 %v4013
        %v4015 = vpop.xlane.xlu0 %4014
        %vm4016 = vcmp.eq.f32.partialorder %v4013, %v4015
        %v4017 = vsel %vm4016, %v4012, inf
        %4018 = vmin.xlane.f32.xlu0 %v4017
        %v4019 = vpop.xlane.xlu0 %4018
        %v4020 = vcvt.f32.s32 %v4019
        %v4021 = vcvt.f32.s32 %v4015
        %v4022 = vshll.u32 %v4021, 16
        %v4023 = vadd.s32 %v4022, %v4020
        %v4024 = vand.u32 %v3622, 65535
        %v4025 = vshra.s32 %v3622, 16
        %v4026 = vcvt.s32.f32 %v4024
        %v4027 = vcvt.s32.f32 %v4025
        %4028 = vmin.xlane.f32.xlu0 %v4027
        %v4029 = vpop.xlane.xlu0 %4028
        %vm4030 = vcmp.eq.f32.partialorder %v4027, %v4029
        %v4031 = vsel %vm4030, %v4026, inf
        %4032 = vmin.xlane.f32.xlu0 %v4031
        %v4033 = vpop.xlane.xlu0 %4032
        %v4034 = vcvt.f32.s32 %v4033
        %v4035 = vcvt.f32.s32 %v4029
        %v4036 = vshll.u32 %v4035, 16
        %v4037 = vadd.s32 %v4036, %v4034
        %v4038 = vand.u32 %v3623, 65535
        %v4039 = vshra.s32 %v3623, 16
        %v4040 = vcvt.s32.f32 %v4038
        %v4041 = vcvt.s32.f32 %v4039
        %4042 = vmin.xlane.f32.xlu0 %v4041
        %v4043 = vpop.xlane.xlu0 %4042
        %vm4044 = vcmp.eq.f32.partialorder %v4041, %v4043
        %v4045 = vsel %vm4044, %v4040, inf
        %4046 = vmin.xlane.f32.xlu0 %v4045
        %v4047 = vpop.xlane.xlu0 %4046
        %v4048 = vcvt.f32.s32 %v4047
        %v4049 = vcvt.f32.s32 %v4043
        %v4050 = vshll.u32 %v4049, 16
        %v4051 = vadd.s32 %v4050, %v4048
        %v4052 = vand.u32 %v3624, 65535
        %v4053 = vshra.s32 %v3624, 16
        %v4054 = vcvt.s32.f32 %v4052
        %v4055 = vcvt.s32.f32 %v4053
        %4056 = vmin.xlane.f32.xlu0 %v4055
        %v4057 = vpop.xlane.xlu0 %4056
        %vm4058 = vcmp.eq.f32.partialorder %v4055, %v4057
        %v4059 = vsel %vm4058, %v4054, inf
        %4060 = vmin.xlane.f32.xlu0 %v4059
        %v4061 = vpop.xlane.xlu0 %4060
        %v4062 = vcvt.f32.s32 %v4061
        %v4063 = vcvt.f32.s32 %v4057
        %v4064 = vshll.u32 %v4063, 16
        %v4065 = vadd.s32 %v4064, %v4062
        %v4066 = vand.u32 %v3625, 65535
        %v4067 = vshra.s32 %v3625, 16
        %v4068 = vcvt.s32.f32 %v4066
        %v4069 = vcvt.s32.f32 %v4067
        %4070 = vmin.xlane.f32.xlu0 %v4069
        %v4071 = vpop.xlane.xlu0 %4070
        %vm4072 = vcmp.eq.f32.partialorder %v4069, %v4071
        %v4073 = vsel %vm4072, %v4068, inf
        %4074 = vmin.xlane.f32.xlu0 %v4073
        %v4075 = vpop.xlane.xlu0 %4074
        %v4076 = vcvt.f32.s32 %v4075
        %v4077 = vcvt.f32.s32 %v4071
        %v4078 = vshll.u32 %v4077, 16
        %v4079 = vadd.s32 %v4078, %v4076
        %v4080 = vand.u32 %v3626, 65535
        %v4081 = vshra.s32 %v3626, 16
        %v4082 = vcvt.s32.f32 %v4080
        %v4083 = vcvt.s32.f32 %v4081
        %4084 = vmin.xlane.f32.xlu0 %v4083
        %v4085 = vpop.xlane.xlu0 %4084
        %vm4086 = vcmp.eq.f32.partialorder %v4083, %v4085
        %v4087 = vsel %vm4086, %v4082, inf
        %4088 = vmin.xlane.f32.xlu0 %v4087
        %v4089 = vpop.xlane.xlu0 %4088
        %v4090 = vcvt.f32.s32 %v4089
        %v4091 = vcvt.f32.s32 %v4085
        %v4092 = vshll.u32 %v4091, 16
        %v4093 = vadd.s32 %v4092, %v4090
        %v4094 = vand.u32 %v3627, 65535
        %v4095 = vshra.s32 %v3627, 16
        %v4096 = vcvt.s32.f32 %v4094
        %v4097 = vcvt.s32.f32 %v4095
        %4098 = vmin.xlane.f32.xlu0 %v4097
        %v4099 = vpop.xlane.xlu0 %4098
        %vm4100 = vcmp.eq.f32.partialorder %v4097, %v4099
        %v4101 = vsel %vm4100, %v4096, inf
        %4102 = vmin.xlane.f32.xlu0 %v4101
        %v4103 = vpop.xlane.xlu0 %4102
        %v4104 = vcvt.f32.s32 %v4103
        %v4105 = vcvt.f32.s32 %v4099
        %v4106 = vshll.u32 %v4105, 16
        %v4107 = vadd.s32 %v4106, %v4104
        %v4108 = vand.u32 %v3628, 65535
        %v4109 = vshra.s32 %v3628, 16
        %v4110 = vcvt.s32.f32 %v4108
        %v4111 = vcvt.s32.f32 %v4109
        %4112 = vmin.xlane.f32.xlu0 %v4111
        %v4113 = vpop.xlane.xlu0 %4112
        %vm4114 = vcmp.eq.f32.partialorder %v4111, %v4113
        %v4115 = vsel %vm4114, %v4110, inf
        %4116 = vmin.xlane.f32.xlu0 %v4115
        %v4117 = vpop.xlane.xlu0 %4116
        %v4118 = vcvt.f32.s32 %v4117
        %v4119 = vcvt.f32.s32 %v4113
        %v4120 = vshll.u32 %v4119, 16
        %v4121 = vadd.s32 %v4120, %v4118
        %v4122 = vand.u32 %v3629, 65535
        %v4123 = vshra.s32 %v3629, 16
        %v4124 = vcvt.s32.f32 %v4122
        %v4125 = vcvt.s32.f32 %v4123
        %4126 = vmin.xlane.f32.xlu0 %v4125
        %v4127 = vpop.xlane.xlu0 %4126
        %vm4128 = vcmp.eq.f32.partialorder %v4125, %v4127
        %v4129 = vsel %vm4128, %v4124, inf
        %4130 = vmin.xlane.f32.xlu0 %v4129
        %v4131 = vpop.xlane.xlu0 %4130
        %v4132 = vcvt.f32.s32 %v4131
        %v4133 = vcvt.f32.s32 %v4127
        %v4134 = vshll.u32 %v4133, 16
        %v4135 = vadd.s32 %v4134, %v4132
        %v4136 = vand.u32 %v3630, 65535
        %v4137 = vshra.s32 %v3630, 16
        %v4138 = vcvt.s32.f32 %v4136
        %v4139 = vcvt.s32.f32 %v4137
        %4140 = vmin.xlane.f32.xlu0 %v4139
        %v4141 = vpop.xlane.xlu0 %4140
        %vm4142 = vcmp.eq.f32.partialorder %v4139, %v4141
        %v4143 = vsel %vm4142, %v4138, inf
        %4144 = vmin.xlane.f32.xlu0 %v4143
        %v4145 = vpop.xlane.xlu0 %4144
        %v4146 = vcvt.f32.s32 %v4145
        %v4147 = vcvt.f32.s32 %v4141
        %v4148 = vshll.u32 %v4147, 16
        %v4149 = vadd.s32 %v4148, %v4146
        %v4150 = vand.u32 %v3631, 65535
        %v4151 = vshra.s32 %v3631, 16
        %v4152 = vcvt.s32.f32 %v4150
        %v4153 = vcvt.s32.f32 %v4151
        %4154 = vmin.xlane.f32.xlu0 %v4153
        %v4155 = vpop.xlane.xlu0 %4154
        %vm4156 = vcmp.eq.f32.partialorder %v4153, %v4155
        %v4157 = vsel %vm4156, %v4152, inf
        %4158 = vmin.xlane.f32.xlu0 %v4157
        %v4159 = vpop.xlane.xlu0 %4158
        %v4160 = vcvt.f32.s32 %v4159
        %v4161 = vcvt.f32.s32 %v4155
        %v4162 = vshll.u32 %v4161, 16
        %v4163 = vadd.s32 %v4162, %v4160
        %v4164 = vand.u32 %v3632, 65535
        %v4165 = vshra.s32 %v3632, 16
        %v4166 = vcvt.s32.f32 %v4164
        %v4167 = vcvt.s32.f32 %v4165
        %4168 = vmin.xlane.f32.xlu0 %v4167
        %v4169 = vpop.xlane.xlu0 %4168
        %vm4170 = vcmp.eq.f32.partialorder %v4167, %v4169
        %v4171 = vsel %vm4170, %v4166, inf
        %4172 = vmin.xlane.f32.xlu0 %v4171
        %v4173 = vpop.xlane.xlu0 %4172
        %v4174 = vcvt.f32.s32 %v4173
        %v4175 = vcvt.f32.s32 %v4169
        %v4176 = vshll.u32 %v4175, 16
        %v4177 = vadd.s32 %v4176, %v4174
        %v4178 = vand.u32 %v3633, 65535
        %v4179 = vshra.s32 %v3633, 16
        %v4180 = vcvt.s32.f32 %v4178
        %v4181 = vcvt.s32.f32 %v4179
        %4182 = vmin.xlane.f32.xlu0 %v4181
        %v4183 = vpop.xlane.xlu0 %4182
        %vm4184 = vcmp.eq.f32.partialorder %v4181, %v4183
        %v4185 = vsel %vm4184, %v4180, inf
        %4186 = vmin.xlane.f32.xlu0 %v4185
        %v4187 = vpop.xlane.xlu0 %4186
        %v4188 = vcvt.f32.s32 %v4187
        %v4189 = vcvt.f32.s32 %v4183
        %v4190 = vshll.u32 %v4189, 16
        %v4191 = vadd.s32 %v4190, %v4188
        %v4192 = vand.u32 %v3634, 65535
        %v4193 = vshra.s32 %v3634, 16
        %v4194 = vcvt.s32.f32 %v4192
        %v4195 = vcvt.s32.f32 %v4193
        %4196 = vmin.xlane.f32.xlu0 %v4195
        %v4197 = vpop.xlane.xlu0 %4196
        %vm4198 = vcmp.eq.f32.partialorder %v4195, %v4197
        %v4199 = vsel %vm4198, %v4194, inf
        %4200 = vmin.xlane.f32.xlu0 %v4199
        %v4201 = vpop.xlane.xlu0 %4200
        %v4202 = vcvt.f32.s32 %v4201
        %v4203 = vcvt.f32.s32 %v4197
        %v4204 = vshll.u32 %v4203, 16
        %v4205 = vadd.s32 %v4204, %v4202
        %v4206 = vand.u32 %v3635, 65535
        %v4207 = vshra.s32 %v3635, 16
        %v4208 = vcvt.s32.f32 %v4206
        %v4209 = vcvt.s32.f32 %v4207
        %4210 = vmin.xlane.f32.xlu0 %v4209
        %v4211 = vpop.xlane.xlu0 %4210
        %vm4212 = vcmp.eq.f32.partialorder %v4209, %v4211
        %v4213 = vsel %vm4212, %v4208, inf
        %4214 = vmin.xlane.f32.xlu0 %v4213
        %v4215 = vpop.xlane.xlu0 %4214
        %v4216 = vcvt.f32.s32 %v4215
        %v4217 = vcvt.f32.s32 %v4211
        %v4218 = vshll.u32 %v4217, 16
        %v4219 = vadd.s32 %v4218, %v4216
        %v4220 = vand.u32 %v3636, 65535
        %v4221 = vshra.s32 %v3636, 16
        %v4222 = vcvt.s32.f32 %v4220
        %v4223 = vcvt.s32.f32 %v4221
        %4224 = vmin.xlane.f32.xlu0 %v4223
        %v4225 = vpop.xlane.xlu0 %4224
        %vm4226 = vcmp.eq.f32.partialorder %v4223, %v4225
        %v4227 = vsel %vm4226, %v4222, inf
        %4228 = vmin.xlane.f32.xlu0 %v4227
        %v4229 = vpop.xlane.xlu0 %4228
        %v4230 = vcvt.f32.s32 %v4229
        %v4231 = vcvt.f32.s32 %v4225
        %v4232 = vshll.u32 %v4231, 16
        %v4233 = vadd.s32 %v4232, %v4230
        %v4234 = vand.u32 %v3637, 65535
        %v4235 = vshra.s32 %v3637, 16
        %v4236 = vcvt.s32.f32 %v4234
        %v4237 = vcvt.s32.f32 %v4235
        %4238 = vmin.xlane.f32.xlu0 %v4237
        %v4239 = vpop.xlane.xlu0 %4238
        %vm4240 = vcmp.eq.f32.partialorder %v4237, %v4239
        %v4241 = vsel %vm4240, %v4236, inf
        %4242 = vmin.xlane.f32.xlu0 %v4241
        %v4243 = vpop.xlane.xlu0 %4242
        %v4244 = vcvt.f32.s32 %v4243
        %v4245 = vcvt.f32.s32 %v4239
        %v4246 = vshll.u32 %v4245, 16
        %v4247 = vadd.s32 %v4246, %v4244
        %v4248 = vand.u32 %v3638, 65535
        %v4249 = vshra.s32 %v3638, 16
        %v4250 = vcvt.s32.f32 %v4248
        %v4251 = vcvt.s32.f32 %v4249
        %4252 = vmin.xlane.f32.xlu0 %v4251
        %v4253 = vpop.xlane.xlu0 %4252
        %vm4254 = vcmp.eq.f32.partialorder %v4251, %v4253
        %v4255 = vsel %vm4254, %v4250, inf
        %4256 = vmin.xlane.f32.xlu0 %v4255
        %v4257 = vpop.xlane.xlu0 %4256
        %v4258 = vcvt.f32.s32 %v4257
        %v4259 = vcvt.f32.s32 %v4253
        %v4260 = vshll.u32 %v4259, 16
        %v4261 = vadd.s32 %v4260, %v4258
        %v4262 = vand.u32 %v3639, 65535
        %v4263 = vshra.s32 %v3639, 16
        %v4264 = vcvt.s32.f32 %v4262
        %v4265 = vcvt.s32.f32 %v4263
        %4266 = vmin.xlane.f32.xlu0 %v4265
        %v4267 = vpop.xlane.xlu0 %4266
        %vm4268 = vcmp.eq.f32.partialorder %v4265, %v4267
        %v4269 = vsel %vm4268, %v4264, inf
        %4270 = vmin.xlane.f32.xlu0 %v4269
        %v4271 = vpop.xlane.xlu0 %4270
        %v4272 = vcvt.f32.s32 %v4271
        %v4273 = vcvt.f32.s32 %v4267
        %v4274 = vshll.u32 %v4273, 16
        %v4275 = vadd.s32 %v4274, %v4272
        %v4276 = vand.u32 %v3640, 65535
        %v4277 = vshra.s32 %v3640, 16
        %v4278 = vcvt.s32.f32 %v4276
        %v4279 = vcvt.s32.f32 %v4277
        %4280 = vmin.xlane.f32.xlu0 %v4279
        %v4281 = vpop.xlane.xlu0 %4280
        %vm4282 = vcmp.eq.f32.partialorder %v4279, %v4281
        %v4283 = vsel %vm4282, %v4278, inf
        %4284 = vmin.xlane.f32.xlu0 %v4283
        %v4285 = vpop.xlane.xlu0 %4284
        %v4286 = vcvt.f32.s32 %v4285
        %v4287 = vcvt.f32.s32 %v4281
        %v4288 = vshll.u32 %v4287, 16
        %v4289 = vadd.s32 %v4288, %v4286
        %v4290 = vand.u32 %v3641, 65535
        %v4291 = vshra.s32 %v3641, 16
        %v4292 = vcvt.s32.f32 %v4290
        %v4293 = vcvt.s32.f32 %v4291
        %4294 = vmin.xlane.f32.xlu0 %v4293
        %v4295 = vpop.xlane.xlu0 %4294
        %vm4296 = vcmp.eq.f32.partialorder %v4293, %v4295
        %v4297 = vsel %vm4296, %v4292, inf
        %4298 = vmin.xlane.f32.xlu0 %v4297
        %v4299 = vpop.xlane.xlu0 %4298
        %v4300 = vcvt.f32.s32 %v4299
        %v4301 = vcvt.f32.s32 %v4295
        %v4302 = vshll.u32 %v4301, 16
        %v4303 = vadd.s32 %v4302, %v4300
        %v4304 = vand.u32 %v3642, 65535
        %v4305 = vshra.s32 %v3642, 16
        %v4306 = vcvt.s32.f32 %v4304
        %v4307 = vcvt.s32.f32 %v4305
        %4308 = vmin.xlane.f32.xlu0 %v4307
        %v4309 = vpop.xlane.xlu0 %4308
        %vm4310 = vcmp.eq.f32.partialorder %v4307, %v4309
        %v4311 = vsel %vm4310, %v4306, inf
        %4312 = vmin.xlane.f32.xlu0 %v4311
        %v4313 = vpop.xlane.xlu0 %4312
        %v4314 = vcvt.f32.s32 %v4313
        %v4315 = vcvt.f32.s32 %v4309
        %v4316 = vshll.u32 %v4315, 16
        %v4317 = vadd.s32 %v4316, %v4314
        %v4318 = vand.u32 %v3643, 65535
        %v4319 = vshra.s32 %v3643, 16
        %v4320 = vcvt.s32.f32 %v4318
        %v4321 = vcvt.s32.f32 %v4319
        %4322 = vmin.xlane.f32.xlu0 %v4321
        %v4323 = vpop.xlane.xlu0 %4322
        %vm4324 = vcmp.eq.f32.partialorder %v4321, %v4323
        %v4325 = vsel %vm4324, %v4320, inf
        %4326 = vmin.xlane.f32.xlu0 %v4325
        %v4327 = vpop.xlane.xlu0 %4326
        %v4328 = vcvt.f32.s32 %v4327
        %v4329 = vcvt.f32.s32 %v4323
        %v4330 = vshll.u32 %v4329, 16
        %v4331 = vadd.s32 %v4330, %v4328
        %v4332 = vand.u32 %v3644, 65535
        %v4333 = vshra.s32 %v3644, 16
        %v4334 = vcvt.s32.f32 %v4332
        %v4335 = vcvt.s32.f32 %v4333
        %4336 = vmin.xlane.f32.xlu0 %v4335
        %v4337 = vpop.xlane.xlu0 %4336
        %vm4338 = vcmp.eq.f32.partialorder %v4335, %v4337
        %v4339 = vsel %vm4338, %v4334, inf
        %4340 = vmin.xlane.f32.xlu0 %v4339
        %v4341 = vpop.xlane.xlu0 %4340
        %v4342 = vcvt.f32.s32 %v4341
        %v4343 = vcvt.f32.s32 %v4337
        %v4344 = vshll.u32 %v4343, 16
        %v4345 = vadd.s32 %v4344, %v4342
        %v4346 = vand.u32 %v3645, 65535
        %v4347 = vshra.s32 %v3645, 16
        %v4348 = vcvt.s32.f32 %v4346
        %v4349 = vcvt.s32.f32 %v4347
        %4350 = vmin.xlane.f32.xlu0 %v4349
        %v4351 = vpop.xlane.xlu0 %4350
        %vm4352 = vcmp.eq.f32.partialorder %v4349, %v4351
        %v4353 = vsel %vm4352, %v4348, inf
        %4354 = vmin.xlane.f32.xlu0 %v4353
        %v4355 = vpop.xlane.xlu0 %4354
        %v4356 = vcvt.f32.s32 %v4355
        %v4357 = vcvt.f32.s32 %v4351
        %v4358 = vshll.u32 %v4357, 16
        %v4359 = vadd.s32 %v4358, %v4356
        %v4360 = vand.u32 %v3646, 65535
        %v4361 = vshra.s32 %v3646, 16
        %v4362 = vcvt.s32.f32 %v4360
        %v4363 = vcvt.s32.f32 %v4361
        %4364 = vmin.xlane.f32.xlu0 %v4363
        %v4365 = vpop.xlane.xlu0 %4364
        %vm4366 = vcmp.eq.f32.partialorder %v4363, %v4365
        %v4367 = vsel %vm4366, %v4362, inf
        %4368 = vmin.xlane.f32.xlu0 %v4367
        %v4369 = vpop.xlane.xlu0 %4368
        %v4370 = vcvt.f32.s32 %v4369
        %v4371 = vcvt.f32.s32 %v4365
        %v4372 = vshll.u32 %v4371, 16
        %v4373 = vadd.s32 %v4372, %v4370
        %v4374 = vand.u32 %v3647, 65535
        %v4375 = vshra.s32 %v3647, 16
        %v4376 = vcvt.s32.f32 %v4374
        %v4377 = vcvt.s32.f32 %v4375
        %4378 = vmin.xlane.f32.xlu0 %v4377
        %v4379 = vpop.xlane.xlu0 %4378
        %vm4380 = vcmp.eq.f32.partialorder %v4377, %v4379
        %v4381 = vsel %vm4380, %v4376, inf
        %4382 = vmin.xlane.f32.xlu0 %v4381
        %v4383 = vpop.xlane.xlu0 %4382
        %v4384 = vcvt.f32.s32 %v4383
        %v4385 = vcvt.f32.s32 %v4379
        %v4386 = vshll.u32 %v4385, 16
        %v4387 = vadd.s32 %v4386, %v4384
        %v4388 = vand.u32 %v3648, 65535
        %v4389 = vshra.s32 %v3648, 16
        %v4390 = vcvt.s32.f32 %v4388
        %v4391 = vcvt.s32.f32 %v4389
        %4392 = vmin.xlane.f32.xlu0 %v4391
        %v4393 = vpop.xlane.xlu0 %4392
        %vm4394 = vcmp.eq.f32.partialorder %v4391, %v4393
        %v4395 = vsel %vm4394, %v4390, inf
        %4396 = vmin.xlane.f32.xlu0 %v4395
        %v4397 = vpop.xlane.xlu0 %4396
        %v4398 = vcvt.f32.s32 %v4397
        %v4399 = vcvt.f32.s32 %v4393
        %v4400 = vshll.u32 %v4399, 16
        %v4401 = vadd.s32 %v4400, %v4398
        %v4402 = vand.u32 %v3649, 65535
        %v4403 = vshra.s32 %v3649, 16
        %v4404 = vcvt.s32.f32 %v4402
        %v4405 = vcvt.s32.f32 %v4403
        %4406 = vmin.xlane.f32.xlu0 %v4405
        %v4407 = vpop.xlane.xlu0 %4406
        %vm4408 = vcmp.eq.f32.partialorder %v4405, %v4407
        %v4409 = vsel %vm4408, %v4404, inf
        %4410 = vmin.xlane.f32.xlu0 %v4409
        %v4411 = vpop.xlane.xlu0 %4410
        %v4412 = vcvt.f32.s32 %v4411
        %v4413 = vcvt.f32.s32 %v4407
        %v4414 = vshll.u32 %v4413, 16
        %v4415 = vadd.s32 %v4414, %v4412
        %v4416 = vand.u32 %v3650, 65535
        %v4417 = vshra.s32 %v3650, 16
        %v4418 = vcvt.s32.f32 %v4416
        %v4419 = vcvt.s32.f32 %v4417
        %4420 = vmin.xlane.f32.xlu0 %v4419
        %v4421 = vpop.xlane.xlu0 %4420
        %vm4422 = vcmp.eq.f32.partialorder %v4419, %v4421
        %v4423 = vsel %vm4422, %v4418, inf
        %4424 = vmin.xlane.f32.xlu0 %v4423
        %v4425 = vpop.xlane.xlu0 %4424
        %v4426 = vcvt.f32.s32 %v4425
        %v4427 = vcvt.f32.s32 %v4421
        %v4428 = vshll.u32 %v4427, 16
        %v4429 = vadd.s32 %v4428, %v4426
        %v4430 = vand.u32 %v3651, 65535
        %v4431 = vshra.s32 %v3651, 16
        %v4432 = vcvt.s32.f32 %v4430
        %v4433 = vcvt.s32.f32 %v4431
        %4434 = vmin.xlane.f32.xlu0 %v4433
        %v4435 = vpop.xlane.xlu0 %4434
        %vm4436 = vcmp.eq.f32.partialorder %v4433, %v4435
        %v4437 = vsel %vm4436, %v4432, inf
        %4438 = vmin.xlane.f32.xlu0 %v4437
        %v4439 = vpop.xlane.xlu0 %4438
        %v4440 = vcvt.f32.s32 %v4439
        %v4441 = vcvt.f32.s32 %v4435
        %v4442 = vshll.u32 %v4441, 16
        %v4443 = vadd.s32 %v4442, %v4440
        %v4444 = vand.u32 %v3652, 65535
        %v4445 = vshra.s32 %v3652, 16
        %v4446 = vcvt.s32.f32 %v4444
        %v4447 = vcvt.s32.f32 %v4445
        %4448 = vmin.xlane.f32.xlu0 %v4447
        %v4449 = vpop.xlane.xlu0 %4448
        %vm4450 = vcmp.eq.f32.partialorder %v4447, %v4449
        %v4451 = vsel %vm4450, %v4446, inf
        %4452 = vmin.xlane.f32.xlu0 %v4451
        %v4453 = vpop.xlane.xlu0 %4452
        %v4454 = vcvt.f32.s32 %v4453
        %v4455 = vcvt.f32.s32 %v4449
        %v4456 = vshll.u32 %v4455, 16
        %v4457 = vadd.s32 %v4456, %v4454
        %v4458 = vand.u32 %v3653, 65535
        %v4459 = vshra.s32 %v3653, 16
        %v4460 = vcvt.s32.f32 %v4458
        %v4461 = vcvt.s32.f32 %v4459
        %4462 = vmin.xlane.f32.xlu0 %v4461
        %v4463 = vpop.xlane.xlu0 %4462
        %vm4464 = vcmp.eq.f32.partialorder %v4461, %v4463
        %v4465 = vsel %vm4464, %v4460, inf
        %4466 = vmin.xlane.f32.xlu0 %v4465
        %v4467 = vpop.xlane.xlu0 %4466
        %v4468 = vcvt.f32.s32 %v4467
        %v4469 = vcvt.f32.s32 %v4463
        %v4470 = vshll.u32 %v4469, 16
        %v4471 = vadd.s32 %v4470, %v4468
        %v4472 = vand.u32 %v3654, 65535
        %v4473 = vshra.s32 %v3654, 16
        %v4474 = vcvt.s32.f32 %v4472
        %v4475 = vcvt.s32.f32 %v4473
        %4476 = vmin.xlane.f32.xlu0 %v4475
        %v4477 = vpop.xlane.xlu0 %4476
        %vm4478 = vcmp.eq.f32.partialorder %v4475, %v4477
        %v4479 = vsel %vm4478, %v4474, inf
        %4480 = vmin.xlane.f32.xlu0 %v4479
        %v4481 = vpop.xlane.xlu0 %4480
        %v4482 = vcvt.f32.s32 %v4481
        %v4483 = vcvt.f32.s32 %v4477
        %v4484 = vshll.u32 %v4483, 16
        %v4485 = vadd.s32 %v4484, %v4482
        %v4486 = vand.u32 %v3655, 65535
        %v4487 = vshra.s32 %v3655, 16
        %v4488 = vcvt.s32.f32 %v4486
        %v4489 = vcvt.s32.f32 %v4487
        %4490 = vmin.xlane.f32.xlu0 %v4489
        %v4491 = vpop.xlane.xlu0 %4490
        %vm4492 = vcmp.eq.f32.partialorder %v4489, %v4491
        %v4493 = vsel %vm4492, %v4488, inf
        %4494 = vmin.xlane.f32.xlu0 %v4493
        %v4495 = vpop.xlane.xlu0 %4494
        %v4496 = vcvt.f32.s32 %v4495
        %v4497 = vcvt.f32.s32 %v4491
        %v4498 = vshll.u32 %v4497, 16
        %v4499 = vadd.s32 %v4498, %v4496
        %v4500 = vand.u32 %v3656, 65535
        %v4501 = vshra.s32 %v3656, 16
        %v4502 = vcvt.s32.f32 %v4500
        %v4503 = vcvt.s32.f32 %v4501
        %4504 = vmin.xlane.f32.xlu0 %v4503
        %v4505 = vpop.xlane.xlu0 %4504
        %vm4506 = vcmp.eq.f32.partialorder %v4503, %v4505
        %v4507 = vsel %vm4506, %v4502, inf
        %4508 = vmin.xlane.f32.xlu0 %v4507
        %v4509 = vpop.xlane.xlu0 %4508
        %v4510 = vcvt.f32.s32 %v4509
        %v4511 = vcvt.f32.s32 %v4505
        %v4512 = vshll.u32 %v4511, 16
        %v4513 = vadd.s32 %v4512, %v4510
        %v4514 = vand.u32 %v3657, 65535
        %v4515 = vshra.s32 %v3657, 16
        %v4516 = vcvt.s32.f32 %v4514
        %v4517 = vcvt.s32.f32 %v4515
        %4518 = vmin.xlane.f32.xlu0 %v4517
        %v4519 = vpop.xlane.xlu0 %4518
        %vm4520 = vcmp.eq.f32.partialorder %v4517, %v4519
        %v4521 = vsel %vm4520, %v4516, inf
        %4522 = vmin.xlane.f32.xlu0 %v4521
        %v4523 = vpop.xlane.xlu0 %4522
        %v4524 = vcvt.f32.s32 %v4523
        %v4525 = vcvt.f32.s32 %v4519
        %v4526 = vshll.u32 %v4525, 16
        %v4527 = vadd.s32 %v4526, %v4524
        %v4528 = vand.u32 %v3658, 65535
        %v4529 = vshra.s32 %v3658, 16
        %v4530 = vcvt.s32.f32 %v4528
        %v4531 = vcvt.s32.f32 %v4529
        %4532 = vmin.xlane.f32.xlu0 %v4531
        %v4533 = vpop.xlane.xlu0 %4532
        %vm4534 = vcmp.eq.f32.partialorder %v4531, %v4533
        %v4535 = vsel %vm4534, %v4530, inf
        %4536 = vmin.xlane.f32.xlu0 %v4535
        %v4537 = vpop.xlane.xlu0 %4536
        %v4538 = vcvt.f32.s32 %v4537
        %v4539 = vcvt.f32.s32 %v4533
        %v4540 = vshll.u32 %v4539, 16
        %v4541 = vadd.s32 %v4540, %v4538
        %v4542 = vand.u32 %v3659, 65535
        %v4543 = vshra.s32 %v3659, 16
        %v4544 = vcvt.s32.f32 %v4542
        %v4545 = vcvt.s32.f32 %v4543
        %4546 = vmin.xlane.f32.xlu0 %v4545
        %v4547 = vpop.xlane.xlu0 %4546
        %vm4548 = vcmp.eq.f32.partialorder %v4545, %v4547
        %v4549 = vsel %vm4548, %v4544, inf
        %4550 = vmin.xlane.f32.xlu0 %v4549
        %v4551 = vpop.xlane.xlu0 %4550
        %v4552 = vcvt.f32.s32 %v4551
        %v4553 = vcvt.f32.s32 %v4547
        %v4554 = vshll.u32 %v4553, 16
        %v4555 = vadd.s32 %v4554, %v4552
        %vm4556 = vcmp.eq.s32.totalorder %v1803, %v3673
        %vm4557 = vcmp.eq.s32.totalorder %v1803, %v3687
        %vm4558 = vcmp.eq.s32.totalorder %v1803, %v3701
        %vm4559 = vcmp.eq.s32.totalorder %v1803, %v3715
        %vm4560 = vcmp.eq.s32.totalorder %v1803, %v3729
        %vm4561 = vcmp.eq.s32.totalorder %v1803, %v3743
        %vm4562 = vcmp.eq.s32.totalorder %v1803, %v3757
        %vm4563 = vcmp.eq.s32.totalorder %v1803, %v3771
        %vm4564 = vcmp.eq.s32.totalorder %v1803, %v3785
        %vm4565 = vcmp.eq.s32.totalorder %v1803, %v3799
        %vm4566 = vcmp.eq.s32.totalorder %v1803, %v3813
        %vm4567 = vcmp.eq.s32.totalorder %v1803, %v3827
        %vm4568 = vcmp.eq.s32.totalorder %v1803, %v3841
        %vm4569 = vcmp.eq.s32.totalorder %v1803, %v3855
        %vm4570 = vcmp.eq.s32.totalorder %v1803, %v3869
        %vm4571 = vcmp.eq.s32.totalorder %v1803, %v3883
        %vm4572 = vcmp.eq.s32.totalorder %v1803, %v3897
        %vm4573 = vcmp.eq.s32.totalorder %v1803, %v3911
        %vm4574 = vcmp.eq.s32.totalorder %v1803, %v3925
        %vm4575 = vcmp.eq.s32.totalorder %v1803, %v3939
        %vm4576 = vcmp.eq.s32.totalorder %v1803, %v3953
        %vm4577 = vcmp.eq.s32.totalorder %v1803, %v3967
        %vm4578 = vcmp.eq.s32.totalorder %v1803, %v3981
        %vm4579 = vcmp.eq.s32.totalorder %v1803, %v3995
        %vm4580 = vcmp.eq.s32.totalorder %v1803, %v4009
        %vm4581 = vcmp.eq.s32.totalorder %v1803, %v4023
        %vm4582 = vcmp.eq.s32.totalorder %v1803, %v4037
        %vm4583 = vcmp.eq.s32.totalorder %v1803, %v4051
        %vm4584 = vcmp.eq.s32.totalorder %v1803, %v4065
        %vm4585 = vcmp.eq.s32.totalorder %v1803, %v4079
        %vm4586 = vcmp.eq.s32.totalorder %v1803, %v4093
        %vm4587 = vcmp.eq.s32.totalorder %v1803, %v4107
        %vm4588 = vcmp.eq.s32.totalorder %v1803, %v4121
        %vm4589 = vcmp.eq.s32.totalorder %v1803, %v4135
        %vm4590 = vcmp.eq.s32.totalorder %v1803, %v4149
        %vm4591 = vcmp.eq.s32.totalorder %v1803, %v4163
        %vm4592 = vcmp.eq.s32.totalorder %v1803, %v4177
        %vm4593 = vcmp.eq.s32.totalorder %v1803, %v4191
        %vm4594 = vcmp.eq.s32.totalorder %v1803, %v4205
        %vm4595 = vcmp.eq.s32.totalorder %v1803, %v4219
        %vm4596 = vcmp.eq.s32.totalorder %v1803, %v4233
        %vm4597 = vcmp.eq.s32.totalorder %v1803, %v4247
        %vm4598 = vcmp.eq.s32.totalorder %v1803, %v4261
        %vm4599 = vcmp.eq.s32.totalorder %v1803, %v4275
        %vm4600 = vcmp.eq.s32.totalorder %v1803, %v4289
        %vm4601 = vcmp.eq.s32.totalorder %v1803, %v4303
        %vm4602 = vcmp.eq.s32.totalorder %v1803, %v4317
        %vm4603 = vcmp.eq.s32.totalorder %v1803, %v4331
        %vm4604 = vcmp.eq.s32.totalorder %v1803, %v4345
        %vm4605 = vcmp.eq.s32.totalorder %v1803, %v4359
        %vm4606 = vcmp.eq.s32.totalorder %v1803, %v4373
        %vm4607 = vcmp.eq.s32.totalorder %v1803, %v4387
        %vm4608 = vcmp.eq.s32.totalorder %v1803, %v4401
        %vm4609 = vcmp.eq.s32.totalorder %v1803, %v4415
        %vm4610 = vcmp.eq.s32.totalorder %v1803, %v4429
        %vm4611 = vcmp.eq.s32.totalorder %v1803, %v4443
        %vm4612 = vcmp.eq.s32.totalorder %v1803, %v4457
        %vm4613 = vcmp.eq.s32.totalorder %v1803, %v4471
        %vm4614 = vcmp.eq.s32.totalorder %v1803, %v4485
        %vm4615 = vcmp.eq.s32.totalorder %v1803, %v4499
        %vm4616 = vcmp.eq.s32.totalorder %v1803, %v4513
        %vm4617 = vcmp.eq.s32.totalorder %v1803, %v4527
        %vm4618 = vcmp.eq.s32.totalorder %v1803, %v4541
        %vm4619 = vcmp.eq.s32.totalorder %v1803, %v4555
        %v4620 = vadd.f32 %v3405, 1e-08
        %v4621 = vadd.f32 %v3407, 1e-08
        %v4622 = vadd.f32 %v3409, 1e-08
        %v4623 = vadd.f32 %v3411, 1e-08
        %v4624 = vadd.f32 %v3413, 1e-08
        %v4625 = vadd.f32 %v3415, 1e-08
        %v4626 = vadd.f32 %v3417, 1e-08
        %v4627 = vadd.f32 %v3419, 1e-08
        %v4628 = vadd.f32 %v3421, 1e-08
        %v4629 = vadd.f32 %v3423, 1e-08
        %v4630 = vadd.f32 %v3425, 1e-08
        %v4631 = vadd.f32 %v3427, 1e-08
        %v4632 = vadd.f32 %v3429, 1e-08
        %v4633 = vadd.f32 %v3431, 1e-08
        %v4634 = vadd.f32 %v3433, 1e-08
        %v4635 = vadd.f32 %v3435, 1e-08
        %v4636 = vadd.f32 %v3437, 1e-08
        %v4637 = vadd.f32 %v3439, 1e-08
        %v4638 = vadd.f32 %v3441, 1e-08
        %v4639 = vadd.f32 %v3443, 1e-08
        %v4640 = vadd.f32 %v3445, 1e-08
        %v4641 = vadd.f32 %v3447, 1e-08
        %v4642 = vadd.f32 %v3449, 1e-08
        %v4643 = vadd.f32 %v3451, 1e-08
        %v4644 = vadd.f32 %v3453, 1e-08
        %v4645 = vadd.f32 %v3455, 1e-08
        %v4646 = vadd.f32 %v3457, 1e-08
        %v4647 = vadd.f32 %v3459, 1e-08
        %v4648 = vadd.f32 %v3461, 1e-08
        %v4649 = vadd.f32 %v3463, 1e-08
        %v4650 = vadd.f32 %v3465, 1e-08
        %v4651 = vadd.f32 %v3467, 1e-08
        %v4652 = vadd.f32 %v3469, 1e-08
        %v4653 = vadd.f32 %v3471, 1e-08
        %v4654 = vadd.f32 %v3473, 1e-08
        %v4655 = vadd.f32 %v3475, 1e-08
        %v4656 = vadd.f32 %v3477, 1e-08
        %v4657 = vadd.f32 %v3479, 1e-08
        %v4658 = vadd.f32 %v3481, 1e-08
        %v4659 = vadd.f32 %v3483, 1e-08
        %v4660 = vadd.f32 %v3485, 1e-08
        %v4661 = vadd.f32 %v3487, 1e-08
        %v4662 = vadd.f32 %v3489, 1e-08
        %v4663 = vadd.f32 %v3491, 1e-08
        %v4664 = vadd.f32 %v3493, 1e-08
        %v4665 = vadd.f32 %v3495, 1e-08
        %v4666 = vadd.f32 %v3497, 1e-08
        %v4667 = vadd.f32 %v3499, 1e-08
        %v4668 = vadd.f32 %v3501, 1e-08
        %v4669 = vadd.f32 %v3503, 1e-08
        %v4670 = vadd.f32 %v3505, 1e-08
        %v4671 = vadd.f32 %v3507, 1e-08
        %v4672 = vadd.f32 %v3509, 1e-08
        %v4673 = vadd.f32 %v3511, 1e-08
        %v4674 = vadd.f32 %v3513, 1e-08
        %v4675 = vadd.f32 %v3515, 1e-08
        %v4676 = vadd.f32 %v3517, 1e-08
        %v4677 = vadd.f32 %v3519, 1e-08
        %v4678 = vadd.f32 %v3521, 1e-08
        %v4679 = vadd.f32 %v3523, 1e-08
        %v4680 = vadd.f32 %v3525, 1e-08
        %v4681 = vadd.f32 %v3527, 1e-08
        %v4682 = vadd.f32 %v3529, 1e-08
        %v4683 = vadd.f32 %v3531, 1e-08
        %v4684 = vrcp.pop %v4620
        %v4685 = vmul.f32 1.0, %v4684
        %v4686 = vrcp.pop %v4621
        %v4687 = vmul.f32 1.0, %v4686
        %v4688 = vrcp.pop %v4622
        %v4689 = vmul.f32 1.0, %v4688
        %v4690 = vrcp.pop %v4623
        %v4691 = vmul.f32 1.0, %v4690
        %v4692 = vrcp.pop %v4624
        %v4693 = vmul.f32 1.0, %v4692
        %v4694 = vrcp.pop %v4625
        %v4695 = vmul.f32 1.0, %v4694
        %v4696 = vrcp.pop %v4626
        %v4697 = vmul.f32 1.0, %v4696
        %v4698 = vrcp.pop %v4627
        %v4699 = vmul.f32 1.0, %v4698
        %v4700 = vrcp.pop %v4628
        %v4701 = vmul.f32 1.0, %v4700
        %v4702 = vrcp.pop %v4629
        %v4703 = vmul.f32 1.0, %v4702
        %v4704 = vrcp.pop %v4630
        %v4705 = vmul.f32 1.0, %v4704
        %v4706 = vrcp.pop %v4631
        %v4707 = vmul.f32 1.0, %v4706
        %v4708 = vrcp.pop %v4632
        %v4709 = vmul.f32 1.0, %v4708
        %v4710 = vrcp.pop %v4633
        %v4711 = vmul.f32 1.0, %v4710
        %v4712 = vrcp.pop %v4634
        %v4713 = vmul.f32 1.0, %v4712
        %v4714 = vrcp.pop %v4635
        %v4715 = vmul.f32 1.0, %v4714
        %v4716 = vrcp.pop %v4636
        %v4717 = vmul.f32 1.0, %v4716
        %v4718 = vrcp.pop %v4637
        %v4719 = vmul.f32 1.0, %v4718
        %v4720 = vrcp.pop %v4638
        %v4721 = vmul.f32 1.0, %v4720
        %v4722 = vrcp.pop %v4639
        %v4723 = vmul.f32 1.0, %v4722
        %v4724 = vrcp.pop %v4640
        %v4725 = vmul.f32 1.0, %v4724
        %v4726 = vrcp.pop %v4641
        %v4727 = vmul.f32 1.0, %v4726
        %v4728 = vrcp.pop %v4642
        %v4729 = vmul.f32 1.0, %v4728
        %v4730 = vrcp.pop %v4643
        %v4731 = vmul.f32 1.0, %v4730
        %v4732 = vrcp.pop %v4644
        %v4733 = vmul.f32 1.0, %v4732
        %v4734 = vrcp.pop %v4645
        %v4735 = vmul.f32 1.0, %v4734
        %v4736 = vrcp.pop %v4646
        %v4737 = vmul.f32 1.0, %v4736
        %v4738 = vrcp.pop %v4647
        %v4739 = vmul.f32 1.0, %v4738
        %v4740 = vrcp.pop %v4648
        %v4741 = vmul.f32 1.0, %v4740
        %v4742 = vrcp.pop %v4649
        %v4743 = vmul.f32 1.0, %v4742
        %v4744 = vrcp.pop %v4650
        %v4745 = vmul.f32 1.0, %v4744
        %v4746 = vrcp.pop %v4651
        %v4747 = vmul.f32 1.0, %v4746
        %v4748 = vrcp.pop %v4652
        %v4749 = vmul.f32 1.0, %v4748
        %v4750 = vrcp.pop %v4653
        %v4751 = vmul.f32 1.0, %v4750
        %v4752 = vrcp.pop %v4654
        %v4753 = vmul.f32 1.0, %v4752
        %v4754 = vrcp.pop %v4655
        %v4755 = vmul.f32 1.0, %v4754
        %v4756 = vrcp.pop %v4656
        %v4757 = vmul.f32 1.0, %v4756
        %v4758 = vrcp.pop %v4657
        %v4759 = vmul.f32 1.0, %v4758
        %v4760 = vrcp.pop %v4658
        %v4761 = vmul.f32 1.0, %v4760
        %v4762 = vrcp.pop %v4659
        %v4763 = vmul.f32 1.0, %v4762
        %v4764 = vrcp.pop %v4660
        %v4765 = vmul.f32 1.0, %v4764
        %v4766 = vrcp.pop %v4661
        %v4767 = vmul.f32 1.0, %v4766
        %v4768 = vrcp.pop %v4662
        %v4769 = vmul.f32 1.0, %v4768
        %v4770 = vrcp.pop %v4663
        %v4771 = vmul.f32 1.0, %v4770
        %v4772 = vrcp.pop %v4664
        %v4773 = vmul.f32 1.0, %v4772
        %v4774 = vrcp.pop %v4665
        %v4775 = vmul.f32 1.0, %v4774
        %v4776 = vrcp.pop %v4666
        %v4777 = vmul.f32 1.0, %v4776
        %v4778 = vrcp.pop %v4667
        %v4779 = vmul.f32 1.0, %v4778
        %v4780 = vrcp.pop %v4668
        %v4781 = vmul.f32 1.0, %v4780
        %v4782 = vrcp.pop %v4669
        %v4783 = vmul.f32 1.0, %v4782
        %v4784 = vrcp.pop %v4670
        %v4785 = vmul.f32 1.0, %v4784
        %v4786 = vrcp.pop %v4671
        %v4787 = vmul.f32 1.0, %v4786
        %v4788 = vrcp.pop %v4672
        %v4789 = vmul.f32 1.0, %v4788
        %v4790 = vrcp.pop %v4673
        %v4791 = vmul.f32 1.0, %v4790
        %v4792 = vrcp.pop %v4674
        %v4793 = vmul.f32 1.0, %v4792
        %v4794 = vrcp.pop %v4675
        %v4795 = vmul.f32 1.0, %v4794
        %v4796 = vrcp.pop %v4676
        %v4797 = vmul.f32 1.0, %v4796
        %v4798 = vrcp.pop %v4677
        %v4799 = vmul.f32 1.0, %v4798
        %v4800 = vrcp.pop %v4678
        %v4801 = vmul.f32 1.0, %v4800
        %v4802 = vrcp.pop %v4679
        %v4803 = vmul.f32 1.0, %v4802
        %v4804 = vrcp.pop %v4680
        %v4805 = vmul.f32 1.0, %v4804
        %v4806 = vrcp.pop %v4681
        %v4807 = vmul.f32 1.0, %v4806
        %v4808 = vrcp.pop %v4682
        %v4809 = vmul.f32 1.0, %v4808
        %v4810 = vrcp.pop %v4683
        %v4811 = vmul.f32 1.0, %v4810
        %v4812 = vsel %vm4556, %v4685, %v3212
        %v4813 = vsel %vm4557, %v4687, %v3213
        %v4814 = vsel %vm4558, %v4689, %v3214
        %v4815 = vsel %vm4559, %v4691, %v3215
        %v4816 = vsel %vm4560, %v4693, %v3216
        %v4817 = vsel %vm4561, %v4695, %v3217
        %v4818 = vsel %vm4562, %v4697, %v3218
        %v4819 = vsel %vm4563, %v4699, %v3219
        %v4820 = vsel %vm4564, %v4701, %v3220
        %v4821 = vsel %vm4565, %v4703, %v3221
        %v4822 = vsel %vm4566, %v4705, %v3222
        %v4823 = vsel %vm4567, %v4707, %v3223
        %v4824 = vsel %vm4568, %v4709, %v3224
        %v4825 = vsel %vm4569, %v4711, %v3225
        %v4826 = vsel %vm4570, %v4713, %v3226
        %v4827 = vsel %vm4571, %v4715, %v3227
        %v4828 = vsel %vm4572, %v4717, %v3228
        %v4829 = vsel %vm4573, %v4719, %v3229
        %v4830 = vsel %vm4574, %v4721, %v3230
        %v4831 = vsel %vm4575, %v4723, %v3231
        %v4832 = vsel %vm4576, %v4725, %v3232
        %v4833 = vsel %vm4577, %v4727, %v3233
        %v4834 = vsel %vm4578, %v4729, %v3234
        %v4835 = vsel %vm4579, %v4731, %v3235
        %v4836 = vsel %vm4580, %v4733, %v3236
        %v4837 = vsel %vm4581, %v4735, %v3237
        %v4838 = vsel %vm4582, %v4737, %v3238
        %v4839 = vsel %vm4583, %v4739, %v3239
        %v4840 = vsel %vm4584, %v4741, %v3240
        %v4841 = vsel %vm4585, %v4743, %v3241
        %v4842 = vsel %vm4586, %v4745, %v3242
        %v4843 = vsel %vm4587, %v4747, %v3243
        %v4844 = vsel %vm4588, %v4749, %v3244
        %v4845 = vsel %vm4589, %v4751, %v3245
        %v4846 = vsel %vm4590, %v4753, %v3246
        %v4847 = vsel %vm4591, %v4755, %v3247
        %v4848 = vsel %vm4592, %v4757, %v3248
        %v4849 = vsel %vm4593, %v4759, %v3249
        %v4850 = vsel %vm4594, %v4761, %v3250
        %v4851 = vsel %vm4595, %v4763, %v3251
        %v4852 = vsel %vm4596, %v4765, %v3252
        %v4853 = vsel %vm4597, %v4767, %v3253
        %v4854 = vsel %vm4598, %v4769, %v3254
        %v4855 = vsel %vm4599, %v4771, %v3255
        %v4856 = vsel %vm4600, %v4773, %v3256
        %v4857 = vsel %vm4601, %v4775, %v3257
        %v4858 = vsel %vm4602, %v4777, %v3258
        %v4859 = vsel %vm4603, %v4779, %v3259
        %v4860 = vsel %vm4604, %v4781, %v3260
        %v4861 = vsel %vm4605, %v4783, %v3261
        %v4862 = vsel %vm4606, %v4785, %v3262
        %v4863 = vsel %vm4607, %v4787, %v3263
        %v4864 = vsel %vm4608, %v4789, %v3264
        %v4865 = vsel %vm4609, %v4791, %v3265
        %v4866 = vsel %vm4610, %v4793, %v3266
        %v4867 = vsel %vm4611, %v4795, %v3267
        %v4868 = vsel %vm4612, %v4797, %v3268
        %v4869 = vsel %vm4613, %v4799, %v3269
        %v4870 = vsel %vm4614, %v4801, %v3270
        %v4871 = vsel %vm4615, %v4803, %v3271
        %v4872 = vsel %vm4616, %v4805, %v3272
        %v4873 = vsel %vm4617, %v4807, %v3273
        %v4874 = vsel %vm4618, %v4809, %v3274
        %v4875 = vsel %vm4619, %v4811, %v3275
        %v4876 = vadd.f32 %v3276, %v4685
        %v4877 = vadd.f32 %v3277, %v4687
        %v4878 = vadd.f32 %v3278, %v4689
        %v4879 = vadd.f32 %v3279, %v4691
        %v4880 = vadd.f32 %v3280, %v4693
        %v4881 = vadd.f32 %v3281, %v4695
        %v4882 = vadd.f32 %v3282, %v4697
        %v4883 = vadd.f32 %v3283, %v4699
        %v4884 = vadd.f32 %v3284, %v4701
        %v4885 = vadd.f32 %v3285, %v4703
        %v4886 = vadd.f32 %v3286, %v4705
        %v4887 = vadd.f32 %v3287, %v4707
        %v4888 = vadd.f32 %v3288, %v4709
        %v4889 = vadd.f32 %v3289, %v4711
        %v4890 = vadd.f32 %v3290, %v4713
        %v4891 = vadd.f32 %v3291, %v4715
        %v4892 = vadd.f32 %v3292, %v4717
        %v4893 = vadd.f32 %v3293, %v4719
        %v4894 = vadd.f32 %v3294, %v4721
        %v4895 = vadd.f32 %v3295, %v4723
        %v4896 = vadd.f32 %v3296, %v4725
        %v4897 = vadd.f32 %v3297, %v4727
        %v4898 = vadd.f32 %v3298, %v4729
        %v4899 = vadd.f32 %v3299, %v4731
        %v4900 = vadd.f32 %v3300, %v4733
        %v4901 = vadd.f32 %v3301, %v4735
        %v4902 = vadd.f32 %v3302, %v4737
        %v4903 = vadd.f32 %v3303, %v4739
        %v4904 = vadd.f32 %v3304, %v4741
        %v4905 = vadd.f32 %v3305, %v4743
        %v4906 = vadd.f32 %v3306, %v4745
        %v4907 = vadd.f32 %v3307, %v4747
        %v4908 = vadd.f32 %v3308, %v4749
        %v4909 = vadd.f32 %v3309, %v4751
        %v4910 = vadd.f32 %v3310, %v4753
        %v4911 = vadd.f32 %v3311, %v4755
        %v4912 = vadd.f32 %v3312, %v4757
        %v4913 = vadd.f32 %v3313, %v4759
        %v4914 = vadd.f32 %v3314, %v4761
        %v4915 = vadd.f32 %v3315, %v4763
        %v4916 = vadd.f32 %v3316, %v4765
        %v4917 = vadd.f32 %v3317, %v4767
        %v4918 = vadd.f32 %v3318, %v4769
        %v4919 = vadd.f32 %v3319, %v4771
        %v4920 = vadd.f32 %v3320, %v4773
        %v4921 = vadd.f32 %v3321, %v4775
        %v4922 = vadd.f32 %v3322, %v4777
        %v4923 = vadd.f32 %v3323, %v4779
        %v4924 = vadd.f32 %v3324, %v4781
        %v4925 = vadd.f32 %v3325, %v4783
        %v4926 = vadd.f32 %v3326, %v4785
        %v4927 = vadd.f32 %v3327, %v4787
        %v4928 = vadd.f32 %v3328, %v4789
        %v4929 = vadd.f32 %v3329, %v4791
        %v4930 = vadd.f32 %v3330, %v4793
        %v4931 = vadd.f32 %v3331, %v4795
        %v4932 = vadd.f32 %v3332, %v4797
        %v4933 = vadd.f32 %v3333, %v4799
        %v4934 = vadd.f32 %v3334, %v4801
        %v4935 = vadd.f32 %v3335, %v4803
        %v4936 = vadd.f32 %v3336, %v4805
        %v4937 = vadd.f32 %v3337, %v4807
        %v4938 = vadd.f32 %v3338, %v4809
        %v4939 = vadd.f32 %v3339, %v4811
        %v4940 = vsel %vm4556, 3e+38, %v3340
        %v4941 = vsel %vm4557, 3e+38, %v3341
        %v4942 = vsel %vm4558, 3e+38, %v3342
        %v4943 = vsel %vm4559, 3e+38, %v3343
        %v4944 = vsel %vm4560, 3e+38, %v3344
        %v4945 = vsel %vm4561, 3e+38, %v3345
        %v4946 = vsel %vm4562, 3e+38, %v3346
        %v4947 = vsel %vm4563, 3e+38, %v3347
        %v4948 = vsel %vm4564, 3e+38, %v3348
        %v4949 = vsel %vm4565, 3e+38, %v3349
        %v4950 = vsel %vm4566, 3e+38, %v3350
        %v4951 = vsel %vm4567, 3e+38, %v3351
        %v4952 = vsel %vm4568, 3e+38, %v3352
        %v4953 = vsel %vm4569, 3e+38, %v3353
        %v4954 = vsel %vm4570, 3e+38, %v3354
        %v4955 = vsel %vm4571, 3e+38, %v3355
        %v4956 = vsel %vm4572, 3e+38, %v3356
        %v4957 = vsel %vm4573, 3e+38, %v3357
        %v4958 = vsel %vm4574, 3e+38, %v3358
        %v4959 = vsel %vm4575, 3e+38, %v3359
        %v4960 = vsel %vm4576, 3e+38, %v3360
        %v4961 = vsel %vm4577, 3e+38, %v3361
        %v4962 = vsel %vm4578, 3e+38, %v3362
        %v4963 = vsel %vm4579, 3e+38, %v3363
        %v4964 = vsel %vm4580, 3e+38, %v3364
        %v4965 = vsel %vm4581, 3e+38, %v3365
        %v4966 = vsel %vm4582, 3e+38, %v3366
        %v4967 = vsel %vm4583, 3e+38, %v3367
        %v4968 = vsel %vm4584, 3e+38, %v3368
        %v4969 = vsel %vm4585, 3e+38, %v3369
        %v4970 = vsel %vm4586, 3e+38, %v3370
        %v4971 = vsel %vm4587, 3e+38, %v3371
        %v4972 = vsel %vm4588, 3e+38, %v3372
        %v4973 = vsel %vm4589, 3e+38, %v3373
        %v4974 = vsel %vm4590, 3e+38, %v3374
        %v4975 = vsel %vm4591, 3e+38, %v3375
        %v4976 = vsel %vm4592, 3e+38, %v3376
        %v4977 = vsel %vm4593, 3e+38, %v3377
        %v4978 = vsel %vm4594, 3e+38, %v3378
        %v4979 = vsel %vm4595, 3e+38, %v3379
        %v4980 = vsel %vm4596, 3e+38, %v3380
        %v4981 = vsel %vm4597, 3e+38, %v3381
        %v4982 = vsel %vm4598, 3e+38, %v3382
        %v4983 = vsel %vm4599, 3e+38, %v3383
        %v4984 = vsel %vm4600, 3e+38, %v3384
        %v4985 = vsel %vm4601, 3e+38, %v3385
        %v4986 = vsel %vm4602, 3e+38, %v3386
        %v4987 = vsel %vm4603, 3e+38, %v3387
        %v4988 = vsel %vm4604, 3e+38, %v3388
        %v4989 = vsel %vm4605, 3e+38, %v3389
        %v4990 = vsel %vm4606, 3e+38, %v3390
        %v4991 = vsel %vm4607, 3e+38, %v3391
        %v4992 = vsel %vm4608, 3e+38, %v3392
        %v4993 = vsel %vm4609, 3e+38, %v3393
        %v4994 = vsel %vm4610, 3e+38, %v3394
        %v4995 = vsel %vm4611, 3e+38, %v3395
        %v4996 = vsel %vm4612, 3e+38, %v3396
        %v4997 = vsel %vm4613, 3e+38, %v3397
        %v4998 = vsel %vm4614, 3e+38, %v3398
        %v4999 = vsel %vm4615, 3e+38, %v3399
        %v5000 = vsel %vm4616, 3e+38, %v3400
        %v5001 = vsel %vm4617, 3e+38, %v3401
        %v5002 = vsel %vm4618, 3e+38, %v3402
        %v5003 = vsel %vm4619, 3e+38, %v3403
        %5004 = vmin.xlane.f32.xlu0 %v4940
        %v5005 = vpop.xlane.xlu0 %5004
        %5006 = vmin.xlane.f32.xlu0 %v4941
        %v5007 = vpop.xlane.xlu0 %5006
        %5008 = vmin.xlane.f32.xlu0 %v4942
        %v5009 = vpop.xlane.xlu0 %5008
        %5010 = vmin.xlane.f32.xlu0 %v4943
        %v5011 = vpop.xlane.xlu0 %5010
        %5012 = vmin.xlane.f32.xlu0 %v4944
        %v5013 = vpop.xlane.xlu0 %5012
        %5014 = vmin.xlane.f32.xlu0 %v4945
        %v5015 = vpop.xlane.xlu0 %5014
        %5016 = vmin.xlane.f32.xlu0 %v4946
        %v5017 = vpop.xlane.xlu0 %5016
        %5018 = vmin.xlane.f32.xlu0 %v4947
        %v5019 = vpop.xlane.xlu0 %5018
        %5020 = vmin.xlane.f32.xlu0 %v4948
        %v5021 = vpop.xlane.xlu0 %5020
        %5022 = vmin.xlane.f32.xlu0 %v4949
        %v5023 = vpop.xlane.xlu0 %5022
        %5024 = vmin.xlane.f32.xlu0 %v4950
        %v5025 = vpop.xlane.xlu0 %5024
        %5026 = vmin.xlane.f32.xlu0 %v4951
        %v5027 = vpop.xlane.xlu0 %5026
        %5028 = vmin.xlane.f32.xlu0 %v4952
        %v5029 = vpop.xlane.xlu0 %5028
        %5030 = vmin.xlane.f32.xlu0 %v4953
        %v5031 = vpop.xlane.xlu0 %5030
        %5032 = vmin.xlane.f32.xlu0 %v4954
        %v5033 = vpop.xlane.xlu0 %5032
        %5034 = vmin.xlane.f32.xlu0 %v4955
        %v5035 = vpop.xlane.xlu0 %5034
        %5036 = vmin.xlane.f32.xlu0 %v4956
        %v5037 = vpop.xlane.xlu0 %5036
        %5038 = vmin.xlane.f32.xlu0 %v4957
        %v5039 = vpop.xlane.xlu0 %5038
        %5040 = vmin.xlane.f32.xlu0 %v4958
        %v5041 = vpop.xlane.xlu0 %5040
        %5042 = vmin.xlane.f32.xlu0 %v4959
        %v5043 = vpop.xlane.xlu0 %5042
        %5044 = vmin.xlane.f32.xlu0 %v4960
        %v5045 = vpop.xlane.xlu0 %5044
        %5046 = vmin.xlane.f32.xlu0 %v4961
        %v5047 = vpop.xlane.xlu0 %5046
        %5048 = vmin.xlane.f32.xlu0 %v4962
        %v5049 = vpop.xlane.xlu0 %5048
        %5050 = vmin.xlane.f32.xlu0 %v4963
        %v5051 = vpop.xlane.xlu0 %5050
        %5052 = vmin.xlane.f32.xlu0 %v4964
        %v5053 = vpop.xlane.xlu0 %5052
        %5054 = vmin.xlane.f32.xlu0 %v4965
        %v5055 = vpop.xlane.xlu0 %5054
        %5056 = vmin.xlane.f32.xlu0 %v4966
        %v5057 = vpop.xlane.xlu0 %5056
        %5058 = vmin.xlane.f32.xlu0 %v4967
        %v5059 = vpop.xlane.xlu0 %5058
        %5060 = vmin.xlane.f32.xlu0 %v4968
        %v5061 = vpop.xlane.xlu0 %5060
        %5062 = vmin.xlane.f32.xlu0 %v4969
        %v5063 = vpop.xlane.xlu0 %5062
        %5064 = vmin.xlane.f32.xlu0 %v4970
        %v5065 = vpop.xlane.xlu0 %5064
        %5066 = vmin.xlane.f32.xlu0 %v4971
        %v5067 = vpop.xlane.xlu0 %5066
        %5068 = vmin.xlane.f32.xlu0 %v4972
        %v5069 = vpop.xlane.xlu0 %5068
        %5070 = vmin.xlane.f32.xlu0 %v4973
        %v5071 = vpop.xlane.xlu0 %5070
        %5072 = vmin.xlane.f32.xlu0 %v4974
        %v5073 = vpop.xlane.xlu0 %5072
        %5074 = vmin.xlane.f32.xlu0 %v4975
        %v5075 = vpop.xlane.xlu0 %5074
        %5076 = vmin.xlane.f32.xlu0 %v4976
        %v5077 = vpop.xlane.xlu0 %5076
        %5078 = vmin.xlane.f32.xlu0 %v4977
        %v5079 = vpop.xlane.xlu0 %5078
        %5080 = vmin.xlane.f32.xlu0 %v4978
        %v5081 = vpop.xlane.xlu0 %5080
        %5082 = vmin.xlane.f32.xlu0 %v4979
        %v5083 = vpop.xlane.xlu0 %5082
        %5084 = vmin.xlane.f32.xlu0 %v4980
        %v5085 = vpop.xlane.xlu0 %5084
        %5086 = vmin.xlane.f32.xlu0 %v4981
        %v5087 = vpop.xlane.xlu0 %5086
        %5088 = vmin.xlane.f32.xlu0 %v4982
        %v5089 = vpop.xlane.xlu0 %5088
        %5090 = vmin.xlane.f32.xlu0 %v4983
        %v5091 = vpop.xlane.xlu0 %5090
        %5092 = vmin.xlane.f32.xlu0 %v4984
        %v5093 = vpop.xlane.xlu0 %5092
        %5094 = vmin.xlane.f32.xlu0 %v4985
        %v5095 = vpop.xlane.xlu0 %5094
        %5096 = vmin.xlane.f32.xlu0 %v4986
        %v5097 = vpop.xlane.xlu0 %5096
        %5098 = vmin.xlane.f32.xlu0 %v4987
        %v5099 = vpop.xlane.xlu0 %5098
        %5100 = vmin.xlane.f32.xlu0 %v4988
        %v5101 = vpop.xlane.xlu0 %5100
        %5102 = vmin.xlane.f32.xlu0 %v4989
        %v5103 = vpop.xlane.xlu0 %5102
        %5104 = vmin.xlane.f32.xlu0 %v4990
        %v5105 = vpop.xlane.xlu0 %5104
        %5106 = vmin.xlane.f32.xlu0 %v4991
        %v5107 = vpop.xlane.xlu0 %5106
        %5108 = vmin.xlane.f32.xlu0 %v4992
        %v5109 = vpop.xlane.xlu0 %5108
        %5110 = vmin.xlane.f32.xlu0 %v4993
        %v5111 = vpop.xlane.xlu0 %5110
        %5112 = vmin.xlane.f32.xlu0 %v4994
        %v5113 = vpop.xlane.xlu0 %5112
        %5114 = vmin.xlane.f32.xlu0 %v4995
        %v5115 = vpop.xlane.xlu0 %5114
        %5116 = vmin.xlane.f32.xlu0 %v4996
        %v5117 = vpop.xlane.xlu0 %5116
        %5118 = vmin.xlane.f32.xlu0 %v4997
        %v5119 = vpop.xlane.xlu0 %5118
        %5120 = vmin.xlane.f32.xlu0 %v4998
        %v5121 = vpop.xlane.xlu0 %5120
        %5122 = vmin.xlane.f32.xlu0 %v4999
        %v5123 = vpop.xlane.xlu0 %5122
        %5124 = vmin.xlane.f32.xlu0 %v5000
        %v5125 = vpop.xlane.xlu0 %5124
        %5126 = vmin.xlane.f32.xlu0 %v5001
        %v5127 = vpop.xlane.xlu0 %5126
        %5128 = vmin.xlane.f32.xlu0 %v5002
        %v5129 = vpop.xlane.xlu0 %5128
        %5130 = vmin.xlane.f32.xlu0 %v5003
        %v5131 = vpop.xlane.xlu0 %5130
        %vm5132 = vcmp.eq.f32.partialorder %v4940, %v5005
        %vm5133 = vcmp.eq.f32.partialorder %v4941, %v5007
        %vm5134 = vcmp.eq.f32.partialorder %v4942, %v5009
        %vm5135 = vcmp.eq.f32.partialorder %v4943, %v5011
        %vm5136 = vcmp.eq.f32.partialorder %v4944, %v5013
        %vm5137 = vcmp.eq.f32.partialorder %v4945, %v5015
        %vm5138 = vcmp.eq.f32.partialorder %v4946, %v5017
        %vm5139 = vcmp.eq.f32.partialorder %v4947, %v5019
        %vm5140 = vcmp.eq.f32.partialorder %v4948, %v5021
        %vm5141 = vcmp.eq.f32.partialorder %v4949, %v5023
        %vm5142 = vcmp.eq.f32.partialorder %v4950, %v5025
        %vm5143 = vcmp.eq.f32.partialorder %v4951, %v5027
        %vm5144 = vcmp.eq.f32.partialorder %v4952, %v5029
        %vm5145 = vcmp.eq.f32.partialorder %v4953, %v5031
        %vm5146 = vcmp.eq.f32.partialorder %v4954, %v5033
        %vm5147 = vcmp.eq.f32.partialorder %v4955, %v5035
        %vm5148 = vcmp.eq.f32.partialorder %v4956, %v5037
        %vm5149 = vcmp.eq.f32.partialorder %v4957, %v5039
        %vm5150 = vcmp.eq.f32.partialorder %v4958, %v5041
        %vm5151 = vcmp.eq.f32.partialorder %v4959, %v5043
        %vm5152 = vcmp.eq.f32.partialorder %v4960, %v5045
        %vm5153 = vcmp.eq.f32.partialorder %v4961, %v5047
        %vm5154 = vcmp.eq.f32.partialorder %v4962, %v5049
        %vm5155 = vcmp.eq.f32.partialorder %v4963, %v5051
        %vm5156 = vcmp.eq.f32.partialorder %v4964, %v5053
        %vm5157 = vcmp.eq.f32.partialorder %v4965, %v5055
        %vm5158 = vcmp.eq.f32.partialorder %v4966, %v5057
        %vm5159 = vcmp.eq.f32.partialorder %v4967, %v5059
        %vm5160 = vcmp.eq.f32.partialorder %v4968, %v5061
        %vm5161 = vcmp.eq.f32.partialorder %v4969, %v5063
        %vm5162 = vcmp.eq.f32.partialorder %v4970, %v5065
        %vm5163 = vcmp.eq.f32.partialorder %v4971, %v5067
        %vm5164 = vcmp.eq.f32.partialorder %v4972, %v5069
        %vm5165 = vcmp.eq.f32.partialorder %v4973, %v5071
        %vm5166 = vcmp.eq.f32.partialorder %v4974, %v5073
        %vm5167 = vcmp.eq.f32.partialorder %v4975, %v5075
        %vm5168 = vcmp.eq.f32.partialorder %v4976, %v5077
        %vm5169 = vcmp.eq.f32.partialorder %v4977, %v5079
        %vm5170 = vcmp.eq.f32.partialorder %v4978, %v5081
        %vm5171 = vcmp.eq.f32.partialorder %v4979, %v5083
        %vm5172 = vcmp.eq.f32.partialorder %v4980, %v5085
        %vm5173 = vcmp.eq.f32.partialorder %v4981, %v5087
        %vm5174 = vcmp.eq.f32.partialorder %v4982, %v5089
        %vm5175 = vcmp.eq.f32.partialorder %v4983, %v5091
        %vm5176 = vcmp.eq.f32.partialorder %v4984, %v5093
        %vm5177 = vcmp.eq.f32.partialorder %v4985, %v5095
        %vm5178 = vcmp.eq.f32.partialorder %v4986, %v5097
        %vm5179 = vcmp.eq.f32.partialorder %v4987, %v5099
        %vm5180 = vcmp.eq.f32.partialorder %v4988, %v5101
        %vm5181 = vcmp.eq.f32.partialorder %v4989, %v5103
        %vm5182 = vcmp.eq.f32.partialorder %v4990, %v5105
        %vm5183 = vcmp.eq.f32.partialorder %v4991, %v5107
        %vm5184 = vcmp.eq.f32.partialorder %v4992, %v5109
        %vm5185 = vcmp.eq.f32.partialorder %v4993, %v5111
        %vm5186 = vcmp.eq.f32.partialorder %v4994, %v5113
        %vm5187 = vcmp.eq.f32.partialorder %v4995, %v5115
        %vm5188 = vcmp.eq.f32.partialorder %v4996, %v5117
        %vm5189 = vcmp.eq.f32.partialorder %v4997, %v5119
        %vm5190 = vcmp.eq.f32.partialorder %v4998, %v5121
        %vm5191 = vcmp.eq.f32.partialorder %v4999, %v5123
        %vm5192 = vcmp.eq.f32.partialorder %v5000, %v5125
        %vm5193 = vcmp.eq.f32.partialorder %v5001, %v5127
        %vm5194 = vcmp.eq.f32.partialorder %v5002, %v5129
        %vm5195 = vcmp.eq.f32.partialorder %v5003, %v5131
        %v5196 = vsel %vm5132, %v1803, 128
        %v5197 = vsel %vm5133, %v1803, 128
        %v5198 = vsel %vm5134, %v1803, 128
        %v5199 = vsel %vm5135, %v1803, 128
        %v5200 = vsel %vm5136, %v1803, 128
        %v5201 = vsel %vm5137, %v1803, 128
        %v5202 = vsel %vm5138, %v1803, 128
        %v5203 = vsel %vm5139, %v1803, 128
        %v5204 = vsel %vm5140, %v1803, 128
        %v5205 = vsel %vm5141, %v1803, 128
        %v5206 = vsel %vm5142, %v1803, 128
        %v5207 = vsel %vm5143, %v1803, 128
        %v5208 = vsel %vm5144, %v1803, 128
        %v5209 = vsel %vm5145, %v1803, 128
        %v5210 = vsel %vm5146, %v1803, 128
        %v5211 = vsel %vm5147, %v1803, 128
        %v5212 = vsel %vm5148, %v1803, 128
        %v5213 = vsel %vm5149, %v1803, 128
        %v5214 = vsel %vm5150, %v1803, 128
        %v5215 = vsel %vm5151, %v1803, 128
        %v5216 = vsel %vm5152, %v1803, 128
        %v5217 = vsel %vm5153, %v1803, 128
        %v5218 = vsel %vm5154, %v1803, 128
        %v5219 = vsel %vm5155, %v1803, 128
        %v5220 = vsel %vm5156, %v1803, 128
        %v5221 = vsel %vm5157, %v1803, 128
        %v5222 = vsel %vm5158, %v1803, 128
        %v5223 = vsel %vm5159, %v1803, 128
        %v5224 = vsel %vm5160, %v1803, 128
        %v5225 = vsel %vm5161, %v1803, 128
        %v5226 = vsel %vm5162, %v1803, 128
        %v5227 = vsel %vm5163, %v1803, 128
        %v5228 = vsel %vm5164, %v1803, 128
        %v5229 = vsel %vm5165, %v1803, 128
        %v5230 = vsel %vm5166, %v1803, 128
        %v5231 = vsel %vm5167, %v1803, 128
        %v5232 = vsel %vm5168, %v1803, 128
        %v5233 = vsel %vm5169, %v1803, 128
        %v5234 = vsel %vm5170, %v1803, 128
        %v5235 = vsel %vm5171, %v1803, 128
        %v5236 = vsel %vm5172, %v1803, 128
        %v5237 = vsel %vm5173, %v1803, 128
        %v5238 = vsel %vm5174, %v1803, 128
        %v5239 = vsel %vm5175, %v1803, 128
        %v5240 = vsel %vm5176, %v1803, 128
        %v5241 = vsel %vm5177, %v1803, 128
        %v5242 = vsel %vm5178, %v1803, 128
        %v5243 = vsel %vm5179, %v1803, 128
        %v5244 = vsel %vm5180, %v1803, 128
        %v5245 = vsel %vm5181, %v1803, 128
        %v5246 = vsel %vm5182, %v1803, 128
        %v5247 = vsel %vm5183, %v1803, 128
        %v5248 = vsel %vm5184, %v1803, 128
        %v5249 = vsel %vm5185, %v1803, 128
        %v5250 = vsel %vm5186, %v1803, 128
        %v5251 = vsel %vm5187, %v1803, 128
        %v5252 = vsel %vm5188, %v1803, 128
        %v5253 = vsel %vm5189, %v1803, 128
        %v5254 = vsel %vm5190, %v1803, 128
        %v5255 = vsel %vm5191, %v1803, 128
        %v5256 = vsel %vm5192, %v1803, 128
        %v5257 = vsel %vm5193, %v1803, 128
        %v5258 = vsel %vm5194, %v1803, 128
        %v5259 = vsel %vm5195, %v1803, 128
        %v5260 = vand.u32 %v5196, 65535
        %v5261 = vshra.s32 %v5196, 16
        %v5262 = vcvt.s32.f32 %v5260
        %v5263 = vcvt.s32.f32 %v5261
        %5264 = vmin.xlane.f32.xlu0 %v5263
        %v5265 = vpop.xlane.xlu0 %5264
        %vm5266 = vcmp.eq.f32.partialorder %v5263, %v5265
        %v5267 = vsel %vm5266, %v5262, inf
        %5268 = vmin.xlane.f32.xlu0 %v5267
        %v5269 = vpop.xlane.xlu0 %5268
        %v5270 = vcvt.f32.s32 %v5269
        %v5271 = vcvt.f32.s32 %v5265
        %v5272 = vshll.u32 %v5271, 16
        %v5273 = vadd.s32 %v5272, %v5270
        %v5274 = vand.u32 %v5197, 65535
        %v5275 = vshra.s32 %v5197, 16
        %v5276 = vcvt.s32.f32 %v5274
        %v5277 = vcvt.s32.f32 %v5275
        %5278 = vmin.xlane.f32.xlu0 %v5277
        %v5279 = vpop.xlane.xlu0 %5278
        %vm5280 = vcmp.eq.f32.partialorder %v5277, %v5279
        %v5281 = vsel %vm5280, %v5276, inf
        %5282 = vmin.xlane.f32.xlu0 %v5281
        %v5283 = vpop.xlane.xlu0 %5282
        %v5284 = vcvt.f32.s32 %v5283
        %v5285 = vcvt.f32.s32 %v5279
        %v5286 = vshll.u32 %v5285, 16
        %v5287 = vadd.s32 %v5286, %v5284
        %v5288 = vand.u32 %v5198, 65535
        %v5289 = vshra.s32 %v5198, 16
        %v5290 = vcvt.s32.f32 %v5288
        %v5291 = vcvt.s32.f32 %v5289
        %5292 = vmin.xlane.f32.xlu0 %v5291
        %v5293 = vpop.xlane.xlu0 %5292
        %vm5294 = vcmp.eq.f32.partialorder %v5291, %v5293
        %v5295 = vsel %vm5294, %v5290, inf
        %5296 = vmin.xlane.f32.xlu0 %v5295
        %v5297 = vpop.xlane.xlu0 %5296
        %v5298 = vcvt.f32.s32 %v5297
        %v5299 = vcvt.f32.s32 %v5293
        %v5300 = vshll.u32 %v5299, 16
        %v5301 = vadd.s32 %v5300, %v5298
        %v5302 = vand.u32 %v5199, 65535
        %v5303 = vshra.s32 %v5199, 16
        %v5304 = vcvt.s32.f32 %v5302
        %v5305 = vcvt.s32.f32 %v5303
        %5306 = vmin.xlane.f32.xlu0 %v5305
        %v5307 = vpop.xlane.xlu0 %5306
        %vm5308 = vcmp.eq.f32.partialorder %v5305, %v5307
        %v5309 = vsel %vm5308, %v5304, inf
        %5310 = vmin.xlane.f32.xlu0 %v5309
        %v5311 = vpop.xlane.xlu0 %5310
        %v5312 = vcvt.f32.s32 %v5311
        %v5313 = vcvt.f32.s32 %v5307
        %v5314 = vshll.u32 %v5313, 16
        %v5315 = vadd.s32 %v5314, %v5312
        %v5316 = vand.u32 %v5200, 65535
        %v5317 = vshra.s32 %v5200, 16
        %v5318 = vcvt.s32.f32 %v5316
        %v5319 = vcvt.s32.f32 %v5317
        %5320 = vmin.xlane.f32.xlu0 %v5319
        %v5321 = vpop.xlane.xlu0 %5320
        %vm5322 = vcmp.eq.f32.partialorder %v5319, %v5321
        %v5323 = vsel %vm5322, %v5318, inf
        %5324 = vmin.xlane.f32.xlu0 %v5323
        %v5325 = vpop.xlane.xlu0 %5324
        %v5326 = vcvt.f32.s32 %v5325
        %v5327 = vcvt.f32.s32 %v5321
        %v5328 = vshll.u32 %v5327, 16
        %v5329 = vadd.s32 %v5328, %v5326
        %v5330 = vand.u32 %v5201, 65535
        %v5331 = vshra.s32 %v5201, 16
        %v5332 = vcvt.s32.f32 %v5330
        %v5333 = vcvt.s32.f32 %v5331
        %5334 = vmin.xlane.f32.xlu0 %v5333
        %v5335 = vpop.xlane.xlu0 %5334
        %vm5336 = vcmp.eq.f32.partialorder %v5333, %v5335
        %v5337 = vsel %vm5336, %v5332, inf
        %5338 = vmin.xlane.f32.xlu0 %v5337
        %v5339 = vpop.xlane.xlu0 %5338
        %v5340 = vcvt.f32.s32 %v5339
        %v5341 = vcvt.f32.s32 %v5335
        %v5342 = vshll.u32 %v5341, 16
        %v5343 = vadd.s32 %v5342, %v5340
        %v5344 = vand.u32 %v5202, 65535
        %v5345 = vshra.s32 %v5202, 16
        %v5346 = vcvt.s32.f32 %v5344
        %v5347 = vcvt.s32.f32 %v5345
        %5348 = vmin.xlane.f32.xlu0 %v5347
        %v5349 = vpop.xlane.xlu0 %5348
        %vm5350 = vcmp.eq.f32.partialorder %v5347, %v5349
        %v5351 = vsel %vm5350, %v5346, inf
        %5352 = vmin.xlane.f32.xlu0 %v5351
        %v5353 = vpop.xlane.xlu0 %5352
        %v5354 = vcvt.f32.s32 %v5353
        %v5355 = vcvt.f32.s32 %v5349
        %v5356 = vshll.u32 %v5355, 16
        %v5357 = vadd.s32 %v5356, %v5354
        %v5358 = vand.u32 %v5203, 65535
        %v5359 = vshra.s32 %v5203, 16
        %v5360 = vcvt.s32.f32 %v5358
        %v5361 = vcvt.s32.f32 %v5359
        %5362 = vmin.xlane.f32.xlu0 %v5361
        %v5363 = vpop.xlane.xlu0 %5362
        %vm5364 = vcmp.eq.f32.partialorder %v5361, %v5363
        %v5365 = vsel %vm5364, %v5360, inf
        %5366 = vmin.xlane.f32.xlu0 %v5365
        %v5367 = vpop.xlane.xlu0 %5366
        %v5368 = vcvt.f32.s32 %v5367
        %v5369 = vcvt.f32.s32 %v5363
        %v5370 = vshll.u32 %v5369, 16
        %v5371 = vadd.s32 %v5370, %v5368
        %v5372 = vand.u32 %v5204, 65535
        %v5373 = vshra.s32 %v5204, 16
        %v5374 = vcvt.s32.f32 %v5372
        %v5375 = vcvt.s32.f32 %v5373
        %5376 = vmin.xlane.f32.xlu0 %v5375
        %v5377 = vpop.xlane.xlu0 %5376
        %vm5378 = vcmp.eq.f32.partialorder %v5375, %v5377
        %v5379 = vsel %vm5378, %v5374, inf
        %5380 = vmin.xlane.f32.xlu0 %v5379
        %v5381 = vpop.xlane.xlu0 %5380
        %v5382 = vcvt.f32.s32 %v5381
        %v5383 = vcvt.f32.s32 %v5377
        %v5384 = vshll.u32 %v5383, 16
        %v5385 = vadd.s32 %v5384, %v5382
        %v5386 = vand.u32 %v5205, 65535
        %v5387 = vshra.s32 %v5205, 16
        %v5388 = vcvt.s32.f32 %v5386
        %v5389 = vcvt.s32.f32 %v5387
        %5390 = vmin.xlane.f32.xlu0 %v5389
        %v5391 = vpop.xlane.xlu0 %5390
        %vm5392 = vcmp.eq.f32.partialorder %v5389, %v5391
        %v5393 = vsel %vm5392, %v5388, inf
        %5394 = vmin.xlane.f32.xlu0 %v5393
        %v5395 = vpop.xlane.xlu0 %5394
        %v5396 = vcvt.f32.s32 %v5395
        %v5397 = vcvt.f32.s32 %v5391
        %v5398 = vshll.u32 %v5397, 16
        %v5399 = vadd.s32 %v5398, %v5396
        %v5400 = vand.u32 %v5206, 65535
        %v5401 = vshra.s32 %v5206, 16
        %v5402 = vcvt.s32.f32 %v5400
        %v5403 = vcvt.s32.f32 %v5401
        %5404 = vmin.xlane.f32.xlu0 %v5403
        %v5405 = vpop.xlane.xlu0 %5404
        %vm5406 = vcmp.eq.f32.partialorder %v5403, %v5405
        %v5407 = vsel %vm5406, %v5402, inf
        %5408 = vmin.xlane.f32.xlu0 %v5407
        %v5409 = vpop.xlane.xlu0 %5408
        %v5410 = vcvt.f32.s32 %v5409
        %v5411 = vcvt.f32.s32 %v5405
        %v5412 = vshll.u32 %v5411, 16
        %v5413 = vadd.s32 %v5412, %v5410
        %v5414 = vand.u32 %v5207, 65535
        %v5415 = vshra.s32 %v5207, 16
        %v5416 = vcvt.s32.f32 %v5414
        %v5417 = vcvt.s32.f32 %v5415
        %5418 = vmin.xlane.f32.xlu0 %v5417
        %v5419 = vpop.xlane.xlu0 %5418
        %vm5420 = vcmp.eq.f32.partialorder %v5417, %v5419
        %v5421 = vsel %vm5420, %v5416, inf
        %5422 = vmin.xlane.f32.xlu0 %v5421
        %v5423 = vpop.xlane.xlu0 %5422
        %v5424 = vcvt.f32.s32 %v5423
        %v5425 = vcvt.f32.s32 %v5419
        %v5426 = vshll.u32 %v5425, 16
        %v5427 = vadd.s32 %v5426, %v5424
        %v5428 = vand.u32 %v5208, 65535
        %v5429 = vshra.s32 %v5208, 16
        %v5430 = vcvt.s32.f32 %v5428
        %v5431 = vcvt.s32.f32 %v5429
        %5432 = vmin.xlane.f32.xlu0 %v5431
        %v5433 = vpop.xlane.xlu0 %5432
        %vm5434 = vcmp.eq.f32.partialorder %v5431, %v5433
        %v5435 = vsel %vm5434, %v5430, inf
        %5436 = vmin.xlane.f32.xlu0 %v5435
        %v5437 = vpop.xlane.xlu0 %5436
        %v5438 = vcvt.f32.s32 %v5437
        %v5439 = vcvt.f32.s32 %v5433
        %v5440 = vshll.u32 %v5439, 16
        %v5441 = vadd.s32 %v5440, %v5438
        %v5442 = vand.u32 %v5209, 65535
        %v5443 = vshra.s32 %v5209, 16
        %v5444 = vcvt.s32.f32 %v5442
        %v5445 = vcvt.s32.f32 %v5443
        %5446 = vmin.xlane.f32.xlu0 %v5445
        %v5447 = vpop.xlane.xlu0 %5446
        %vm5448 = vcmp.eq.f32.partialorder %v5445, %v5447
        %v5449 = vsel %vm5448, %v5444, inf
        %5450 = vmin.xlane.f32.xlu0 %v5449
        %v5451 = vpop.xlane.xlu0 %5450
        %v5452 = vcvt.f32.s32 %v5451
        %v5453 = vcvt.f32.s32 %v5447
        %v5454 = vshll.u32 %v5453, 16
        %v5455 = vadd.s32 %v5454, %v5452
        %v5456 = vand.u32 %v5210, 65535
        %v5457 = vshra.s32 %v5210, 16
        %v5458 = vcvt.s32.f32 %v5456
        %v5459 = vcvt.s32.f32 %v5457
        %5460 = vmin.xlane.f32.xlu0 %v5459
        %v5461 = vpop.xlane.xlu0 %5460
        %vm5462 = vcmp.eq.f32.partialorder %v5459, %v5461
        %v5463 = vsel %vm5462, %v5458, inf
        %5464 = vmin.xlane.f32.xlu0 %v5463
        %v5465 = vpop.xlane.xlu0 %5464
        %v5466 = vcvt.f32.s32 %v5465
        %v5467 = vcvt.f32.s32 %v5461
        %v5468 = vshll.u32 %v5467, 16
        %v5469 = vadd.s32 %v5468, %v5466
        %v5470 = vand.u32 %v5211, 65535
        %v5471 = vshra.s32 %v5211, 16
        %v5472 = vcvt.s32.f32 %v5470
        %v5473 = vcvt.s32.f32 %v5471
        %5474 = vmin.xlane.f32.xlu0 %v5473
        %v5475 = vpop.xlane.xlu0 %5474
        %vm5476 = vcmp.eq.f32.partialorder %v5473, %v5475
        %v5477 = vsel %vm5476, %v5472, inf
        %5478 = vmin.xlane.f32.xlu0 %v5477
        %v5479 = vpop.xlane.xlu0 %5478
        %v5480 = vcvt.f32.s32 %v5479
        %v5481 = vcvt.f32.s32 %v5475
        %v5482 = vshll.u32 %v5481, 16
        %v5483 = vadd.s32 %v5482, %v5480
        %v5484 = vand.u32 %v5212, 65535
        %v5485 = vshra.s32 %v5212, 16
        %v5486 = vcvt.s32.f32 %v5484
        %v5487 = vcvt.s32.f32 %v5485
        %5488 = vmin.xlane.f32.xlu0 %v5487
        %v5489 = vpop.xlane.xlu0 %5488
        %vm5490 = vcmp.eq.f32.partialorder %v5487, %v5489
        %v5491 = vsel %vm5490, %v5486, inf
        %5492 = vmin.xlane.f32.xlu0 %v5491
        %v5493 = vpop.xlane.xlu0 %5492
        %v5494 = vcvt.f32.s32 %v5493
        %v5495 = vcvt.f32.s32 %v5489
        %v5496 = vshll.u32 %v5495, 16
        %v5497 = vadd.s32 %v5496, %v5494
        %v5498 = vand.u32 %v5213, 65535
        %v5499 = vshra.s32 %v5213, 16
        %v5500 = vcvt.s32.f32 %v5498
        %v5501 = vcvt.s32.f32 %v5499
        %5502 = vmin.xlane.f32.xlu0 %v5501
        %v5503 = vpop.xlane.xlu0 %5502
        %vm5504 = vcmp.eq.f32.partialorder %v5501, %v5503
        %v5505 = vsel %vm5504, %v5500, inf
        %5506 = vmin.xlane.f32.xlu0 %v5505
        %v5507 = vpop.xlane.xlu0 %5506
        %v5508 = vcvt.f32.s32 %v5507
        %v5509 = vcvt.f32.s32 %v5503
        %v5510 = vshll.u32 %v5509, 16
        %v5511 = vadd.s32 %v5510, %v5508
        %v5512 = vand.u32 %v5214, 65535
        %v5513 = vshra.s32 %v5214, 16
        %v5514 = vcvt.s32.f32 %v5512
        %v5515 = vcvt.s32.f32 %v5513
        %5516 = vmin.xlane.f32.xlu0 %v5515
        %v5517 = vpop.xlane.xlu0 %5516
        %vm5518 = vcmp.eq.f32.partialorder %v5515, %v5517
        %v5519 = vsel %vm5518, %v5514, inf
        %5520 = vmin.xlane.f32.xlu0 %v5519
        %v5521 = vpop.xlane.xlu0 %5520
        %v5522 = vcvt.f32.s32 %v5521
        %v5523 = vcvt.f32.s32 %v5517
        %v5524 = vshll.u32 %v5523, 16
        %v5525 = vadd.s32 %v5524, %v5522
        %v5526 = vand.u32 %v5215, 65535
        %v5527 = vshra.s32 %v5215, 16
        %v5528 = vcvt.s32.f32 %v5526
        %v5529 = vcvt.s32.f32 %v5527
        %5530 = vmin.xlane.f32.xlu0 %v5529
        %v5531 = vpop.xlane.xlu0 %5530
        %vm5532 = vcmp.eq.f32.partialorder %v5529, %v5531
        %v5533 = vsel %vm5532, %v5528, inf
        %5534 = vmin.xlane.f32.xlu0 %v5533
        %v5535 = vpop.xlane.xlu0 %5534
        %v5536 = vcvt.f32.s32 %v5535
        %v5537 = vcvt.f32.s32 %v5531
        %v5538 = vshll.u32 %v5537, 16
        %v5539 = vadd.s32 %v5538, %v5536
        %v5540 = vand.u32 %v5216, 65535
        %v5541 = vshra.s32 %v5216, 16
        %v5542 = vcvt.s32.f32 %v5540
        %v5543 = vcvt.s32.f32 %v5541
        %5544 = vmin.xlane.f32.xlu0 %v5543
        %v5545 = vpop.xlane.xlu0 %5544
        %vm5546 = vcmp.eq.f32.partialorder %v5543, %v5545
        %v5547 = vsel %vm5546, %v5542, inf
        %5548 = vmin.xlane.f32.xlu0 %v5547
        %v5549 = vpop.xlane.xlu0 %5548
        %v5550 = vcvt.f32.s32 %v5549
        %v5551 = vcvt.f32.s32 %v5545
        %v5552 = vshll.u32 %v5551, 16
        %v5553 = vadd.s32 %v5552, %v5550
        %v5554 = vand.u32 %v5217, 65535
        %v5555 = vshra.s32 %v5217, 16
        %v5556 = vcvt.s32.f32 %v5554
        %v5557 = vcvt.s32.f32 %v5555
        %5558 = vmin.xlane.f32.xlu0 %v5557
        %v5559 = vpop.xlane.xlu0 %5558
        %vm5560 = vcmp.eq.f32.partialorder %v5557, %v5559
        %v5561 = vsel %vm5560, %v5556, inf
        %5562 = vmin.xlane.f32.xlu0 %v5561
        %v5563 = vpop.xlane.xlu0 %5562
        %v5564 = vcvt.f32.s32 %v5563
        %v5565 = vcvt.f32.s32 %v5559
        %v5566 = vshll.u32 %v5565, 16
        %v5567 = vadd.s32 %v5566, %v5564
        %v5568 = vand.u32 %v5218, 65535
        %v5569 = vshra.s32 %v5218, 16
        %v5570 = vcvt.s32.f32 %v5568
        %v5571 = vcvt.s32.f32 %v5569
        %5572 = vmin.xlane.f32.xlu0 %v5571
        %v5573 = vpop.xlane.xlu0 %5572
        %vm5574 = vcmp.eq.f32.partialorder %v5571, %v5573
        %v5575 = vsel %vm5574, %v5570, inf
        %5576 = vmin.xlane.f32.xlu0 %v5575
        %v5577 = vpop.xlane.xlu0 %5576
        %v5578 = vcvt.f32.s32 %v5577
        %v5579 = vcvt.f32.s32 %v5573
        %v5580 = vshll.u32 %v5579, 16
        %v5581 = vadd.s32 %v5580, %v5578
        %v5582 = vand.u32 %v5219, 65535
        %v5583 = vshra.s32 %v5219, 16
        %v5584 = vcvt.s32.f32 %v5582
        %v5585 = vcvt.s32.f32 %v5583
        %5586 = vmin.xlane.f32.xlu0 %v5585
        %v5587 = vpop.xlane.xlu0 %5586
        %vm5588 = vcmp.eq.f32.partialorder %v5585, %v5587
        %v5589 = vsel %vm5588, %v5584, inf
        %5590 = vmin.xlane.f32.xlu0 %v5589
        %v5591 = vpop.xlane.xlu0 %5590
        %v5592 = vcvt.f32.s32 %v5591
        %v5593 = vcvt.f32.s32 %v5587
        %v5594 = vshll.u32 %v5593, 16
        %v5595 = vadd.s32 %v5594, %v5592
        %v5596 = vand.u32 %v5220, 65535
        %v5597 = vshra.s32 %v5220, 16
        %v5598 = vcvt.s32.f32 %v5596
        %v5599 = vcvt.s32.f32 %v5597
        %5600 = vmin.xlane.f32.xlu0 %v5599
        %v5601 = vpop.xlane.xlu0 %5600
        %vm5602 = vcmp.eq.f32.partialorder %v5599, %v5601
        %v5603 = vsel %vm5602, %v5598, inf
        %5604 = vmin.xlane.f32.xlu0 %v5603
        %v5605 = vpop.xlane.xlu0 %5604
        %v5606 = vcvt.f32.s32 %v5605
        %v5607 = vcvt.f32.s32 %v5601
        %v5608 = vshll.u32 %v5607, 16
        %v5609 = vadd.s32 %v5608, %v5606
        %v5610 = vand.u32 %v5221, 65535
        %v5611 = vshra.s32 %v5221, 16
        %v5612 = vcvt.s32.f32 %v5610
        %v5613 = vcvt.s32.f32 %v5611
        %5614 = vmin.xlane.f32.xlu0 %v5613
        %v5615 = vpop.xlane.xlu0 %5614
        %vm5616 = vcmp.eq.f32.partialorder %v5613, %v5615
        %v5617 = vsel %vm5616, %v5612, inf
        %5618 = vmin.xlane.f32.xlu0 %v5617
        %v5619 = vpop.xlane.xlu0 %5618
        %v5620 = vcvt.f32.s32 %v5619
        %v5621 = vcvt.f32.s32 %v5615
        %v5622 = vshll.u32 %v5621, 16
        %v5623 = vadd.s32 %v5622, %v5620
        %v5624 = vand.u32 %v5222, 65535
        %v5625 = vshra.s32 %v5222, 16
        %v5626 = vcvt.s32.f32 %v5624
        %v5627 = vcvt.s32.f32 %v5625
        %5628 = vmin.xlane.f32.xlu0 %v5627
        %v5629 = vpop.xlane.xlu0 %5628
        %vm5630 = vcmp.eq.f32.partialorder %v5627, %v5629
        %v5631 = vsel %vm5630, %v5626, inf
        %5632 = vmin.xlane.f32.xlu0 %v5631
        %v5633 = vpop.xlane.xlu0 %5632
        %v5634 = vcvt.f32.s32 %v5633
        %v5635 = vcvt.f32.s32 %v5629
        %v5636 = vshll.u32 %v5635, 16
        %v5637 = vadd.s32 %v5636, %v5634
        %v5638 = vand.u32 %v5223, 65535
        %v5639 = vshra.s32 %v5223, 16
        %v5640 = vcvt.s32.f32 %v5638
        %v5641 = vcvt.s32.f32 %v5639
        %5642 = vmin.xlane.f32.xlu0 %v5641
        %v5643 = vpop.xlane.xlu0 %5642
        %vm5644 = vcmp.eq.f32.partialorder %v5641, %v5643
        %v5645 = vsel %vm5644, %v5640, inf
        %5646 = vmin.xlane.f32.xlu0 %v5645
        %v5647 = vpop.xlane.xlu0 %5646
        %v5648 = vcvt.f32.s32 %v5647
        %v5649 = vcvt.f32.s32 %v5643
        %v5650 = vshll.u32 %v5649, 16
        %v5651 = vadd.s32 %v5650, %v5648
        %v5652 = vand.u32 %v5224, 65535
        %v5653 = vshra.s32 %v5224, 16
        %v5654 = vcvt.s32.f32 %v5652
        %v5655 = vcvt.s32.f32 %v5653
        %5656 = vmin.xlane.f32.xlu0 %v5655
        %v5657 = vpop.xlane.xlu0 %5656
        %vm5658 = vcmp.eq.f32.partialorder %v5655, %v5657
        %v5659 = vsel %vm5658, %v5654, inf
        %5660 = vmin.xlane.f32.xlu0 %v5659
        %v5661 = vpop.xlane.xlu0 %5660
        %v5662 = vcvt.f32.s32 %v5661
        %v5663 = vcvt.f32.s32 %v5657
        %v5664 = vshll.u32 %v5663, 16
        %v5665 = vadd.s32 %v5664, %v5662
        %v5666 = vand.u32 %v5225, 65535
        %v5667 = vshra.s32 %v5225, 16
        %v5668 = vcvt.s32.f32 %v5666
        %v5669 = vcvt.s32.f32 %v5667
        %5670 = vmin.xlane.f32.xlu0 %v5669
        %v5671 = vpop.xlane.xlu0 %5670
        %vm5672 = vcmp.eq.f32.partialorder %v5669, %v5671
        %v5673 = vsel %vm5672, %v5668, inf
        %5674 = vmin.xlane.f32.xlu0 %v5673
        %v5675 = vpop.xlane.xlu0 %5674
        %v5676 = vcvt.f32.s32 %v5675
        %v5677 = vcvt.f32.s32 %v5671
        %v5678 = vshll.u32 %v5677, 16
        %v5679 = vadd.s32 %v5678, %v5676
        %v5680 = vand.u32 %v5226, 65535
        %v5681 = vshra.s32 %v5226, 16
        %v5682 = vcvt.s32.f32 %v5680
        %v5683 = vcvt.s32.f32 %v5681
        %5684 = vmin.xlane.f32.xlu0 %v5683
        %v5685 = vpop.xlane.xlu0 %5684
        %vm5686 = vcmp.eq.f32.partialorder %v5683, %v5685
        %v5687 = vsel %vm5686, %v5682, inf
        %5688 = vmin.xlane.f32.xlu0 %v5687
        %v5689 = vpop.xlane.xlu0 %5688
        %v5690 = vcvt.f32.s32 %v5689
        %v5691 = vcvt.f32.s32 %v5685
        %v5692 = vshll.u32 %v5691, 16
        %v5693 = vadd.s32 %v5692, %v5690
        %v5694 = vand.u32 %v5227, 65535
        %v5695 = vshra.s32 %v5227, 16
        %v5696 = vcvt.s32.f32 %v5694
        %v5697 = vcvt.s32.f32 %v5695
        %5698 = vmin.xlane.f32.xlu0 %v5697
        %v5699 = vpop.xlane.xlu0 %5698
        %vm5700 = vcmp.eq.f32.partialorder %v5697, %v5699
        %v5701 = vsel %vm5700, %v5696, inf
        %5702 = vmin.xlane.f32.xlu0 %v5701
        %v5703 = vpop.xlane.xlu0 %5702
        %v5704 = vcvt.f32.s32 %v5703
        %v5705 = vcvt.f32.s32 %v5699
        %v5706 = vshll.u32 %v5705, 16
        %v5707 = vadd.s32 %v5706, %v5704
        %v5708 = vand.u32 %v5228, 65535
        %v5709 = vshra.s32 %v5228, 16
        %v5710 = vcvt.s32.f32 %v5708
        %v5711 = vcvt.s32.f32 %v5709
        %5712 = vmin.xlane.f32.xlu0 %v5711
        %v5713 = vpop.xlane.xlu0 %5712
        %vm5714 = vcmp.eq.f32.partialorder %v5711, %v5713
        %v5715 = vsel %vm5714, %v5710, inf
        %5716 = vmin.xlane.f32.xlu0 %v5715
        %v5717 = vpop.xlane.xlu0 %5716
        %v5718 = vcvt.f32.s32 %v5717
        %v5719 = vcvt.f32.s32 %v5713
        %v5720 = vshll.u32 %v5719, 16
        %v5721 = vadd.s32 %v5720, %v5718
        %v5722 = vand.u32 %v5229, 65535
        %v5723 = vshra.s32 %v5229, 16
        %v5724 = vcvt.s32.f32 %v5722
        %v5725 = vcvt.s32.f32 %v5723
        %5726 = vmin.xlane.f32.xlu0 %v5725
        %v5727 = vpop.xlane.xlu0 %5726
        %vm5728 = vcmp.eq.f32.partialorder %v5725, %v5727
        %v5729 = vsel %vm5728, %v5724, inf
        %5730 = vmin.xlane.f32.xlu0 %v5729
        %v5731 = vpop.xlane.xlu0 %5730
        %v5732 = vcvt.f32.s32 %v5731
        %v5733 = vcvt.f32.s32 %v5727
        %v5734 = vshll.u32 %v5733, 16
        %v5735 = vadd.s32 %v5734, %v5732
        %v5736 = vand.u32 %v5230, 65535
        %v5737 = vshra.s32 %v5230, 16
        %v5738 = vcvt.s32.f32 %v5736
        %v5739 = vcvt.s32.f32 %v5737
        %5740 = vmin.xlane.f32.xlu0 %v5739
        %v5741 = vpop.xlane.xlu0 %5740
        %vm5742 = vcmp.eq.f32.partialorder %v5739, %v5741
        %v5743 = vsel %vm5742, %v5738, inf
        %5744 = vmin.xlane.f32.xlu0 %v5743
        %v5745 = vpop.xlane.xlu0 %5744
        %v5746 = vcvt.f32.s32 %v5745
        %v5747 = vcvt.f32.s32 %v5741
        %v5748 = vshll.u32 %v5747, 16
        %v5749 = vadd.s32 %v5748, %v5746
        %v5750 = vand.u32 %v5231, 65535
        %v5751 = vshra.s32 %v5231, 16
        %v5752 = vcvt.s32.f32 %v5750
        %v5753 = vcvt.s32.f32 %v5751
        %5754 = vmin.xlane.f32.xlu0 %v5753
        %v5755 = vpop.xlane.xlu0 %5754
        %vm5756 = vcmp.eq.f32.partialorder %v5753, %v5755
        %v5757 = vsel %vm5756, %v5752, inf
        %5758 = vmin.xlane.f32.xlu0 %v5757
        %v5759 = vpop.xlane.xlu0 %5758
        %v5760 = vcvt.f32.s32 %v5759
        %v5761 = vcvt.f32.s32 %v5755
        %v5762 = vshll.u32 %v5761, 16
        %v5763 = vadd.s32 %v5762, %v5760
        %v5764 = vand.u32 %v5232, 65535
        %v5765 = vshra.s32 %v5232, 16
        %v5766 = vcvt.s32.f32 %v5764
        %v5767 = vcvt.s32.f32 %v5765
        %5768 = vmin.xlane.f32.xlu0 %v5767
        %v5769 = vpop.xlane.xlu0 %5768
        %vm5770 = vcmp.eq.f32.partialorder %v5767, %v5769
        %v5771 = vsel %vm5770, %v5766, inf
        %5772 = vmin.xlane.f32.xlu0 %v5771
        %v5773 = vpop.xlane.xlu0 %5772
        %v5774 = vcvt.f32.s32 %v5773
        %v5775 = vcvt.f32.s32 %v5769
        %v5776 = vshll.u32 %v5775, 16
        %v5777 = vadd.s32 %v5776, %v5774
        %v5778 = vand.u32 %v5233, 65535
        %v5779 = vshra.s32 %v5233, 16
        %v5780 = vcvt.s32.f32 %v5778
        %v5781 = vcvt.s32.f32 %v5779
        %5782 = vmin.xlane.f32.xlu0 %v5781
        %v5783 = vpop.xlane.xlu0 %5782
        %vm5784 = vcmp.eq.f32.partialorder %v5781, %v5783
        %v5785 = vsel %vm5784, %v5780, inf
        %5786 = vmin.xlane.f32.xlu0 %v5785
        %v5787 = vpop.xlane.xlu0 %5786
        %v5788 = vcvt.f32.s32 %v5787
        %v5789 = vcvt.f32.s32 %v5783
        %v5790 = vshll.u32 %v5789, 16
        %v5791 = vadd.s32 %v5790, %v5788
        %v5792 = vand.u32 %v5234, 65535
        %v5793 = vshra.s32 %v5234, 16
        %v5794 = vcvt.s32.f32 %v5792
        %v5795 = vcvt.s32.f32 %v5793
        %5796 = vmin.xlane.f32.xlu0 %v5795
        %v5797 = vpop.xlane.xlu0 %5796
        %vm5798 = vcmp.eq.f32.partialorder %v5795, %v5797
        %v5799 = vsel %vm5798, %v5794, inf
        %5800 = vmin.xlane.f32.xlu0 %v5799
        %v5801 = vpop.xlane.xlu0 %5800
        %v5802 = vcvt.f32.s32 %v5801
        %v5803 = vcvt.f32.s32 %v5797
        %v5804 = vshll.u32 %v5803, 16
        %v5805 = vadd.s32 %v5804, %v5802
        %v5806 = vand.u32 %v5235, 65535
        %v5807 = vshra.s32 %v5235, 16
        %v5808 = vcvt.s32.f32 %v5806
        %v5809 = vcvt.s32.f32 %v5807
        %5810 = vmin.xlane.f32.xlu0 %v5809
        %v5811 = vpop.xlane.xlu0 %5810
        %vm5812 = vcmp.eq.f32.partialorder %v5809, %v5811
        %v5813 = vsel %vm5812, %v5808, inf
        %5814 = vmin.xlane.f32.xlu0 %v5813
        %v5815 = vpop.xlane.xlu0 %5814
        %v5816 = vcvt.f32.s32 %v5815
        %v5817 = vcvt.f32.s32 %v5811
        %v5818 = vshll.u32 %v5817, 16
        %v5819 = vadd.s32 %v5818, %v5816
        %v5820 = vand.u32 %v5236, 65535
        %v5821 = vshra.s32 %v5236, 16
        %v5822 = vcvt.s32.f32 %v5820
        %v5823 = vcvt.s32.f32 %v5821
        %5824 = vmin.xlane.f32.xlu0 %v5823
        %v5825 = vpop.xlane.xlu0 %5824
        %vm5826 = vcmp.eq.f32.partialorder %v5823, %v5825
        %v5827 = vsel %vm5826, %v5822, inf
        %5828 = vmin.xlane.f32.xlu0 %v5827
        %v5829 = vpop.xlane.xlu0 %5828
        %v5830 = vcvt.f32.s32 %v5829
        %v5831 = vcvt.f32.s32 %v5825
        %v5832 = vshll.u32 %v5831, 16
        %v5833 = vadd.s32 %v5832, %v5830
        %v5834 = vand.u32 %v5237, 65535
        %v5835 = vshra.s32 %v5237, 16
        %v5836 = vcvt.s32.f32 %v5834
        %v5837 = vcvt.s32.f32 %v5835
        %5838 = vmin.xlane.f32.xlu0 %v5837
        %v5839 = vpop.xlane.xlu0 %5838
        %vm5840 = vcmp.eq.f32.partialorder %v5837, %v5839
        %v5841 = vsel %vm5840, %v5836, inf
        %5842 = vmin.xlane.f32.xlu0 %v5841
        %v5843 = vpop.xlane.xlu0 %5842
        %v5844 = vcvt.f32.s32 %v5843
        %v5845 = vcvt.f32.s32 %v5839
        %v5846 = vshll.u32 %v5845, 16
        %v5847 = vadd.s32 %v5846, %v5844
        %v5848 = vand.u32 %v5238, 65535
        %v5849 = vshra.s32 %v5238, 16
        %v5850 = vcvt.s32.f32 %v5848
        %v5851 = vcvt.s32.f32 %v5849
        %5852 = vmin.xlane.f32.xlu0 %v5851
        %v5853 = vpop.xlane.xlu0 %5852
        %vm5854 = vcmp.eq.f32.partialorder %v5851, %v5853
        %v5855 = vsel %vm5854, %v5850, inf
        %5856 = vmin.xlane.f32.xlu0 %v5855
        %v5857 = vpop.xlane.xlu0 %5856
        %v5858 = vcvt.f32.s32 %v5857
        %v5859 = vcvt.f32.s32 %v5853
        %v5860 = vshll.u32 %v5859, 16
        %v5861 = vadd.s32 %v5860, %v5858
        %v5862 = vand.u32 %v5239, 65535
        %v5863 = vshra.s32 %v5239, 16
        %v5864 = vcvt.s32.f32 %v5862
        %v5865 = vcvt.s32.f32 %v5863
        %5866 = vmin.xlane.f32.xlu0 %v5865
        %v5867 = vpop.xlane.xlu0 %5866
        %vm5868 = vcmp.eq.f32.partialorder %v5865, %v5867
        %v5869 = vsel %vm5868, %v5864, inf
        %5870 = vmin.xlane.f32.xlu0 %v5869
        %v5871 = vpop.xlane.xlu0 %5870
        %v5872 = vcvt.f32.s32 %v5871
        %v5873 = vcvt.f32.s32 %v5867
        %v5874 = vshll.u32 %v5873, 16
        %v5875 = vadd.s32 %v5874, %v5872
        %v5876 = vand.u32 %v5240, 65535
        %v5877 = vshra.s32 %v5240, 16
        %v5878 = vcvt.s32.f32 %v5876
        %v5879 = vcvt.s32.f32 %v5877
        %5880 = vmin.xlane.f32.xlu0 %v5879
        %v5881 = vpop.xlane.xlu0 %5880
        %vm5882 = vcmp.eq.f32.partialorder %v5879, %v5881
        %v5883 = vsel %vm5882, %v5878, inf
        %5884 = vmin.xlane.f32.xlu0 %v5883
        %v5885 = vpop.xlane.xlu0 %5884
        %v5886 = vcvt.f32.s32 %v5885
        %v5887 = vcvt.f32.s32 %v5881
        %v5888 = vshll.u32 %v5887, 16
        %v5889 = vadd.s32 %v5888, %v5886
        %v5890 = vand.u32 %v5241, 65535
        %v5891 = vshra.s32 %v5241, 16
        %v5892 = vcvt.s32.f32 %v5890
        %v5893 = vcvt.s32.f32 %v5891
        %5894 = vmin.xlane.f32.xlu0 %v5893
        %v5895 = vpop.xlane.xlu0 %5894
        %vm5896 = vcmp.eq.f32.partialorder %v5893, %v5895
        %v5897 = vsel %vm5896, %v5892, inf
        %5898 = vmin.xlane.f32.xlu0 %v5897
        %v5899 = vpop.xlane.xlu0 %5898
        %v5900 = vcvt.f32.s32 %v5899
        %v5901 = vcvt.f32.s32 %v5895
        %v5902 = vshll.u32 %v5901, 16
        %v5903 = vadd.s32 %v5902, %v5900
        %v5904 = vand.u32 %v5242, 65535
        %v5905 = vshra.s32 %v5242, 16
        %v5906 = vcvt.s32.f32 %v5904
        %v5907 = vcvt.s32.f32 %v5905
        %5908 = vmin.xlane.f32.xlu0 %v5907
        %v5909 = vpop.xlane.xlu0 %5908
        %vm5910 = vcmp.eq.f32.partialorder %v5907, %v5909
        %v5911 = vsel %vm5910, %v5906, inf
        %5912 = vmin.xlane.f32.xlu0 %v5911
        %v5913 = vpop.xlane.xlu0 %5912
        %v5914 = vcvt.f32.s32 %v5913
        %v5915 = vcvt.f32.s32 %v5909
        %v5916 = vshll.u32 %v5915, 16
        %v5917 = vadd.s32 %v5916, %v5914
        %v5918 = vand.u32 %v5243, 65535
        %v5919 = vshra.s32 %v5243, 16
        %v5920 = vcvt.s32.f32 %v5918
        %v5921 = vcvt.s32.f32 %v5919
        %5922 = vmin.xlane.f32.xlu0 %v5921
        %v5923 = vpop.xlane.xlu0 %5922
        %vm5924 = vcmp.eq.f32.partialorder %v5921, %v5923
        %v5925 = vsel %vm5924, %v5920, inf
        %5926 = vmin.xlane.f32.xlu0 %v5925
        %v5927 = vpop.xlane.xlu0 %5926
        %v5928 = vcvt.f32.s32 %v5927
        %v5929 = vcvt.f32.s32 %v5923
        %v5930 = vshll.u32 %v5929, 16
        %v5931 = vadd.s32 %v5930, %v5928
        %v5932 = vand.u32 %v5244, 65535
        %v5933 = vshra.s32 %v5244, 16
        %v5934 = vcvt.s32.f32 %v5932
        %v5935 = vcvt.s32.f32 %v5933
        %5936 = vmin.xlane.f32.xlu0 %v5935
        %v5937 = vpop.xlane.xlu0 %5936
        %vm5938 = vcmp.eq.f32.partialorder %v5935, %v5937
        %v5939 = vsel %vm5938, %v5934, inf
        %5940 = vmin.xlane.f32.xlu0 %v5939
        %v5941 = vpop.xlane.xlu0 %5940
        %v5942 = vcvt.f32.s32 %v5941
        %v5943 = vcvt.f32.s32 %v5937
        %v5944 = vshll.u32 %v5943, 16
        %v5945 = vadd.s32 %v5944, %v5942
        %v5946 = vand.u32 %v5245, 65535
        %v5947 = vshra.s32 %v5245, 16
        %v5948 = vcvt.s32.f32 %v5946
        %v5949 = vcvt.s32.f32 %v5947
        %5950 = vmin.xlane.f32.xlu0 %v5949
        %v5951 = vpop.xlane.xlu0 %5950
        %vm5952 = vcmp.eq.f32.partialorder %v5949, %v5951
        %v5953 = vsel %vm5952, %v5948, inf
        %5954 = vmin.xlane.f32.xlu0 %v5953
        %v5955 = vpop.xlane.xlu0 %5954
        %v5956 = vcvt.f32.s32 %v5955
        %v5957 = vcvt.f32.s32 %v5951
        %v5958 = vshll.u32 %v5957, 16
        %v5959 = vadd.s32 %v5958, %v5956
        %v5960 = vand.u32 %v5246, 65535
        %v5961 = vshra.s32 %v5246, 16
        %v5962 = vcvt.s32.f32 %v5960
        %v5963 = vcvt.s32.f32 %v5961
        %5964 = vmin.xlane.f32.xlu0 %v5963
        %v5965 = vpop.xlane.xlu0 %5964
        %vm5966 = vcmp.eq.f32.partialorder %v5963, %v5965
        %v5967 = vsel %vm5966, %v5962, inf
        %5968 = vmin.xlane.f32.xlu0 %v5967
        %v5969 = vpop.xlane.xlu0 %5968
        %v5970 = vcvt.f32.s32 %v5969
        %v5971 = vcvt.f32.s32 %v5965
        %v5972 = vshll.u32 %v5971, 16
        %v5973 = vadd.s32 %v5972, %v5970
        %v5974 = vand.u32 %v5247, 65535
        %v5975 = vshra.s32 %v5247, 16
        %v5976 = vcvt.s32.f32 %v5974
        %v5977 = vcvt.s32.f32 %v5975
        %5978 = vmin.xlane.f32.xlu0 %v5977
        %v5979 = vpop.xlane.xlu0 %5978
        %vm5980 = vcmp.eq.f32.partialorder %v5977, %v5979
        %v5981 = vsel %vm5980, %v5976, inf
        %5982 = vmin.xlane.f32.xlu0 %v5981
        %v5983 = vpop.xlane.xlu0 %5982
        %v5984 = vcvt.f32.s32 %v5983
        %v5985 = vcvt.f32.s32 %v5979
        %v5986 = vshll.u32 %v5985, 16
        %v5987 = vadd.s32 %v5986, %v5984
        %v5988 = vand.u32 %v5248, 65535
        %v5989 = vshra.s32 %v5248, 16
        %v5990 = vcvt.s32.f32 %v5988
        %v5991 = vcvt.s32.f32 %v5989
        %5992 = vmin.xlane.f32.xlu0 %v5991
        %v5993 = vpop.xlane.xlu0 %5992
        %vm5994 = vcmp.eq.f32.partialorder %v5991, %v5993
        %v5995 = vsel %vm5994, %v5990, inf
        %5996 = vmin.xlane.f32.xlu0 %v5995
        %v5997 = vpop.xlane.xlu0 %5996
        %v5998 = vcvt.f32.s32 %v5997
        %v5999 = vcvt.f32.s32 %v5993
        %v6000 = vshll.u32 %v5999, 16
        %v6001 = vadd.s32 %v6000, %v5998
        %v6002 = vand.u32 %v5249, 65535
        %v6003 = vshra.s32 %v5249, 16
        %v6004 = vcvt.s32.f32 %v6002
        %v6005 = vcvt.s32.f32 %v6003
        %6006 = vmin.xlane.f32.xlu0 %v6005
        %v6007 = vpop.xlane.xlu0 %6006
        %vm6008 = vcmp.eq.f32.partialorder %v6005, %v6007
        %v6009 = vsel %vm6008, %v6004, inf
        %6010 = vmin.xlane.f32.xlu0 %v6009
        %v6011 = vpop.xlane.xlu0 %6010
        %v6012 = vcvt.f32.s32 %v6011
        %v6013 = vcvt.f32.s32 %v6007
        %v6014 = vshll.u32 %v6013, 16
        %v6015 = vadd.s32 %v6014, %v6012
        %v6016 = vand.u32 %v5250, 65535
        %v6017 = vshra.s32 %v5250, 16
        %v6018 = vcvt.s32.f32 %v6016
        %v6019 = vcvt.s32.f32 %v6017
        %6020 = vmin.xlane.f32.xlu0 %v6019
        %v6021 = vpop.xlane.xlu0 %6020
        %vm6022 = vcmp.eq.f32.partialorder %v6019, %v6021
        %v6023 = vsel %vm6022, %v6018, inf
        %6024 = vmin.xlane.f32.xlu0 %v6023
        %v6025 = vpop.xlane.xlu0 %6024
        %v6026 = vcvt.f32.s32 %v6025
        %v6027 = vcvt.f32.s32 %v6021
        %v6028 = vshll.u32 %v6027, 16
        %v6029 = vadd.s32 %v6028, %v6026
        %v6030 = vand.u32 %v5251, 65535
        %v6031 = vshra.s32 %v5251, 16
        %v6032 = vcvt.s32.f32 %v6030
        %v6033 = vcvt.s32.f32 %v6031
        %6034 = vmin.xlane.f32.xlu0 %v6033
        %v6035 = vpop.xlane.xlu0 %6034
        %vm6036 = vcmp.eq.f32.partialorder %v6033, %v6035
        %v6037 = vsel %vm6036, %v6032, inf
        %6038 = vmin.xlane.f32.xlu0 %v6037
        %v6039 = vpop.xlane.xlu0 %6038
        %v6040 = vcvt.f32.s32 %v6039
        %v6041 = vcvt.f32.s32 %v6035
        %v6042 = vshll.u32 %v6041, 16
        %v6043 = vadd.s32 %v6042, %v6040
        %v6044 = vand.u32 %v5252, 65535
        %v6045 = vshra.s32 %v5252, 16
        %v6046 = vcvt.s32.f32 %v6044
        %v6047 = vcvt.s32.f32 %v6045
        %6048 = vmin.xlane.f32.xlu0 %v6047
        %v6049 = vpop.xlane.xlu0 %6048
        %vm6050 = vcmp.eq.f32.partialorder %v6047, %v6049
        %v6051 = vsel %vm6050, %v6046, inf
        %6052 = vmin.xlane.f32.xlu0 %v6051
        %v6053 = vpop.xlane.xlu0 %6052
        %v6054 = vcvt.f32.s32 %v6053
        %v6055 = vcvt.f32.s32 %v6049
        %v6056 = vshll.u32 %v6055, 16
        %v6057 = vadd.s32 %v6056, %v6054
        %v6058 = vand.u32 %v5253, 65535
        %v6059 = vshra.s32 %v5253, 16
        %v6060 = vcvt.s32.f32 %v6058
        %v6061 = vcvt.s32.f32 %v6059
        %6062 = vmin.xlane.f32.xlu0 %v6061
        %v6063 = vpop.xlane.xlu0 %6062
        %vm6064 = vcmp.eq.f32.partialorder %v6061, %v6063
        %v6065 = vsel %vm6064, %v6060, inf
        %6066 = vmin.xlane.f32.xlu0 %v6065
        %v6067 = vpop.xlane.xlu0 %6066
        %v6068 = vcvt.f32.s32 %v6067
        %v6069 = vcvt.f32.s32 %v6063
        %v6070 = vshll.u32 %v6069, 16
        %v6071 = vadd.s32 %v6070, %v6068
        %v6072 = vand.u32 %v5254, 65535
        %v6073 = vshra.s32 %v5254, 16
        %v6074 = vcvt.s32.f32 %v6072
        %v6075 = vcvt.s32.f32 %v6073
        %6076 = vmin.xlane.f32.xlu0 %v6075
        %v6077 = vpop.xlane.xlu0 %6076
        %vm6078 = vcmp.eq.f32.partialorder %v6075, %v6077
        %v6079 = vsel %vm6078, %v6074, inf
        %6080 = vmin.xlane.f32.xlu0 %v6079
        %v6081 = vpop.xlane.xlu0 %6080
        %v6082 = vcvt.f32.s32 %v6081
        %v6083 = vcvt.f32.s32 %v6077
        %v6084 = vshll.u32 %v6083, 16
        %v6085 = vadd.s32 %v6084, %v6082
        %v6086 = vand.u32 %v5255, 65535
        %v6087 = vshra.s32 %v5255, 16
        %v6088 = vcvt.s32.f32 %v6086
        %v6089 = vcvt.s32.f32 %v6087
        %6090 = vmin.xlane.f32.xlu0 %v6089
        %v6091 = vpop.xlane.xlu0 %6090
        %vm6092 = vcmp.eq.f32.partialorder %v6089, %v6091
        %v6093 = vsel %vm6092, %v6088, inf
        %6094 = vmin.xlane.f32.xlu0 %v6093
        %v6095 = vpop.xlane.xlu0 %6094
        %v6096 = vcvt.f32.s32 %v6095
        %v6097 = vcvt.f32.s32 %v6091
        %v6098 = vshll.u32 %v6097, 16
        %v6099 = vadd.s32 %v6098, %v6096
        %v6100 = vand.u32 %v5256, 65535
        %v6101 = vshra.s32 %v5256, 16
        %v6102 = vcvt.s32.f32 %v6100
        %v6103 = vcvt.s32.f32 %v6101
        %6104 = vmin.xlane.f32.xlu0 %v6103
        %v6105 = vpop.xlane.xlu0 %6104
        %vm6106 = vcmp.eq.f32.partialorder %v6103, %v6105
        %v6107 = vsel %vm6106, %v6102, inf
        %6108 = vmin.xlane.f32.xlu0 %v6107
        %v6109 = vpop.xlane.xlu0 %6108
        %v6110 = vcvt.f32.s32 %v6109
        %v6111 = vcvt.f32.s32 %v6105
        %v6112 = vshll.u32 %v6111, 16
        %v6113 = vadd.s32 %v6112, %v6110
        %v6114 = vand.u32 %v5257, 65535
        %v6115 = vshra.s32 %v5257, 16
        %v6116 = vcvt.s32.f32 %v6114
        %v6117 = vcvt.s32.f32 %v6115
        %6118 = vmin.xlane.f32.xlu0 %v6117
        %v6119 = vpop.xlane.xlu0 %6118
        %vm6120 = vcmp.eq.f32.partialorder %v6117, %v6119
        %v6121 = vsel %vm6120, %v6116, inf
        %6122 = vmin.xlane.f32.xlu0 %v6121
        %v6123 = vpop.xlane.xlu0 %6122
        %v6124 = vcvt.f32.s32 %v6123
        %v6125 = vcvt.f32.s32 %v6119
        %v6126 = vshll.u32 %v6125, 16
        %v6127 = vadd.s32 %v6126, %v6124
        %v6128 = vand.u32 %v5258, 65535
        %v6129 = vshra.s32 %v5258, 16
        %v6130 = vcvt.s32.f32 %v6128
        %v6131 = vcvt.s32.f32 %v6129
        %6132 = vmin.xlane.f32.xlu0 %v6131
        %v6133 = vpop.xlane.xlu0 %6132
        %vm6134 = vcmp.eq.f32.partialorder %v6131, %v6133
        %v6135 = vsel %vm6134, %v6130, inf
        %6136 = vmin.xlane.f32.xlu0 %v6135
        %v6137 = vpop.xlane.xlu0 %6136
        %v6138 = vcvt.f32.s32 %v6137
        %v6139 = vcvt.f32.s32 %v6133
        %v6140 = vshll.u32 %v6139, 16
        %v6141 = vadd.s32 %v6140, %v6138
        %v6142 = vand.u32 %v5259, 65535
        %v6143 = vshra.s32 %v5259, 16
        %v6144 = vcvt.s32.f32 %v6142
        %v6145 = vcvt.s32.f32 %v6143
        %6146 = vmin.xlane.f32.xlu0 %v6145
        %v6147 = vpop.xlane.xlu0 %6146
        %vm6148 = vcmp.eq.f32.partialorder %v6145, %v6147
        %v6149 = vsel %vm6148, %v6144, inf
        %6150 = vmin.xlane.f32.xlu0 %v6149
        %v6151 = vpop.xlane.xlu0 %6150
        %v6152 = vcvt.f32.s32 %v6151
        %v6153 = vcvt.f32.s32 %v6147
        %v6154 = vshll.u32 %v6153, 16
        %v6155 = vadd.s32 %v6154, %v6152
        %vm6156 = vcmp.eq.s32.totalorder %v1803, %v5273
        %vm6157 = vcmp.eq.s32.totalorder %v1803, %v5287
        %vm6158 = vcmp.eq.s32.totalorder %v1803, %v5301
        %vm6159 = vcmp.eq.s32.totalorder %v1803, %v5315
        %vm6160 = vcmp.eq.s32.totalorder %v1803, %v5329
        %vm6161 = vcmp.eq.s32.totalorder %v1803, %v5343
        %vm6162 = vcmp.eq.s32.totalorder %v1803, %v5357
        %vm6163 = vcmp.eq.s32.totalorder %v1803, %v5371
        %vm6164 = vcmp.eq.s32.totalorder %v1803, %v5385
        %vm6165 = vcmp.eq.s32.totalorder %v1803, %v5399
        %vm6166 = vcmp.eq.s32.totalorder %v1803, %v5413
        %vm6167 = vcmp.eq.s32.totalorder %v1803, %v5427
        %vm6168 = vcmp.eq.s32.totalorder %v1803, %v5441
        %vm6169 = vcmp.eq.s32.totalorder %v1803, %v5455
        %vm6170 = vcmp.eq.s32.totalorder %v1803, %v5469
        %vm6171 = vcmp.eq.s32.totalorder %v1803, %v5483
        %vm6172 = vcmp.eq.s32.totalorder %v1803, %v5497
        %vm6173 = vcmp.eq.s32.totalorder %v1803, %v5511
        %vm6174 = vcmp.eq.s32.totalorder %v1803, %v5525
        %vm6175 = vcmp.eq.s32.totalorder %v1803, %v5539
        %vm6176 = vcmp.eq.s32.totalorder %v1803, %v5553
        %vm6177 = vcmp.eq.s32.totalorder %v1803, %v5567
        %vm6178 = vcmp.eq.s32.totalorder %v1803, %v5581
        %vm6179 = vcmp.eq.s32.totalorder %v1803, %v5595
        %vm6180 = vcmp.eq.s32.totalorder %v1803, %v5609
        %vm6181 = vcmp.eq.s32.totalorder %v1803, %v5623
        %vm6182 = vcmp.eq.s32.totalorder %v1803, %v5637
        %vm6183 = vcmp.eq.s32.totalorder %v1803, %v5651
        %vm6184 = vcmp.eq.s32.totalorder %v1803, %v5665
        %vm6185 = vcmp.eq.s32.totalorder %v1803, %v5679
        %vm6186 = vcmp.eq.s32.totalorder %v1803, %v5693
        %vm6187 = vcmp.eq.s32.totalorder %v1803, %v5707
        %vm6188 = vcmp.eq.s32.totalorder %v1803, %v5721
        %vm6189 = vcmp.eq.s32.totalorder %v1803, %v5735
        %vm6190 = vcmp.eq.s32.totalorder %v1803, %v5749
        %vm6191 = vcmp.eq.s32.totalorder %v1803, %v5763
        %vm6192 = vcmp.eq.s32.totalorder %v1803, %v5777
        %vm6193 = vcmp.eq.s32.totalorder %v1803, %v5791
        %vm6194 = vcmp.eq.s32.totalorder %v1803, %v5805
        %vm6195 = vcmp.eq.s32.totalorder %v1803, %v5819
        %vm6196 = vcmp.eq.s32.totalorder %v1803, %v5833
        %vm6197 = vcmp.eq.s32.totalorder %v1803, %v5847
        %vm6198 = vcmp.eq.s32.totalorder %v1803, %v5861
        %vm6199 = vcmp.eq.s32.totalorder %v1803, %v5875
        %vm6200 = vcmp.eq.s32.totalorder %v1803, %v5889
        %vm6201 = vcmp.eq.s32.totalorder %v1803, %v5903
        %vm6202 = vcmp.eq.s32.totalorder %v1803, %v5917
        %vm6203 = vcmp.eq.s32.totalorder %v1803, %v5931
        %vm6204 = vcmp.eq.s32.totalorder %v1803, %v5945
        %vm6205 = vcmp.eq.s32.totalorder %v1803, %v5959
        %vm6206 = vcmp.eq.s32.totalorder %v1803, %v5973
        %vm6207 = vcmp.eq.s32.totalorder %v1803, %v5987
        %vm6208 = vcmp.eq.s32.totalorder %v1803, %v6001
        %vm6209 = vcmp.eq.s32.totalorder %v1803, %v6015
        %vm6210 = vcmp.eq.s32.totalorder %v1803, %v6029
        %vm6211 = vcmp.eq.s32.totalorder %v1803, %v6043
        %vm6212 = vcmp.eq.s32.totalorder %v1803, %v6057
        %vm6213 = vcmp.eq.s32.totalorder %v1803, %v6071
        %vm6214 = vcmp.eq.s32.totalorder %v1803, %v6085
        %vm6215 = vcmp.eq.s32.totalorder %v1803, %v6099
        %vm6216 = vcmp.eq.s32.totalorder %v1803, %v6113
        %vm6217 = vcmp.eq.s32.totalorder %v1803, %v6127
        %vm6218 = vcmp.eq.s32.totalorder %v1803, %v6141
        %vm6219 = vcmp.eq.s32.totalorder %v1803, %v6155
        %v6220 = vadd.f32 %v5005, 1e-08
        %v6221 = vadd.f32 %v5007, 1e-08
        %v6222 = vadd.f32 %v5009, 1e-08
        %v6223 = vadd.f32 %v5011, 1e-08
        %v6224 = vadd.f32 %v5013, 1e-08
        %v6225 = vadd.f32 %v5015, 1e-08
        %v6226 = vadd.f32 %v5017, 1e-08
        %v6227 = vadd.f32 %v5019, 1e-08
        %v6228 = vadd.f32 %v5021, 1e-08
        %v6229 = vadd.f32 %v5023, 1e-08
        %v6230 = vadd.f32 %v5025, 1e-08
        %v6231 = vadd.f32 %v5027, 1e-08
        %v6232 = vadd.f32 %v5029, 1e-08
        %v6233 = vadd.f32 %v5031, 1e-08
        %v6234 = vadd.f32 %v5033, 1e-08
        %v6235 = vadd.f32 %v5035, 1e-08
        %v6236 = vadd.f32 %v5037, 1e-08
        %v6237 = vadd.f32 %v5039, 1e-08
        %v6238 = vadd.f32 %v5041, 1e-08
        %v6239 = vadd.f32 %v5043, 1e-08
        %v6240 = vadd.f32 %v5045, 1e-08
        %v6241 = vadd.f32 %v5047, 1e-08
        %v6242 = vadd.f32 %v5049, 1e-08
        %v6243 = vadd.f32 %v5051, 1e-08
        %v6244 = vadd.f32 %v5053, 1e-08
        %v6245 = vadd.f32 %v5055, 1e-08
        %v6246 = vadd.f32 %v5057, 1e-08
        %v6247 = vadd.f32 %v5059, 1e-08
        %v6248 = vadd.f32 %v5061, 1e-08
        %v6249 = vadd.f32 %v5063, 1e-08
        %v6250 = vadd.f32 %v5065, 1e-08
        %v6251 = vadd.f32 %v5067, 1e-08
        %v6252 = vadd.f32 %v5069, 1e-08
        %v6253 = vadd.f32 %v5071, 1e-08
        %v6254 = vadd.f32 %v5073, 1e-08
        %v6255 = vadd.f32 %v5075, 1e-08
        %v6256 = vadd.f32 %v5077, 1e-08
        %v6257 = vadd.f32 %v5079, 1e-08
        %v6258 = vadd.f32 %v5081, 1e-08
        %v6259 = vadd.f32 %v5083, 1e-08
        %v6260 = vadd.f32 %v5085, 1e-08
        %v6261 = vadd.f32 %v5087, 1e-08
        %v6262 = vadd.f32 %v5089, 1e-08
        %v6263 = vadd.f32 %v5091, 1e-08
        %v6264 = vadd.f32 %v5093, 1e-08
        %v6265 = vadd.f32 %v5095, 1e-08
        %v6266 = vadd.f32 %v5097, 1e-08
        %v6267 = vadd.f32 %v5099, 1e-08
        %v6268 = vadd.f32 %v5101, 1e-08
        %v6269 = vadd.f32 %v5103, 1e-08
        %v6270 = vadd.f32 %v5105, 1e-08
        %v6271 = vadd.f32 %v5107, 1e-08
        %v6272 = vadd.f32 %v5109, 1e-08
        %v6273 = vadd.f32 %v5111, 1e-08
        %v6274 = vadd.f32 %v5113, 1e-08
        %v6275 = vadd.f32 %v5115, 1e-08
        %v6276 = vadd.f32 %v5117, 1e-08
        %v6277 = vadd.f32 %v5119, 1e-08
        %v6278 = vadd.f32 %v5121, 1e-08
        %v6279 = vadd.f32 %v5123, 1e-08
        %v6280 = vadd.f32 %v5125, 1e-08
        %v6281 = vadd.f32 %v5127, 1e-08
        %v6282 = vadd.f32 %v5129, 1e-08
        %v6283 = vadd.f32 %v5131, 1e-08
        %v6284 = vrcp.pop %v6220
        %v6285 = vmul.f32 1.0, %v6284
        %v6286 = vrcp.pop %v6221
        %v6287 = vmul.f32 1.0, %v6286
        %v6288 = vrcp.pop %v6222
        %v6289 = vmul.f32 1.0, %v6288
        %v6290 = vrcp.pop %v6223
        %v6291 = vmul.f32 1.0, %v6290
        %v6292 = vrcp.pop %v6224
        %v6293 = vmul.f32 1.0, %v6292
        %v6294 = vrcp.pop %v6225
        %v6295 = vmul.f32 1.0, %v6294
        %v6296 = vrcp.pop %v6226
        %v6297 = vmul.f32 1.0, %v6296
        %v6298 = vrcp.pop %v6227
        %v6299 = vmul.f32 1.0, %v6298
        %v6300 = vrcp.pop %v6228
        %v6301 = vmul.f32 1.0, %v6300
        %v6302 = vrcp.pop %v6229
        %v6303 = vmul.f32 1.0, %v6302
        %v6304 = vrcp.pop %v6230
        %v6305 = vmul.f32 1.0, %v6304
        %v6306 = vrcp.pop %v6231
        %v6307 = vmul.f32 1.0, %v6306
        %v6308 = vrcp.pop %v6232
        %v6309 = vmul.f32 1.0, %v6308
        %v6310 = vrcp.pop %v6233
        %v6311 = vmul.f32 1.0, %v6310
        %v6312 = vrcp.pop %v6234
        %v6313 = vmul.f32 1.0, %v6312
        %v6314 = vrcp.pop %v6235
        %v6315 = vmul.f32 1.0, %v6314
        %v6316 = vrcp.pop %v6236
        %v6317 = vmul.f32 1.0, %v6316
        %v6318 = vrcp.pop %v6237
        %v6319 = vmul.f32 1.0, %v6318
        %v6320 = vrcp.pop %v6238
        %v6321 = vmul.f32 1.0, %v6320
        %v6322 = vrcp.pop %v6239
        %v6323 = vmul.f32 1.0, %v6322
        %v6324 = vrcp.pop %v6240
        %v6325 = vmul.f32 1.0, %v6324
        %v6326 = vrcp.pop %v6241
        %v6327 = vmul.f32 1.0, %v6326
        %v6328 = vrcp.pop %v6242
        %v6329 = vmul.f32 1.0, %v6328
        %v6330 = vrcp.pop %v6243
        %v6331 = vmul.f32 1.0, %v6330
        %v6332 = vrcp.pop %v6244
        %v6333 = vmul.f32 1.0, %v6332
        %v6334 = vrcp.pop %v6245
        %v6335 = vmul.f32 1.0, %v6334
        %v6336 = vrcp.pop %v6246
        %v6337 = vmul.f32 1.0, %v6336
        %v6338 = vrcp.pop %v6247
        %v6339 = vmul.f32 1.0, %v6338
        %v6340 = vrcp.pop %v6248
        %v6341 = vmul.f32 1.0, %v6340
        %v6342 = vrcp.pop %v6249
        %v6343 = vmul.f32 1.0, %v6342
        %v6344 = vrcp.pop %v6250
        %v6345 = vmul.f32 1.0, %v6344
        %v6346 = vrcp.pop %v6251
        %v6347 = vmul.f32 1.0, %v6346
        %v6348 = vrcp.pop %v6252
        %v6349 = vmul.f32 1.0, %v6348
        %v6350 = vrcp.pop %v6253
        %v6351 = vmul.f32 1.0, %v6350
        %v6352 = vrcp.pop %v6254
        %v6353 = vmul.f32 1.0, %v6352
        %v6354 = vrcp.pop %v6255
        %v6355 = vmul.f32 1.0, %v6354
        %v6356 = vrcp.pop %v6256
        %v6357 = vmul.f32 1.0, %v6356
        %v6358 = vrcp.pop %v6257
        %v6359 = vmul.f32 1.0, %v6358
        %v6360 = vrcp.pop %v6258
        %v6361 = vmul.f32 1.0, %v6360
        %v6362 = vrcp.pop %v6259
        %v6363 = vmul.f32 1.0, %v6362
        %v6364 = vrcp.pop %v6260
        %v6365 = vmul.f32 1.0, %v6364
        %v6366 = vrcp.pop %v6261
        %v6367 = vmul.f32 1.0, %v6366
        %v6368 = vrcp.pop %v6262
        %v6369 = vmul.f32 1.0, %v6368
        %v6370 = vrcp.pop %v6263
        %v6371 = vmul.f32 1.0, %v6370
        %v6372 = vrcp.pop %v6264
        %v6373 = vmul.f32 1.0, %v6372
        %v6374 = vrcp.pop %v6265
        %v6375 = vmul.f32 1.0, %v6374
        %v6376 = vrcp.pop %v6266
        %v6377 = vmul.f32 1.0, %v6376
        %v6378 = vrcp.pop %v6267
        %v6379 = vmul.f32 1.0, %v6378
        %v6380 = vrcp.pop %v6268
        %v6381 = vmul.f32 1.0, %v6380
        %v6382 = vrcp.pop %v6269
        %v6383 = vmul.f32 1.0, %v6382
        %v6384 = vrcp.pop %v6270
        %v6385 = vmul.f32 1.0, %v6384
        %v6386 = vrcp.pop %v6271
        %v6387 = vmul.f32 1.0, %v6386
        %v6388 = vrcp.pop %v6272
        %v6389 = vmul.f32 1.0, %v6388
        %v6390 = vrcp.pop %v6273
        %v6391 = vmul.f32 1.0, %v6390
        %v6392 = vrcp.pop %v6274
        %v6393 = vmul.f32 1.0, %v6392
        %v6394 = vrcp.pop %v6275
        %v6395 = vmul.f32 1.0, %v6394
        %v6396 = vrcp.pop %v6276
        %v6397 = vmul.f32 1.0, %v6396
        %v6398 = vrcp.pop %v6277
        %v6399 = vmul.f32 1.0, %v6398
        %v6400 = vrcp.pop %v6278
        %v6401 = vmul.f32 1.0, %v6400
        %v6402 = vrcp.pop %v6279
        %v6403 = vmul.f32 1.0, %v6402
        %v6404 = vrcp.pop %v6280
        %v6405 = vmul.f32 1.0, %v6404
        %v6406 = vrcp.pop %v6281
        %v6407 = vmul.f32 1.0, %v6406
        %v6408 = vrcp.pop %v6282
        %v6409 = vmul.f32 1.0, %v6408
        %v6410 = vrcp.pop %v6283
        %v6411 = vmul.f32 1.0, %v6410
        %v6412 = vsel %vm6156, %v6285, %v4812
        %v6413 = vsel %vm6157, %v6287, %v4813
        %v6414 = vsel %vm6158, %v6289, %v4814
        %v6415 = vsel %vm6159, %v6291, %v4815
        %v6416 = vsel %vm6160, %v6293, %v4816
        %v6417 = vsel %vm6161, %v6295, %v4817
        %v6418 = vsel %vm6162, %v6297, %v4818
        %v6419 = vsel %vm6163, %v6299, %v4819
        %v6420 = vsel %vm6164, %v6301, %v4820
        %v6421 = vsel %vm6165, %v6303, %v4821
        %v6422 = vsel %vm6166, %v6305, %v4822
        %v6423 = vsel %vm6167, %v6307, %v4823
        %v6424 = vsel %vm6168, %v6309, %v4824
        %v6425 = vsel %vm6169, %v6311, %v4825
        %v6426 = vsel %vm6170, %v6313, %v4826
        %v6427 = vsel %vm6171, %v6315, %v4827
        %v6428 = vsel %vm6172, %v6317, %v4828
        %v6429 = vsel %vm6173, %v6319, %v4829
        %v6430 = vsel %vm6174, %v6321, %v4830
        %v6431 = vsel %vm6175, %v6323, %v4831
        %v6432 = vsel %vm6176, %v6325, %v4832
        %v6433 = vsel %vm6177, %v6327, %v4833
        %v6434 = vsel %vm6178, %v6329, %v4834
        %v6435 = vsel %vm6179, %v6331, %v4835
        %v6436 = vsel %vm6180, %v6333, %v4836
        %v6437 = vsel %vm6181, %v6335, %v4837
        %v6438 = vsel %vm6182, %v6337, %v4838
        %v6439 = vsel %vm6183, %v6339, %v4839
        %v6440 = vsel %vm6184, %v6341, %v4840
        %v6441 = vsel %vm6185, %v6343, %v4841
        %v6442 = vsel %vm6186, %v6345, %v4842
        %v6443 = vsel %vm6187, %v6347, %v4843
        %v6444 = vsel %vm6188, %v6349, %v4844
        %v6445 = vsel %vm6189, %v6351, %v4845
        %v6446 = vsel %vm6190, %v6353, %v4846
        %v6447 = vsel %vm6191, %v6355, %v4847
        %v6448 = vsel %vm6192, %v6357, %v4848
        %v6449 = vsel %vm6193, %v6359, %v4849
        %v6450 = vsel %vm6194, %v6361, %v4850
        %v6451 = vsel %vm6195, %v6363, %v4851
        %v6452 = vsel %vm6196, %v6365, %v4852
        %v6453 = vsel %vm6197, %v6367, %v4853
        %v6454 = vsel %vm6198, %v6369, %v4854
        %v6455 = vsel %vm6199, %v6371, %v4855
        %v6456 = vsel %vm6200, %v6373, %v4856
        %v6457 = vsel %vm6201, %v6375, %v4857
        %v6458 = vsel %vm6202, %v6377, %v4858
        %v6459 = vsel %vm6203, %v6379, %v4859
        %v6460 = vsel %vm6204, %v6381, %v4860
        %v6461 = vsel %vm6205, %v6383, %v4861
        %v6462 = vsel %vm6206, %v6385, %v4862
        %v6463 = vsel %vm6207, %v6387, %v4863
        %v6464 = vsel %vm6208, %v6389, %v4864
        %v6465 = vsel %vm6209, %v6391, %v4865
        %v6466 = vsel %vm6210, %v6393, %v4866
        %v6467 = vsel %vm6211, %v6395, %v4867
        %v6468 = vsel %vm6212, %v6397, %v4868
        %v6469 = vsel %vm6213, %v6399, %v4869
        %v6470 = vsel %vm6214, %v6401, %v4870
        %v6471 = vsel %vm6215, %v6403, %v4871
        %v6472 = vsel %vm6216, %v6405, %v4872
        %v6473 = vsel %vm6217, %v6407, %v4873
        %v6474 = vsel %vm6218, %v6409, %v4874
        %v6475 = vsel %vm6219, %v6411, %v4875
        %v6476 = vadd.f32 %v4876, %v6285
        %v6477 = vadd.f32 %v4877, %v6287
        %v6478 = vadd.f32 %v4878, %v6289
        %v6479 = vadd.f32 %v4879, %v6291
        %v6480 = vadd.f32 %v4880, %v6293
        %v6481 = vadd.f32 %v4881, %v6295
        %v6482 = vadd.f32 %v4882, %v6297
        %v6483 = vadd.f32 %v4883, %v6299
        %v6484 = vadd.f32 %v4884, %v6301
        %v6485 = vadd.f32 %v4885, %v6303
        %v6486 = vadd.f32 %v4886, %v6305
        %v6487 = vadd.f32 %v4887, %v6307
        %v6488 = vadd.f32 %v4888, %v6309
        %v6489 = vadd.f32 %v4889, %v6311
        %v6490 = vadd.f32 %v4890, %v6313
        %v6491 = vadd.f32 %v4891, %v6315
        %v6492 = vadd.f32 %v4892, %v6317
        %v6493 = vadd.f32 %v4893, %v6319
        %v6494 = vadd.f32 %v4894, %v6321
        %v6495 = vadd.f32 %v4895, %v6323
        %v6496 = vadd.f32 %v4896, %v6325
        %v6497 = vadd.f32 %v4897, %v6327
        %v6498 = vadd.f32 %v4898, %v6329
        %v6499 = vadd.f32 %v4899, %v6331
        %v6500 = vadd.f32 %v4900, %v6333
        %v6501 = vadd.f32 %v4901, %v6335
        %v6502 = vadd.f32 %v4902, %v6337
        %v6503 = vadd.f32 %v4903, %v6339
        %v6504 = vadd.f32 %v4904, %v6341
        %v6505 = vadd.f32 %v4905, %v6343
        %v6506 = vadd.f32 %v4906, %v6345
        %v6507 = vadd.f32 %v4907, %v6347
        %v6508 = vadd.f32 %v4908, %v6349
        %v6509 = vadd.f32 %v4909, %v6351
        %v6510 = vadd.f32 %v4910, %v6353
        %v6511 = vadd.f32 %v4911, %v6355
        %v6512 = vadd.f32 %v4912, %v6357
        %v6513 = vadd.f32 %v4913, %v6359
        %v6514 = vadd.f32 %v4914, %v6361
        %v6515 = vadd.f32 %v4915, %v6363
        %v6516 = vadd.f32 %v4916, %v6365
        %v6517 = vadd.f32 %v4917, %v6367
        %v6518 = vadd.f32 %v4918, %v6369
        %v6519 = vadd.f32 %v4919, %v6371
        %v6520 = vadd.f32 %v4920, %v6373
        %v6521 = vadd.f32 %v4921, %v6375
        %v6522 = vadd.f32 %v4922, %v6377
        %v6523 = vadd.f32 %v4923, %v6379
        %v6524 = vadd.f32 %v4924, %v6381
        %v6525 = vadd.f32 %v4925, %v6383
        %v6526 = vadd.f32 %v4926, %v6385
        %v6527 = vadd.f32 %v4927, %v6387
        %v6528 = vadd.f32 %v4928, %v6389
        %v6529 = vadd.f32 %v4929, %v6391
        %v6530 = vadd.f32 %v4930, %v6393
        %v6531 = vadd.f32 %v4931, %v6395
        %v6532 = vadd.f32 %v4932, %v6397
        %v6533 = vadd.f32 %v4933, %v6399
        %v6534 = vadd.f32 %v4934, %v6401
        %v6535 = vadd.f32 %v4935, %v6403
        %v6536 = vadd.f32 %v4936, %v6405
        %v6537 = vadd.f32 %v4937, %v6407
        %v6538 = vadd.f32 %v4938, %v6409
        %v6539 = vadd.f32 %v4939, %v6411
        %v6540 = vrcp.pop %v6476
        %v6541 = vrcp.pop %v6477
        %v6542 = vrcp.pop %v6478
        %v6543 = vrcp.pop %v6479
        %v6544 = vrcp.pop %v6480
        %v6545 = vrcp.pop %v6481
        %v6546 = vrcp.pop %v6482
        %v6547 = vrcp.pop %v6483
        %v6548 = vrcp.pop %v6484
        %v6549 = vrcp.pop %v6485
        %v6550 = vrcp.pop %v6486
        %v6551 = vrcp.pop %v6487
        %v6552 = vrcp.pop %v6488
        %v6553 = vrcp.pop %v6489
        %v6554 = vrcp.pop %v6490
        %v6555 = vrcp.pop %v6491
        %v6556 = vrcp.pop %v6492
        %v6557 = vrcp.pop %v6493
        %v6558 = vrcp.pop %v6494
        %v6559 = vrcp.pop %v6495
        %v6560 = vrcp.pop %v6496
        %v6561 = vrcp.pop %v6497
        %v6562 = vrcp.pop %v6498
        %v6563 = vrcp.pop %v6499
        %v6564 = vrcp.pop %v6500
        %v6565 = vrcp.pop %v6501
        %v6566 = vrcp.pop %v6502
        %v6567 = vrcp.pop %v6503
        %v6568 = vrcp.pop %v6504
        %v6569 = vrcp.pop %v6505
        %v6570 = vrcp.pop %v6506
        %v6571 = vrcp.pop %v6507
        %v6572 = vrcp.pop %v6508
        %v6573 = vrcp.pop %v6509
        %v6574 = vrcp.pop %v6510
        %v6575 = vrcp.pop %v6511
        %v6576 = vrcp.pop %v6512
        %v6577 = vrcp.pop %v6513
        %v6578 = vrcp.pop %v6514
        %v6579 = vrcp.pop %v6515
        %v6580 = vrcp.pop %v6516
        %v6581 = vrcp.pop %v6517
        %v6582 = vrcp.pop %v6518
        %v6583 = vrcp.pop %v6519
        %v6584 = vrcp.pop %v6520
        %v6585 = vrcp.pop %v6521
        %v6586 = vrcp.pop %v6522
        %v6587 = vrcp.pop %v6523
        %v6588 = vrcp.pop %v6524
        %v6589 = vrcp.pop %v6525
        %v6590 = vrcp.pop %v6526
        %v6591 = vrcp.pop %v6527
        %v6592 = vrcp.pop %v6528
        %v6593 = vrcp.pop %v6529
        %v6594 = vrcp.pop %v6530
        %v6595 = vrcp.pop %v6531
        %v6596 = vrcp.pop %v6532
        %v6597 = vrcp.pop %v6533
        %v6598 = vrcp.pop %v6534
        %v6599 = vrcp.pop %v6535
        %v6600 = vrcp.pop %v6536
        %v6601 = vrcp.pop %v6537
        %v6602 = vrcp.pop %v6538
        %v6603 = vrcp.pop %v6539
        %v6604 = vmul.f32 %v6412, %v6540
        %v6605 = vmul.f32 %v6413, %v6541
        %v6606 = vmul.f32 %v6414, %v6542
        %v6607 = vmul.f32 %v6415, %v6543
        %v6608 = vmul.f32 %v6416, %v6544
        %v6609 = vmul.f32 %v6417, %v6545
        %v6610 = vmul.f32 %v6418, %v6546
        %v6611 = vmul.f32 %v6419, %v6547
        %v6612 = vmul.f32 %v6420, %v6548
        %v6613 = vmul.f32 %v6421, %v6549
        %v6614 = vmul.f32 %v6422, %v6550
        %v6615 = vmul.f32 %v6423, %v6551
        %v6616 = vmul.f32 %v6424, %v6552
        %v6617 = vmul.f32 %v6425, %v6553
        %v6618 = vmul.f32 %v6426, %v6554
        %v6619 = vmul.f32 %v6427, %v6555
        %v6620 = vmul.f32 %v6428, %v6556
        %v6621 = vmul.f32 %v6429, %v6557
        %v6622 = vmul.f32 %v6430, %v6558
        %v6623 = vmul.f32 %v6431, %v6559
        %v6624 = vmul.f32 %v6432, %v6560
        %v6625 = vmul.f32 %v6433, %v6561
        %v6626 = vmul.f32 %v6434, %v6562
        %v6627 = vmul.f32 %v6435, %v6563
        %v6628 = vmul.f32 %v6436, %v6564
        %v6629 = vmul.f32 %v6437, %v6565
        %v6630 = vmul.f32 %v6438, %v6566
        %v6631 = vmul.f32 %v6439, %v6567
        %v6632 = vmul.f32 %v6440, %v6568
        %v6633 = vmul.f32 %v6441, %v6569
        %v6634 = vmul.f32 %v6442, %v6570
        %v6635 = vmul.f32 %v6443, %v6571
        %v6636 = vmul.f32 %v6444, %v6572
        %v6637 = vmul.f32 %v6445, %v6573
        %v6638 = vmul.f32 %v6446, %v6574
        %v6639 = vmul.f32 %v6447, %v6575
        %v6640 = vmul.f32 %v6448, %v6576
        %v6641 = vmul.f32 %v6449, %v6577
        %v6642 = vmul.f32 %v6450, %v6578
        %v6643 = vmul.f32 %v6451, %v6579
        %v6644 = vmul.f32 %v6452, %v6580
        %v6645 = vmul.f32 %v6453, %v6581
        %v6646 = vmul.f32 %v6454, %v6582
        %v6647 = vmul.f32 %v6455, %v6583
        %v6648 = vmul.f32 %v6456, %v6584
        %v6649 = vmul.f32 %v6457, %v6585
        %v6650 = vmul.f32 %v6458, %v6586
        %v6651 = vmul.f32 %v6459, %v6587
        %v6652 = vmul.f32 %v6460, %v6588
        %v6653 = vmul.f32 %v6461, %v6589
        %v6654 = vmul.f32 %v6462, %v6590
        %v6655 = vmul.f32 %v6463, %v6591
        %v6656 = vmul.f32 %v6464, %v6592
        %v6657 = vmul.f32 %v6465, %v6593
        %v6658 = vmul.f32 %v6466, %v6594
        %v6659 = vmul.f32 %v6467, %v6595
        %v6660 = vmul.f32 %v6468, %v6596
        %v6661 = vmul.f32 %v6469, %v6597
        %v6662 = vmul.f32 %v6470, %v6598
        %v6663 = vmul.f32 %v6471, %v6599
        %v6664 = vmul.f32 %v6472, %v6600
        %v6665 = vmul.f32 %v6473, %v6601
        %v6666 = vmul.f32 %v6474, %v6602
        %v6667 = vmul.f32 %v6475, %v6603
        %v6668 = vpack.c.bf16 %v6605, %v6604
        %v6669 = vpack.c.bf16 %v6607, %v6606
        %v6670 = vpack.c.bf16 %v6609, %v6608
        %v6671 = vpack.c.bf16 %v6611, %v6610
        %v6672 = vpack.c.bf16 %v6613, %v6612
        %v6673 = vpack.c.bf16 %v6615, %v6614
        %v6674 = vpack.c.bf16 %v6617, %v6616
        %v6675 = vpack.c.bf16 %v6619, %v6618
        %v6676 = vpack.c.bf16 %v6621, %v6620
        %v6677 = vpack.c.bf16 %v6623, %v6622
        %v6678 = vpack.c.bf16 %v6625, %v6624
        %v6679 = vpack.c.bf16 %v6627, %v6626
        %v6680 = vpack.c.bf16 %v6629, %v6628
        %v6681 = vpack.c.bf16 %v6631, %v6630
        %v6682 = vpack.c.bf16 %v6633, %v6632
        %v6683 = vpack.c.bf16 %v6635, %v6634
        %v6684 = vpack.c.bf16 %v6637, %v6636
        %v6685 = vpack.c.bf16 %v6639, %v6638
        %v6686 = vpack.c.bf16 %v6641, %v6640
        %v6687 = vpack.c.bf16 %v6643, %v6642
        %v6688 = vpack.c.bf16 %v6645, %v6644
        %v6689 = vpack.c.bf16 %v6647, %v6646
        %v6690 = vpack.c.bf16 %v6649, %v6648
        %v6691 = vpack.c.bf16 %v6651, %v6650
        %v6692 = vpack.c.bf16 %v6653, %v6652
        %v6693 = vpack.c.bf16 %v6655, %v6654
        %v6694 = vpack.c.bf16 %v6657, %v6656
        %v6695 = vpack.c.bf16 %v6659, %v6658
        %v6696 = vpack.c.bf16 %v6661, %v6660
        %v6697 = vpack.c.bf16 %v6663, %v6662
        %v6698 = vpack.c.bf16 %v6665, %v6664
        %v6699 = vpack.c.bf16 %v6667, %v6666
        %v6700 = vld [vmem:[%s297] sm:$0xff]
        %v6701 = vld [vmem:[%s297 + $0x8] sm:$0xff]
        %v6702 = vld [vmem:[%s297 + $0x10] sm:$0xff]
        %v6703 = vld [vmem:[%s297 + $0x18] sm:$0xff]
        %v6704 = vld [vmem:[%s297 + $0x20] sm:$0xff]
        %v6705 = vld [vmem:[%s297 + $0x28] sm:$0xff]
        %v6706 = vld [vmem:[%s297 + $0x30] sm:$0xff]
        %v6707 = vld [vmem:[%s297 + $0x38] sm:$0xff]
        %v6708 = vld [vmem:[%s297 + $0x40] sm:$0xff]
        %v6709 = vld [vmem:[%s297 + $0x48] sm:$0xff]
        %v6710 = vld [vmem:[%s297 + $0x50] sm:$0xff]
        %v6711 = vld [vmem:[%s297 + $0x58] sm:$0xff]
        %v6712 = vld [vmem:[%s297 + $0x60] sm:$0xff]
        %v6713 = vld [vmem:[%s297 + $0x68] sm:$0xff]
        %v6714 = vld [vmem:[%s297 + $0x70] sm:$0xff]
        %v6715 = vld [vmem:[%s297 + $0x78] sm:$0xff]
        %v6716 = vld [vmem:[%s297 + $0x80] sm:$0xff]
        %v6717 = vld [vmem:[%s297 + $0x88] sm:$0xff]
        %v6718 = vld [vmem:[%s297 + $0x90] sm:$0xff]
        %v6719 = vld [vmem:[%s297 + $0x98] sm:$0xff]
        %v6720 = vld [vmem:[%s297 + $0xa0] sm:$0xff]
        %v6721 = vld [vmem:[%s297 + $0xa8] sm:$0xff]
        %v6722 = vld [vmem:[%s297 + $0xb0] sm:$0xff]
        %v6723 = vld [vmem:[%s297 + $0xb8] sm:$0xff]
        %v6724 = vld [vmem:[%s297 + $0xc0] sm:$0xff]
        %v6725 = vld [vmem:[%s297 + $0xc8] sm:$0xff]
        %v6726 = vld [vmem:[%s297 + $0xd0] sm:$0xff]
        %v6727 = vld [vmem:[%s297 + $0xd8] sm:$0xff]
        %v6728 = vld [vmem:[%s297 + $0xe0] sm:$0xff]
        %v6729 = vld [vmem:[%s297 + $0xe8] sm:$0xff]
        %v6730 = vld [vmem:[%s297 + $0xf0] sm:$0xff]
        %v6731 = vld [vmem:[%s297 + $0xf8] sm:$0xff]
        %v6732 = vld [vmem:[%s297 + $0x100] sm:$0xff]
        %v6733 = vld [vmem:[%s297 + $0x108] sm:$0xff]
        %v6734 = vld [vmem:[%s297 + $0x110] sm:$0xff]
        %v6735 = vld [vmem:[%s297 + $0x118] sm:$0xff]
        %v6736 = vld [vmem:[%s297 + $0x120] sm:$0xff]
        %v6737 = vld [vmem:[%s297 + $0x128] sm:$0xff]
        %v6738 = vld [vmem:[%s297 + $0x130] sm:$0xff]
        %v6739 = vld [vmem:[%s297 + $0x138] sm:$0xff]
        %v6740 = vld [vmem:[%s297 + $0x140] sm:$0xff]
        %v6741 = vld [vmem:[%s297 + $0x148] sm:$0xff]
        %v6742 = vld [vmem:[%s297 + $0x150] sm:$0xff]
        %v6743 = vld [vmem:[%s297 + $0x158] sm:$0xff]
        %v6744 = vld [vmem:[%s297 + $0x160] sm:$0xff]
        %v6745 = vld [vmem:[%s297 + $0x168] sm:$0xff]
        %v6746 = vld [vmem:[%s297 + $0x170] sm:$0xff]
        %v6747 = vld [vmem:[%s297 + $0x178] sm:$0xff]
        %v6748 = vld [vmem:[%s297 + $0x180] sm:$0xff]
        %v6749 = vld [vmem:[%s297 + $0x188] sm:$0xff]
        %v6750 = vld [vmem:[%s297 + $0x190] sm:$0xff]
        %v6751 = vld [vmem:[%s297 + $0x198] sm:$0xff]
        %v6752 = vld [vmem:[%s297 + $0x1a0] sm:$0xff]
        %v6753 = vld [vmem:[%s297 + $0x1a8] sm:$0xff]
        %v6754 = vld [vmem:[%s297 + $0x1b0] sm:$0xff]
        %v6755 = vld [vmem:[%s297 + $0x1b8] sm:$0xff]
        %v6756 = vld [vmem:[%s297 + $0x1c0] sm:$0xff]
        %v6757 = vld [vmem:[%s297 + $0x1c8] sm:$0xff]
        %v6758 = vld [vmem:[%s297 + $0x1d0] sm:$0xff]
        %v6759 = vld [vmem:[%s297 + $0x1d8] sm:$0xff]
        %v6760 = vld [vmem:[%s297 + $0x1e0] sm:$0xff]
        %v6761 = vld [vmem:[%s297 + $0x1e8] sm:$0xff]
        %v6762 = vld [vmem:[%s297 + $0x1f0] sm:$0xff]
        %v6763 = vld [vmem:[%s297 + $0x1f8] sm:$0xff]
        %v6764 = vpack.c.bf16 %v6701, %v6700
        %v6765 = vpack.c.bf16 %v6703, %v6702
        %v6766 = vpack.c.bf16 %v6705, %v6704
        %v6767 = vpack.c.bf16 %v6707, %v6706
        %v6768 = vpack.c.bf16 %v6709, %v6708
        %v6769 = vpack.c.bf16 %v6711, %v6710
        %v6770 = vpack.c.bf16 %v6713, %v6712
        %v6771 = vpack.c.bf16 %v6715, %v6714
        %v6772 = vpack.c.bf16 %v6717, %v6716
        %v6773 = vpack.c.bf16 %v6719, %v6718
        %v6774 = vpack.c.bf16 %v6721, %v6720
        %v6775 = vpack.c.bf16 %v6723, %v6722
        %v6776 = vpack.c.bf16 %v6725, %v6724
        %v6777 = vpack.c.bf16 %v6727, %v6726
        %v6778 = vpack.c.bf16 %v6729, %v6728
        %v6779 = vpack.c.bf16 %v6731, %v6730
        %v6780 = vpack.c.bf16 %v6733, %v6732
        %v6781 = vpack.c.bf16 %v6735, %v6734
        %v6782 = vpack.c.bf16 %v6737, %v6736
        %v6783 = vpack.c.bf16 %v6739, %v6738
        %v6784 = vpack.c.bf16 %v6741, %v6740
        %v6785 = vpack.c.bf16 %v6743, %v6742
        %v6786 = vpack.c.bf16 %v6745, %v6744
        %v6787 = vpack.c.bf16 %v6747, %v6746
        %v6788 = vpack.c.bf16 %v6749, %v6748
        %v6789 = vpack.c.bf16 %v6751, %v6750
        %v6790 = vpack.c.bf16 %v6753, %v6752
        %v6791 = vpack.c.bf16 %v6755, %v6754
        %v6792 = vpack.c.bf16 %v6757, %v6756
        %v6793 = vpack.c.bf16 %v6759, %v6758
        %v6794 = vpack.c.bf16 %v6761, %v6760
        %v6795 = vpack.c.bf16 %v6763, %v6762
        %v6796 = vlaneseq
        %v6797 = vshrl.u32 %v6796, 7
        %v6798 = vadd.s32 %v6797, 8
        %v6799 = vadd.s32 %v6797, 32
        %v6800 = vadd.s32 %v6798, 32
        %vm6801 = vcmp.eq.s32.totalorder %v1803, %v6799
        %vm6802 = vcmp.eq.s32.totalorder %v1803, %v6800
        %v6803 = vsel %vm6801, 1, 0
        %v6804 = vsel %vm6802, 1, 0
        %v6805 = vcvt.s32.f32 %v6803
        %v6806 = vcvt.s32.f32 %v6804
        %v6807 = vpack.c.bf16 %v6806, %v6805
        %vm6808 = vcmask 130048
        %v6810 = vsel %vm6808, %v6764, 0
        %v6813 = vsel %vm6808, %v6765, 0
        %v6816 = vsel %vm6808, %v6766, 0
        %v6819 = vsel %vm6808, %v6767, 0
        %v6822 = vsel %vm6808, %v6768, 0
        %v6825 = vsel %vm6808, %v6769, 0
        %v6828 = vsel %vm6808, %v6770, 0
        %v6831 = vsel %vm6808, %v6771, 0
        %v6834 = vsel %vm6808, %v6772, 0
        %v6837 = vsel %vm6808, %v6773, 0
        %v6840 = vsel %vm6808, %v6774, 0
        %v6843 = vsel %vm6808, %v6775, 0
        %v6846 = vsel %vm6808, %v6776, 0
        %v6849 = vsel %vm6808, %v6777, 0
        %v6852 = vsel %vm6808, %v6778, 0
        %v6855 = vsel %vm6808, %v6779, 0
        %v6858 = vsel %vm6808, %v6780, 0
        %v6861 = vsel %vm6808, %v6781, 0
        %v6864 = vsel %vm6808, %v6782, 0
        %v6867 = vsel %vm6808, %v6783, 0
        %v6870 = vsel %vm6808, %v6784, 0
        %v6873 = vsel %vm6808, %v6785, 0
        %v6876 = vsel %vm6808, %v6786, 0
        %v6879 = vsel %vm6808, %v6787, 0
        %v6882 = vsel %vm6808, %v6788, 0
        %v6885 = vsel %vm6808, %v6789, 0
        %v6888 = vsel %vm6808, %v6790, 0
        %v6891 = vsel %vm6808, %v6791, 0
        %v6894 = vsel %vm6808, %v6792, 0
        %v6897 = vsel %vm6808, %v6793, 0
        %v6900 = vsel %vm6808, %v6794, 0
        %v6903 = vsel %vm6808, %v6795, 0
        %6905 = vmatprep.subr.bf16.mxu0 0
        %6906 = vmatpush1.bf16.msra.mxu0 %v6807
        %6907 = vmatprep.subr.bf16.mxu0 0
        %6908 = vmatpush1.bf16.msra.mxu0 0
        %6909 = vmatprep.subr.bf16.mxu0 0
        %6910 = vmatpush1.bf16.msra.mxu0 0
        %6911 = vmatprep.subr.bf16.mxu0 0
        %6912 = vmatpush1.bf16.msra.mxu0 0
        %6913 = vmatprep.subr.bf16.mxu0 0
        %6914 = vmatpush1.bf16.msra.mxu0 0
        %6915 = vmatprep.subr.bf16.mxu0 0
        %6916 = vmatpush1.bf16.msra.mxu0 0
        %6917 = vmatprep.subr.bf16.mxu0 0
        %6918 = vmatpush1.bf16.msra.mxu0 0
        %6919 = vmatprep.subr.bf16.mxu0 0
        %6920 = vmatpush1.bf16.msra.mxu0 0
        %6921 = vmatprep.subr.bf16.mxu0 0
        %6922 = vmatpush1.bf16.msra.mxu0 0
        %6923 = vmatprep.subr.bf16.mxu0 0
        %6924 = vmatpush1.bf16.msra.mxu0 0
        %6925 = vmatprep.subr.bf16.mxu0 0
        %6926 = vmatpush1.bf16.msra.mxu0 0
        %6927 = vmatprep.subr.bf16.mxu0 0
        %6928 = vmatpush1.bf16.msra.mxu0 0
        %6929 = vmatprep.subr.bf16.mxu0 0
        %6930 = vmatpush1.bf16.msra.mxu0 0
        %6931 = vmatprep.subr.bf16.mxu0 0
        %6932 = vmatpush1.bf16.msra.mxu0 0
        %6933 = vmatprep.subr.bf16.mxu0 0
        %6934 = vmatpush1.bf16.msra.mxu0 0
        %6935 = vmatprep.subr.bf16.mxu0 0
        %6936 = vmatpush1.bf16.msra.mxu0 0
        %6937 = vmatprep.mubr.bf16.mxu0 0
        %6938 = vmatmul.mubr.bf16.gmra.mrb[0].mxu0 %v6810
        %v6939 = vpop.f32.mrb[0].mxu0
        %v6940 = vadd.f32 0.0, %v6939
        %v6941 = vpop.f32.mrb[0].mxu0
        %v6942 = vpop.f32.mrb[0].mxu0
        %v6943 = vadd.f32 0.0, %v6942
        %v6944 = vpop.f32.mrb[0].mxu0
        %6945 = vmatprep.mubr.bf16.mxu0 0
        %6946 = vmatmul.mubr.bf16.gmra.mrb[0].mxu0 %v6813
        %v6947 = vpop.f32.mrb[0].mxu0
        %v6948 = vadd.f32 0.0, %v6947
        %v6949 = vpop.f32.mrb[0].mxu0
        %v6950 = vpop.f32.mrb[0].mxu0
        %v6951 = vadd.f32 0.0, %v6950
        %v6952 = vpop.f32.mrb[0].mxu0
        %6953 = vmatprep.mubr.bf16.mxu0 0
        %6954 = vmatmul.mubr.bf16.gmra.mrb[0].mxu0 %v6816
        %v6955 = vpop.f32.mrb[0].mxu0
        %v6956 = vadd.f32 0.0, %v6955
        %v6957 = vpop.f32.mrb[0].mxu0
        %v6958 = vpop.f32.mrb[0].mxu0
        %v6959 = vadd.f32 0.0, %v6958
        %v6960 = vpop.f32.mrb[0].mxu0
        %6961 = vmatprep.mubr.bf16.mxu0 0
        %6962 = vmatmul.mubr.bf16.gmra.mrb[0].mxu0 %v6819
        %v6963 = vpop.f32.mrb[0].mxu0
        %v6964 = vadd.f32 0.0, %v6963
        %v6965 = vpop.f32.mrb[0].mxu0
        %v6966 = vpop.f32.mrb[0].mxu0
        %v6967 = vadd.f32 0.0, %v6966
        %v6968 = vpop.f32.mrb[0].mxu0
        %6969 = vmatprep.mubr.bf16.mxu0 0
        %6970 = vmatmul.mubr.bf16.gmra.mrb[0].mxu0 %v6822
        %v6971 = vpop.f32.mrb[0].mxu0
        %v6972 = vadd.f32 0.0, %v6971
        %v6973 = vpop.f32.mrb[0].mxu0
        %v6974 = vpop.f32.mrb[0].mxu0
        %v6975 = vadd.f32 0.0, %v6974
        %v6976 = vpop.f32.mrb[0].mxu0
        %6977 = vmatprep.mubr.bf16.mxu0 0
        %6978 = vmatmul.mubr.bf16.gmra.mrb[0].mxu0 %v6825
        %v6979 = vpop.f32.mrb[0].mxu0
        %v6980 = vadd.f32 0.0, %v6979
        %v6981 = vpop.f32.mrb[0].mxu0
        %v6982 = vpop.f32.mrb[0].mxu0
        %v6983 = vadd.f32 0.0, %v6982
        %v6984 = vpop.f32.mrb[0].mxu0
        %6985 = vmatprep.mubr.bf16.mxu0 0
        %6986 = vmatmul.mubr.bf16.gmra.mrb[0].mxu0 %v6828
        %v6987 = vpop.f32.mrb[0].mxu0
        %v6988 = vadd.f32 0.0, %v6987
        %v6989 = vpop.f32.mrb[0].mxu0
        %v6990 = vpop.f32.mrb[0].mxu0
        %v6991 = vadd.f32 0.0, %v6990
        %v6992 = vpop.f32.mrb[0].mxu0
        %6993 = vmatprep.mubr.bf16.mxu0 0
        %6994 = vmatmul.mubr.bf16.gmra.mrb[0].mxu0 %v6831
        %v6995 = vpop.f32.mrb[0].mxu0
        %v6996 = vadd.f32 0.0, %v6995
        %v6997 = vpop.f32.mrb[0].mxu0
        %v6998 = vpop.f32.mrb[0].mxu0
        %v6999 = vadd.f32 0.0, %v6998
        %v7000 = vpop.f32.mrb[0].mxu0
        %7001 = vmatprep.mubr.bf16.mxu0 0
        %7002 = vmatmul.mubr.bf16.gmra.mrb[0].mxu0 %v6834
        %v7003 = vpop.f32.mrb[0].mxu0
        %v7004 = vadd.f32 0.0, %v7003
        %v7005 = vpop.f32.mrb[0].mxu0
        %v7006 = vpop.f32.mrb[0].mxu0
        %v7007 = vadd.f32 0.0, %v7006
        %v7008 = vpop.f32.mrb[0].mxu0
        %7009 = vmatprep.mubr.bf16.mxu0 0
        %7010 = vmatmul.mubr.bf16.gmra.mrb[0].mxu0 %v6837
        %v7011 = vpop.f32.mrb[0].mxu0
        %v7012 = vadd.f32 0.0, %v7011
        %v7013 = vpop.f32.mrb[0].mxu0
        %v7014 = vpop.f32.mrb[0].mxu0
        %v7015 = vadd.f32 0.0, %v7014
        %v7016 = vpop.f32.mrb[0].mxu0
        %7017 = vmatprep.mubr.bf16.mxu0 0
        %7018 = vmatmul.mubr.bf16.gmra.mrb[0].mxu0 %v6840
        %v7019 = vpop.f32.mrb[0].mxu0
        %v7020 = vadd.f32 0.0, %v7019
        %v7021 = vpop.f32.mrb[0].mxu0
        %v7022 = vpop.f32.mrb[0].mxu0
        %v7023 = vadd.f32 0.0, %v7022
        %v7024 = vpop.f32.mrb[0].mxu0
        %7025 = vmatprep.mubr.bf16.mxu0 0
        %7026 = vmatmul.mubr.bf16.gmra.mrb[0].mxu0 %v6843
        %v7027 = vpop.f32.mrb[0].mxu0
        %v7028 = vadd.f32 0.0, %v7027
        %v7029 = vpop.f32.mrb[0].mxu0
        %v7030 = vpop.f32.mrb[0].mxu0
        %v7031 = vadd.f32 0.0, %v7030
        %v7032 = vpop.f32.mrb[0].mxu0
        %7033 = vmatprep.mubr.bf16.mxu0 0
        %7034 = vmatmul.mubr.bf16.gmra.mrb[0].mxu0 %v6846
        %v7035 = vpop.f32.mrb[0].mxu0
        %v7036 = vadd.f32 0.0, %v7035
        %v7037 = vpop.f32.mrb[0].mxu0
        %v7038 = vpop.f32.mrb[0].mxu0
        %v7039 = vadd.f32 0.0, %v7038
        %v7040 = vpop.f32.mrb[0].mxu0
        %7041 = vmatprep.mubr.bf16.mxu0 0
        %7042 = vmatmul.mubr.bf16.gmra.mrb[0].mxu0 %v6849
        %v7043 = vpop.f32.mrb[0].mxu0
        %v7044 = vadd.f32 0.0, %v7043
        %v7045 = vpop.f32.mrb[0].mxu0
        %v7046 = vpop.f32.mrb[0].mxu0
        %v7047 = vadd.f32 0.0, %v7046
        %v7048 = vpop.f32.mrb[0].mxu0
        %7049 = vmatprep.mubr.bf16.mxu0 0
        %7050 = vmatmul.mubr.bf16.gmra.mrb[0].mxu0 %v6852
        %v7051 = vpop.f32.mrb[0].mxu0
        %v7052 = vadd.f32 0.0, %v7051
        %v7053 = vpop.f32.mrb[0].mxu0
        %v7054 = vpop.f32.mrb[0].mxu0
        %v7055 = vadd.f32 0.0, %v7054
        %v7056 = vpop.f32.mrb[0].mxu0
        %7057 = vmatprep.mubr.bf16.mxu0 0
        %7058 = vmatmul.mubr.bf16.gmra.mrb[0].mxu0 %v6855
        %v7059 = vpop.f32.mrb[0].mxu0
        %v7060 = vadd.f32 0.0, %v7059
        %v7061 = vpop.f32.mrb[0].mxu0
        %v7062 = vpop.f32.mrb[0].mxu0
        %v7063 = vadd.f32 0.0, %v7062
        %v7064 = vpop.f32.mrb[0].mxu0
        %7065 = vmatprep.mubr.bf16.mxu0 0
        %7066 = vmatmul.mubr.bf16.gmra.mrb[0].mxu0 %v6858
        %v7067 = vpop.f32.mrb[0].mxu0
        %v7068 = vadd.f32 0.0, %v7067
        %v7069 = vpop.f32.mrb[0].mxu0
        %v7070 = vpop.f32.mrb[0].mxu0
        %v7071 = vadd.f32 0.0, %v7070
        %v7072 = vpop.f32.mrb[0].mxu0
        %7073 = vmatprep.mubr.bf16.mxu0 0
        %7074 = vmatmul.mubr.bf16.gmra.mrb[0].mxu0 %v6861
        %v7075 = vpop.f32.mrb[0].mxu0
        %v7076 = vadd.f32 0.0, %v7075
        %v7077 = vpop.f32.mrb[0].mxu0
        %v7078 = vpop.f32.mrb[0].mxu0
        %v7079 = vadd.f32 0.0, %v7078
        %v7080 = vpop.f32.mrb[0].mxu0
        %7081 = vmatprep.mubr.bf16.mxu0 0
        %7082 = vmatmul.mubr.bf16.gmra.mrb[0].mxu0 %v6864
        %v7083 = vpop.f32.mrb[0].mxu0
        %v7084 = vadd.f32 0.0, %v7083
        %v7085 = vpop.f32.mrb[0].mxu0
        %v7086 = vpop.f32.mrb[0].mxu0
        %v7087 = vadd.f32 0.0, %v7086
        %v7088 = vpop.f32.mrb[0].mxu0
        %7089 = vmatprep.mubr.bf16.mxu0 0
        %7090 = vmatmul.mubr.bf16.gmra.mrb[0].mxu0 %v6867
        %v7091 = vpop.f32.mrb[0].mxu0
        %v7092 = vadd.f32 0.0, %v7091
        %v7093 = vpop.f32.mrb[0].mxu0
        %v7094 = vpop.f32.mrb[0].mxu0
        %v7095 = vadd.f32 0.0, %v7094
        %v7096 = vpop.f32.mrb[0].mxu0
        %7097 = vmatprep.mubr.bf16.mxu0 0
        %7098 = vmatmul.mubr.bf16.gmra.mrb[0].mxu0 %v6870
        %v7099 = vpop.f32.mrb[0].mxu0
        %v7100 = vadd.f32 0.0, %v7099
        %v7101 = vpop.f32.mrb[0].mxu0
        %v7102 = vpop.f32.mrb[0].mxu0
        %v7103 = vadd.f32 0.0, %v7102
        %v7104 = vpop.f32.mrb[0].mxu0
        %7105 = vmatprep.mubr.bf16.mxu0 0
        %7106 = vmatmul.mubr.bf16.gmra.mrb[0].mxu0 %v6873
        %v7107 = vpop.f32.mrb[0].mxu0
        %v7108 = vadd.f32 0.0, %v7107
        %v7109 = vpop.f32.mrb[0].mxu0
        %v7110 = vpop.f32.mrb[0].mxu0
        %v7111 = vadd.f32 0.0, %v7110
        %v7112 = vpop.f32.mrb[0].mxu0
        %7113 = vmatprep.mubr.bf16.mxu0 0
        %7114 = vmatmul.mubr.bf16.gmra.mrb[0].mxu0 %v6876
        %v7115 = vpop.f32.mrb[0].mxu0
        %v7116 = vadd.f32 0.0, %v7115
        %v7117 = vpop.f32.mrb[0].mxu0
        %v7118 = vpop.f32.mrb[0].mxu0
        %v7119 = vadd.f32 0.0, %v7118
        %v7120 = vpop.f32.mrb[0].mxu0
        %7121 = vmatprep.mubr.bf16.mxu0 0
        %7122 = vmatmul.mubr.bf16.gmra.mrb[0].mxu0 %v6879
        %v7123 = vpop.f32.mrb[0].mxu0
        %v7124 = vadd.f32 0.0, %v7123
        %v7125 = vpop.f32.mrb[0].mxu0
        %v7126 = vpop.f32.mrb[0].mxu0
        %v7127 = vadd.f32 0.0, %v7126
        %v7128 = vpop.f32.mrb[0].mxu0
        %7129 = vmatprep.mubr.bf16.mxu0 0
        %7130 = vmatmul.mubr.bf16.gmra.mrb[0].mxu0 %v6882
        %v7131 = vpop.f32.mrb[0].mxu0
        %v7132 = vadd.f32 0.0, %v7131
        %v7133 = vpop.f32.mrb[0].mxu0
        %v7134 = vpop.f32.mrb[0].mxu0
        %v7135 = vadd.f32 0.0, %v7134
        %v7136 = vpop.f32.mrb[0].mxu0
        %7137 = vmatprep.mubr.bf16.mxu0 0
        %7138 = vmatmul.mubr.bf16.gmra.mrb[0].mxu0 %v6885
        %v7139 = vpop.f32.mrb[0].mxu0
        %v7140 = vadd.f32 0.0, %v7139
        %v7141 = vpop.f32.mrb[0].mxu0
        %v7142 = vpop.f32.mrb[0].mxu0
        %v7143 = vadd.f32 0.0, %v7142
        %v7144 = vpop.f32.mrb[0].mxu0
        %7145 = vmatprep.mubr.bf16.mxu0 0
        %7146 = vmatmul.mubr.bf16.gmra.mrb[0].mxu0 %v6888
        %v7147 = vpop.f32.mrb[0].mxu0
        %v7148 = vadd.f32 0.0, %v7147
        %v7149 = vpop.f32.mrb[0].mxu0
        %v7150 = vpop.f32.mrb[0].mxu0
        %v7151 = vadd.f32 0.0, %v7150
        %v7152 = vpop.f32.mrb[0].mxu0
        %7153 = vmatprep.mubr.bf16.mxu0 0
        %7154 = vmatmul.mubr.bf16.gmra.mrb[0].mxu0 %v6891
        %v7155 = vpop.f32.mrb[0].mxu0
        %v7156 = vadd.f32 0.0, %v7155
        %v7157 = vpop.f32.mrb[0].mxu0
        %v7158 = vpop.f32.mrb[0].mxu0
        %v7159 = vadd.f32 0.0, %v7158
        %v7160 = vpop.f32.mrb[0].mxu0
        %7161 = vmatprep.mubr.bf16.mxu0 0
        %7162 = vmatmul.mubr.bf16.gmra.mrb[0].mxu0 %v6894
        %v7163 = vpop.f32.mrb[0].mxu0
        %v7164 = vadd.f32 0.0, %v7163
        %v7165 = vpop.f32.mrb[0].mxu0
        %v7166 = vpop.f32.mrb[0].mxu0
        %v7167 = vadd.f32 0.0, %v7166
        %v7168 = vpop.f32.mrb[0].mxu0
        %7169 = vmatprep.mubr.bf16.mxu0 0
        %7170 = vmatmul.mubr.bf16.gmra.mrb[0].mxu0 %v6897
        %v7171 = vpop.f32.mrb[0].mxu0
        %v7172 = vadd.f32 0.0, %v7171
        %v7173 = vpop.f32.mrb[0].mxu0
        %v7174 = vpop.f32.mrb[0].mxu0
        %v7175 = vadd.f32 0.0, %v7174
        %v7176 = vpop.f32.mrb[0].mxu0
        %7177 = vmatprep.mubr.bf16.mxu0 0
        %7178 = vmatmul.mubr.bf16.gmra.mrb[0].mxu0 %v6900
        %v7179 = vpop.f32.mrb[0].mxu0
        %v7180 = vadd.f32 0.0, %v7179
        %v7181 = vpop.f32.mrb[0].mxu0
        %v7182 = vpop.f32.mrb[0].mxu0
        %v7183 = vadd.f32 0.0, %v7182
        %v7184 = vpop.f32.mrb[0].mxu0
        %7185 = vmatprep.mubr.bf16.mxu0 0
        %7186 = vmatmul.mubr.bf16.gmra.mrb[0].mxu0 %v6903
        %v7187 = vpop.f32.mrb[0].mxu0
        %v7188 = vadd.f32 0.0, %v7187
        %v7189 = vpop.f32.mrb[0].mxu0
        %v7190 = vpop.f32.mrb[0].mxu0
        %v7191 = vadd.f32 0.0, %v7190
        %v7192 = vpop.f32.mrb[0].mxu0
        %7193 = vdwg.mxu0
        %v7210 = vunpack.c.l.b16 %v366
        %v7211 = vunpack.c.l.b16 %v367
        %v7212 = vunpack.c.l.b16 %v368
        %v7213 = vunpack.c.l.b16 %v369
        %v7214 = vunpack.c.l.b16 %v370
        %v7215 = vunpack.c.l.b16 %v371
        %v7216 = vunpack.c.l.b16 %v372
        %v7217 = vunpack.c.l.b16 %v373
        %v7218 = vunpack.c.l.b16 %v374
        %v7219 = vunpack.c.l.b16 %v375
        %v7220 = vunpack.c.l.b16 %v376
        %v7221 = vunpack.c.l.b16 %v377
        %v7222 = vunpack.c.l.b16 %v378
        %v7223 = vunpack.c.l.b16 %v379
        %v7224 = vunpack.c.l.b16 %v380
        %v7225 = vunpack.c.l.b16 %v381
        %v7226 = vpack.c.b16 %v7211, %v7210
        %v7227 = vpack.c.b16 %v7213, %v7212
        %v7228 = vpack.c.b16 %v7215, %v7214
        %v7229 = vpack.c.b16 %v7217, %v7216
        %v7230 = vpack.c.b16 %v7219, %v7218
        %v7231 = vpack.c.b16 %v7221, %v7220
        %v7232 = vpack.c.b16 %v7223, %v7222
        %v7233 = vpack.c.b16 %v7225, %v7224
        %7242 = vmatprep.subr.bf16.mxu0 0
        %7243 = vmatpush1.bf16.msra.mxu0 %v7226
        %7244 = vmatprep.subr.bf16.mxu0 0
        %7245 = vmatpush1.bf16.msra.mxu0 %v7227
        %7246 = vmatprep.subr.bf16.mxu0 0
        %7247 = vmatpush1.bf16.msra.mxu0 %v7228
        %7248 = vmatprep.subr.bf16.mxu0 0
        %7249 = vmatpush1.bf16.msra.mxu0 %v7229
        %7250 = vmatprep.subr.bf16.mxu0 0
        %7251 = vmatpush1.bf16.msra.mxu0 %v7230
        %7252 = vmatprep.subr.bf16.mxu0 0
        %7253 = vmatpush1.bf16.msra.mxu0 %v7231
        %7254 = vmatprep.subr.bf16.mxu0 0
        %7255 = vmatpush1.bf16.msra.mxu0 %v7232
        %7256 = vmatprep.subr.bf16.mxu0 0
        %7257 = vmatpush1.bf16.msra.mxu0 %v7233
        %7258 = vmatprep.subr.bf16.mxu0 0
        %7259 = vmatpush1.bf16.msra.mxu0 0
        %7260 = vmatprep.subr.bf16.mxu0 0
        %7261 = vmatpush1.bf16.msra.mxu0 0
        %7262 = vmatprep.subr.bf16.mxu0 0
        %7263 = vmatpush1.bf16.msra.mxu0 0
        %7264 = vmatprep.subr.bf16.mxu0 0
        %7265 = vmatpush1.bf16.msra.mxu0 0
        %7266 = vmatprep.subr.bf16.mxu0 0
        %7267 = vmatpush1.bf16.msra.mxu0 0
        %7268 = vmatprep.subr.bf16.mxu0 0
        %7269 = vmatpush1.bf16.msra.mxu0 0
        %7270 = vmatprep.subr.bf16.mxu0 0
        %7271 = vmatpush1.bf16.msra.mxu0 0
        %7272 = vmatprep.subr.bf16.mxu0 0
        %7273 = vmatpush1.bf16.msra.mxu0 0
        %7274 = vmatprep.mubr.bf16.mxu0 0
        %7275 = vmatmul.mubr.bf16.gmra.mrb[0].mxu0 %v6668
        %v7276 = vpop.f32.mrb[0].mxu0
        %v7277 = vadd.f32 %v6940, %v7276
        %v7278 = vpop.f32.mrb[0].mxu0
        %v7279 = vpop.f32.mrb[0].mxu0
        %v7280 = vadd.f32 %v6943, %v7279
        %v7281 = vpop.f32.mrb[0].mxu0
        %7282 = vmatprep.mubr.bf16.mxu0 0
        %7283 = vmatmul.mubr.bf16.gmra.mrb[0].mxu0 %v6669
        %v7284 = vpop.f32.mrb[0].mxu0
        %v7285 = vadd.f32 %v6948, %v7284
        %v7286 = vpop.f32.mrb[0].mxu0
        %v7287 = vpop.f32.mrb[0].mxu0
        %v7288 = vadd.f32 %v6951, %v7287
        %v7289 = vpop.f32.mrb[0].mxu0
        %7290 = vmatprep.mubr.bf16.mxu0 0
        %7291 = vmatmul.mubr.bf16.gmra.mrb[0].mxu0 %v6670
        %v7292 = vpop.f32.mrb[0].mxu0
        %v7293 = vadd.f32 %v6956, %v7292
        %v7294 = vpop.f32.mrb[0].mxu0
        %v7295 = vpop.f32.mrb[0].mxu0
        %v7296 = vadd.f32 %v6959, %v7295
        %v7297 = vpop.f32.mrb[0].mxu0
        %7298 = vmatprep.mubr.bf16.mxu0 0
        %7299 = vmatmul.mubr.bf16.gmra.mrb[0].mxu0 %v6671
        %v7300 = vpop.f32.mrb[0].mxu0
        %v7301 = vadd.f32 %v6964, %v7300
        %v7302 = vpop.f32.mrb[0].mxu0
        %v7303 = vpop.f32.mrb[0].mxu0
        %v7304 = vadd.f32 %v6967, %v7303
        %v7305 = vpop.f32.mrb[0].mxu0
        %7306 = vmatprep.mubr.bf16.mxu0 0
        %7307 = vmatmul.mubr.bf16.gmra.mrb[0].mxu0 %v6672
        %v7308 = vpop.f32.mrb[0].mxu0
        %v7309 = vadd.f32 %v6972, %v7308
        %v7310 = vpop.f32.mrb[0].mxu0
        %v7311 = vpop.f32.mrb[0].mxu0
        %v7312 = vadd.f32 %v6975, %v7311
        %v7313 = vpop.f32.mrb[0].mxu0
        %7314 = vmatprep.mubr.bf16.mxu0 0
        %7315 = vmatmul.mubr.bf16.gmra.mrb[0].mxu0 %v6673
        %v7316 = vpop.f32.mrb[0].mxu0
        %v7317 = vadd.f32 %v6980, %v7316
        %v7318 = vpop.f32.mrb[0].mxu0
        %v7319 = vpop.f32.mrb[0].mxu0
        %v7320 = vadd.f32 %v6983, %v7319
        %v7321 = vpop.f32.mrb[0].mxu0
        %7322 = vmatprep.mubr.bf16.mxu0 0
        %7323 = vmatmul.mubr.bf16.gmra.mrb[0].mxu0 %v6674
        %v7324 = vpop.f32.mrb[0].mxu0
        %v7325 = vadd.f32 %v6988, %v7324
        %v7326 = vpop.f32.mrb[0].mxu0
        %v7327 = vpop.f32.mrb[0].mxu0
        %v7328 = vadd.f32 %v6991, %v7327
        %v7329 = vpop.f32.mrb[0].mxu0
        %7330 = vmatprep.mubr.bf16.mxu0 0
        %7331 = vmatmul.mubr.bf16.gmra.mrb[0].mxu0 %v6675
        %v7332 = vpop.f32.mrb[0].mxu0
        %v7333 = vadd.f32 %v6996, %v7332
        %v7334 = vpop.f32.mrb[0].mxu0
        %v7335 = vpop.f32.mrb[0].mxu0
        %v7336 = vadd.f32 %v6999, %v7335
        %v7337 = vpop.f32.mrb[0].mxu0
        %7338 = vmatprep.mubr.bf16.mxu0 0
        %7339 = vmatmul.mubr.bf16.gmra.mrb[0].mxu0 %v6676
        %v7340 = vpop.f32.mrb[0].mxu0
        %v7341 = vadd.f32 %v7004, %v7340
        %v7342 = vpop.f32.mrb[0].mxu0
        %v7343 = vpop.f32.mrb[0].mxu0
        %v7344 = vadd.f32 %v7007, %v7343
        %v7345 = vpop.f32.mrb[0].mxu0
        %7346 = vmatprep.mubr.bf16.mxu0 0
        %7347 = vmatmul.mubr.bf16.gmra.mrb[0].mxu0 %v6677
        %v7348 = vpop.f32.mrb[0].mxu0
        %v7349 = vadd.f32 %v7012, %v7348
        %v7350 = vpop.f32.mrb[0].mxu0
        %v7351 = vpop.f32.mrb[0].mxu0
        %v7352 = vadd.f32 %v7015, %v7351
        %v7353 = vpop.f32.mrb[0].mxu0
        %7354 = vmatprep.mubr.bf16.mxu0 0
        %7355 = vmatmul.mubr.bf16.gmra.mrb[0].mxu0 %v6678
        %v7356 = vpop.f32.mrb[0].mxu0
        %v7357 = vadd.f32 %v7020, %v7356
        %v7358 = vpop.f32.mrb[0].mxu0
        %v7359 = vpop.f32.mrb[0].mxu0
        %v7360 = vadd.f32 %v7023, %v7359
        %v7361 = vpop.f32.mrb[0].mxu0
        %7362 = vmatprep.mubr.bf16.mxu0 0
        %7363 = vmatmul.mubr.bf16.gmra.mrb[0].mxu0 %v6679
        %v7364 = vpop.f32.mrb[0].mxu0
        %v7365 = vadd.f32 %v7028, %v7364
        %v7366 = vpop.f32.mrb[0].mxu0
        %v7367 = vpop.f32.mrb[0].mxu0
        %v7368 = vadd.f32 %v7031, %v7367
        %v7369 = vpop.f32.mrb[0].mxu0
        %7370 = vmatprep.mubr.bf16.mxu0 0
        %7371 = vmatmul.mubr.bf16.gmra.mrb[0].mxu0 %v6680
        %v7372 = vpop.f32.mrb[0].mxu0
        %v7373 = vadd.f32 %v7036, %v7372
        %v7374 = vpop.f32.mrb[0].mxu0
        %v7375 = vpop.f32.mrb[0].mxu0
        %v7376 = vadd.f32 %v7039, %v7375
        %v7377 = vpop.f32.mrb[0].mxu0
        %7378 = vmatprep.mubr.bf16.mxu0 0
        %7379 = vmatmul.mubr.bf16.gmra.mrb[0].mxu0 %v6681
        %v7380 = vpop.f32.mrb[0].mxu0
        %v7381 = vadd.f32 %v7044, %v7380
        %v7382 = vpop.f32.mrb[0].mxu0
        %v7383 = vpop.f32.mrb[0].mxu0
        %v7384 = vadd.f32 %v7047, %v7383
        %v7385 = vpop.f32.mrb[0].mxu0
        %7386 = vmatprep.mubr.bf16.mxu0 0
        %7387 = vmatmul.mubr.bf16.gmra.mrb[0].mxu0 %v6682
        %v7388 = vpop.f32.mrb[0].mxu0
        %v7389 = vadd.f32 %v7052, %v7388
        %v7390 = vpop.f32.mrb[0].mxu0
        %v7391 = vpop.f32.mrb[0].mxu0
        %v7392 = vadd.f32 %v7055, %v7391
        %v7393 = vpop.f32.mrb[0].mxu0
        %7394 = vmatprep.mubr.bf16.mxu0 0
        %7395 = vmatmul.mubr.bf16.gmra.mrb[0].mxu0 %v6683
        %v7396 = vpop.f32.mrb[0].mxu0
        %v7397 = vadd.f32 %v7060, %v7396
        %v7398 = vpop.f32.mrb[0].mxu0
        %v7399 = vpop.f32.mrb[0].mxu0
        %v7400 = vadd.f32 %v7063, %v7399
        %v7401 = vpop.f32.mrb[0].mxu0
        %7402 = vmatprep.mubr.bf16.mxu0 0
        %7403 = vmatmul.mubr.bf16.gmra.mrb[0].mxu0 %v6684
        %v7404 = vpop.f32.mrb[0].mxu0
        %v7405 = vadd.f32 %v7068, %v7404
        %v7406 = vpop.f32.mrb[0].mxu0
        %v7407 = vpop.f32.mrb[0].mxu0
        %v7408 = vadd.f32 %v7071, %v7407
        %v7409 = vpop.f32.mrb[0].mxu0
        %7410 = vmatprep.mubr.bf16.mxu0 0
        %7411 = vmatmul.mubr.bf16.gmra.mrb[0].mxu0 %v6685
        %v7412 = vpop.f32.mrb[0].mxu0
        %v7413 = vadd.f32 %v7076, %v7412
        %v7414 = vpop.f32.mrb[0].mxu0
        %v7415 = vpop.f32.mrb[0].mxu0
        %v7416 = vadd.f32 %v7079, %v7415
        %v7417 = vpop.f32.mrb[0].mxu0
        %7418 = vmatprep.mubr.bf16.mxu0 0
        %7419 = vmatmul.mubr.bf16.gmra.mrb[0].mxu0 %v6686
        %v7420 = vpop.f32.mrb[0].mxu0
        %v7421 = vadd.f32 %v7084, %v7420
        %v7422 = vpop.f32.mrb[0].mxu0
        %v7423 = vpop.f32.mrb[0].mxu0
        %v7424 = vadd.f32 %v7087, %v7423
        %v7425 = vpop.f32.mrb[0].mxu0
        %7426 = vmatprep.mubr.bf16.mxu0 0
        %7427 = vmatmul.mubr.bf16.gmra.mrb[0].mxu0 %v6687
        %v7428 = vpop.f32.mrb[0].mxu0
        %v7429 = vadd.f32 %v7092, %v7428
        %v7430 = vpop.f32.mrb[0].mxu0
        %v7431 = vpop.f32.mrb[0].mxu0
        %v7432 = vadd.f32 %v7095, %v7431
        %v7433 = vpop.f32.mrb[0].mxu0
        %7434 = vmatprep.mubr.bf16.mxu0 0
        %7435 = vmatmul.mubr.bf16.gmra.mrb[0].mxu0 %v6688
        %v7436 = vpop.f32.mrb[0].mxu0
        %v7437 = vadd.f32 %v7100, %v7436
        %v7438 = vpop.f32.mrb[0].mxu0
        %v7439 = vpop.f32.mrb[0].mxu0
        %v7440 = vadd.f32 %v7103, %v7439
        %v7441 = vpop.f32.mrb[0].mxu0
        %7442 = vmatprep.mubr.bf16.mxu0 0
        %7443 = vmatmul.mubr.bf16.gmra.mrb[0].mxu0 %v6689
        %v7444 = vpop.f32.mrb[0].mxu0
        %v7445 = vadd.f32 %v7108, %v7444
        %v7446 = vpop.f32.mrb[0].mxu0
        %v7447 = vpop.f32.mrb[0].mxu0
        %v7448 = vadd.f32 %v7111, %v7447
        %v7449 = vpop.f32.mrb[0].mxu0
        %7450 = vmatprep.mubr.bf16.mxu0 0
        %7451 = vmatmul.mubr.bf16.gmra.mrb[0].mxu0 %v6690
        %v7452 = vpop.f32.mrb[0].mxu0
        %v7453 = vadd.f32 %v7116, %v7452
        %v7454 = vpop.f32.mrb[0].mxu0
        %v7455 = vpop.f32.mrb[0].mxu0
        %v7456 = vadd.f32 %v7119, %v7455
        %v7457 = vpop.f32.mrb[0].mxu0
        %7458 = vmatprep.mubr.bf16.mxu0 0
        %7459 = vmatmul.mubr.bf16.gmra.mrb[0].mxu0 %v6691
        %v7460 = vpop.f32.mrb[0].mxu0
        %v7461 = vadd.f32 %v7124, %v7460
        %v7462 = vpop.f32.mrb[0].mxu0
        %v7463 = vpop.f32.mrb[0].mxu0
        %v7464 = vadd.f32 %v7127, %v7463
        %v7465 = vpop.f32.mrb[0].mxu0
        %7466 = vmatprep.mubr.bf16.mxu0 0
        %7467 = vmatmul.mubr.bf16.gmra.mrb[0].mxu0 %v6692
        %v7468 = vpop.f32.mrb[0].mxu0
        %v7469 = vadd.f32 %v7132, %v7468
        %v7470 = vpop.f32.mrb[0].mxu0
        %v7471 = vpop.f32.mrb[0].mxu0
        %v7472 = vadd.f32 %v7135, %v7471
        %v7473 = vpop.f32.mrb[0].mxu0
        %7474 = vmatprep.mubr.bf16.mxu0 0
        %7475 = vmatmul.mubr.bf16.gmra.mrb[0].mxu0 %v6693
        %v7476 = vpop.f32.mrb[0].mxu0
        %v7477 = vadd.f32 %v7140, %v7476
        %v7478 = vpop.f32.mrb[0].mxu0
        %v7479 = vpop.f32.mrb[0].mxu0
        %v7480 = vadd.f32 %v7143, %v7479
        %v7481 = vpop.f32.mrb[0].mxu0
        %7482 = vmatprep.mubr.bf16.mxu0 0
        %7483 = vmatmul.mubr.bf16.gmra.mrb[0].mxu0 %v6694
        %v7484 = vpop.f32.mrb[0].mxu0
        %v7485 = vadd.f32 %v7148, %v7484
        %v7486 = vpop.f32.mrb[0].mxu0
        %v7487 = vpop.f32.mrb[0].mxu0
        %v7488 = vadd.f32 %v7151, %v7487
        %v7489 = vpop.f32.mrb[0].mxu0
        %7490 = vmatprep.mubr.bf16.mxu0 0
        %7491 = vmatmul.mubr.bf16.gmra.mrb[0].mxu0 %v6695
        %v7492 = vpop.f32.mrb[0].mxu0
        %v7493 = vadd.f32 %v7156, %v7492
        %v7494 = vpop.f32.mrb[0].mxu0
        %v7495 = vpop.f32.mrb[0].mxu0
        %v7496 = vadd.f32 %v7159, %v7495
        %v7497 = vpop.f32.mrb[0].mxu0
        %7498 = vmatprep.mubr.bf16.mxu0 0
        %7499 = vmatmul.mubr.bf16.gmra.mrb[0].mxu0 %v6696
        %v7500 = vpop.f32.mrb[0].mxu0
        %v7501 = vadd.f32 %v7164, %v7500
        %v7502 = vpop.f32.mrb[0].mxu0
        %v7503 = vpop.f32.mrb[0].mxu0
        %v7504 = vadd.f32 %v7167, %v7503
        %v7505 = vpop.f32.mrb[0].mxu0
        %7506 = vmatprep.mubr.bf16.mxu0 0
        %7507 = vmatmul.mubr.bf16.gmra.mrb[0].mxu0 %v6697
        %v7508 = vpop.f32.mrb[0].mxu0
        %v7509 = vadd.f32 %v7172, %v7508
        %v7510 = vpop.f32.mrb[0].mxu0
        %v7511 = vpop.f32.mrb[0].mxu0
        %v7512 = vadd.f32 %v7175, %v7511
        %v7513 = vpop.f32.mrb[0].mxu0
        %7514 = vmatprep.mubr.bf16.mxu0 0
        %7515 = vmatmul.mubr.bf16.gmra.mrb[0].mxu0 %v6698
        %v7516 = vpop.f32.mrb[0].mxu0
        %v7517 = vadd.f32 %v7180, %v7516
        %v7518 = vpop.f32.mrb[0].mxu0
        %v7519 = vpop.f32.mrb[0].mxu0
        %v7520 = vadd.f32 %v7183, %v7519
        %v7521 = vpop.f32.mrb[0].mxu0
        %7522 = vmatprep.mubr.bf16.mxu0 0
        %7523 = vmatmul.mubr.bf16.gmra.mrb[0].mxu0 %v6699
        %v7524 = vpop.f32.mrb[0].mxu0
        %v7525 = vadd.f32 %v7188, %v7524
        %v7526 = vpop.f32.mrb[0].mxu0
        %v7527 = vpop.f32.mrb[0].mxu0
        %v7528 = vadd.f32 %v7191, %v7527
        %v7529 = vpop.f32.mrb[0].mxu0
        %7530 = vdwg.mxu0
        %v7531 = vpack.c.bf16 %v7280, %v7277
        %v7532 = vpack.c.bf16 %v7288, %v7285
        %v7533 = vpack.c.bf16 %v7296, %v7293
        %v7534 = vpack.c.bf16 %v7304, %v7301
        %v7535 = vpack.c.bf16 %v7312, %v7309
        %v7536 = vpack.c.bf16 %v7320, %v7317
        %v7537 = vpack.c.bf16 %v7328, %v7325
        %v7538 = vpack.c.bf16 %v7336, %v7333
        %v7539 = vpack.c.bf16 %v7344, %v7341
        %v7540 = vpack.c.bf16 %v7352, %v7349
        %v7541 = vpack.c.bf16 %v7360, %v7357
        %v7542 = vpack.c.bf16 %v7368, %v7365
        %v7543 = vpack.c.bf16 %v7376, %v7373
        %v7544 = vpack.c.bf16 %v7384, %v7381
        %v7545 = vpack.c.bf16 %v7392, %v7389
        %v7546 = vpack.c.bf16 %v7400, %v7397
        %v7547 = vpack.c.bf16 %v7408, %v7405
        %v7548 = vpack.c.bf16 %v7416, %v7413
        %v7549 = vpack.c.bf16 %v7424, %v7421
        %v7550 = vpack.c.bf16 %v7432, %v7429
        %v7551 = vpack.c.bf16 %v7440, %v7437
        %v7552 = vpack.c.bf16 %v7448, %v7445
        %v7553 = vpack.c.bf16 %v7456, %v7453
        %v7554 = vpack.c.bf16 %v7464, %v7461
        %v7555 = vpack.c.bf16 %v7472, %v7469
        %v7556 = vpack.c.bf16 %v7480, %v7477
        %v7557 = vpack.c.bf16 %v7488, %v7485
        %v7558 = vpack.c.bf16 %v7496, %v7493
        %v7559 = vpack.c.bf16 %v7504, %v7501
        %v7560 = vpack.c.bf16 %v7512, %v7509
        %v7561 = vpack.c.bf16 %v7520, %v7517
        %v7562 = vpack.c.bf16 %v7528, %v7525
        %v7595 = vunpack.c.l.b16 %v7531
        %v7596 = vunpack.c.h.b16 %v7531
        %v7597 = vunpack.c.l.b16 %v7532
        %v7598 = vunpack.c.h.b16 %v7532
        %v7599 = vunpack.c.l.b16 %v7533
        %v7600 = vunpack.c.h.b16 %v7533
        %v7601 = vunpack.c.l.b16 %v7534
        %v7602 = vunpack.c.h.b16 %v7534
        %v7603 = vunpack.c.l.b16 %v7535
        %v7604 = vunpack.c.h.b16 %v7535
        %v7605 = vunpack.c.l.b16 %v7536
        %v7606 = vunpack.c.h.b16 %v7536
        %v7607 = vunpack.c.l.b16 %v7537
        %v7608 = vunpack.c.h.b16 %v7537
        %v7609 = vunpack.c.l.b16 %v7538
        %v7610 = vunpack.c.h.b16 %v7538
        %v7611 = vunpack.c.l.b16 %v7539
        %v7612 = vunpack.c.h.b16 %v7539
        %v7613 = vunpack.c.l.b16 %v7540
        %v7614 = vunpack.c.h.b16 %v7540
        %v7615 = vunpack.c.l.b16 %v7541
        %v7616 = vunpack.c.h.b16 %v7541
        %v7617 = vunpack.c.l.b16 %v7542
        %v7618 = vunpack.c.h.b16 %v7542
        %v7619 = vunpack.c.l.b16 %v7543
        %v7620 = vunpack.c.h.b16 %v7543
        %v7621 = vunpack.c.l.b16 %v7544
        %v7622 = vunpack.c.h.b16 %v7544
        %v7623 = vunpack.c.l.b16 %v7545
        %v7624 = vunpack.c.h.b16 %v7545
        %v7625 = vunpack.c.l.b16 %v7546
        %v7626 = vunpack.c.h.b16 %v7546
        %v7627 = vunpack.c.l.b16 %v7547
        %v7628 = vunpack.c.h.b16 %v7547
        %v7629 = vunpack.c.l.b16 %v7548
        %v7630 = vunpack.c.h.b16 %v7548
        %v7631 = vunpack.c.l.b16 %v7549
        %v7632 = vunpack.c.h.b16 %v7549
        %v7633 = vunpack.c.l.b16 %v7550
        %v7634 = vunpack.c.h.b16 %v7550
        %v7635 = vunpack.c.l.b16 %v7551
        %v7636 = vunpack.c.h.b16 %v7551
        %v7637 = vunpack.c.l.b16 %v7552
        %v7638 = vunpack.c.h.b16 %v7552
        %v7639 = vunpack.c.l.b16 %v7553
        %v7640 = vunpack.c.h.b16 %v7553
        %v7641 = vunpack.c.l.b16 %v7554
        %v7642 = vunpack.c.h.b16 %v7554
        %v7643 = vunpack.c.l.b16 %v7555
        %v7644 = vunpack.c.h.b16 %v7555
        %v7645 = vunpack.c.l.b16 %v7556
        %v7646 = vunpack.c.h.b16 %v7556
        %v7647 = vunpack.c.l.b16 %v7557
        %v7648 = vunpack.c.h.b16 %v7557
        %v7649 = vunpack.c.l.b16 %v7558
        %v7650 = vunpack.c.h.b16 %v7558
        %v7651 = vunpack.c.l.b16 %v7559
        %v7652 = vunpack.c.h.b16 %v7559
        %v7653 = vunpack.c.l.b16 %v7560
        %v7654 = vunpack.c.h.b16 %v7560
        %v7655 = vunpack.c.l.b16 %v7561
        %v7656 = vunpack.c.h.b16 %v7561
        %v7657 = vunpack.c.l.b16 %v7562
        %v7658 = vunpack.c.h.b16 %v7562
        %v7659 = vpack.c.b16 %v7595, %v7595
        %v7660 = vpack.c.b16 %v7596, %v7596
        %v7661 = vpack.c.b16 %v7597, %v7597
        %v7662 = vpack.c.b16 %v7598, %v7598
        %v7663 = vpack.c.b16 %v7599, %v7599
        %v7664 = vpack.c.b16 %v7600, %v7600
        %v7665 = vpack.c.b16 %v7601, %v7601
        %v7666 = vpack.c.b16 %v7602, %v7602
        %v7667 = vpack.c.b16 %v7603, %v7603
        %v7668 = vpack.c.b16 %v7604, %v7604
        %v7669 = vpack.c.b16 %v7605, %v7605
        %v7670 = vpack.c.b16 %v7606, %v7606
        %v7671 = vpack.c.b16 %v7607, %v7607
        %v7672 = vpack.c.b16 %v7608, %v7608
        %v7673 = vpack.c.b16 %v7609, %v7609
        %v7674 = vpack.c.b16 %v7610, %v7610
        %v7675 = vpack.c.b16 %v7611, %v7611
        %v7676 = vpack.c.b16 %v7612, %v7612
        %v7677 = vpack.c.b16 %v7613, %v7613
        %v7678 = vpack.c.b16 %v7614, %v7614
        %v7679 = vpack.c.b16 %v7615, %v7615
        %v7680 = vpack.c.b16 %v7616, %v7616
        %v7681 = vpack.c.b16 %v7617, %v7617
        %v7682 = vpack.c.b16 %v7618, %v7618
        %v7683 = vpack.c.b16 %v7619, %v7619
        %v7684 = vpack.c.b16 %v7620, %v7620
        %v7685 = vpack.c.b16 %v7621, %v7621
        %v7686 = vpack.c.b16 %v7622, %v7622
        %v7687 = vpack.c.b16 %v7623, %v7623
        %v7688 = vpack.c.b16 %v7624, %v7624
        %v7689 = vpack.c.b16 %v7625, %v7625
        %v7690 = vpack.c.b16 %v7626, %v7626
        %v7691 = vpack.c.b16 %v7627, %v7627
        %v7692 = vpack.c.b16 %v7628, %v7628
        %v7693 = vpack.c.b16 %v7629, %v7629
        %v7694 = vpack.c.b16 %v7630, %v7630
        %v7695 = vpack.c.b16 %v7631, %v7631
        %v7696 = vpack.c.b16 %v7632, %v7632
        %v7697 = vpack.c.b16 %v7633, %v7633
        %v7698 = vpack.c.b16 %v7634, %v7634
        %v7699 = vpack.c.b16 %v7635, %v7635
        %v7700 = vpack.c.b16 %v7636, %v7636
        %v7701 = vpack.c.b16 %v7637, %v7637
        %v7702 = vpack.c.b16 %v7638, %v7638
        %v7703 = vpack.c.b16 %v7639, %v7639
        %v7704 = vpack.c.b16 %v7640, %v7640
        %v7705 = vpack.c.b16 %v7641, %v7641
        %v7706 = vpack.c.b16 %v7642, %v7642
        %v7707 = vpack.c.b16 %v7643, %v7643
        %v7708 = vpack.c.b16 %v7644, %v7644
        %v7709 = vpack.c.b16 %v7645, %v7645
        %v7710 = vpack.c.b16 %v7646, %v7646
        %v7711 = vpack.c.b16 %v7647, %v7647
        %v7712 = vpack.c.b16 %v7648, %v7648
        %v7713 = vpack.c.b16 %v7649, %v7649
        %v7714 = vpack.c.b16 %v7650, %v7650
        %v7715 = vpack.c.b16 %v7651, %v7651
        %v7716 = vpack.c.b16 %v7652, %v7652
        %v7717 = vpack.c.b16 %v7653, %v7653
        %v7718 = vpack.c.b16 %v7654, %v7654
        %v7719 = vpack.c.b16 %v7655, %v7655
        %v7720 = vpack.c.b16 %v7656, %v7656
        %v7721 = vpack.c.b16 %v7657, %v7657
        %v7722 = vpack.c.b16 %v7658, %v7658
        %7787 = vst [vmem:[%s269] sm:$0xf] %v7659
        %7788 = vst [vmem:[%s269 + $0x4] sm:$0xf] %v7660
        %7789 = vst [vmem:[%s269 + $0x8] sm:$0xf] %v7661
        %7790 = vst [vmem:[%s269 + $0xc] sm:$0xf] %v7662
        %7791 = vst [vmem:[%s269 + $0x10] sm:$0xf] %v7663
        %7792 = vst [vmem:[%s269 + $0x14] sm:$0xf] %v7664
        %7793 = vst [vmem:[%s269 + $0x18] sm:$0xf] %v7665
        %7794 = vst [vmem:[%s269 + $0x1c] sm:$0xf] %v7666
        %7795 = vst [vmem:[%s269 + $0x20] sm:$0xf] %v7667
        %7796 = vst [vmem:[%s269 + $0x24] sm:$0xf] %v7668
        %7797 = vst [vmem:[%s269 + $0x28] sm:$0xf] %v7669
        %7798 = vst [vmem:[%s269 + $0x2c] sm:$0xf] %v7670
        %7799 = vst [vmem:[%s269 + $0x30] sm:$0xf] %v7671
        %7800 = vst [vmem:[%s269 + $0x34] sm:$0xf] %v7672
        %7801 = vst [vmem:[%s269 + $0x38] sm:$0xf] %v7673
        %7802 = vst [vmem:[%s269 + $0x3c] sm:$0xf] %v7674
        %7803 = vst [vmem:[%s269 + $0x40] sm:$0xf] %v7675
        %7804 = vst [vmem:[%s269 + $0x44] sm:$0xf] %v7676
        %7805 = vst [vmem:[%s269 + $0x48] sm:$0xf] %v7677
        %7806 = vst [vmem:[%s269 + $0x4c] sm:$0xf] %v7678
        %7807 = vst [vmem:[%s269 + $0x50] sm:$0xf] %v7679
        %7808 = vst [vmem:[%s269 + $0x54] sm:$0xf] %v7680
        %7809 = vst [vmem:[%s269 + $0x58] sm:$0xf] %v7681
        %7810 = vst [vmem:[%s269 + $0x5c] sm:$0xf] %v7682
        %7811 = vst [vmem:[%s269 + $0x60] sm:$0xf] %v7683
        %7812 = vst [vmem:[%s269 + $0x64] sm:$0xf] %v7684
        %7813 = vst [vmem:[%s269 + $0x68] sm:$0xf] %v7685
        %7814 = vst [vmem:[%s269 + $0x6c] sm:$0xf] %v7686
        %7815 = vst [vmem:[%s269 + $0x70] sm:$0xf] %v7687
        %7816 = vst [vmem:[%s269 + $0x74] sm:$0xf] %v7688
        %7817 = vst [vmem:[%s269 + $0x78] sm:$0xf] %v7689
        %7818 = vst [vmem:[%s269 + $0x7c] sm:$0xf] %v7690
        %7819 = vst [vmem:[%s269 + $0x80] sm:$0xf] %v7691
        %7820 = vst [vmem:[%s269 + $0x84] sm:$0xf] %v7692
        %7821 = vst [vmem:[%s269 + $0x88] sm:$0xf] %v7693
        %7822 = vst [vmem:[%s269 + $0x8c] sm:$0xf] %v7694
        %7823 = vst [vmem:[%s269 + $0x90] sm:$0xf] %v7695
        %7824 = vst [vmem:[%s269 + $0x94] sm:$0xf] %v7696
        %7825 = vst [vmem:[%s269 + $0x98] sm:$0xf] %v7697
        %7826 = vst [vmem:[%s269 + $0x9c] sm:$0xf] %v7698
        %7827 = vst [vmem:[%s269 + $0xa0] sm:$0xf] %v7699
        %7828 = vst [vmem:[%s269 + $0xa4] sm:$0xf] %v7700
        %7829 = vst [vmem:[%s269 + $0xa8] sm:$0xf] %v7701
        %7830 = vst [vmem:[%s269 + $0xac] sm:$0xf] %v7702
        %7831 = vst [vmem:[%s269 + $0xb0] sm:$0xf] %v7703
        %7832 = vst [vmem:[%s269 + $0xb4] sm:$0xf] %v7704
        %7833 = vst [vmem:[%s269 + $0xb8] sm:$0xf] %v7705
        %7834 = vst [vmem:[%s269 + $0xbc] sm:$0xf] %v7706
        %7835 = vst [vmem:[%s269 + $0xc0] sm:$0xf] %v7707
        %7836 = vst [vmem:[%s269 + $0xc4] sm:$0xf] %v7708
        %7837 = vst [vmem:[%s269 + $0xc8] sm:$0xf] %v7709
        %7838 = vst [vmem:[%s269 + $0xcc] sm:$0xf] %v7710
        %7839 = vst [vmem:[%s269 + $0xd0] sm:$0xf] %v7711
        %7840 = vst [vmem:[%s269 + $0xd4] sm:$0xf] %v7712
        %7841 = vst [vmem:[%s269 + $0xd8] sm:$0xf] %v7713
        %7842 = vst [vmem:[%s269 + $0xdc] sm:$0xf] %v7714
        %7843 = vst [vmem:[%s269 + $0xe0] sm:$0xf] %v7715
        %7844 = vst [vmem:[%s269 + $0xe4] sm:$0xf] %v7716
        %7845 = vst [vmem:[%s269 + $0xe8] sm:$0xf] %v7717
        %7846 = vst [vmem:[%s269 + $0xec] sm:$0xf] %v7718
        %7847 = vst [vmem:[%s269 + $0xf0] sm:$0xf] %v7719
        %7848 = vst [vmem:[%s269 + $0xf4] sm:$0xf] %v7720
        %7849 = vst [vmem:[%s269 + $0xf8] sm:$0xf] %v7721
        %7850 = vst [vmem:[%s269 + $0xfc] sm:$0xf] %v7722
        %s7851 = sand.u32 %s148, 1
        %s7852 = scalar_lea.sflag [#allocation3], %s7851
        %s7853 = sand.u32 %s148, 1
        %s7854 = smul.addr %s7853, 256
        %s7855 = scalar_lea.vmem [#allocation2], %s7854
        // Predicated region
        $region37: #{tpu_custom_call.1} parent=35 // pred_check
          %p7856 = pneg %p158
        $region38: #{tpu_custom_call.1} parent=35 // pred_check_branch
          %7858 = sbr.rel (%p7856) target = $region40
        $region39: #{tpu_custom_call.1} parent=35 // pred_region
          %s7859 = smul.u32 64, %s23
          %s7861 = ssub.s32 4096, 4096
          %7862 = vsyncadd %s7852, %s7861
          %s7863 = smul.addr %s22, 64
          %s7864 = sadd.s32 %s7859, %s7863
          %s7865 = smul.addr %s7864, 64
          %s7866 = scalar_lea.hbm %s4, %s7865
          %s7867 = sshll.u32 %s7855, 4
          %s7868 = int_to_ptr.vmem [resolvable:$true] %s7867
          %7873 = dma.vmem_to_hbm [thread:$0]  %s7868, 4096, %s7866, %s7852, 64, 64, 4
        $region40: #{tpu_custom_call.1} parent=35 // pred_fallthru
          _
      $region36: #{tpu_custom_call.1} parent=5 // pred_fallthru
        _
      %p7874 = scmp.le.s32.totalorder 2, %s13
      // Predicated region
      $region41: #{tpu_custom_call.1} parent=5 // pred_check
        %p7875 = pneg %p7874
      $region42: #{tpu_custom_call.1} parent=5 // pred_check_branch
        %7877 = sbr.rel (%p7875) target = $region44
      $region43: #{tpu_custom_call.1} parent=5 // pred_region
        %s7878 = ssub.s32 %s13, 2
        // Predicated region
        $region45: #{tpu_custom_call.1} parent=43 // pred_check
          %p7879 = pneg %p164
        $region46: #{tpu_custom_call.1} parent=43 // pred_check_branch
          %7881 = sbr.rel (%p7879) target = $region48
        $region47: #{tpu_custom_call.1} parent=43 // pred_region
          %s7882 = sand.u32 %s149, 1
          %s7883 = scalar_lea.sflag [#allocation3], %s7882
          %s7884 = sand.u32 %s149, 1
          %s7885 = smul.addr %s7884, 256
          %s7886 = scalar_lea.vmem [#allocation2], %s7885
          %7887 = dma.done %s7883, 4096
        $region48: #{tpu_custom_call.1} parent=43 // pred_fallthru
          _
      $region44: #{tpu_custom_call.1} parent=5 // pred_fallthru
        _
    $region6: #{tpu_custom_call.1} parent=1 // loop_footer
      %s17 = sadd.s32 1, %s13
    $region7: #{tpu_custom_call.1} parent=1 // loop_footer_branch
      %12 = sbr.rel target = $region3
    $region8: #{tpu_custom_call.1} parent=1 // loop_exit
      _
    %7888 = vsyncpa [#allocation3], 1
    %s7889 = scalar_lea.sflag [#allocation3], 1
    %7890 = vsyncpa %s7889, 1

</llo_original>
